<compile_context>
chip_gen: v5e
topology: v5e:2x2
jax: 0.10.0
libtpu: 0.0.40
codegen_flags: <defaults>
</compile_context>

<pallas_src>
import jax
import jax.numpy as jnp
import numpy as np
from jax.experimental import pallas as pl
from jax.experimental.pallas import tpu as pltpu

EPS = 1e-6


def _matching_kernel(s1f_ref, s1b_ref, s2f_ref, s2b_ref, s2flat_ref, w_ref, out_ref):
    """Fused fwd+bwd multi-perspective matching for one tile of s1 states.

    s1f_ref/s1b_ref: [b, T,  d]    tile of s1 forward / backward halves
    s2f_ref/s2b_ref: [b, n2, d]    full s2 forward / backward halves (grid-invariant)
    s2flat_ref:      [n2, d]       s2_for.reshape(n2*b, d)[:n2]   (flat-index bug rows)
    w_ref:           [8, d, P]     stacked perspective weights w1..w8 (pre-transposed)
    out_ref:         [T, b*8*P]    lane-dense output slab; lane order = (batch, strategy):
                                   [full_f | full_b | maxpool_f | maxpool_b |
                                    mean_att_f | mean_att_b | max_att_f(w7) | mean_att_b(w8)]
    """
    b, T, d = s1f_ref.shape
    n2 = s2f_ref.shape[1]
    P = w_ref.shape[2]
    f32 = jnp.float32

    w = w_ref[...]                     # [8, d, P]
    w2 = w * w                         # squared weights, hoisted once

    def rsqrt_c(x):
        # clamp(min=EPS) + sqrt + divide of the reference  ->  rsqrt on the EUP.
        return jax.lax.rsqrt(jnp.maximum(x, EPS))

    def pdot(x, k):
        # x: [b, M, d] -> [b, M, P] as ONE (b*M, d) @ (d, P) MXU matmul.
        # (batch folded into rows; b-batched N=8 dots would leave the MXU ~empty)
        m = x.shape[1]
        return jnp.dot(x.reshape(b * m, d), w2[k],
                       preferred_element_type=f32).reshape(b, m, P)

    def cos_persp(x, y, k, xsq):
        # multi-perspective cosine of (x * w_k) vs (y * w_k) over d -> [b, T, P]
        return (pdot(x * y, k)
                * rsqrt_c(pdot(xsq, k))
                * rsqrt_c(pdot(y * y, k)))

    def direction(s1d, s2d, k_full, k_pool, k_mean):
        """full / max-pooling / mean-attentive matching for one direction."""
        s1sq = s1d * s1d
        s2sq = s2d * s2d

        # unweighted cosine matrix [b, T, n2]: numerator on the MXU, norms via rsqrt
        num_c = jnp.einsum('btd,bnd->btn', s1d, s2d, preferred_element_type=f32)
        inv1 = rsqrt_c(jnp.sum(s1sq, axis=-1, keepdims=True))          # [b, T, 1]
        inv2 = rsqrt_c(jnp.sum(s2sq, axis=-1))                         # [b, n2]
        cosm = num_c * inv1 * inv2[:, None, :]

        # --- full matching: every s1 state vs the last s2 state ---
        s2_last = s2d[:, n2 - 1:n2, :]                                  # [b, 1, d]
        full = (pdot(s1d * s2_last, k_full)
                * rsqrt_c(pdot(s1sq, k_full))
                * rsqrt_c(pdot(s2_last * s2_last, k_full)))             # [b, T, P]

        # --- max-pooling matching: one stacked (b, T*P, d) x (b, n2, d) contraction ---
        w_pd = jnp.transpose(w2[k_pool])                                # [P, d] (squared)
        s1w = (s1d[:, :, None, :] * w_pd[None, None, :, :]).reshape(b, T * P, d)
        num_p = jnp.einsum('bqd,bnd->bqn', s1w, s2d,
                           preferred_element_type=f32).reshape(b, T, P, n2)
        inv_x = rsqrt_c(pdot(s1sq, k_pool))                             # [b, T, P]
        inv_y = rsqrt_c(pdot(s2sq, k_pool))                             # [b, n2, P]
        cos_p = num_p * inv_x[..., None] * jnp.transpose(inv_y, (0, 2, 1))[:, None]
        maxp = jnp.max(cos_p, axis=-1)                                  # [b, T, P]

        # --- mean attentive matching ---
        wsum = jnp.einsum('btn,bnd->btd', cosm, s2d,
                          preferred_element_type=f32)                   # [b, T, d]
        attn_mean = wsum * (1.0 / (jnp.sum(cosm, axis=-1, keepdims=True) + EPS))
        mean = cos_persp(s1d, attn_mean, k_mean, s1sq)

        return full, maxp, mean, cosm, attn_mean, s1sq

    s1f = s1f_ref[...]
    s1b = s1b_ref[...]
    s2f = s2f_ref[...]
    s2b = s2b_ref[...]

    # forward half: full=w1, max-pool=w3, mean-attentive=w5 (+ max-attentive=w7 below)
    full_f, maxp_f, mean_f, cosm_f, _, s1f_sq = direction(s1f, s2f, 0, 2, 4)
    # backward half: full=w2, max-pool=w4, mean-attentive=w6 (+ mean-attentive=w8 below,
    # reproducing the original module's max_attentive_matching_back bug)
    full_b, maxp_b, mean_b, _, attn_mean_b, s1b_sq = direction(s1b, s2b, 1, 3, 5)

    # forward 4th strategy: max-attentive with w7 via a one-hot gather against the
    # flat-indexed s2 rows (first-max tie-break matches torch/jnp argmax).
    m = jnp.max(cosm_f, axis=-1, keepdims=True)                         # [b, T, 1]
    kio = jax.lax.broadcasted_iota(jnp.int32, cosm_f.shape, 2)          # [b, T, n2]
    idx = jnp.min(jnp.where(cosm_f >= m, kio, n2), axis=-1, keepdims=True)
    onehot = (kio == idx).astype(f32)                                   # [b, T, n2]
    attn_max = jnp.dot(onehot.reshape(b * T, n2), s2flat_ref[...],
                       preferred_element_type=f32).reshape(b, T, d)
    maxatt_f = cos_persp(s1f, attn_max, 6, s1f_sq)

    # backward 4th strategy: mean attentive again, with w8 (original module bug).
    meanatt_b = cos_persp(s1b, attn_mean_b, 7, s1b_sq)

    # Single lane-dense store: concat strategies, then fold batch into the lane axis so
    # the HBM slab is [T, b*8P]  (out[t, i*8P + c] = cat[i, t, c]).
    out_cat = jnp.concatenate(
        (full_f, full_b, maxp_f, maxp_b, mean_f, mean_b, maxatt_f, meanatt_b),
        axis=-1)                                                        # [b, T, 8P]
    out_ref[...] = jnp.concatenate([out_cat[i] for i in range(b)], axis=-1)


def _vmem_plan():
    """Generation-aware (VMEM budget, n1-tile cap).

    v5e/v6e have 128 MiB physical VMEM -> large budget/tiles; v7x has 64 MiB -> tighter.
    Falls back to a budget that is safe on every generation if the query fails.
    """
    budget, cap = 32 * 1024 * 1024, 128
    try:
        info = pltpu.get_tpu_info()
        phys = getattr(info, "vmem_capacity_bytes", None)
        if phys is not None:
            if phys >= 128 * 1024 * 1024:          # v5e / v6e
                budget, cap = 96 * 1024 * 1024, 512
            else:                                  # v7x-class (64 MiB, 2 TensorCores)
                budget, cap = 40 * 1024 * 1024, 128
    except Exception:
        pass
    return budget, cap


def _plan_n1(n1, cap):
    """Pad n1 to a multiple of 8 and pick a tile that (a) divides the padded length,
    (b) is a multiple of 8 within the VMEM-derived cap, and (c) gives >= 2 grid steps
    so both v7x TensorCores get work (harmless on single-TC v5e/v6e)."""
    n1p = max(16, -(-n1 // 8) * 8)
    tile = 8
    t = (min(cap, n1p // 2) // 8) * 8
    while t >= 8:
        if n1p % t == 0:
            tile = t
            break
        t -= 8
    return n1p, tile


def matching_layer(s1, s2, weights, embed_dim, perspective):
    """Pallas implementation of MatchingLayer.forward (the 'all' branch, as the module executes).

    s1: [n1, b, 2*d], s2: [n2, b, 2*d], weights: 8 x [P, d]  ->  [n1, b, 8*P]
    """
    d = embed_dim
    P = perspective
    n1, b, _ = s1.shape
    n2 = s2.shape[0]

    # Layout plumbing in the wrapper (free relative to the kernel): batch-major inputs,
    # pre-split fwd/bwd halves, and weights pre-transposed to [8, d, P] so every
    # in-kernel contraction is a clean (rows, d) @ (d, P) MXU matmul.
    s1f = jnp.transpose(s1[:, :, :d], (1, 0, 2))       # [b, n1, d]
    s1b = jnp.transpose(s1[:, :, d:], (1, 0, 2))
    s2f = jnp.transpose(s2[:, :, :d], (1, 0, 2))       # [b, n2, d]
    s2b = jnp.transpose(s2[:, :, d:], (1, 0, 2))
    # Reproduce the original max_attentive_vectors flat-index bug: argmax indices are in
    # [0, n2) but index s2_for.reshape(n2*b, d).
    s2flat = s2[:, :, :d].reshape(n2 * b, d)[:n2]
    w_stack = jnp.stack(weights, axis=0).transpose(0, 2, 1)   # [8, d, P]

    vmem_bytes, cap = _vmem_plan()
    n1p, tile = _plan_n1(n1, cap)
    if n1p != n1:
        pad = n1p - n1
        s1f = jnp.pad(s1f, ((0, 0), (0, pad), (0, 0)))
        s1b = jnp.pad(s1b, ((0, 0), (0, pad), (0, 0)))
    grid = (n1p // tile,)

    def build(single_buffer_invariants):
        # Grid-invariant blocks (s2 halves, flat rows, weights) don't need double
        # buffering; requesting a single buffer halves their VMEM footprint (matters
        # on v7x's 64 MiB at production sizes).
        inv_kw = ({"pipeline_mode": pl.Buffered(1)}
                  if single_buffer_invariants else {})
        return pl.pallas_call(
            _matching_kernel,
            out_shape=jax.ShapeDtypeStruct((n1p, b * 8 * P), jnp.float32),
            grid=grid,
            in_specs=[
                pl.BlockSpec((b, tile, d), lambda i: (0, i, 0)),          # s1 fwd tile
                pl.BlockSpec((b, tile, d), lambda i: (0, i, 0)),          # s1 bwd tile
                pl.BlockSpec((b, n2, d), lambda i: (0, 0, 0), **inv_kw),  # s2 fwd
                pl.BlockSpec((b, n2, d), lambda i: (0, 0, 0), **inv_kw),  # s2 bwd
                pl.BlockSpec((n2, d), lambda i: (0, 0), **inv_kw),        # flat rows
                pl.BlockSpec((8, d, P), lambda i: (0, 0, 0), **inv_kw),   # weights
            ],
            out_specs=pl.BlockSpec((tile, b * 8 * P), lambda i: (i, 0)),
            compiler_params=pltpu.CompilerParams(
                dimension_semantics=("parallel",),
                vmem_limit_bytes=vmem_bytes,
            ),
        )

    try:
        out2d = build(True)(s1f, s1b, s2f, s2b, s2flat, w_stack)
    except Exception:
        # TODO(synk): pl.Buffered(1) not supported by this jax build; fall back to the
        # default double-buffered grid-invariant blocks (identical numerics).
        out2d = build(False)(s1f, s1b, s2f, s2b, s2flat, w_stack)

    # [n1p, b*8P] -> [n1, b, 8P]  (drop the n1 padding rows)
    return out2d.reshape(n1p, b, 8 * P)[:n1]


# ---------------- pure-JAX reference (direct port of the torch code) ----------------
def _ref_forward(s1, s2, weights, embed_dim, perspective):
    d, P = embed_dim, perspective
    w1, w2, w3, w4, w5, w6, w7, w8 = weights

    def cos_calc(v1, v2):
        cos = jnp.sum(v1 * v2, -1)
        n1 = jnp.sqrt(jnp.maximum(jnp.sum(v1 ** 2, -1), EPS))
        n2 = jnp.sqrt(jnp.maximum(jnp.sum(v2 ** 2, -1), EPS))
        return cos / (n1 * n2)

    def cosine_matrix(a, b):
        return cos_calc(a[:, None], b[None])

    def ems(s, w):  # element_multiply_states
        return s[:, :, None, :] * w[None, None]

    def full_matching(a, b, w):
        ws1 = ems(a, w)
        ws2 = (b[-1][:, None, :] * w[None])[None]
        return cos_calc(ws1, ws2)

    def max_pooling(a, b, w):
        return jnp.max(cos_calc(ems(a, w)[:, None], ems(b, w)[None]), axis=1)

    def mean_att_vec(s, cm):
        wsum = jnp.sum(cm[..., None] * s[None], axis=1)
        return wsum / (jnp.sum(cm, 1) + EPS)[..., None]

    def mean_att(a, b, w, cm):
        return cos_calc(ems(a, w), ems(mean_att_vec(b, cm), w))

    def max_att_vec(s, cm):
        bsz = s.shape[1]
        idx = jnp.argmax(cm, axis=1).reshape(-1)
        return s.reshape(-1, d)[idx].reshape(-1, bsz, d)  # same flat-index bug as torch code

    def max_att(a, b, w, cm):
        return cos_calc(ems(a, w), ems(max_att_vec(b, cm), w))

    s1f, s1b = s1[:, :, :d], s1[:, :, d:]
    s2f, s2b = s2[:, :, :d], s2[:, :, d:]
    cmf, cmb = cosine_matrix(s1f, s2f), cosine_matrix(s1b, s2b)
    full = jnp.concatenate([full_matching(s1f, s2f, w1), full_matching(s1b, s2b, w2)], 2)
    maxp = jnp.concatenate([max_pooling(s1f, s2f, w3), max_pooling(s1b, s2b, w4)], 2)
    mean = jnp.concatenate([mean_att(s1f, s2f, w5, cmf), mean_att(s1b, s2b, w6, cmb)], 2)
    mx = jnp.concatenate([max_att(s1f, s2f, w7, cmf), mean_att(s1b, s2b, w8, cmb)], 2)
    return jnp.concatenate([full, maxp, mean, mx], axis=-1)


if __name__ == "__main__":
    # Small shapes consistent with the module: seq lens 8/6, batch 2, embed_dim 32, perspective 8.
    n1, n2, batch, embed_dim, perspective = 8, 6, 2, 32, 8

    key = jax.random.PRNGKey(0)
    k_s1, k_s2, k_w = jax.random.split(key, 3)
    s1 = jax.random.normal(k_s1, (n1, batch, 2 * embed_dim), dtype=jnp.float32)
    s2 = jax.random.normal(k_s2, (n2, batch, 2 * embed_dim), dtype=jnp.float32)

    # nn.init.uniform(w, -0.01, 0.01) for w1..w8, deterministically.
    wkeys = jax.random.split(k_w, 8)
    weights = tuple(
        jax.random.uniform(wk, (perspective, embed_dim), dtype=jnp.float32,
                           minval=-0.01, maxval=0.01)
        for wk in wkeys
    )

    out = matching_layer(s1, s2, weights, embed_dim, perspective)
    out = jax.block_until_ready(out)

    ref = _ref_forward(s1, s2, weights, embed_dim, perspective)
    np.testing.assert_allclose(np.asarray(out), np.asarray(ref), rtol=1e-4, atol=1e-4)
    assert out.shape == (n1, batch, 8 * perspective)

    print("KERNEL_OK")
</pallas_src>

<mosaic_0001>
module attributes {stable_mosaic.version = 11 : i64} {
  func.func @_matching_kernel(%arg0: i32, %arg1: memref<2x8x32xf32, #tpu.memory_space<vmem>>, %arg2: memref<2x8x32xf32, #tpu.memory_space<vmem>>, %arg3: memref<2x6x32xf32, #tpu.memory_space<vmem>>, %arg4: memref<2x6x32xf32, #tpu.memory_space<vmem>>, %arg5: memref<6x32xf32, #tpu.memory_space<vmem>>, %arg6: memref<8x32x8xf32, #tpu.memory_space<vmem>>, %arg7: memref<8x128xf32, #tpu.memory_space<vmem>>) attributes {dimension_semantics = [#tpu.dimension_semantics<parallel>], iteration_bounds = array<i64: 2>, scalar_prefetch = 0 : i64, scratch_operands = 0 : i64, tpu.core_type = #tpu.core_type<tc>, window_params = [{transform_indices = @transform_0, window_bounds = array<i64: 2, 8, 32>}, {transform_indices = @transform_1, window_bounds = array<i64: 2, 8, 32>}, {pipeline_mode = #tpu.pipeline_mode<synchronous>, transform_indices = @transform_2, window_bounds = array<i64: 2, 6, 32>}, {pipeline_mode = #tpu.pipeline_mode<synchronous>, transform_indices = @transform_3, window_bounds = array<i64: 2, 6, 32>}, {pipeline_mode = #tpu.pipeline_mode<synchronous>, transform_indices = @transform_4, window_bounds = array<i64: 6, 32>}, {pipeline_mode = #tpu.pipeline_mode<synchronous>, transform_indices = @transform_5, window_bounds = array<i64: 8, 32, 8>}, {transform_indices = @transform_6, window_bounds = array<i64: 8, 128>}]} {
    %c0 = arith.constant 0 : index
    %c0_0 = arith.constant 0 : index
    %c0_1 = arith.constant 0 : index
    %0 = vector.load %arg6[%c0, %c0_0, %c0_1] : memref<8x32x8xf32, #tpu.memory_space<vmem>>, vector<8x32x8xf32>
    %1 = arith.mulf %0, %0 : vector<8x32x8xf32>
    %c0_2 = arith.constant 0 : index
    %c0_3 = arith.constant 0 : index
    %c0_4 = arith.constant 0 : index
    %2 = vector.load %arg1[%c0_2, %c0_3, %c0_4] : memref<2x8x32xf32, #tpu.memory_space<vmem>>, vector<2x8x32xf32>
    %c0_5 = arith.constant 0 : index
    %c0_6 = arith.constant 0 : index
    %c0_7 = arith.constant 0 : index
    %3 = vector.load %arg2[%c0_5, %c0_6, %c0_7] : memref<2x8x32xf32, #tpu.memory_space<vmem>>, vector<2x8x32xf32>
    %c0_8 = arith.constant 0 : index
    %c0_9 = arith.constant 0 : index
    %c0_10 = arith.constant 0 : index
    %4 = vector.load %arg3[%c0_8, %c0_9, %c0_10] : memref<2x6x32xf32, #tpu.memory_space<vmem>>, vector<2x6x32xf32>
    %c0_11 = arith.constant 0 : index
    %c0_12 = arith.constant 0 : index
    %c0_13 = arith.constant 0 : index
    %5 = vector.load %arg4[%c0_11, %c0_12, %c0_13] : memref<2x6x32xf32, #tpu.memory_space<vmem>>, vector<2x6x32xf32>
    %6 = arith.mulf %2, %2 : vector<2x8x32xf32>
    %7 = arith.mulf %4, %4 : vector<2x6x32xf32>
    "tpu.trace_start"() <{level = 10 : i32, message = "btd,bnd->btn"}> : () -> ()
    %cst = arith.constant dense<0.000000e+00> : vector<2x8x6xf32>
    %8 = tpu.matmul %2, %4, %cst {dimension_numbers = #tpu.dot_dimension_numbers<[2], [2], [1], [1], [0, 0, 0, 1, 1, 1], [0], [0]>} : vector<2x8x32xf32>, vector<2x6x32xf32>, vector<2x8x6xf32> -> vector<2x8x6xf32>
    "tpu.trace_stop"() : () -> ()
    %cst_14 = arith.constant dense<0.000000e+00> : vector<2x8xf32>
    %9 = vector.multi_reduction <add>, %6, %cst_14 [2] : vector<2x8x32xf32> to vector<2x8xf32>
    %10 = vector.shape_cast %9 : vector<2x8xf32> to vector<2x8x1xf32>
    %cst_15 = arith.constant 9.99999997E-7 : f32
    %11 = vector.broadcast %cst_15 : f32 to vector<2x8x1xf32>
    %12 = arith.maximumf %10, %11 : vector<2x8x1xf32>
    %13 = math.rsqrt %12 : vector<2x8x1xf32>
    %cst_16 = arith.constant dense<0.000000e+00> : vector<2x6xf32>
    %14 = vector.multi_reduction <add>, %7, %cst_16 [2] : vector<2x6x32xf32> to vector<2x6xf32>
    %cst_17 = arith.constant 9.99999997E-7 : f32
    %15 = vector.broadcast %cst_17 : f32 to vector<2x6xf32>
    %16 = arith.maximumf %14, %15 : vector<2x6xf32>
    %17 = math.rsqrt %16 : vector<2x6xf32>
    %18 = vector.broadcast %13 : vector<2x8x1xf32> to vector<2x8x6xf32>
    %19 = arith.mulf %8, %18 : vector<2x8x6xf32>
    %20 = vector.shape_cast %17 : vector<2x6xf32> to vector<2x1x6xf32>
    %21 = vector.broadcast %20 : vector<2x1x6xf32> to vector<2x8x6xf32>
    %22 = arith.mulf %19, %21 : vector<2x8x6xf32>
    %23 = vector.extract_strided_slice %4 {offsets = [0, 5, 0], sizes = [2, 1, 32], strides = [1, 1, 1]} : vector<2x6x32xf32> to vector<2x1x32xf32>
    %24 = vector.broadcast %23 : vector<2x1x32xf32> to vector<2x8x32xf32>
    %25 = arith.mulf %2, %24 : vector<2x8x32xf32>
    %26 = vector.shape_cast %25 : vector<2x8x32xf32> to vector<16x32xf32>
    %27 = vector.extract_strided_slice %1 {offsets = [0, 0, 0], sizes = [1, 32, 8], strides = [1, 1, 1]} : vector<8x32x8xf32> to vector<1x32x8xf32>
    %28 = vector.shape_cast %27 : vector<1x32x8xf32> to vector<32x8xf32>
    %cst_18 = arith.constant dense<0.000000e+00> : vector<16x8xf32>
    %29 = tpu.matmul %26, %28, %cst_18 {dimension_numbers = #tpu.dot_dimension_numbers<[1], [0], [0], [1], [0, 0, 1, 1], [], []>} : vector<16x32xf32>, vector<32x8xf32>, vector<16x8xf32> -> vector<16x8xf32>
    %30 = vector.shape_cast %29 : vector<16x8xf32> to vector<2x8x8xf32>
    %31 = vector.shape_cast %6 : vector<2x8x32xf32> to vector<16x32xf32>
    %32 = vector.extract_strided_slice %1 {offsets = [0, 0, 0], sizes = [1, 32, 8], strides = [1, 1, 1]} : vector<8x32x8xf32> to vector<1x32x8xf32>
    %33 = vector.shape_cast %32 : vector<1x32x8xf32> to vector<32x8xf32>
    %cst_19 = arith.constant dense<0.000000e+00> : vector<16x8xf32>
    %34 = tpu.matmul %31, %33, %cst_19 {dimension_numbers = #tpu.dot_dimension_numbers<[1], [0], [0], [1], [0, 0, 1, 1], [], []>} : vector<16x32xf32>, vector<32x8xf32>, vector<16x8xf32> -> vector<16x8xf32>
    %35 = vector.shape_cast %34 : vector<16x8xf32> to vector<2x8x8xf32>
    %cst_20 = arith.constant 9.99999997E-7 : f32
    %36 = vector.broadcast %cst_20 : f32 to vector<2x8x8xf32>
    %37 = arith.maximumf %35, %36 : vector<2x8x8xf32>
    %38 = math.rsqrt %37 : vector<2x8x8xf32>
    %39 = arith.mulf %30, %38 : vector<2x8x8xf32>
    %40 = arith.mulf %23, %23 : vector<2x1x32xf32>
    %41 = vector.shape_cast %40 : vector<2x1x32xf32> to vector<2x32xf32>
    %42 = vector.extract_strided_slice %1 {offsets = [0, 0, 0], sizes = [1, 32, 8], strides = [1, 1, 1]} : vector<8x32x8xf32> to vector<1x32x8xf32>
    %43 = vector.shape_cast %42 : vector<1x32x8xf32> to vector<32x8xf32>
    %cst_21 = arith.constant dense<0.000000e+00> : vector<2x8xf32>
    %44 = tpu.matmul %41, %43, %cst_21 {dimension_numbers = #tpu.dot_dimension_numbers<[1], [0], [0], [1], [0, 0, 1, 1], [], []>} : vector<2x32xf32>, vector<32x8xf32>, vector<2x8xf32> -> vector<2x8xf32>
    %45 = vector.shape_cast %44 : vector<2x8xf32> to vector<2x1x8xf32>
    %cst_22 = arith.constant 9.99999997E-7 : f32
    %46 = vector.broadcast %cst_22 : f32 to vector<2x1x8xf32>
    %47 = arith.maximumf %45, %46 : vector<2x1x8xf32>
    %48 = math.rsqrt %47 : vector<2x1x8xf32>
    %49 = vector.broadcast %48 : vector<2x1x8xf32> to vector<2x8x8xf32>
    %50 = arith.mulf %39, %49 : vector<2x8x8xf32>
    %51 = vector.extract_strided_slice %1 {offsets = [2, 0, 0], sizes = [1, 32, 8], strides = [1, 1, 1]} : vector<8x32x8xf32> to vector<1x32x8xf32>
    %52 = vector.shape_cast %51 : vector<1x32x8xf32> to vector<32x8xf32>
    %53 = tpu.transpose %52, [1, 0] : vector<32x8xf32> -> vector<8x32xf32>
    %54 = vector.shape_cast %2 : vector<2x8x32xf32> to vector<2x8x1x32xf32>
    %55 = vector.shape_cast %53 : vector<8x32xf32> to vector<1x1x8x32xf32>
    %56 = vector.broadcast %54 : vector<2x8x1x32xf32> to vector<2x8x8x32xf32>
    %57 = vector.broadcast %55 : vector<1x1x8x32xf32> to vector<2x8x8x32xf32>
    %58 = arith.mulf %56, %57 : vector<2x8x8x32xf32>
    %59 = vector.shape_cast %58 : vector<2x8x8x32xf32> to vector<2x64x32xf32>
    "tpu.trace_start"() <{level = 10 : i32, message = "bqd,bnd->bqn"}> : () -> ()
    %cst_23 = arith.constant dense<0.000000e+00> : vector<2x64x6xf32>
    %60 = tpu.matmul %59, %4, %cst_23 {dimension_numbers = #tpu.dot_dimension_numbers<[2], [2], [1], [1], [0, 0, 0, 1, 1, 1], [0], [0]>} : vector<2x64x32xf32>, vector<2x6x32xf32>, vector<2x64x6xf32> -> vector<2x64x6xf32>
    "tpu.trace_stop"() : () -> ()
    %61 = vector.shape_cast %60 : vector<2x64x6xf32> to vector<2x8x8x6xf32>
    %62 = vector.shape_cast %6 : vector<2x8x32xf32> to vector<16x32xf32>
    %63 = vector.extract_strided_slice %1 {offsets = [2, 0, 0], sizes = [1, 32, 8], strides = [1, 1, 1]} : vector<8x32x8xf32> to vector<1x32x8xf32>
    %64 = vector.shape_cast %63 : vector<1x32x8xf32> to vector<32x8xf32>
    %cst_24 = arith.constant dense<0.000000e+00> : vector<16x8xf32>
    %65 = tpu.matmul %62, %64, %cst_24 {dimension_numbers = #tpu.dot_dimension_numbers<[1], [0], [0], [1], [0, 0, 1, 1], [], []>} : vector<16x32xf32>, vector<32x8xf32>, vector<16x8xf32> -> vector<16x8xf32>
    %66 = vector.shape_cast %65 : vector<16x8xf32> to vector<2x8x8xf32>
    %cst_25 = arith.constant 9.99999997E-7 : f32
    %67 = vector.broadcast %cst_25 : f32 to vector<2x8x8xf32>
    %68 = arith.maximumf %66, %67 : vector<2x8x8xf32>
    %69 = math.rsqrt %68 : vector<2x8x8xf32>
    %70 = vector.shape_cast %7 : vector<2x6x32xf32> to vector<12x32xf32>
    %71 = vector.extract_strided_slice %1 {offsets = [2, 0, 0], sizes = [1, 32, 8], strides = [1, 1, 1]} : vector<8x32x8xf32> to vector<1x32x8xf32>
    %72 = vector.shape_cast %71 : vector<1x32x8xf32> to vector<32x8xf32>
    %cst_26 = arith.constant dense<0.000000e+00> : vector<12x8xf32>
    %73 = tpu.matmul %70, %72, %cst_26 {dimension_numbers = #tpu.dot_dimension_numbers<[1], [0], [0], [1], [0, 0, 1, 1], [], []>} : vector<12x32xf32>, vector<32x8xf32>, vector<12x8xf32> -> vector<12x8xf32>
    %74 = vector.shape_cast %73 : vector<12x8xf32> to vector<2x6x8xf32>
    %cst_27 = arith.constant 9.99999997E-7 : f32
    %75 = vector.broadcast %cst_27 : f32 to vector<2x6x8xf32>
    %76 = arith.maximumf %74, %75 : vector<2x6x8xf32>
    %77 = math.rsqrt %76 : vector<2x6x8xf32>
    %78 = vector.shape_cast %69 : vector<2x8x8xf32> to vector<2x8x8x1xf32>
    %79 = vector.broadcast %78 : vector<2x8x8x1xf32> to vector<2x8x8x6xf32>
    %80 = arith.mulf %61, %79 : vector<2x8x8x6xf32>
    %81 = tpu.transpose %77, [0, 2, 1] : vector<2x6x8xf32> -> vector<2x8x6xf32>
    %82 = vector.shape_cast %81 : vector<2x8x6xf32> to vector<2x1x8x6xf32>
    %83 = vector.broadcast %82 : vector<2x1x8x6xf32> to vector<2x8x8x6xf32>
    %84 = arith.mulf %80, %83 : vector<2x8x8x6xf32>
    %cst_28 = arith.constant dense<0xFF800000> : vector<2x8x8xf32>
    %85 = vector.multi_reduction <maximumf>, %84, %cst_28 [3] : vector<2x8x8x6xf32> to vector<2x8x8xf32>
    "tpu.trace_start"() <{level = 10 : i32, message = "btn,bnd->btd"}> : () -> ()
    %cst_29 = arith.constant dense<0.000000e+00> : vector<2x8x32xf32>
    %86 = tpu.matmul %22, %4, %cst_29 {dimension_numbers = #tpu.dot_dimension_numbers<[2], [1], [1], [2], [0, 0, 0, 1, 1, 2], [0], [0]>} : vector<2x8x6xf32>, vector<2x6x32xf32>, vector<2x8x32xf32> -> vector<2x8x32xf32>
    "tpu.trace_stop"() : () -> ()
    %cst_30 = arith.constant dense<0.000000e+00> : vector<2x8xf32>
    %87 = vector.multi_reduction <add>, %22, %cst_30 [2] : vector<2x8x6xf32> to vector<2x8xf32>
    %88 = vector.shape_cast %87 : vector<2x8xf32> to vector<2x8x1xf32>
    %cst_31 = arith.constant 9.99999997E-7 : f32
    %89 = vector.broadcast %cst_31 : f32 to vector<2x8x1xf32>
    %90 = arith.addf %88, %89 : vector<2x8x1xf32>
    %cst_32 = arith.constant 1.000000e+00 : f32
    %91 = vector.broadcast %cst_32 : f32 to vector<2x8x1xf32>
    %92 = arith.divf %91, %90 : vector<2x8x1xf32>
    %93 = vector.broadcast %92 : vector<2x8x1xf32> to vector<2x8x32xf32>
    %94 = arith.mulf %86, %93 : vector<2x8x32xf32>
    %95 = arith.mulf %2, %94 : vector<2x8x32xf32>
    %96 = vector.shape_cast %95 : vector<2x8x32xf32> to vector<16x32xf32>
    %97 = vector.extract_strided_slice %1 {offsets = [4, 0, 0], sizes = [1, 32, 8], strides = [1, 1, 1]} : vector<8x32x8xf32> to vector<1x32x8xf32>
    %98 = vector.shape_cast %97 : vector<1x32x8xf32> to vector<32x8xf32>
    %cst_33 = arith.constant dense<0.000000e+00> : vector<16x8xf32>
    %99 = tpu.matmul %96, %98, %cst_33 {dimension_numbers = #tpu.dot_dimension_numbers<[1], [0], [0], [1], [0, 0, 1, 1], [], []>} : vector<16x32xf32>, vector<32x8xf32>, vector<16x8xf32> -> vector<16x8xf32>
    %100 = vector.shape_cast %99 : vector<16x8xf32> to vector<2x8x8xf32>
    %101 = vector.shape_cast %6 : vector<2x8x32xf32> to vector<16x32xf32>
    %102 = vector.extract_strided_slice %1 {offsets = [4, 0, 0], sizes = [1, 32, 8], strides = [1, 1, 1]} : vector<8x32x8xf32> to vector<1x32x8xf32>
    %103 = vector.shape_cast %102 : vector<1x32x8xf32> to vector<32x8xf32>
    %cst_34 = arith.constant dense<0.000000e+00> : vector<16x8xf32>
    %104 = tpu.matmul %101, %103, %cst_34 {dimension_numbers = #tpu.dot_dimension_numbers<[1], [0], [0], [1], [0, 0, 1, 1], [], []>} : vector<16x32xf32>, vector<32x8xf32>, vector<16x8xf32> -> vector<16x8xf32>
    %105 = vector.shape_cast %104 : vector<16x8xf32> to vector<2x8x8xf32>
    %cst_35 = arith.constant 9.99999997E-7 : f32
    %106 = vector.broadcast %cst_35 : f32 to vector<2x8x8xf32>
    %107 = arith.maximumf %105, %106 : vector<2x8x8xf32>
    %108 = math.rsqrt %107 : vector<2x8x8xf32>
    %109 = arith.mulf %100, %108 : vector<2x8x8xf32>
    %110 = arith.mulf %94, %94 : vector<2x8x32xf32>
    %111 = vector.shape_cast %110 : vector<2x8x32xf32> to vector<16x32xf32>
    %112 = vector.extract_strided_slice %1 {offsets = [4, 0, 0], sizes = [1, 32, 8], strides = [1, 1, 1]} : vector<8x32x8xf32> to vector<1x32x8xf32>
    %113 = vector.shape_cast %112 : vector<1x32x8xf32> to vector<32x8xf32>
    %cst_36 = arith.constant dense<0.000000e+00> : vector<16x8xf32>
    %114 = tpu.matmul %111, %113, %cst_36 {dimension_numbers = #tpu.dot_dimension_numbers<[1], [0], [0], [1], [0, 0, 1, 1], [], []>} : vector<16x32xf32>, vector<32x8xf32>, vector<16x8xf32> -> vector<16x8xf32>
    %115 = vector.shape_cast %114 : vector<16x8xf32> to vector<2x8x8xf32>
    %cst_37 = arith.constant 9.99999997E-7 : f32
    %116 = vector.broadcast %cst_37 : f32 to vector<2x8x8xf32>
    %117 = arith.maximumf %115, %116 : vector<2x8x8xf32>
    %118 = math.rsqrt %117 : vector<2x8x8xf32>
    %119 = arith.mulf %109, %118 : vector<2x8x8xf32>
    %120 = arith.mulf %3, %3 : vector<2x8x32xf32>
    %121 = arith.mulf %5, %5 : vector<2x6x32xf32>
    "tpu.trace_start"() <{level = 10 : i32, message = "btd,bnd->btn"}> : () -> ()
    %cst_38 = arith.constant dense<0.000000e+00> : vector<2x8x6xf32>
    %122 = tpu.matmul %3, %5, %cst_38 {dimension_numbers = #tpu.dot_dimension_numbers<[2], [2], [1], [1], [0, 0, 0, 1, 1, 1], [0], [0]>} : vector<2x8x32xf32>, vector<2x6x32xf32>, vector<2x8x6xf32> -> vector<2x8x6xf32>
    "tpu.trace_stop"() : () -> ()
    %cst_39 = arith.constant dense<0.000000e+00> : vector<2x8xf32>
    %123 = vector.multi_reduction <add>, %120, %cst_39 [2] : vector<2x8x32xf32> to vector<2x8xf32>
    %124 = vector.shape_cast %123 : vector<2x8xf32> to vector<2x8x1xf32>
    %cst_40 = arith.constant 9.99999997E-7 : f32
    %125 = vector.broadcast %cst_40 : f32 to vector<2x8x1xf32>
    %126 = arith.maximumf %124, %125 : vector<2x8x1xf32>
    %127 = math.rsqrt %126 : vector<2x8x1xf32>
    %cst_41 = arith.constant dense<0.000000e+00> : vector<2x6xf32>
    %128 = vector.multi_reduction <add>, %121, %cst_41 [2] : vector<2x6x32xf32> to vector<2x6xf32>
    %cst_42 = arith.constant 9.99999997E-7 : f32
    %129 = vector.broadcast %cst_42 : f32 to vector<2x6xf32>
    %130 = arith.maximumf %128, %129 : vector<2x6xf32>
    %131 = math.rsqrt %130 : vector<2x6xf32>
    %132 = vector.broadcast %127 : vector<2x8x1xf32> to vector<2x8x6xf32>
    %133 = arith.mulf %122, %132 : vector<2x8x6xf32>
    %134 = vector.shape_cast %131 : vector<2x6xf32> to vector<2x1x6xf32>
    %135 = vector.broadcast %134 : vector<2x1x6xf32> to vector<2x8x6xf32>
    %136 = arith.mulf %133, %135 : vector<2x8x6xf32>
    %137 = vector.extract_strided_slice %5 {offsets = [0, 5, 0], sizes = [2, 1, 32], strides = [1, 1, 1]} : vector<2x6x32xf32> to vector<2x1x32xf32>
    %138 = vector.broadcast %137 : vector<2x1x32xf32> to vector<2x8x32xf32>
    %139 = arith.mulf %3, %138 : vector<2x8x32xf32>
    %140 = vector.shape_cast %139 : vector<2x8x32xf32> to vector<16x32xf32>
    %141 = vector.extract_strided_slice %1 {offsets = [1, 0, 0], sizes = [1, 32, 8], strides = [1, 1, 1]} : vector<8x32x8xf32> to vector<1x32x8xf32>
    %142 = vector.shape_cast %141 : vector<1x32x8xf32> to vector<32x8xf32>
    %cst_43 = arith.constant dense<0.000000e+00> : vector<16x8xf32>
    %143 = tpu.matmul %140, %142, %cst_43 {dimension_numbers = #tpu.dot_dimension_numbers<[1], [0], [0], [1], [0, 0, 1, 1], [], []>} : vector<16x32xf32>, vector<32x8xf32>, vector<16x8xf32> -> vector<16x8xf32>
    %144 = vector.shape_cast %143 : vector<16x8xf32> to vector<2x8x8xf32>
    %145 = vector.shape_cast %120 : vector<2x8x32xf32> to vector<16x32xf32>
    %146 = vector.extract_strided_slice %1 {offsets = [1, 0, 0], sizes = [1, 32, 8], strides = [1, 1, 1]} : vector<8x32x8xf32> to vector<1x32x8xf32>
    %147 = vector.shape_cast %146 : vector<1x32x8xf32> to vector<32x8xf32>
    %cst_44 = arith.constant dense<0.000000e+00> : vector<16x8xf32>
    %148 = tpu.matmul %145, %147, %cst_44 {dimension_numbers = #tpu.dot_dimension_numbers<[1], [0], [0], [1], [0, 0, 1, 1], [], []>} : vector<16x32xf32>, vector<32x8xf32>, vector<16x8xf32> -> vector<16x8xf32>
    %149 = vector.shape_cast %148 : vector<16x8xf32> to vector<2x8x8xf32>
    %cst_45 = arith.constant 9.99999997E-7 : f32
    %150 = vector.broadcast %cst_45 : f32 to vector<2x8x8xf32>
    %151 = arith.maximumf %149, %150 : vector<2x8x8xf32>
    %152 = math.rsqrt %151 : vector<2x8x8xf32>
    %153 = arith.mulf %144, %152 : vector<2x8x8xf32>
    %154 = arith.mulf %137, %137 : vector<2x1x32xf32>
    %155 = vector.shape_cast %154 : vector<2x1x32xf32> to vector<2x32xf32>
    %156 = vector.extract_strided_slice %1 {offsets = [1, 0, 0], sizes = [1, 32, 8], strides = [1, 1, 1]} : vector<8x32x8xf32> to vector<1x32x8xf32>
    %157 = vector.shape_cast %156 : vector<1x32x8xf32> to vector<32x8xf32>
    %cst_46 = arith.constant dense<0.000000e+00> : vector<2x8xf32>
    %158 = tpu.matmul %155, %157, %cst_46 {dimension_numbers = #tpu.dot_dimension_numbers<[1], [0], [0], [1], [0, 0, 1, 1], [], []>} : vector<2x32xf32>, vector<32x8xf32>, vector<2x8xf32> -> vector<2x8xf32>
    %159 = vector.shape_cast %158 : vector<2x8xf32> to vector<2x1x8xf32>
    %cst_47 = arith.constant 9.99999997E-7 : f32
    %160 = vector.broadcast %cst_47 : f32 to vector<2x1x8xf32>
    %161 = arith.maximumf %159, %160 : vector<2x1x8xf32>
    %162 = math.rsqrt %161 : vector<2x1x8xf32>
    %163 = vector.broadcast %162 : vector<2x1x8xf32> to vector<2x8x8xf32>
    %164 = arith.mulf %153, %163 : vector<2x8x8xf32>
    %165 = vector.extract_strided_slice %1 {offsets = [3, 0, 0], sizes = [1, 32, 8], strides = [1, 1, 1]} : vector<8x32x8xf32> to vector<1x32x8xf32>
    %166 = vector.shape_cast %165 : vector<1x32x8xf32> to vector<32x8xf32>
    %167 = tpu.transpose %166, [1, 0] : vector<32x8xf32> -> vector<8x32xf32>
    %168 = vector.shape_cast %3 : vector<2x8x32xf32> to vector<2x8x1x32xf32>
    %169 = vector.shape_cast %167 : vector<8x32xf32> to vector<1x1x8x32xf32>
    %170 = vector.broadcast %168 : vector<2x8x1x32xf32> to vector<2x8x8x32xf32>
    %171 = vector.broadcast %169 : vector<1x1x8x32xf32> to vector<2x8x8x32xf32>
    %172 = arith.mulf %170, %171 : vector<2x8x8x32xf32>
    %173 = vector.shape_cast %172 : vector<2x8x8x32xf32> to vector<2x64x32xf32>
    "tpu.trace_start"() <{level = 10 : i32, message = "bqd,bnd->bqn"}> : () -> ()
    %cst_48 = arith.constant dense<0.000000e+00> : vector<2x64x6xf32>
    %174 = tpu.matmul %173, %5, %cst_48 {dimension_numbers = #tpu.dot_dimension_numbers<[2], [2], [1], [1], [0, 0, 0, 1, 1, 1], [0], [0]>} : vector<2x64x32xf32>, vector<2x6x32xf32>, vector<2x64x6xf32> -> vector<2x64x6xf32>
    "tpu.trace_stop"() : () -> ()
    %175 = vector.shape_cast %174 : vector<2x64x6xf32> to vector<2x8x8x6xf32>
    %176 = vector.shape_cast %120 : vector<2x8x32xf32> to vector<16x32xf32>
    %177 = vector.extract_strided_slice %1 {offsets = [3, 0, 0], sizes = [1, 32, 8], strides = [1, 1, 1]} : vector<8x32x8xf32> to vector<1x32x8xf32>
    %178 = vector.shape_cast %177 : vector<1x32x8xf32> to vector<32x8xf32>
    %cst_49 = arith.constant dense<0.000000e+00> : vector<16x8xf32>
    %179 = tpu.matmul %176, %178, %cst_49 {dimension_numbers = #tpu.dot_dimension_numbers<[1], [0], [0], [1], [0, 0, 1, 1], [], []>} : vector<16x32xf32>, vector<32x8xf32>, vector<16x8xf32> -> vector<16x8xf32>
    %180 = vector.shape_cast %179 : vector<16x8xf32> to vector<2x8x8xf32>
    %cst_50 = arith.constant 9.99999997E-7 : f32
    %181 = vector.broadcast %cst_50 : f32 to vector<2x8x8xf32>
    %182 = arith.maximumf %180, %181 : vector<2x8x8xf32>
    %183 = math.rsqrt %182 : vector<2x8x8xf32>
    %184 = vector.shape_cast %121 : vector<2x6x32xf32> to vector<12x32xf32>
    %185 = vector.extract_strided_slice %1 {offsets = [3, 0, 0], sizes = [1, 32, 8], strides = [1, 1, 1]} : vector<8x32x8xf32> to vector<1x32x8xf32>
    %186 = vector.shape_cast %185 : vector<1x32x8xf32> to vector<32x8xf32>
    %cst_51 = arith.constant dense<0.000000e+00> : vector<12x8xf32>
    %187 = tpu.matmul %184, %186, %cst_51 {dimension_numbers = #tpu.dot_dimension_numbers<[1], [0], [0], [1], [0, 0, 1, 1], [], []>} : vector<12x32xf32>, vector<32x8xf32>, vector<12x8xf32> -> vector<12x8xf32>
    %188 = vector.shape_cast %187 : vector<12x8xf32> to vector<2x6x8xf32>
    %cst_52 = arith.constant 9.99999997E-7 : f32
    %189 = vector.broadcast %cst_52 : f32 to vector<2x6x8xf32>
    %190 = arith.maximumf %188, %189 : vector<2x6x8xf32>
    %191 = math.rsqrt %190 : vector<2x6x8xf32>
    %192 = vector.shape_cast %183 : vector<2x8x8xf32> to vector<2x8x8x1xf32>
    %193 = vector.broadcast %192 : vector<2x8x8x1xf32> to vector<2x8x8x6xf32>
    %194 = arith.mulf %175, %193 : vector<2x8x8x6xf32>
    %195 = tpu.transpose %191, [0, 2, 1] : vector<2x6x8xf32> -> vector<2x8x6xf32>
    %196 = vector.shape_cast %195 : vector<2x8x6xf32> to vector<2x1x8x6xf32>
    %197 = vector.broadcast %196 : vector<2x1x8x6xf32> to vector<2x8x8x6xf32>
    %198 = arith.mulf %194, %197 : vector<2x8x8x6xf32>
    %cst_53 = arith.constant dense<0xFF800000> : vector<2x8x8xf32>
    %199 = vector.multi_reduction <maximumf>, %198, %cst_53 [3] : vector<2x8x8x6xf32> to vector<2x8x8xf32>
    "tpu.trace_start"() <{level = 10 : i32, message = "btn,bnd->btd"}> : () -> ()
    %cst_54 = arith.constant dense<0.000000e+00> : vector<2x8x32xf32>
    %200 = tpu.matmul %136, %5, %cst_54 {dimension_numbers = #tpu.dot_dimension_numbers<[2], [1], [1], [2], [0, 0, 0, 1, 1, 2], [0], [0]>} : vector<2x8x6xf32>, vector<2x6x32xf32>, vector<2x8x32xf32> -> vector<2x8x32xf32>
    "tpu.trace_stop"() : () -> ()
    %cst_55 = arith.constant dense<0.000000e+00> : vector<2x8xf32>
    %201 = vector.multi_reduction <add>, %136, %cst_55 [2] : vector<2x8x6xf32> to vector<2x8xf32>
    %202 = vector.shape_cast %201 : vector<2x8xf32> to vector<2x8x1xf32>
    %cst_56 = arith.constant 9.99999997E-7 : f32
    %203 = vector.broadcast %cst_56 : f32 to vector<2x8x1xf32>
    %204 = arith.addf %202, %203 : vector<2x8x1xf32>
    %cst_57 = arith.constant 1.000000e+00 : f32
    %205 = vector.broadcast %cst_57 : f32 to vector<2x8x1xf32>
    %206 = arith.divf %205, %204 : vector<2x8x1xf32>
    %207 = vector.broadcast %206 : vector<2x8x1xf32> to vector<2x8x32xf32>
    %208 = arith.mulf %200, %207 : vector<2x8x32xf32>
    %209 = arith.mulf %3, %208 : vector<2x8x32xf32>
    %210 = vector.shape_cast %209 : vector<2x8x32xf32> to vector<16x32xf32>
    %211 = vector.extract_strided_slice %1 {offsets = [5, 0, 0], sizes = [1, 32, 8], strides = [1, 1, 1]} : vector<8x32x8xf32> to vector<1x32x8xf32>
    %212 = vector.shape_cast %211 : vector<1x32x8xf32> to vector<32x8xf32>
    %cst_58 = arith.constant dense<0.000000e+00> : vector<16x8xf32>
    %213 = tpu.matmul %210, %212, %cst_58 {dimension_numbers = #tpu.dot_dimension_numbers<[1], [0], [0], [1], [0, 0, 1, 1], [], []>} : vector<16x32xf32>, vector<32x8xf32>, vector<16x8xf32> -> vector<16x8xf32>
    %214 = vector.shape_cast %213 : vector<16x8xf32> to vector<2x8x8xf32>
    %215 = vector.shape_cast %120 : vector<2x8x32xf32> to vector<16x32xf32>
    %216 = vector.extract_strided_slice %1 {offsets = [5, 0, 0], sizes = [1, 32, 8], strides = [1, 1, 1]} : vector<8x32x8xf32> to vector<1x32x8xf32>
    %217 = vector.shape_cast %216 : vector<1x32x8xf32> to vector<32x8xf32>
    %cst_59 = arith.constant dense<0.000000e+00> : vector<16x8xf32>
    %218 = tpu.matmul %215, %217, %cst_59 {dimension_numbers = #tpu.dot_dimension_numbers<[1], [0], [0], [1], [0, 0, 1, 1], [], []>} : vector<16x32xf32>, vector<32x8xf32>, vector<16x8xf32> -> vector<16x8xf32>
    %219 = vector.shape_cast %218 : vector<16x8xf32> to vector<2x8x8xf32>
    %cst_60 = arith.constant 9.99999997E-7 : f32
    %220 = vector.broadcast %cst_60 : f32 to vector<2x8x8xf32>
    %221 = arith.maximumf %219, %220 : vector<2x8x8xf32>
    %222 = math.rsqrt %221 : vector<2x8x8xf32>
    %223 = arith.mulf %214, %222 : vector<2x8x8xf32>
    %224 = arith.mulf %208, %208 : vector<2x8x32xf32>
    %225 = vector.shape_cast %224 : vector<2x8x32xf32> to vector<16x32xf32>
    %226 = vector.extract_strided_slice %1 {offsets = [5, 0, 0], sizes = [1, 32, 8], strides = [1, 1, 1]} : vector<8x32x8xf32> to vector<1x32x8xf32>
    %227 = vector.shape_cast %226 : vector<1x32x8xf32> to vector<32x8xf32>
    %cst_61 = arith.constant dense<0.000000e+00> : vector<16x8xf32>
    %228 = tpu.matmul %225, %227, %cst_61 {dimension_numbers = #tpu.dot_dimension_numbers<[1], [0], [0], [1], [0, 0, 1, 1], [], []>} : vector<16x32xf32>, vector<32x8xf32>, vector<16x8xf32> -> vector<16x8xf32>
    %229 = vector.shape_cast %228 : vector<16x8xf32> to vector<2x8x8xf32>
    %cst_62 = arith.constant 9.99999997E-7 : f32
    %230 = vector.broadcast %cst_62 : f32 to vector<2x8x8xf32>
    %231 = arith.maximumf %229, %230 : vector<2x8x8xf32>
    %232 = math.rsqrt %231 : vector<2x8x8xf32>
    %233 = arith.mulf %223, %232 : vector<2x8x8xf32>
    %cst_63 = arith.constant dense<0xFF800000> : vector<2x8xf32>
    %234 = vector.multi_reduction <maximumf>, %22, %cst_63 [2] : vector<2x8x6xf32> to vector<2x8xf32>
    %235 = vector.shape_cast %234 : vector<2x8xf32> to vector<2x8x1xf32>
    %236 = tpu.iota {dimensions = array<i32: 2>} : vector<2x8x6xi32>
    %237 = vector.broadcast %235 : vector<2x8x1xf32> to vector<2x8x6xf32>
    %238 = arith.cmpf oge, %22, %237 : vector<2x8x6xf32>
    %c6_i32 = arith.constant 6 : i32
    %239 = vector.broadcast %c6_i32 : i32 to vector<2x8x6xi32>
    %240 = arith.select %238, %236, %239 : vector<2x8x6xi1>, vector<2x8x6xi32>
    %cst_64 = arith.constant dense<2147483647> : vector<2x8xi32>
    %241 = vector.multi_reduction <minsi>, %240, %cst_64 [2] : vector<2x8x6xi32> to vector<2x8xi32>
    %242 = vector.shape_cast %241 : vector<2x8xi32> to vector<2x8x1xi32>
    %243 = vector.broadcast %242 : vector<2x8x1xi32> to vector<2x8x6xi32>
    %244 = arith.cmpi eq, %236, %243 : vector<2x8x6xi32>
    %245 = arith.extui %244 : vector<2x8x6xi1> to vector<2x8x6xi32>
    %246 = arith.sitofp %245 : vector<2x8x6xi32> to vector<2x8x6xf32>
    %247 = vector.shape_cast %246 : vector<2x8x6xf32> to vector<16x6xf32>
    %c0_65 = arith.constant 0 : index
    %c0_66 = arith.constant 0 : index
    %248 = vector.load %arg5[%c0_65, %c0_66] : memref<6x32xf32, #tpu.memory_space<vmem>>, vector<6x32xf32>
    %cst_67 = arith.constant dense<0.000000e+00> : vector<16x32xf32>
    %249 = tpu.matmul %247, %248, %cst_67 {dimension_numbers = #tpu.dot_dimension_numbers<[1], [0], [0], [1], [0, 0, 1, 1], [], []>} : vector<16x6xf32>, vector<6x32xf32>, vector<16x32xf32> -> vector<16x32xf32>
    %250 = vector.shape_cast %249 : vector<16x32xf32> to vector<2x8x32xf32>
    %251 = arith.mulf %2, %250 : vector<2x8x32xf32>
    %252 = vector.shape_cast %251 : vector<2x8x32xf32> to vector<16x32xf32>
    %253 = vector.extract_strided_slice %1 {offsets = [6, 0, 0], sizes = [1, 32, 8], strides = [1, 1, 1]} : vector<8x32x8xf32> to vector<1x32x8xf32>
    %254 = vector.shape_cast %253 : vector<1x32x8xf32> to vector<32x8xf32>
    %cst_68 = arith.constant dense<0.000000e+00> : vector<16x8xf32>
    %255 = tpu.matmul %252, %254, %cst_68 {dimension_numbers = #tpu.dot_dimension_numbers<[1], [0], [0], [1], [0, 0, 1, 1], [], []>} : vector<16x32xf32>, vector<32x8xf32>, vector<16x8xf32> -> vector<16x8xf32>
    %256 = vector.shape_cast %255 : vector<16x8xf32> to vector<2x8x8xf32>
    %257 = vector.shape_cast %6 : vector<2x8x32xf32> to vector<16x32xf32>
    %258 = vector.extract_strided_slice %1 {offsets = [6, 0, 0], sizes = [1, 32, 8], strides = [1, 1, 1]} : vector<8x32x8xf32> to vector<1x32x8xf32>
    %259 = vector.shape_cast %258 : vector<1x32x8xf32> to vector<32x8xf32>
    %cst_69 = arith.constant dense<0.000000e+00> : vector<16x8xf32>
    %260 = tpu.matmul %257, %259, %cst_69 {dimension_numbers = #tpu.dot_dimension_numbers<[1], [0], [0], [1], [0, 0, 1, 1], [], []>} : vector<16x32xf32>, vector<32x8xf32>, vector<16x8xf32> -> vector<16x8xf32>
    %261 = vector.shape_cast %260 : vector<16x8xf32> to vector<2x8x8xf32>
    %cst_70 = arith.constant 9.99999997E-7 : f32
    %262 = vector.broadcast %cst_70 : f32 to vector<2x8x8xf32>
    %263 = arith.maximumf %261, %262 : vector<2x8x8xf32>
    %264 = math.rsqrt %263 : vector<2x8x8xf32>
    %265 = arith.mulf %256, %264 : vector<2x8x8xf32>
    %266 = arith.mulf %250, %250 : vector<2x8x32xf32>
    %267 = vector.shape_cast %266 : vector<2x8x32xf32> to vector<16x32xf32>
    %268 = vector.extract_strided_slice %1 {offsets = [6, 0, 0], sizes = [1, 32, 8], strides = [1, 1, 1]} : vector<8x32x8xf32> to vector<1x32x8xf32>
    %269 = vector.shape_cast %268 : vector<1x32x8xf32> to vector<32x8xf32>
    %cst_71 = arith.constant dense<0.000000e+00> : vector<16x8xf32>
    %270 = tpu.matmul %267, %269, %cst_71 {dimension_numbers = #tpu.dot_dimension_numbers<[1], [0], [0], [1], [0, 0, 1, 1], [], []>} : vector<16x32xf32>, vector<32x8xf32>, vector<16x8xf32> -> vector<16x8xf32>
    %271 = vector.shape_cast %270 : vector<16x8xf32> to vector<2x8x8xf32>
    %cst_72 = arith.constant 9.99999997E-7 : f32
    %272 = vector.broadcast %cst_72 : f32 to vector<2x8x8xf32>
    %273 = arith.maximumf %271, %272 : vector<2x8x8xf32>
    %274 = math.rsqrt %273 : vector<2x8x8xf32>
    %275 = arith.mulf %265, %274 : vector<2x8x8xf32>
    %276 = arith.mulf %3, %208 : vector<2x8x32xf32>
    %277 = vector.shape_cast %276 : vector<2x8x32xf32> to vector<16x32xf32>
    %278 = vector.extract_strided_slice %1 {offsets = [7, 0, 0], sizes = [1, 32, 8], strides = [1, 1, 1]} : vector<8x32x8xf32> to vector<1x32x8xf32>
    %279 = vector.shape_cast %278 : vector<1x32x8xf32> to vector<32x8xf32>
    %cst_73 = arith.constant dense<0.000000e+00> : vector<16x8xf32>
    %280 = tpu.matmul %277, %279, %cst_73 {dimension_numbers = #tpu.dot_dimension_numbers<[1], [0], [0], [1], [0, 0, 1, 1], [], []>} : vector<16x32xf32>, vector<32x8xf32>, vector<16x8xf32> -> vector<16x8xf32>
    %281 = vector.shape_cast %280 : vector<16x8xf32> to vector<2x8x8xf32>
    %282 = vector.shape_cast %120 : vector<2x8x32xf32> to vector<16x32xf32>
    %283 = vector.extract_strided_slice %1 {offsets = [7, 0, 0], sizes = [1, 32, 8], strides = [1, 1, 1]} : vector<8x32x8xf32> to vector<1x32x8xf32>
    %284 = vector.shape_cast %283 : vector<1x32x8xf32> to vector<32x8xf32>
    %cst_74 = arith.constant dense<0.000000e+00> : vector<16x8xf32>
    %285 = tpu.matmul %282, %284, %cst_74 {dimension_numbers = #tpu.dot_dimension_numbers<[1], [0], [0], [1], [0, 0, 1, 1], [], []>} : vector<16x32xf32>, vector<32x8xf32>, vector<16x8xf32> -> vector<16x8xf32>
    %286 = vector.shape_cast %285 : vector<16x8xf32> to vector<2x8x8xf32>
    %cst_75 = arith.constant 9.99999997E-7 : f32
    %287 = vector.broadcast %cst_75 : f32 to vector<2x8x8xf32>
    %288 = arith.maximumf %286, %287 : vector<2x8x8xf32>
    %289 = math.rsqrt %288 : vector<2x8x8xf32>
    %290 = arith.mulf %281, %289 : vector<2x8x8xf32>
    %291 = arith.mulf %208, %208 : vector<2x8x32xf32>
    %292 = vector.shape_cast %291 : vector<2x8x32xf32> to vector<16x32xf32>
    %293 = vector.extract_strided_slice %1 {offsets = [7, 0, 0], sizes = [1, 32, 8], strides = [1, 1, 1]} : vector<8x32x8xf32> to vector<1x32x8xf32>
    %294 = vector.shape_cast %293 : vector<1x32x8xf32> to vector<32x8xf32>
    %cst_76 = arith.constant dense<0.000000e+00> : vector<16x8xf32>
    %295 = tpu.matmul %292, %294, %cst_76 {dimension_numbers = #tpu.dot_dimension_numbers<[1], [0], [0], [1], [0, 0, 1, 1], [], []>} : vector<16x32xf32>, vector<32x8xf32>, vector<16x8xf32> -> vector<16x8xf32>
    %296 = vector.shape_cast %295 : vector<16x8xf32> to vector<2x8x8xf32>
    %cst_77 = arith.constant 9.99999997E-7 : f32
    %297 = vector.broadcast %cst_77 : f32 to vector<2x8x8xf32>
    %298 = arith.maximumf %296, %297 : vector<2x8x8xf32>
    %299 = math.rsqrt %298 : vector<2x8x8xf32>
    %300 = arith.mulf %290, %299 : vector<2x8x8xf32>
    %301 = tpu.concatenate %50, %164, %85, %199, %119, %233, %275, %300 in 2 : vector<2x8x8xf32>, vector<2x8x8xf32>, vector<2x8x8xf32>, vector<2x8x8xf32>, vector<2x8x8xf32>, vector<2x8x8xf32>, vector<2x8x8xf32>, vector<2x8x8xf32> -> vector<2x8x64xf32>
    %302 = vector.extract_strided_slice %301 {offsets = [0, 0, 0], sizes = [1, 8, 64], strides = [1, 1, 1]} : vector<2x8x64xf32> to vector<1x8x64xf32>
    %303 = vector.shape_cast %302 : vector<1x8x64xf32> to vector<8x64xf32>
    %304 = vector.extract_strided_slice %301 {offsets = [1, 0, 0], sizes = [1, 8, 64], strides = [1, 1, 1]} : vector<2x8x64xf32> to vector<1x8x64xf32>
    %305 = vector.shape_cast %304 : vector<1x8x64xf32> to vector<8x64xf32>
    %306 = tpu.concatenate %303, %305 in 1 : vector<8x64xf32>, vector<8x64xf32> -> vector<8x128xf32>
    %c0_78 = arith.constant 0 : index
    %c0_79 = arith.constant 0 : index
    %307 = vector.load %arg7[%c0_78, %c0_79] : memref<8x128xf32, #tpu.memory_space<vmem>>, vector<8x128xf32>
    tpu.vector_store %arg7[%c0_78, %c0_79], %306 {strides = array<i32>} : memref<8x128xf32, #tpu.memory_space<vmem>>, vector<8x128xf32>,
    return
  }
  func.func @transform_0(%arg0: i32) -> (i32, i32, i32) {
    %c0_i32 = arith.constant 0 : i32
    %c0_i32_0 = arith.constant 0 : i32
    %c0_i32_1 = arith.constant 0 : i32
    return %c0_i32, %arg0, %c0_i32_0 : i32, i32, i32
  }
  func.func @transform_1(%arg0: i32) -> (i32, i32, i32) {
    %c0_i32 = arith.constant 0 : i32
    %c0_i32_0 = arith.constant 0 : i32
    %c0_i32_1 = arith.constant 0 : i32
    return %c0_i32, %arg0, %c0_i32_0 : i32, i32, i32
  }
  func.func @transform_2(%arg0: i32) -> (i32, i32, i32) {
    %c0_i32 = arith.constant 0 : i32
    %c0_i32_0 = arith.constant 0 : i32
    %c0_i32_1 = arith.constant 0 : i32
    %c0_i32_2 = arith.constant 0 : i32
    return %c0_i32, %c0_i32_0, %c0_i32_1 : i32, i32, i32
  }
  func.func @transform_3(%arg0: i32) -> (i32, i32, i32) {
    %c0_i32 = arith.constant 0 : i32
    %c0_i32_0 = arith.constant 0 : i32
    %c0_i32_1 = arith.constant 0 : i32
    %c0_i32_2 = arith.constant 0 : i32
    return %c0_i32, %c0_i32_0, %c0_i32_1 : i32, i32, i32
  }
  func.func @transform_4(%arg0: i32) -> (i32, i32) {
    %c0_i32 = arith.constant 0 : i32
    %c0_i32_0 = arith.constant 0 : i32
    %c0_i32_1 = arith.constant 0 : i32
    return %c0_i32, %c0_i32_0 : i32, i32
  }
  func.func @transform_5(%arg0: i32) -> (i32, i32, i32) {
    %c0_i32 = arith.constant 0 : i32
    %c0_i32_0 = arith.constant 0 : i32
    %c0_i32_1 = arith.constant 0 : i32
    %c0_i32_2 = arith.constant 0 : i32
    return %c0_i32, %c0_i32_0, %c0_i32_1 : i32, i32, i32
  }
  func.func @transform_6(%arg0: i32) -> (i32, i32) {
    %c0_i32 = arith.constant 0 : i32
    %c0_i32_0 = arith.constant 0 : i32
    return %arg0, %c0_i32 : i32, i32
  }
}

module attributes {stable_mosaic.version = 11 : i64} {
  func.func @_matching_kernel(%arg0: i32, %arg1: memref<2x8x32xf32, #tpu.memory_space<vmem>>, %arg2: memref<2x8x32xf32, #tpu.memory_space<vmem>>, %arg3: memref<2x6x32xf32, #tpu.memory_space<vmem>>, %arg4: memref<2x6x32xf32, #tpu.memory_space<vmem>>, %arg5: memref<6x32xf32, #tpu.memory_space<vmem>>, %arg6: memref<8x32x8xf32, #tpu.memory_space<vmem>>, %arg7: memref<8x128xf32, #tpu.memory_space<vmem>>) attributes {dimension_semantics = [#tpu.dimension_semantics<parallel>], iteration_bounds = array<i64: 2>, scalar_prefetch = 0 : i64, scratch_operands = 0 : i64, tpu.core_type = #tpu.core_type<tc>, window_params = [{transform_indices = @transform_0, window_bounds = array<i64: 2, 8, 32>}, {transform_indices = @transform_1, window_bounds = array<i64: 2, 8, 32>}, {pipeline_mode = #tpu.pipeline_mode<synchronous>, transform_indices = @transform_2, window_bounds = array<i64: 2, 6, 32>}, {pipeline_mode = #tpu.pipeline_mode<synchronous>, transform_indices = @transform_3, window_bounds = array<i64: 2, 6, 32>}, {pipeline_mode = #tpu.pipeline_mode<synchronous>, transform_indices = @transform_4, window_bounds = array<i64: 6, 32>}, {pipeline_mode = #tpu.pipeline_mode<synchronous>, transform_indices = @transform_5, window_bounds = array<i64: 8, 32, 8>}, {transform_indices = @transform_6, window_bounds = array<i64: 8, 128>}]} {
    %c0 = arith.constant 0 : index
    %c0_0 = arith.constant 0 : index
    %c0_1 = arith.constant 0 : index
    %0 = vector.load %arg6[%c0, %c0_0, %c0_1] : memref<8x32x8xf32, #tpu.memory_space<vmem>>, vector<8x32x8xf32>
    %1 = arith.mulf %0, %0 : vector<8x32x8xf32>
    %c0_2 = arith.constant 0 : index
    %c0_3 = arith.constant 0 : index
    %c0_4 = arith.constant 0 : index
    %2 = vector.load %arg1[%c0_2, %c0_3, %c0_4] : memref<2x8x32xf32, #tpu.memory_space<vmem>>, vector<2x8x32xf32>
    %c0_5 = arith.constant 0 : index
    %c0_6 = arith.constant 0 : index
    %c0_7 = arith.constant 0 : index
    %3 = vector.load %arg2[%c0_5, %c0_6, %c0_7] : memref<2x8x32xf32, #tpu.memory_space<vmem>>, vector<2x8x32xf32>
    %c0_8 = arith.constant 0 : index
    %c0_9 = arith.constant 0 : index
    %c0_10 = arith.constant 0 : index
    %4 = vector.load %arg3[%c0_8, %c0_9, %c0_10] : memref<2x6x32xf32, #tpu.memory_space<vmem>>, vector<2x6x32xf32>
    %c0_11 = arith.constant 0 : index
    %c0_12 = arith.constant 0 : index
    %c0_13 = arith.constant 0 : index
    %5 = vector.load %arg4[%c0_11, %c0_12, %c0_13] : memref<2x6x32xf32, #tpu.memory_space<vmem>>, vector<2x6x32xf32>
    %6 = arith.mulf %2, %2 : vector<2x8x32xf32>
    %7 = arith.mulf %4, %4 : vector<2x6x32xf32>
    "tpu.trace_start"() <{level = 10 : i32, message = "btd,bnd->btn"}> : () -> ()
    %cst = arith.constant dense<0.000000e+00> : vector<2x8x6xf32>
    %8 = tpu.matmul %2, %4, %cst {dimension_numbers = #tpu.dot_dimension_numbers<[2], [2], [1], [1], [0, 0, 0, 1, 1, 1], [0], [0]>} : vector<2x8x32xf32>, vector<2x6x32xf32>, vector<2x8x6xf32> -> vector<2x8x6xf32>
    "tpu.trace_stop"() : () -> ()
    %cst_14 = arith.constant dense<0.000000e+00> : vector<2x8xf32>
    %9 = vector.multi_reduction <add>, %6, %cst_14 [2] : vector<2x8x32xf32> to vector<2x8xf32>
    %10 = vector.shape_cast %9 : vector<2x8xf32> to vector<2x8x1xf32>
    %cst_15 = arith.constant 9.99999997E-7 : f32
    %11 = vector.broadcast %cst_15 : f32 to vector<2x8x1xf32>
    %12 = arith.maximumf %10, %11 : vector<2x8x1xf32>
    %13 = math.rsqrt %12 : vector<2x8x1xf32>
    %cst_16 = arith.constant dense<0.000000e+00> : vector<2x6xf32>
    %14 = vector.multi_reduction <add>, %7, %cst_16 [2] : vector<2x6x32xf32> to vector<2x6xf32>
    %cst_17 = arith.constant 9.99999997E-7 : f32
    %15 = vector.broadcast %cst_17 : f32 to vector<2x6xf32>
    %16 = arith.maximumf %14, %15 : vector<2x6xf32>
    %17 = math.rsqrt %16 : vector<2x6xf32>
    %18 = vector.broadcast %13 : vector<2x8x1xf32> to vector<2x8x6xf32>
    %19 = arith.mulf %8, %18 : vector<2x8x6xf32>
    %20 = vector.shape_cast %17 : vector<2x6xf32> to vector<2x1x6xf32>
    %21 = vector.broadcast %20 : vector<2x1x6xf32> to vector<2x8x6xf32>
    %22 = arith.mulf %19, %21 : vector<2x8x6xf32>
    %23 = vector.extract_strided_slice %4 {offsets = [0, 5, 0], sizes = [2, 1, 32], strides = [1, 1, 1]} : vector<2x6x32xf32> to vector<2x1x32xf32>
    %24 = vector.broadcast %23 : vector<2x1x32xf32> to vector<2x8x32xf32>
    %25 = arith.mulf %2, %24 : vector<2x8x32xf32>
    %26 = vector.shape_cast %25 : vector<2x8x32xf32> to vector<16x32xf32>
    %27 = vector.extract_strided_slice %1 {offsets = [0, 0, 0], sizes = [1, 32, 8], strides = [1, 1, 1]} : vector<8x32x8xf32> to vector<1x32x8xf32>
    %28 = vector.shape_cast %27 : vector<1x32x8xf32> to vector<32x8xf32>
    %cst_18 = arith.constant dense<0.000000e+00> : vector<16x8xf32>
    %29 = tpu.matmul %26, %28, %cst_18 {dimension_numbers = #tpu.dot_dimension_numbers<[1], [0], [0], [1], [0, 0, 1, 1], [], []>} : vector<16x32xf32>, vector<32x8xf32>, vector<16x8xf32> -> vector<16x8xf32>
    %30 = vector.shape_cast %29 : vector<16x8xf32> to vector<2x8x8xf32>
    %31 = vector.shape_cast %6 : vector<2x8x32xf32> to vector<16x32xf32>
    %32 = vector.extract_strided_slice %1 {offsets = [0, 0, 0], sizes = [1, 32, 8], strides = [1, 1, 1]} : vector<8x32x8xf32> to vector<1x32x8xf32>
    %33 = vector.shape_cast %32 : vector<1x32x8xf32> to vector<32x8xf32>
    %cst_19 = arith.constant dense<0.000000e+00> : vector<16x8xf32>
    %34 = tpu.matmul %31, %33, %cst_19 {dimension_numbers = #tpu.dot_dimension_numbers<[1], [0], [0], [1], [0, 0, 1, 1], [], []>} : vector<16x32xf32>, vector<32x8xf32>, vector<16x8xf32> -> vector<16x8xf32>
    %35 = vector.shape_cast %34 : vector<16x8xf32> to vector<2x8x8xf32>
    %cst_20 = arith.constant 9.99999997E-7 : f32
    %36 = vector.broadcast %cst_20 : f32 to vector<2x8x8xf32>
    %37 = arith.maximumf %35, %36 : vector<2x8x8xf32>
    %38 = math.rsqrt %37 : vector<2x8x8xf32>
    %39 = arith.mulf %30, %38 : vector<2x8x8xf32>
    %40 = arith.mulf %23, %23 : vector<2x1x32xf32>
    %41 = vector.shape_cast %40 : vector<2x1x32xf32> to vector<2x32xf32>
    %42 = vector.extract_strided_slice %1 {offsets = [0, 0, 0], sizes = [1, 32, 8], strides = [1, 1, 1]} : vector<8x32x8xf32> to vector<1x32x8xf32>
    %43 = vector.shape_cast %42 : vector<1x32x8xf32> to vector<32x8xf32>
    %cst_21 = arith.constant dense<0.000000e+00> : vector<2x8xf32>
    %44 = tpu.matmul %41, %43, %cst_21 {dimension_numbers = #tpu.dot_dimension_numbers<[1], [0], [0], [1], [0, 0, 1, 1], [], []>} : vector<2x32xf32>, vector<32x8xf32>, vector<2x8xf32> -> vector<2x8xf32>
    %45 = vector.shape_cast %44 : vector<2x8xf32> to vector<2x1x8xf32>
    %cst_22 = arith.constant 9.99999997E-7 : f32
    %46 = vector.broadcast %cst_22 : f32 to vector<2x1x8xf32>
    %47 = arith.maximumf %45, %46 : vector<2x1x8xf32>
    %48 = math.rsqrt %47 : vector<2x1x8xf32>
    %49 = vector.broadcast %48 : vector<2x1x8xf32> to vector<2x8x8xf32>
    %50 = arith.mulf %39, %49 : vector<2x8x8xf32>
    %51 = vector.extract_strided_slice %1 {offsets = [2, 0, 0], sizes = [1, 32, 8], strides = [1, 1, 1]} : vector<8x32x8xf32> to vector<1x32x8xf32>
    %52 = vector.shape_cast %51 : vector<1x32x8xf32> to vector<32x8xf32>
    %53 = tpu.transpose %52, [1, 0] : vector<32x8xf32> -> vector<8x32xf32>
    %54 = vector.shape_cast %2 : vector<2x8x32xf32> to vector<2x8x1x32xf32>
    %55 = vector.shape_cast %53 : vector<8x32xf32> to vector<1x1x8x32xf32>
    %56 = vector.broadcast %54 : vector<2x8x1x32xf32> to vector<2x8x8x32xf32>
    %57 = vector.broadcast %55 : vector<1x1x8x32xf32> to vector<2x8x8x32xf32>
    %58 = arith.mulf %56, %57 : vector<2x8x8x32xf32>
    %59 = vector.shape_cast %58 : vector<2x8x8x32xf32> to vector<2x64x32xf32>
    "tpu.trace_start"() <{level = 10 : i32, message = "bqd,bnd->bqn"}> : () -> ()
    %cst_23 = arith.constant dense<0.000000e+00> : vector<2x64x6xf32>
    %60 = tpu.matmul %59, %4, %cst_23 {dimension_numbers = #tpu.dot_dimension_numbers<[2], [2], [1], [1], [0, 0, 0, 1, 1, 1], [0], [0]>} : vector<2x64x32xf32>, vector<2x6x32xf32>, vector<2x64x6xf32> -> vector<2x64x6xf32>
    "tpu.trace_stop"() : () -> ()
    %61 = vector.shape_cast %60 : vector<2x64x6xf32> to vector<2x8x8x6xf32>
    %62 = vector.shape_cast %6 : vector<2x8x32xf32> to vector<16x32xf32>
    %63 = vector.extract_strided_slice %1 {offsets = [2, 0, 0], sizes = [1, 32, 8], strides = [1, 1, 1]} : vector<8x32x8xf32> to vector<1x32x8xf32>
    %64 = vector.shape_cast %63 : vector<1x32x8xf32> to vector<32x8xf32>
    %cst_24 = arith.constant dense<0.000000e+00> : vector<16x8xf32>
    %65 = tpu.matmul %62, %64, %cst_24 {dimension_numbers = #tpu.dot_dimension_numbers<[1], [0], [0], [1], [0, 0, 1, 1], [], []>} : vector<16x32xf32>, vector<32x8xf32>, vector<16x8xf32> -> vector<16x8xf32>
    %66 = vector.shape_cast %65 : vector<16x8xf32> to vector<2x8x8xf32>
    %cst_25 = arith.constant 9.99999997E-7 : f32
    %67 = vector.broadcast %cst_25 : f32 to vector<2x8x8xf32>
    %68 = arith.maximumf %66, %67 : vector<2x8x8xf32>
    %69 = math.rsqrt %68 : vector<2x8x8xf32>
    %70 = vector.shape_cast %7 : vector<2x6x32xf32> to vector<12x32xf32>
    %71 = vector.extract_strided_slice %1 {offsets = [2, 0, 0], sizes = [1, 32, 8], strides = [1, 1, 1]} : vector<8x32x8xf32> to vector<1x32x8xf32>
    %72 = vector.shape_cast %71 : vector<1x32x8xf32> to vector<32x8xf32>
    %cst_26 = arith.constant dense<0.000000e+00> : vector<12x8xf32>
    %73 = tpu.matmul %70, %72, %cst_26 {dimension_numbers = #tpu.dot_dimension_numbers<[1], [0], [0], [1], [0, 0, 1, 1], [], []>} : vector<12x32xf32>, vector<32x8xf32>, vector<12x8xf32> -> vector<12x8xf32>
    %74 = vector.shape_cast %73 : vector<12x8xf32> to vector<2x6x8xf32>
    %cst_27 = arith.constant 9.99999997E-7 : f32
    %75 = vector.broadcast %cst_27 : f32 to vector<2x6x8xf32>
    %76 = arith.maximumf %74, %75 : vector<2x6x8xf32>
    %77 = math.rsqrt %76 : vector<2x6x8xf32>
    %78 = vector.shape_cast %69 : vector<2x8x8xf32> to vector<2x8x8x1xf32>
    %79 = vector.broadcast %78 : vector<2x8x8x1xf32> to vector<2x8x8x6xf32>
    %80 = arith.mulf %61, %79 : vector<2x8x8x6xf32>
    %81 = tpu.transpose %77, [0, 2, 1] : vector<2x6x8xf32> -> vector<2x8x6xf32>
    %82 = vector.shape_cast %81 : vector<2x8x6xf32> to vector<2x1x8x6xf32>
    %83 = vector.broadcast %82 : vector<2x1x8x6xf32> to vector<2x8x8x6xf32>
    %84 = arith.mulf %80, %83 : vector<2x8x8x6xf32>
    %cst_28 = arith.constant dense<0xFF800000> : vector<2x8x8xf32>
    %85 = vector.multi_reduction <maximumf>, %84, %cst_28 [3] : vector<2x8x8x6xf32> to vector<2x8x8xf32>
    "tpu.trace_start"() <{level = 10 : i32, message = "btn,bnd->btd"}> : () -> ()
    %cst_29 = arith.constant dense<0.000000e+00> : vector<2x8x32xf32>
    %86 = tpu.matmul %22, %4, %cst_29 {dimension_numbers = #tpu.dot_dimension_numbers<[2], [1], [1], [2], [0, 0, 0, 1, 1, 2], [0], [0]>} : vector<2x8x6xf32>, vector<2x6x32xf32>, vector<2x8x32xf32> -> vector<2x8x32xf32>
    "tpu.trace_stop"() : () -> ()
    %cst_30 = arith.constant dense<0.000000e+00> : vector<2x8xf32>
    %87 = vector.multi_reduction <add>, %22, %cst_30 [2] : vector<2x8x6xf32> to vector<2x8xf32>
    %88 = vector.shape_cast %87 : vector<2x8xf32> to vector<2x8x1xf32>
    %cst_31 = arith.constant 9.99999997E-7 : f32
    %89 = vector.broadcast %cst_31 : f32 to vector<2x8x1xf32>
    %90 = arith.addf %88, %89 : vector<2x8x1xf32>
    %cst_32 = arith.constant 1.000000e+00 : f32
    %91 = vector.broadcast %cst_32 : f32 to vector<2x8x1xf32>
    %92 = arith.divf %91, %90 : vector<2x8x1xf32>
    %93 = vector.broadcast %92 : vector<2x8x1xf32> to vector<2x8x32xf32>
    %94 = arith.mulf %86, %93 : vector<2x8x32xf32>
    %95 = arith.mulf %2, %94 : vector<2x8x32xf32>
    %96 = vector.shape_cast %95 : vector<2x8x32xf32> to vector<16x32xf32>
    %97 = vector.extract_strided_slice %1 {offsets = [4, 0, 0], sizes = [1, 32, 8], strides = [1, 1, 1]} : vector<8x32x8xf32> to vector<1x32x8xf32>
    %98 = vector.shape_cast %97 : vector<1x32x8xf32> to vector<32x8xf32>
    %cst_33 = arith.constant dense<0.000000e+00> : vector<16x8xf32>
    %99 = tpu.matmul %96, %98, %cst_33 {dimension_numbers = #tpu.dot_dimension_numbers<[1], [0], [0], [1], [0, 0, 1, 1], [], []>} : vector<16x32xf32>, vector<32x8xf32>, vector<16x8xf32> -> vector<16x8xf32>
    %100 = vector.shape_cast %99 : vector<16x8xf32> to vector<2x8x8xf32>
    %101 = vector.shape_cast %6 : vector<2x8x32xf32> to vector<16x32xf32>
    %102 = vector.extract_strided_slice %1 {offsets = [4, 0, 0], sizes = [1, 32, 8], strides = [1, 1, 1]} : vector<8x32x8xf32> to vector<1x32x8xf32>
    %103 = vector.shape_cast %102 : vector<1x32x8xf32> to vector<32x8xf32>
    %cst_34 = arith.constant dense<0.000000e+00> : vector<16x8xf32>
    %104 = tpu.matmul %101, %103, %cst_34 {dimension_numbers = #tpu.dot_dimension_numbers<[1], [0], [0], [1], [0, 0, 1, 1], [], []>} : vector<16x32xf32>, vector<32x8xf32>, vector<16x8xf32> -> vector<16x8xf32>
    %105 = vector.shape_cast %104 : vector<16x8xf32> to vector<2x8x8xf32>
    %cst_35 = arith.constant 9.99999997E-7 : f32
    %106 = vector.broadcast %cst_35 : f32 to vector<2x8x8xf32>
    %107 = arith.maximumf %105, %106 : vector<2x8x8xf32>
    %108 = math.rsqrt %107 : vector<2x8x8xf32>
    %109 = arith.mulf %100, %108 : vector<2x8x8xf32>
    %110 = arith.mulf %94, %94 : vector<2x8x32xf32>
    %111 = vector.shape_cast %110 : vector<2x8x32xf32> to vector<16x32xf32>
    %112 = vector.extract_strided_slice %1 {offsets = [4, 0, 0], sizes = [1, 32, 8], strides = [1, 1, 1]} : vector<8x32x8xf32> to vector<1x32x8xf32>
    %113 = vector.shape_cast %112 : vector<1x32x8xf32> to vector<32x8xf32>
    %cst_36 = arith.constant dense<0.000000e+00> : vector<16x8xf32>
    %114 = tpu.matmul %111, %113, %cst_36 {dimension_numbers = #tpu.dot_dimension_numbers<[1], [0], [0], [1], [0, 0, 1, 1], [], []>} : vector<16x32xf32>, vector<32x8xf32>, vector<16x8xf32> -> vector<16x8xf32>
    %115 = vector.shape_cast %114 : vector<16x8xf32> to vector<2x8x8xf32>
    %cst_37 = arith.constant 9.99999997E-7 : f32
    %116 = vector.broadcast %cst_37 : f32 to vector<2x8x8xf32>
    %117 = arith.maximumf %115, %116 : vector<2x8x8xf32>
    %118 = math.rsqrt %117 : vector<2x8x8xf32>
    %119 = arith.mulf %109, %118 : vector<2x8x8xf32>
    %120 = arith.mulf %3, %3 : vector<2x8x32xf32>
    %121 = arith.mulf %5, %5 : vector<2x6x32xf32>
    "tpu.trace_start"() <{level = 10 : i32, message = "btd,bnd->btn"}> : () -> ()
    %cst_38 = arith.constant dense<0.000000e+00> : vector<2x8x6xf32>
    %122 = tpu.matmul %3, %5, %cst_38 {dimension_numbers = #tpu.dot_dimension_numbers<[2], [2], [1], [1], [0, 0, 0, 1, 1, 1], [0], [0]>} : vector<2x8x32xf32>, vector<2x6x32xf32>, vector<2x8x6xf32> -> vector<2x8x6xf32>
    "tpu.trace_stop"() : () -> ()
    %cst_39 = arith.constant dense<0.000000e+00> : vector<2x8xf32>
    %123 = vector.multi_reduction <add>, %120, %cst_39 [2] : vector<2x8x32xf32> to vector<2x8xf32>
    %124 = vector.shape_cast %123 : vector<2x8xf32> to vector<2x8x1xf32>
    %cst_40 = arith.constant 9.99999997E-7 : f32
    %125 = vector.broadcast %cst_40 : f32 to vector<2x8x1xf32>
    %126 = arith.maximumf %124, %125 : vector<2x8x1xf32>
    %127 = math.rsqrt %126 : vector<2x8x1xf32>
    %cst_41 = arith.constant dense<0.000000e+00> : vector<2x6xf32>
    %128 = vector.multi_reduction <add>, %121, %cst_41 [2] : vector<2x6x32xf32> to vector<2x6xf32>
    %cst_42 = arith.constant 9.99999997E-7 : f32
    %129 = vector.broadcast %cst_42 : f32 to vector<2x6xf32>
    %130 = arith.maximumf %128, %129 : vector<2x6xf32>
    %131 = math.rsqrt %130 : vector<2x6xf32>
    %132 = vector.broadcast %127 : vector<2x8x1xf32> to vector<2x8x6xf32>
    %133 = arith.mulf %122, %132 : vector<2x8x6xf32>
    %134 = vector.shape_cast %131 : vector<2x6xf32> to vector<2x1x6xf32>
    %135 = vector.broadcast %134 : vector<2x1x6xf32> to vector<2x8x6xf32>
    %136 = arith.mulf %133, %135 : vector<2x8x6xf32>
    %137 = vector.extract_strided_slice %5 {offsets = [0, 5, 0], sizes = [2, 1, 32], strides = [1, 1, 1]} : vector<2x6x32xf32> to vector<2x1x32xf32>
    %138 = vector.broadcast %137 : vector<2x1x32xf32> to vector<2x8x32xf32>
    %139 = arith.mulf %3, %138 : vector<2x8x32xf32>
    %140 = vector.shape_cast %139 : vector<2x8x32xf32> to vector<16x32xf32>
    %141 = vector.extract_strided_slice %1 {offsets = [1, 0, 0], sizes = [1, 32, 8], strides = [1, 1, 1]} : vector<8x32x8xf32> to vector<1x32x8xf32>
    %142 = vector.shape_cast %141 : vector<1x32x8xf32> to vector<32x8xf32>
    %cst_43 = arith.constant dense<0.000000e+00> : vector<16x8xf32>
    %143 = tpu.matmul %140, %142, %cst_43 {dimension_numbers = #tpu.dot_dimension_numbers<[1], [0], [0], [1], [0, 0, 1, 1], [], []>} : vector<16x32xf32>, vector<32x8xf32>, vector<16x8xf32> -> vector<16x8xf32>
    %144 = vector.shape_cast %143 : vector<16x8xf32> to vector<2x8x8xf32>
    %145 = vector.shape_cast %120 : vector<2x8x32xf32> to vector<16x32xf32>
    %146 = vector.extract_strided_slice %1 {offsets = [1, 0, 0], sizes = [1, 32, 8], strides = [1, 1, 1]} : vector<8x32x8xf32> to vector<1x32x8xf32>
    %147 = vector.shape_cast %146 : vector<1x32x8xf32> to vector<32x8xf32>
    %cst_44 = arith.constant dense<0.000000e+00> : vector<16x8xf32>
    %148 = tpu.matmul %145, %147, %cst_44 {dimension_numbers = #tpu.dot_dimension_numbers<[1], [0], [0], [1], [0, 0, 1, 1], [], []>} : vector<16x32xf32>, vector<32x8xf32>, vector<16x8xf32> -> vector<16x8xf32>
    %149 = vector.shape_cast %148 : vector<16x8xf32> to vector<2x8x8xf32>
    %cst_45 = arith.constant 9.99999997E-7 : f32
    %150 = vector.broadcast %cst_45 : f32 to vector<2x8x8xf32>
    %151 = arith.maximumf %149, %150 : vector<2x8x8xf32>
    %152 = math.rsqrt %151 : vector<2x8x8xf32>
    %153 = arith.mulf %144, %152 : vector<2x8x8xf32>
    %154 = arith.mulf %137, %137 : vector<2x1x32xf32>
    %155 = vector.shape_cast %154 : vector<2x1x32xf32> to vector<2x32xf32>
    %156 = vector.extract_strided_slice %1 {offsets = [1, 0, 0], sizes = [1, 32, 8], strides = [1, 1, 1]} : vector<8x32x8xf32> to vector<1x32x8xf32>
    %157 = vector.shape_cast %156 : vector<1x32x8xf32> to vector<32x8xf32>
    %cst_46 = arith.constant dense<0.000000e+00> : vector<2x8xf32>
    %158 = tpu.matmul %155, %157, %cst_46 {dimension_numbers = #tpu.dot_dimension_numbers<[1], [0], [0], [1], [0, 0, 1, 1], [], []>} : vector<2x32xf32>, vector<32x8xf32>, vector<2x8xf32> -> vector<2x8xf32>
    %159 = vector.shape_cast %158 : vector<2x8xf32> to vector<2x1x8xf32>
    %cst_47 = arith.constant 9.99999997E-7 : f32
    %160 = vector.broadcast %cst_47 : f32 to vector<2x1x8xf32>
    %161 = arith.maximumf %159, %160 : vector<2x1x8xf32>
    %162 = math.rsqrt %161 : vector<2x1x8xf32>
    %163 = vector.broadcast %162 : vector<2x1x8xf32> to vector<2x8x8xf32>
    %164 = arith.mulf %153, %163 : vector<2x8x8xf32>
    %165 = vector.extract_strided_slice %1 {offsets = [3, 0, 0], sizes = [1, 32, 8], strides = [1, 1, 1]} : vector<8x32x8xf32> to vector<1x32x8xf32>
    %166 = vector.shape_cast %165 : vector<1x32x8xf32> to vector<32x8xf32>
    %167 = tpu.transpose %166, [1, 0] : vector<32x8xf32> -> vector<8x32xf32>
    %168 = vector.shape_cast %3 : vector<2x8x32xf32> to vector<2x8x1x32xf32>
    %169 = vector.shape_cast %167 : vector<8x32xf32> to vector<1x1x8x32xf32>
    %170 = vector.broadcast %168 : vector<2x8x1x32xf32> to vector<2x8x8x32xf32>
    %171 = vector.broadcast %169 : vector<1x1x8x32xf32> to vector<2x8x8x32xf32>
    %172 = arith.mulf %170, %171 : vector<2x8x8x32xf32>
    %173 = vector.shape_cast %172 : vector<2x8x8x32xf32> to vector<2x64x32xf32>
    "tpu.trace_start"() <{level = 10 : i32, message = "bqd,bnd->bqn"}> : () -> ()
    %cst_48 = arith.constant dense<0.000000e+00> : vector<2x64x6xf32>
    %174 = tpu.matmul %173, %5, %cst_48 {dimension_numbers = #tpu.dot_dimension_numbers<[2], [2], [1], [1], [0, 0, 0, 1, 1, 1], [0], [0]>} : vector<2x64x32xf32>, vector<2x6x32xf32>, vector<2x64x6xf32> -> vector<2x64x6xf32>
    "tpu.trace_stop"() : () -> ()
    %175 = vector.shape_cast %174 : vector<2x64x6xf32> to vector<2x8x8x6xf32>
    %176 = vector.shape_cast %120 : vector<2x8x32xf32> to vector<16x32xf32>
    %177 = vector.extract_strided_slice %1 {offsets = [3, 0, 0], sizes = [1, 32, 8], strides = [1, 1, 1]} : vector<8x32x8xf32> to vector<1x32x8xf32>
    %178 = vector.shape_cast %177 : vector<1x32x8xf32> to vector<32x8xf32>
    %cst_49 = arith.constant dense<0.000000e+00> : vector<16x8xf32>
    %179 = tpu.matmul %176, %178, %cst_49 {dimension_numbers = #tpu.dot_dimension_numbers<[1], [0], [0], [1], [0, 0, 1, 1], [], []>} : vector<16x32xf32>, vector<32x8xf32>, vector<16x8xf32> -> vector<16x8xf32>
    %180 = vector.shape_cast %179 : vector<16x8xf32> to vector<2x8x8xf32>
    %cst_50 = arith.constant 9.99999997E-7 : f32
    %181 = vector.broadcast %cst_50 : f32 to vector<2x8x8xf32>
    %182 = arith.maximumf %180, %181 : vector<2x8x8xf32>
    %183 = math.rsqrt %182 : vector<2x8x8xf32>
    %184 = vector.shape_cast %121 : vector<2x6x32xf32> to vector<12x32xf32>
    %185 = vector.extract_strided_slice %1 {offsets = [3, 0, 0], sizes = [1, 32, 8], strides = [1, 1, 1]} : vector<8x32x8xf32> to vector<1x32x8xf32>
    %186 = vector.shape_cast %185 : vector<1x32x8xf32> to vector<32x8xf32>
    %cst_51 = arith.constant dense<0.000000e+00> : vector<12x8xf32>
    %187 = tpu.matmul %184, %186, %cst_51 {dimension_numbers = #tpu.dot_dimension_numbers<[1], [0], [0], [1], [0, 0, 1, 1], [], []>} : vector<12x32xf32>, vector<32x8xf32>, vector<12x8xf32> -> vector<12x8xf32>
    %188 = vector.shape_cast %187 : vector<12x8xf32> to vector<2x6x8xf32>
    %cst_52 = arith.constant 9.99999997E-7 : f32
    %189 = vector.broadcast %cst_52 : f32 to vector<2x6x8xf32>
    %190 = arith.maximumf %188, %189 : vector<2x6x8xf32>
    %191 = math.rsqrt %190 : vector<2x6x8xf32>
    %192 = vector.shape_cast %183 : vector<2x8x8xf32> to vector<2x8x8x1xf32>
    %193 = vector.broadcast %192 : vector<2x8x8x1xf32> to vector<2x8x8x6xf32>
    %194 = arith.mulf %175, %193 : vector<2x8x8x6xf32>
    %195 = tpu.transpose %191, [0, 2, 1] : vector<2x6x8xf32> -> vector<2x8x6xf32>
    %196 = vector.shape_cast %195 : vector<2x8x6xf32> to vector<2x1x8x6xf32>
    %197 = vector.broadcast %196 : vector<2x1x8x6xf32> to vector<2x8x8x6xf32>
    %198 = arith.mulf %194, %197 : vector<2x8x8x6xf32>
    %cst_53 = arith.constant dense<0xFF800000> : vector<2x8x8xf32>
    %199 = vector.multi_reduction <maximumf>, %198, %cst_53 [3] : vector<2x8x8x6xf32> to vector<2x8x8xf32>
    "tpu.trace_start"() <{level = 10 : i32, message = "btn,bnd->btd"}> : () -> ()
    %cst_54 = arith.constant dense<0.000000e+00> : vector<2x8x32xf32>
    %200 = tpu.matmul %136, %5, %cst_54 {dimension_numbers = #tpu.dot_dimension_numbers<[2], [1], [1], [2], [0, 0, 0, 1, 1, 2], [0], [0]>} : vector<2x8x6xf32>, vector<2x6x32xf32>, vector<2x8x32xf32> -> vector<2x8x32xf32>
    "tpu.trace_stop"() : () -> ()
    %cst_55 = arith.constant dense<0.000000e+00> : vector<2x8xf32>
    %201 = vector.multi_reduction <add>, %136, %cst_55 [2] : vector<2x8x6xf32> to vector<2x8xf32>
    %202 = vector.shape_cast %201 : vector<2x8xf32> to vector<2x8x1xf32>
    %cst_56 = arith.constant 9.99999997E-7 : f32
    %203 = vector.broadcast %cst_56 : f32 to vector<2x8x1xf32>
    %204 = arith.addf %202, %203 : vector<2x8x1xf32>
    %cst_57 = arith.constant 1.000000e+00 : f32
    %205 = vector.broadcast %cst_57 : f32 to vector<2x8x1xf32>
    %206 = arith.divf %205, %204 : vector<2x8x1xf32>
    %207 = vector.broadcast %206 : vector<2x8x1xf32> to vector<2x8x32xf32>
    %208 = arith.mulf %200, %207 : vector<2x8x32xf32>
    %209 = arith.mulf %3, %208 : vector<2x8x32xf32>
    %210 = vector.shape_cast %209 : vector<2x8x32xf32> to vector<16x32xf32>
    %211 = vector.extract_strided_slice %1 {offsets = [5, 0, 0], sizes = [1, 32, 8], strides = [1, 1, 1]} : vector<8x32x8xf32> to vector<1x32x8xf32>
    %212 = vector.shape_cast %211 : vector<1x32x8xf32> to vector<32x8xf32>
    %cst_58 = arith.constant dense<0.000000e+00> : vector<16x8xf32>
    %213 = tpu.matmul %210, %212, %cst_58 {dimension_numbers = #tpu.dot_dimension_numbers<[1], [0], [0], [1], [0, 0, 1, 1], [], []>} : vector<16x32xf32>, vector<32x8xf32>, vector<16x8xf32> -> vector<16x8xf32>
    %214 = vector.shape_cast %213 : vector<16x8xf32> to vector<2x8x8xf32>
    %215 = vector.shape_cast %120 : vector<2x8x32xf32> to vector<16x32xf32>
    %216 = vector.extract_strided_slice %1 {offsets = [5, 0, 0], sizes = [1, 32, 8], strides = [1, 1, 1]} : vector<8x32x8xf32> to vector<1x32x8xf32>
    %217 = vector.shape_cast %216 : vector<1x32x8xf32> to vector<32x8xf32>
    %cst_59 = arith.constant dense<0.000000e+00> : vector<16x8xf32>
    %218 = tpu.matmul %215, %217, %cst_59 {dimension_numbers = #tpu.dot_dimension_numbers<[1], [0], [0], [1], [0, 0, 1, 1], [], []>} : vector<16x32xf32>, vector<32x8xf32>, vector<16x8xf32> -> vector<16x8xf32>
    %219 = vector.shape_cast %218 : vector<16x8xf32> to vector<2x8x8xf32>
    %cst_60 = arith.constant 9.99999997E-7 : f32
    %220 = vector.broadcast %cst_60 : f32 to vector<2x8x8xf32>
    %221 = arith.maximumf %219, %220 : vector<2x8x8xf32>
    %222 = math.rsqrt %221 : vector<2x8x8xf32>
    %223 = arith.mulf %214, %222 : vector<2x8x8xf32>
    %224 = arith.mulf %208, %208 : vector<2x8x32xf32>
    %225 = vector.shape_cast %224 : vector<2x8x32xf32> to vector<16x32xf32>
    %226 = vector.extract_strided_slice %1 {offsets = [5, 0, 0], sizes = [1, 32, 8], strides = [1, 1, 1]} : vector<8x32x8xf32> to vector<1x32x8xf32>
    %227 = vector.shape_cast %226 : vector<1x32x8xf32> to vector<32x8xf32>
    %cst_61 = arith.constant dense<0.000000e+00> : vector<16x8xf32>
    %228 = tpu.matmul %225, %227, %cst_61 {dimension_numbers = #tpu.dot_dimension_numbers<[1], [0], [0], [1], [0, 0, 1, 1], [], []>} : vector<16x32xf32>, vector<32x8xf32>, vector<16x8xf32> -> vector<16x8xf32>
    %229 = vector.shape_cast %228 : vector<16x8xf32> to vector<2x8x8xf32>
    %cst_62 = arith.constant 9.99999997E-7 : f32
    %230 = vector.broadcast %cst_62 : f32 to vector<2x8x8xf32>
    %231 = arith.maximumf %229, %230 : vector<2x8x8xf32>
    %232 = math.rsqrt %231 : vector<2x8x8xf32>
    %233 = arith.mulf %223, %232 : vector<2x8x8xf32>
    %cst_63 = arith.constant dense<0xFF800000> : vector<2x8xf32>
    %234 = vector.multi_reduction <maximumf>, %22, %cst_63 [2] : vector<2x8x6xf32> to vector<2x8xf32>
    %235 = vector.shape_cast %234 : vector<2x8xf32> to vector<2x8x1xf32>
    %236 = tpu.iota {dimensions = array<i32: 2>} : vector<2x8x6xi32>
    %237 = vector.broadcast %235 : vector<2x8x1xf32> to vector<2x8x6xf32>
    %238 = arith.cmpf oge, %22, %237 : vector<2x8x6xf32>
    %c6_i32 = arith.constant 6 : i32
    %239 = vector.broadcast %c6_i32 : i32 to vector<2x8x6xi32>
    %240 = arith.select %238, %236, %239 : vector<2x8x6xi1>, vector<2x8x6xi32>
    %cst_64 = arith.constant dense<2147483647> : vector<2x8xi32>
    %241 = vector.multi_reduction <minsi>, %240, %cst_64 [2] : vector<2x8x6xi32> to vector<2x8xi32>
    %242 = vector.shape_cast %241 : vector<2x8xi32> to vector<2x8x1xi32>
    %243 = vector.broadcast %242 : vector<2x8x1xi32> to vector<2x8x6xi32>
    %244 = arith.cmpi eq, %236, %243 : vector<2x8x6xi32>
    %245 = arith.extui %244 : vector<2x8x6xi1> to vector<2x8x6xi32>
    %246 = arith.sitofp %245 : vector<2x8x6xi32> to vector<2x8x6xf32>
    %247 = vector.shape_cast %246 : vector<2x8x6xf32> to vector<16x6xf32>
    %c0_65 = arith.constant 0 : index
    %c0_66 = arith.constant 0 : index
    %248 = vector.load %arg5[%c0_65, %c0_66] : memref<6x32xf32, #tpu.memory_space<vmem>>, vector<6x32xf32>
    %cst_67 = arith.constant dense<0.000000e+00> : vector<16x32xf32>
    %249 = tpu.matmul %247, %248, %cst_67 {dimension_numbers = #tpu.dot_dimension_numbers<[1], [0], [0], [1], [0, 0, 1, 1], [], []>} : vector<16x6xf32>, vector<6x32xf32>, vector<16x32xf32> -> vector<16x32xf32>
    %250 = vector.shape_cast %249 : vector<16x32xf32> to vector<2x8x32xf32>
    %251 = arith.mulf %2, %250 : vector<2x8x32xf32>
    %252 = vector.shape_cast %251 : vector<2x8x32xf32> to vector<16x32xf32>
    %253 = vector.extract_strided_slice %1 {offsets = [6, 0, 0], sizes = [1, 32, 8], strides = [1, 1, 1]} : vector<8x32x8xf32> to vector<1x32x8xf32>
    %254 = vector.shape_cast %253 : vector<1x32x8xf32> to vector<32x8xf32>
    %cst_68 = arith.constant dense<0.000000e+00> : vector<16x8xf32>
    %255 = tpu.matmul %252, %254, %cst_68 {dimension_numbers = #tpu.dot_dimension_numbers<[1], [0], [0], [1], [0, 0, 1, 1], [], []>} : vector<16x32xf32>, vector<32x8xf32>, vector<16x8xf32> -> vector<16x8xf32>
    %256 = vector.shape_cast %255 : vector<16x8xf32> to vector<2x8x8xf32>
    %257 = vector.shape_cast %6 : vector<2x8x32xf32> to vector<16x32xf32>
    %258 = vector.extract_strided_slice %1 {offsets = [6, 0, 0], sizes = [1, 32, 8], strides = [1, 1, 1]} : vector<8x32x8xf32> to vector<1x32x8xf32>
    %259 = vector.shape_cast %258 : vector<1x32x8xf32> to vector<32x8xf32>
    %cst_69 = arith.constant dense<0.000000e+00> : vector<16x8xf32>
    %260 = tpu.matmul %257, %259, %cst_69 {dimension_numbers = #tpu.dot_dimension_numbers<[1], [0], [0], [1], [0, 0, 1, 1], [], []>} : vector<16x32xf32>, vector<32x8xf32>, vector<16x8xf32> -> vector<16x8xf32>
    %261 = vector.shape_cast %260 : vector<16x8xf32> to vector<2x8x8xf32>
    %cst_70 = arith.constant 9.99999997E-7 : f32
    %262 = vector.broadcast %cst_70 : f32 to vector<2x8x8xf32>
    %263 = arith.maximumf %261, %262 : vector<2x8x8xf32>
    %264 = math.rsqrt %263 : vector<2x8x8xf32>
    %265 = arith.mulf %256, %264 : vector<2x8x8xf32>
    %266 = arith.mulf %250, %250 : vector<2x8x32xf32>
    %267 = vector.shape_cast %266 : vector<2x8x32xf32> to vector<16x32xf32>
    %268 = vector.extract_strided_slice %1 {offsets = [6, 0, 0], sizes = [1, 32, 8], strides = [1, 1, 1]} : vector<8x32x8xf32> to vector<1x32x8xf32>
    %269 = vector.shape_cast %268 : vector<1x32x8xf32> to vector<32x8xf32>
    %cst_71 = arith.constant dense<0.000000e+00> : vector<16x8xf32>
    %270 = tpu.matmul %267, %269, %cst_71 {dimension_numbers = #tpu.dot_dimension_numbers<[1], [0], [0], [1], [0, 0, 1, 1], [], []>} : vector<16x32xf32>, vector<32x8xf32>, vector<16x8xf32> -> vector<16x8xf32>
    %271 = vector.shape_cast %270 : vector<16x8xf32> to vector<2x8x8xf32>
    %cst_72 = arith.constant 9.99999997E-7 : f32
    %272 = vector.broadcast %cst_72 : f32 to vector<2x8x8xf32>
    %273 = arith.maximumf %271, %272 : vector<2x8x8xf32>
    %274 = math.rsqrt %273 : vector<2x8x8xf32>
    %275 = arith.mulf %265, %274 : vector<2x8x8xf32>
    %276 = arith.mulf %3, %208 : vector<2x8x32xf32>
    %277 = vector.shape_cast %276 : vector<2x8x32xf32> to vector<16x32xf32>
    %278 = vector.extract_strided_slice %1 {offsets = [7, 0, 0], sizes = [1, 32, 8], strides = [1, 1, 1]} : vector<8x32x8xf32> to vector<1x32x8xf32>
    %279 = vector.shape_cast %278 : vector<1x32x8xf32> to vector<32x8xf32>
    %cst_73 = arith.constant dense<0.000000e+00> : vector<16x8xf32>
    %280 = tpu.matmul %277, %279, %cst_73 {dimension_numbers = #tpu.dot_dimension_numbers<[1], [0], [0], [1], [0, 0, 1, 1], [], []>} : vector<16x32xf32>, vector<32x8xf32>, vector<16x8xf32> -> vector<16x8xf32>
    %281 = vector.shape_cast %280 : vector<16x8xf32> to vector<2x8x8xf32>
    %282 = vector.shape_cast %120 : vector<2x8x32xf32> to vector<16x32xf32>
    %283 = vector.extract_strided_slice %1 {offsets = [7, 0, 0], sizes = [1, 32, 8], strides = [1, 1, 1]} : vector<8x32x8xf32> to vector<1x32x8xf32>
    %284 = vector.shape_cast %283 : vector<1x32x8xf32> to vector<32x8xf32>
    %cst_74 = arith.constant dense<0.000000e+00> : vector<16x8xf32>
    %285 = tpu.matmul %282, %284, %cst_74 {dimension_numbers = #tpu.dot_dimension_numbers<[1], [0], [0], [1], [0, 0, 1, 1], [], []>} : vector<16x32xf32>, vector<32x8xf32>, vector<16x8xf32> -> vector<16x8xf32>
    %286 = vector.shape_cast %285 : vector<16x8xf32> to vector<2x8x8xf32>
    %cst_75 = arith.constant 9.99999997E-7 : f32
    %287 = vector.broadcast %cst_75 : f32 to vector<2x8x8xf32>
    %288 = arith.maximumf %286, %287 : vector<2x8x8xf32>
    %289 = math.rsqrt %288 : vector<2x8x8xf32>
    %290 = arith.mulf %281, %289 : vector<2x8x8xf32>
    %291 = arith.mulf %208, %208 : vector<2x8x32xf32>
    %292 = vector.shape_cast %291 : vector<2x8x32xf32> to vector<16x32xf32>
    %293 = vector.extract_strided_slice %1 {offsets = [7, 0, 0], sizes = [1, 32, 8], strides = [1, 1, 1]} : vector<8x32x8xf32> to vector<1x32x8xf32>
    %294 = vector.shape_cast %293 : vector<1x32x8xf32> to vector<32x8xf32>
    %cst_76 = arith.constant dense<0.000000e+00> : vector<16x8xf32>
    %295 = tpu.matmul %292, %294, %cst_76 {dimension_numbers = #tpu.dot_dimension_numbers<[1], [0], [0], [1], [0, 0, 1, 1], [], []>} : vector<16x32xf32>, vector<32x8xf32>, vector<16x8xf32> -> vector<16x8xf32>
    %296 = vector.shape_cast %295 : vector<16x8xf32> to vector<2x8x8xf32>
    %cst_77 = arith.constant 9.99999997E-7 : f32
    %297 = vector.broadcast %cst_77 : f32 to vector<2x8x8xf32>
    %298 = arith.maximumf %296, %297 : vector<2x8x8xf32>
    %299 = math.rsqrt %298 : vector<2x8x8xf32>
    %300 = arith.mulf %290, %299 : vector<2x8x8xf32>
    %301 = tpu.concatenate %50, %164, %85, %199, %119, %233, %275, %300 in 2 : vector<2x8x8xf32>, vector<2x8x8xf32>, vector<2x8x8xf32>, vector<2x8x8xf32>, vector<2x8x8xf32>, vector<2x8x8xf32>, vector<2x8x8xf32>, vector<2x8x8xf32> -> vector<2x8x64xf32>
    %302 = vector.extract_strided_slice %301 {offsets = [0, 0, 0], sizes = [1, 8, 64], strides = [1, 1, 1]} : vector<2x8x64xf32> to vector<1x8x64xf32>
    %303 = vector.shape_cast %302 : vector<1x8x64xf32> to vector<8x64xf32>
    %304 = vector.extract_strided_slice %301 {offsets = [1, 0, 0], sizes = [1, 8, 64], strides = [1, 1, 1]} : vector<2x8x64xf32> to vector<1x8x64xf32>
    %305 = vector.shape_cast %304 : vector<1x8x64xf32> to vector<8x64xf32>
    %306 = tpu.concatenate %303, %305 in 1 : vector<8x64xf32>, vector<8x64xf32> -> vector<8x128xf32>
    %c0_78 = arith.constant 0 : index
    %c0_79 = arith.constant 0 : index
    %307 = vector.load %arg7[%c0_78, %c0_79] : memref<8x128xf32, #tpu.memory_space<vmem>>, vector<8x128xf32>
    tpu.vector_store %arg7[%c0_78, %c0_79], %306 {strides = array<i32>} : memref<8x128xf32, #tpu.memory_space<vmem>>, vector<8x128xf32>,
    return
  }
  func.func @transform_0(%arg0: i32) -> (i32, i32, i32) {
    %c0_i32 = arith.constant 0 : i32
    %c0_i32_0 = arith.constant 0 : i32
    %c0_i32_1 = arith.constant 0 : i32
    return %c0_i32, %arg0, %c0_i32_0 : i32, i32, i32
  }
  func.func @transform_1(%arg0: i32) -> (i32, i32, i32) {
    %c0_i32 = arith.constant 0 : i32
    %c0_i32_0 = arith.constant 0 : i32
    %c0_i32_1 = arith.constant 0 : i32
    return %c0_i32, %arg0, %c0_i32_0 : i32, i32, i32
  }
  func.func @transform_2(%arg0: i32) -> (i32, i32, i32) {
    %c0_i32 = arith.constant 0 : i32
    %c0_i32_0 = arith.constant 0 : i32
    %c0_i32_1 = arith.constant 0 : i32
    %c0_i32_2 = arith.constant 0 : i32
    return %c0_i32, %c0_i32_0, %c0_i32_1 : i32, i32, i32
  }
  func.func @transform_3(%arg0: i32) -> (i32, i32, i32) {
    %c0_i32 = arith.constant 0 : i32
    %c0_i32_0 = arith.constant 0 : i32
    %c0_i32_1 = arith.constant 0 : i32
    %c0_i32_2 = arith.constant 0 : i32
    return %c0_i32, %c0_i32_0, %c0_i32_1 : i32, i32, i32
  }
  func.func @transform_4(%arg0: i32) -> (i32, i32) {
    %c0_i32 = arith.constant 0 : i32
    %c0_i32_0 = arith.constant 0 : i32
    %c0_i32_1 = arith.constant 0 : i32
    return %c0_i32, %c0_i32_0 : i32, i32
  }
  func.func @transform_5(%arg0: i32) -> (i32, i32, i32) {
    %c0_i32 = arith.constant 0 : i32
    %c0_i32_0 = arith.constant 0 : i32
    %c0_i32_1 = arith.constant 0 : i32
    %c0_i32_2 = arith.constant 0 : i32
    return %c0_i32, %c0_i32_0, %c0_i32_1 : i32, i32, i32
  }
  func.func @transform_6(%arg0: i32) -> (i32, i32) {
    %c0_i32 = arith.constant 0 : i32
    %c0_i32_0 = arith.constant 0 : i32
    return %arg0, %c0_i32 : i32, i32
  }
}

</mosaic_0001>

<llo_original>
// kernel: tpu_custom_call.1
$region0: #{tpu_custom_call.1}
  #allocation0 [shape = 'u32[]', space=smem, size = 0x4, offset = 0x4, fixed_abs, tag = 'smem constant byte address 0x4 - core index']
  #allocation1 [shape = 'u32[72,128]{1,0:T(1,128)}', space=vmem, size = 0x9000, scoped, tag = 'internal scratch']
  %s0 = inlined_call_operand.vmem [shape: f32[2,16,32], index: 0, kind: input, shape index: {}]
  %s1 = inlined_call_operand.vmem [shape: f32[2,16,32], index: 1, kind: input, shape index: {}]
  %s2 = inlined_call_operand.vmem [shape: f32[2,6,32], index: 2, kind: input, shape index: {}]
  %s3 = inlined_call_operand.vmem [shape: f32[2,6,32], index: 3, kind: input, shape index: {}]
  %s4 = inlined_call_operand.vmem [shape: f32[6,32], index: 4, kind: input, shape index: {}]
  %s5 = inlined_call_operand.vmem [shape: f32[8,32,8], index: 5, kind: input, shape index: {}]
  %s6 = inlined_call_operand.hbm [shape: f32[16,128], index: 6, kind: output, shape index: {}]
  %s7 = sld [smem:[#allocation0]]
  $region133: #{tpu_custom_call.1} parent=0
    _
  %s9 = ssub.s32 1, %s7
  %s10 = scalar_select 0, %s9, %s7
  $region1: #{tpu_custom_call.1} parent=0
    #allocation2 [shape = 'u8[16384]{0}', space=vmem, size = 0x4000, scoped, tag = 'input window, operand 0']
    #allocation3 [shape = 'u8[16384]{0}', space=vmem, size = 0x4000, scoped, tag = 'input window, operand 1']
    #allocation4 [shape = 'u8[8192]{0}', space=vmem, size = 0x2000, scoped, tag = 'output window, operand 0']
    #allocation5 [shape = 's32[2]{0}', space=sflag, size = 0x8, scoped, tag = 'scoped memory for tpu_custom_call.1']
    %11 = vsyncpa [#allocation5], 0
    %s12 = scalar_lea.sflag [#allocation5], 1
    %13 = vsyncpa %s12, 0
    loop: start=0, step=1, limit=4
    $region2: #{tpu_custom_call.1} parent=1 // loop_pre_header
      _
    $region3: #{tpu_custom_call.1} parent=1 // loop_header
      %s15 = sphi 0, %s19
      %p16 = scmp.ge.s32.totalorder %s15, 4
      %s25 = sphi 0, %s27
      %s28 = sphi 0, %s25
      %s29 = sphi 0, %s28
      %s45 = sphi 0, %s29
      %s51 = sphi 0, %s53
      %s54 = sphi 0, %s51
      %s55 = sphi 0, %s54
      %s71 = sphi 0, %s55
      %s75 = sphi 0, %s75
      %s77 = sphi 0, %s75
      %s78 = sphi 0, %s77
      %s92 = sphi 0, %s78
      %s96 = sphi 0, %s96
      %s98 = sphi 0, %s96
      %s99 = sphi 0, %s98
      %s113 = sphi 0, %s99
      %s117 = sphi 0, %s117
      %s119 = sphi 0, %s117
      %s120 = sphi 0, %s119
      %s134 = sphi 0, %s120
      %s138 = sphi 0, %s138
      %s140 = sphi 0, %s138
      %s141 = sphi 0, %s140
      %s155 = sphi 0, %s141
      %s161 = sphi 0, %s163
      %s164 = sphi 0, %s161
      %s165 = sphi 0, %s164
      %s181 = sphi 0, %s165
    $region4: #{tpu_custom_call.1} parent=1 // loop_header_branch
      %18 = sbr.rel (%p16) target = $region8
    $region5: #{tpu_custom_call.1} parent=1 // loop_body
      %s20 = ssub.s32 %s15, 1
      %s21 = ssub.s32 %s15, 2
      %s22 = sadd.s32 %s15, 1
      %s23 = ssub.s32 %s15, %s22
      %p24 = scmp.eq.s32.totalorder %s23, 0
      %s26 = sadd.s32 %s25, 1
      %s27 = scalar_select %p24, %s25, %s26
      %p30 = pneg %p24
      %p31 = scmp.eq.s32.totalorder %s15, 1
      %p32 = por %p30, %p31
      %p33 = scmp.ne.s32.totalorder %s25, %s28
      %p34 = scmp.eq.s32.totalorder %s15, 0
      %p35 = por %p33, %p34
      %p36 = scmp.ne.s32.totalorder %s25, %s28
      %p37 = scmp.eq.s32.totalorder %s20, 1
      %p38 = por %p36, %p37
      %p39 = scmp.ne.s32.totalorder %s28, %s29
      %p40 = scmp.eq.s32.totalorder %s20, 0
      %p41 = por %p39, %p40
      %p42 = scmp.ne.s32.totalorder %s28, %s29
      %p43 = scmp.eq.s32.totalorder %s21, 1
      %p44 = por %p42, %p43
      %p46 = scmp.ne.s32.totalorder %s29, %s45
      %p47 = scmp.eq.s32.totalorder %s21, 0
      %p48 = por %p46, %p47
      %s49 = ssub.s32 %s15, %s22
      %p50 = scmp.eq.s32.totalorder %s49, 0
      %s52 = sadd.s32 %s51, 1
      %s53 = scalar_select %p50, %s51, %s52
      %p56 = pneg %p50
      %p57 = scmp.eq.s32.totalorder %s15, 1
      %p58 = por %p56, %p57
      %p59 = scmp.ne.s32.totalorder %s51, %s54
      %p60 = scmp.eq.s32.totalorder %s15, 0
      %p61 = por %p59, %p60
      %p62 = scmp.ne.s32.totalorder %s51, %s54
      %p63 = scmp.eq.s32.totalorder %s20, 1
      %p64 = por %p62, %p63
      %p65 = scmp.ne.s32.totalorder %s54, %s55
      %p66 = scmp.eq.s32.totalorder %s20, 0
      %p67 = por %p65, %p66
      %p68 = scmp.ne.s32.totalorder %s54, %s55
      %p69 = scmp.eq.s32.totalorder %s21, 1
      %p70 = por %p68, %p69
      %p72 = scmp.ne.s32.totalorder %s55, %s71
      %p73 = scmp.eq.s32.totalorder %s21, 0
      %p74 = por %p72, %p73
      %s76 = sadd.s32 %s75, 1
      %p79 = scmp.eq.s32.totalorder %s15, 1
      %p80 = scmp.ne.s32.totalorder %s75, %s77
      %p81 = scmp.eq.s32.totalorder %s15, 0
      %p82 = por %p80, %p81
      %p83 = scmp.ne.s32.totalorder %s75, %s77
      %p84 = scmp.eq.s32.totalorder %s20, 1
      %p85 = por %p83, %p84
      %p86 = scmp.ne.s32.totalorder %s77, %s78
      %p87 = scmp.eq.s32.totalorder %s20, 0
      %p88 = por %p86, %p87
      %p89 = scmp.ne.s32.totalorder %s77, %s78
      %p90 = scmp.eq.s32.totalorder %s21, 1
      %p91 = por %p89, %p90
      %p93 = scmp.ne.s32.totalorder %s78, %s92
      %p94 = scmp.eq.s32.totalorder %s21, 0
      %p95 = por %p93, %p94
      %s97 = sadd.s32 %s96, 1
      %p100 = scmp.eq.s32.totalorder %s15, 1
      %p101 = scmp.ne.s32.totalorder %s96, %s98
      %p102 = scmp.eq.s32.totalorder %s15, 0
      %p103 = por %p101, %p102
      %p104 = scmp.ne.s32.totalorder %s96, %s98
      %p105 = scmp.eq.s32.totalorder %s20, 1
      %p106 = por %p104, %p105
      %p107 = scmp.ne.s32.totalorder %s98, %s99
      %p108 = scmp.eq.s32.totalorder %s20, 0
      %p109 = por %p107, %p108
      %p110 = scmp.ne.s32.totalorder %s98, %s99
      %p111 = scmp.eq.s32.totalorder %s21, 1
      %p112 = por %p110, %p111
      %p114 = scmp.ne.s32.totalorder %s99, %s113
      %p115 = scmp.eq.s32.totalorder %s21, 0
      %p116 = por %p114, %p115
      %s118 = sadd.s32 %s117, 1
      %p121 = scmp.eq.s32.totalorder %s15, 1
      %p122 = scmp.ne.s32.totalorder %s117, %s119
      %p123 = scmp.eq.s32.totalorder %s15, 0
      %p124 = por %p122, %p123
      %p125 = scmp.ne.s32.totalorder %s117, %s119
      %p126 = scmp.eq.s32.totalorder %s20, 1
      %p127 = por %p125, %p126
      %p128 = scmp.ne.s32.totalorder %s119, %s120
      %p129 = scmp.eq.s32.totalorder %s20, 0
      %p130 = por %p128, %p129
      %p131 = scmp.ne.s32.totalorder %s119, %s120
      %p132 = scmp.eq.s32.totalorder %s21, 1
      %p133 = por %p131, %p132
      %p135 = scmp.ne.s32.totalorder %s120, %s134
      %p136 = scmp.eq.s32.totalorder %s21, 0
      %p137 = por %p135, %p136
      %s139 = sadd.s32 %s138, 1
      %p142 = scmp.eq.s32.totalorder %s15, 1
      %p143 = scmp.ne.s32.totalorder %s138, %s140
      %p144 = scmp.eq.s32.totalorder %s15, 0
      %p145 = por %p143, %p144
      %p146 = scmp.ne.s32.totalorder %s138, %s140
      %p147 = scmp.eq.s32.totalorder %s20, 1
      %p148 = por %p146, %p147
      %p149 = scmp.ne.s32.totalorder %s140, %s141
      %p150 = scmp.eq.s32.totalorder %s20, 0
      %p151 = por %p149, %p150
      %p152 = scmp.ne.s32.totalorder %s140, %s141
      %p153 = scmp.eq.s32.totalorder %s21, 1
      %p154 = por %p152, %p153
      %p156 = scmp.ne.s32.totalorder %s141, %s155
      %p157 = scmp.eq.s32.totalorder %s21, 0
      %p158 = por %p156, %p157
      %s159 = ssub.s32 %s15, %s22
      %p160 = scmp.eq.s32.totalorder %s159, 0
      %s162 = sadd.s32 %s161, 1
      %s163 = scalar_select %p160, %s161, %s162
      %p166 = pneg %p160
      %p167 = scmp.eq.s32.totalorder %s15, 1
      %p168 = por %p166, %p167
      %p169 = scmp.ne.s32.totalorder %s161, %s164
      %p170 = scmp.eq.s32.totalorder %s15, 0
      %p171 = por %p169, %p170
      %p172 = scmp.ne.s32.totalorder %s161, %s164
      %p173 = scmp.eq.s32.totalorder %s20, 1
      %p174 = por %p172, %p173
      %p175 = scmp.ne.s32.totalorder %s164, %s165
      %p176 = scmp.eq.s32.totalorder %s20, 0
      %p177 = por %p175, %p176
      %p178 = scmp.ne.s32.totalorder %s164, %s165
      %p179 = scmp.eq.s32.totalorder %s21, 1
      %p180 = por %p178, %p179
      %p182 = scmp.ne.s32.totalorder %s165, %s181
      %p183 = scmp.eq.s32.totalorder %s21, 0
      %p184 = por %p182, %p183
      %p185 = scmp.le.s32.totalorder 1, %s15
      %p186 = scmp.lt.s32.totalorder %s15, 3
      %p187 = pnand %p185, %p186
      %p188 = pneg %p187
      // Predicated region
      $region9: #{tpu_custom_call.1} parent=5 // pred_check
        _
      $region10: #{tpu_custom_call.1} parent=5 // pred_check_branch
        %190 = sbr.rel (%p187) target = $region12
      $region11: #{tpu_custom_call.1} parent=5 // pred_region
        %s191 = ssub.s32 %s15, 1
        // Predicated region
        $region13: #{tpu_custom_call.1} parent=11 // pred_check
          %p192 = pneg %p88
        $region14: #{tpu_custom_call.1} parent=11 // pred_check_branch
          %194 = sbr.rel (%p192) target = $region16
        $region15: #{tpu_custom_call.1} parent=11 // pred_region
          _
        $region16: #{tpu_custom_call.1} parent=11 // pred_fallthru
          _
        // Predicated region
        $region17: #{tpu_custom_call.1} parent=11 // pred_check
          %p195 = pneg %p109
        $region18: #{tpu_custom_call.1} parent=11 // pred_check_branch
          %197 = sbr.rel (%p195) target = $region20
        $region19: #{tpu_custom_call.1} parent=11 // pred_region
          _
        $region20: #{tpu_custom_call.1} parent=11 // pred_fallthru
          _
        // Predicated region
        $region21: #{tpu_custom_call.1} parent=11 // pred_check
          %p198 = pneg %p130
        $region22: #{tpu_custom_call.1} parent=11 // pred_check_branch
          %200 = sbr.rel (%p198) target = $region24
        $region23: #{tpu_custom_call.1} parent=11 // pred_region
          _
        $region24: #{tpu_custom_call.1} parent=11 // pred_fallthru
          _
        // Predicated region
        $region25: #{tpu_custom_call.1} parent=11 // pred_check
          %p201 = pneg %p151
        $region26: #{tpu_custom_call.1} parent=11 // pred_check_branch
          %203 = sbr.rel (%p201) target = $region28
        $region27: #{tpu_custom_call.1} parent=11 // pred_region
          _
        $region28: #{tpu_custom_call.1} parent=11 // pred_fallthru
          _
      $region12: #{tpu_custom_call.1} parent=5 // pred_fallthru
        _
      %p204 = scmp.lt.s32.totalorder %s15, 2
      // Predicated region
      $region29: #{tpu_custom_call.1} parent=5 // pred_check
        %p205 = pneg %p204
      $region30: #{tpu_custom_call.1} parent=5 // pred_check_branch
        %207 = sbr.rel (%p205) target = $region32
      $region31: #{tpu_custom_call.1} parent=5 // pred_region
        // Predicated region
        $region33: #{tpu_custom_call.1} parent=31 // pred_check
          %p208 = pneg %p35
        $region34: #{tpu_custom_call.1} parent=31 // pred_check_branch
          %210 = sbr.rel (%p208) target = $region36
        $region35: #{tpu_custom_call.1} parent=31 // pred_region
          %s211 = sand.u32 %s25, 1
          %s212 = sand.u32 %s25, 1
          %s213 = smul.addr %s212, 16
          %s214 = scalar_lea.vmem [#allocation2], %s213
          %s215 = smul.addr %s15, 8
          %s216 = scalar_lea.vmem %s0, %s215
          // Predicated region
          $region37: #{tpu_custom_call.1} parent=35 // pred_check
            _
          $region38: #{tpu_custom_call.1} parent=35 // pred_check_branch
            %218 = sbr.rel (0) target = $region40
          $region39: #{tpu_custom_call.1} parent=35 // pred_region
            // Predicated region
            $region41: #{tpu_custom_call.1} parent=39 // pred_check
              _
            $region42: #{tpu_custom_call.1} parent=39 // pred_check_branch
              %220 = sbr.rel (0) target = $region44
            $region43: #{tpu_custom_call.1} parent=39 // pred_region
              // Predicated region
              $region56: #{tpu_custom_call.1} parent=43 // pred_check
                _
              $region57: #{tpu_custom_call.1} parent=43 // pred_check_branch
                %238 = sbr.rel (0) target = $region59
              $region58: #{tpu_custom_call.1} parent=43 // pred_region
                loop: start=0, step=1, limit=1
                $region60: #{tpu_custom_call.1} parent=58 // loop_pre_header
                  _
                $region61: #{tpu_custom_call.1} parent=58 // loop_header
                  %s240 = sphi 0, %s244
                  %p241 = scmp.ge.s32.totalorder %s240, 1
                  %s245 = sphi %s216, %s216
                  %s246 = sphi %s214, %s214
                $region62: #{tpu_custom_call.1} parent=58 // loop_header_branch
                  %243 = sbr.rel (%p241) target = $region66
                $region63: #{tpu_custom_call.1} parent=58 // loop_body
                  %v247 = vld [vmem:[%s245] sm:$0xff]
                  %248 = vst [vmem:[%s246] sm:$0xff] %v247
                  %v249 = vld [vmem:[%s245 + $0x10] sm:$0xff]
                  %250 = vst [vmem:[%s246 + $0x8] sm:$0xff] %v249
                $region64: #{tpu_custom_call.1} parent=58 // loop_footer
                  %s244 = sadd.s32 1, %s240
                $region65: #{tpu_custom_call.1} parent=58 // loop_footer_branch
                  %239 = sbr.rel target = $region61
                $region66: #{tpu_custom_call.1} parent=58 // loop_exit
                  _
              $region59: #{tpu_custom_call.1} parent=43 // pred_fallthru
                _
              // Predicated region
              $region67: #{tpu_custom_call.1} parent=43 // pred_check
                _
              $region68: #{tpu_custom_call.1} parent=43 // pred_check_branch
                %252 = sbr.rel target = $region70
              $region69: #{tpu_custom_call.1} parent=43 // pred_region
                _
              $region70: #{tpu_custom_call.1} parent=43 // pred_fallthru
                _
            $region44: #{tpu_custom_call.1} parent=39 // pred_fallthru
              _
            // Predicated region
            $region45: #{tpu_custom_call.1} parent=39 // pred_check
              _
            $region46: #{tpu_custom_call.1} parent=39 // pred_check_branch
              %222 = sbr.rel target = $region48
            $region47: #{tpu_custom_call.1} parent=39 // pred_region
              %s224 = ssub.s32 256, 1
              loop: start=0, step=1, limit=1
              $region49: #{tpu_custom_call.1} parent=47 // loop_pre_header
                _
              $region50: #{tpu_custom_call.1} parent=47 // loop_header
                %s226 = sphi 0, %s230
                %p227 = scmp.ge.s32.totalorder %s226, 1
                %s231 = sphi %s216, %s216
                %s232 = sphi %s214, %s214
              $region51: #{tpu_custom_call.1} parent=47 // loop_header_branch
                %229 = sbr.rel (%p227) target = $region55
              $region52: #{tpu_custom_call.1} parent=47 // loop_body
                %v233 = vld [vmem:[%s231] sm:%s224]
                %234 = vst [vmem:[%s232] sm:%s224] %v233
                %v235 = vld [vmem:[%s231 + $0x10] sm:%s224]
                %236 = vst [vmem:[%s232 + $0x8] sm:%s224] %v235
              $region53: #{tpu_custom_call.1} parent=47 // loop_footer
                %s230 = sadd.s32 1, %s226
              $region54: #{tpu_custom_call.1} parent=47 // loop_footer_branch
                %225 = sbr.rel target = $region50
              $region55: #{tpu_custom_call.1} parent=47 // loop_exit
                _
            $region48: #{tpu_custom_call.1} parent=39 // pred_fallthru
              _
          $region40: #{tpu_custom_call.1} parent=35 // pred_fallthru
            _
          %253 = vnop
        $region36: #{tpu_custom_call.1} parent=31 // pred_fallthru
          _
        // Predicated region
        $region71: #{tpu_custom_call.1} parent=31 // pred_check
          %p254 = pneg %p61
        $region72: #{tpu_custom_call.1} parent=31 // pred_check_branch
          %256 = sbr.rel (%p254) target = $region74
        $region73: #{tpu_custom_call.1} parent=31 // pred_region
          %s257 = sand.u32 %s51, 1
          %s258 = sand.u32 %s51, 1
          %s259 = smul.addr %s258, 16
          %s260 = scalar_lea.vmem [#allocation3], %s259
          %s261 = smul.addr %s15, 8
          %s262 = scalar_lea.vmem %s1, %s261
          // Predicated region
          $region75: #{tpu_custom_call.1} parent=73 // pred_check
            _
          $region76: #{tpu_custom_call.1} parent=73 // pred_check_branch
            %264 = sbr.rel (0) target = $region78
          $region77: #{tpu_custom_call.1} parent=73 // pred_region
            // Predicated region
            $region79: #{tpu_custom_call.1} parent=77 // pred_check
              _
            $region80: #{tpu_custom_call.1} parent=77 // pred_check_branch
              %266 = sbr.rel (0) target = $region82
            $region81: #{tpu_custom_call.1} parent=77 // pred_region
              // Predicated region
              $region94: #{tpu_custom_call.1} parent=81 // pred_check
                _
              $region95: #{tpu_custom_call.1} parent=81 // pred_check_branch
                %284 = sbr.rel (0) target = $region97
              $region96: #{tpu_custom_call.1} parent=81 // pred_region
                loop: start=0, step=1, limit=1
                $region98: #{tpu_custom_call.1} parent=96 // loop_pre_header
                  _
                $region99: #{tpu_custom_call.1} parent=96 // loop_header
                  %s286 = sphi 0, %s290
                  %p287 = scmp.ge.s32.totalorder %s286, 1
                  %s291 = sphi %s262, %s262
                  %s292 = sphi %s260, %s260
                $region100: #{tpu_custom_call.1} parent=96 // loop_header_branch
                  %289 = sbr.rel (%p287) target = $region104
                $region101: #{tpu_custom_call.1} parent=96 // loop_body
                  %v293 = vld [vmem:[%s291] sm:$0xff]
                  %294 = vst [vmem:[%s292] sm:$0xff] %v293
                  %v295 = vld [vmem:[%s291 + $0x10] sm:$0xff]
                  %296 = vst [vmem:[%s292 + $0x8] sm:$0xff] %v295
                $region102: #{tpu_custom_call.1} parent=96 // loop_footer
                  %s290 = sadd.s32 1, %s286
                $region103: #{tpu_custom_call.1} parent=96 // loop_footer_branch
                  %285 = sbr.rel target = $region99
                $region104: #{tpu_custom_call.1} parent=96 // loop_exit
                  _
              $region97: #{tpu_custom_call.1} parent=81 // pred_fallthru
                _
              // Predicated region
              $region105: #{tpu_custom_call.1} parent=81 // pred_check
                _
              $region106: #{tpu_custom_call.1} parent=81 // pred_check_branch
                %298 = sbr.rel target = $region108
              $region107: #{tpu_custom_call.1} parent=81 // pred_region
                _
              $region108: #{tpu_custom_call.1} parent=81 // pred_fallthru
                _
            $region82: #{tpu_custom_call.1} parent=77 // pred_fallthru
              _
            // Predicated region
            $region83: #{tpu_custom_call.1} parent=77 // pred_check
              _
            $region84: #{tpu_custom_call.1} parent=77 // pred_check_branch
              %268 = sbr.rel target = $region86
            $region85: #{tpu_custom_call.1} parent=77 // pred_region
              %s270 = ssub.s32 256, 1
              loop: start=0, step=1, limit=1
              $region87: #{tpu_custom_call.1} parent=85 // loop_pre_header
                _
              $region88: #{tpu_custom_call.1} parent=85 // loop_header
                %s272 = sphi 0, %s276
                %p273 = scmp.ge.s32.totalorder %s272, 1
                %s277 = sphi %s262, %s262
                %s278 = sphi %s260, %s260
              $region89: #{tpu_custom_call.1} parent=85 // loop_header_branch
                %275 = sbr.rel (%p273) target = $region93
              $region90: #{tpu_custom_call.1} parent=85 // loop_body
                %v279 = vld [vmem:[%s277] sm:%s270]
                %280 = vst [vmem:[%s278] sm:%s270] %v279
                %v281 = vld [vmem:[%s277 + $0x10] sm:%s270]
                %282 = vst [vmem:[%s278 + $0x8] sm:%s270] %v281
              $region91: #{tpu_custom_call.1} parent=85 // loop_footer
                %s276 = sadd.s32 1, %s272
              $region92: #{tpu_custom_call.1} parent=85 // loop_footer_branch
                %271 = sbr.rel target = $region88
              $region93: #{tpu_custom_call.1} parent=85 // loop_exit
                _
            $region86: #{tpu_custom_call.1} parent=77 // pred_fallthru
              _
          $region78: #{tpu_custom_call.1} parent=73 // pred_fallthru
            _
          %299 = vnop
        $region74: #{tpu_custom_call.1} parent=31 // pred_fallthru
          _
      $region32: #{tpu_custom_call.1} parent=5 // pred_fallthru
        _
      %p300 = scmp.le.s32.totalorder 1, %s15
      %p301 = scmp.lt.s32.totalorder %s15, 3
      %p302 = pnand %p300, %p301
      %p303 = pneg %p302
      // Predicated region
      $region109: #{tpu_custom_call.1} parent=5 // pred_check
        _
      $region110: #{tpu_custom_call.1} parent=5 // pred_check_branch
        %305 = sbr.rel (%p302) target = $region112
      $region111: #{tpu_custom_call.1} parent=5 // pred_region
        %s306 = ssub.s32 %s15, 1
        %s307 = sand.u32 %s28, 1
        %s308 = sand.u32 %s28, 1
        %s309 = smul.addr %s308, 16
        %s310 = scalar_lea.vmem [#allocation2], %s309
        // Predicated region
        $region113: #{tpu_custom_call.1} parent=111 // pred_check
          %p311 = pneg %p41
        $region114: #{tpu_custom_call.1} parent=111 // pred_check_branch
          %313 = sbr.rel (%p311) target = $region116
        $region115: #{tpu_custom_call.1} parent=111 // pred_region
          _
        $region116: #{tpu_custom_call.1} parent=111 // pred_fallthru
          _
        %s314 = sand.u32 %s54, 1
        %s315 = sand.u32 %s54, 1
        %s316 = smul.addr %s315, 16
        %s317 = scalar_lea.vmem [#allocation3], %s316
        // Predicated region
        $region117: #{tpu_custom_call.1} parent=111 // pred_check
          %p318 = pneg %p67
        $region118: #{tpu_custom_call.1} parent=111 // pred_check_branch
          %320 = sbr.rel (%p318) target = $region120
        $region119: #{tpu_custom_call.1} parent=111 // pred_region
          _
        $region120: #{tpu_custom_call.1} parent=111 // pred_fallthru
          _
        %s321 = sand.u32 %s28, 1
        %s322 = sand.u32 %s28, 1
        %s323 = smul.addr %s322, 16
        %s324 = scalar_lea.vmem [#allocation2], %s323
        %p325 = pneg %p41
        %p326 = pneg %p38
        %s327 = sand.u32 %s54, 1
        %s328 = sand.u32 %s54, 1
        %s329 = smul.addr %s328, 16
        %s330 = scalar_lea.vmem [#allocation3], %s329
        %p331 = pneg %p67
        %p332 = pneg %p64
        %p333 = pneg %p88
        %p334 = pneg %p85
        %p335 = pneg %p109
        %p336 = pneg %p106
        %p337 = pneg %p130
        %p338 = pneg %p127
        %p339 = pneg %p151
        %p340 = pneg %p148
        %p341 = pneg %p177
        %p342 = pneg %p174
        %s343 = sand.u32 %s164, 1
        %s344 = scalar_lea.sflag [#allocation5], %s343
        %s345 = sand.u32 %s164, 1
        %s346 = smul.addr %s345, 8
        %s347 = scalar_lea.vmem [#allocation4], %s346
        %v348 = vld [vmem:[%s5] sm:$0xff]
        %v349 = vld [vmem:[%s5 + $0x8] sm:$0xff]
        %v350 = vld [vmem:[%s5 + $0x10] sm:$0xff]
        %v351 = vld [vmem:[%s5 + $0x18] sm:$0xff]
        %v352 = vld [vmem:[%s5 + $0x20] sm:$0xff]
        %v353 = vld [vmem:[%s5 + $0x28] sm:$0xff]
        %v354 = vld [vmem:[%s5 + $0x30] sm:$0xff]
        %v355 = vld [vmem:[%s5 + $0x38] sm:$0xff]
        %v356 = vld [vmem:[%s5 + $0x40] sm:$0xff]
        %v357 = vld [vmem:[%s5 + $0x48] sm:$0xff]
        %v358 = vld [vmem:[%s5 + $0x50] sm:$0xff]
        %v359 = vld [vmem:[%s5 + $0x58] sm:$0xff]
        %v360 = vld [vmem:[%s5 + $0x60] sm:$0xff]
        %v361 = vld [vmem:[%s5 + $0x68] sm:$0xff]
        %v362 = vld [vmem:[%s5 + $0x70] sm:$0xff]
        %v363 = vld [vmem:[%s5 + $0x78] sm:$0xff]
        %v364 = vld [vmem:[%s5 + $0x80] sm:$0xff]
        %v365 = vld [vmem:[%s5 + $0x88] sm:$0xff]
        %v366 = vld [vmem:[%s5 + $0x90] sm:$0xff]
        %v367 = vld [vmem:[%s5 + $0x98] sm:$0xff]
        %v368 = vld [vmem:[%s5 + $0xa0] sm:$0xff]
        %v369 = vld [vmem:[%s5 + $0xa8] sm:$0xff]
        %v370 = vld [vmem:[%s5 + $0xb0] sm:$0xff]
        %v371 = vld [vmem:[%s5 + $0xb8] sm:$0xff]
        %v372 = vld [vmem:[%s5 + $0xc0] sm:$0xff]
        %v373 = vld [vmem:[%s5 + $0xc8] sm:$0xff]
        %v374 = vld [vmem:[%s5 + $0xd0] sm:$0xff]
        %v375 = vld [vmem:[%s5 + $0xd8] sm:$0xff]
        %v376 = vld [vmem:[%s5 + $0xe0] sm:$0xff]
        %v377 = vld [vmem:[%s5 + $0xe8] sm:$0xff]
        %v378 = vld [vmem:[%s5 + $0xf0] sm:$0xff]
        %v379 = vld [vmem:[%s5 + $0xf8] sm:$0xff]
        %v380 = vmul.f32 %v348, %v348
        %v381 = vmul.f32 %v349, %v349
        %v382 = vmul.f32 %v350, %v350
        %v383 = vmul.f32 %v351, %v351
        %v384 = vmul.f32 %v352, %v352
        %v385 = vmul.f32 %v353, %v353
        %v386 = vmul.f32 %v354, %v354
        %v387 = vmul.f32 %v355, %v355
        %v388 = vmul.f32 %v356, %v356
        %v389 = vmul.f32 %v357, %v357
        %v390 = vmul.f32 %v358, %v358
        %v391 = vmul.f32 %v359, %v359
        %v392 = vmul.f32 %v360, %v360
        %v393 = vmul.f32 %v361, %v361
        %v394 = vmul.f32 %v362, %v362
        %v395 = vmul.f32 %v363, %v363
        %v396 = vmul.f32 %v364, %v364
        %v397 = vmul.f32 %v365, %v365
        %v398 = vmul.f32 %v366, %v366
        %v399 = vmul.f32 %v367, %v367
        %v400 = vmul.f32 %v368, %v368
        %v401 = vmul.f32 %v369, %v369
        %v402 = vmul.f32 %v370, %v370
        %v403 = vmul.f32 %v371, %v371
        %v404 = vmul.f32 %v372, %v372
        %v405 = vmul.f32 %v373, %v373
        %v406 = vmul.f32 %v374, %v374
        %v407 = vmul.f32 %v375, %v375
        %v408 = vmul.f32 %v376, %v376
        %v409 = vmul.f32 %v377, %v377
        %v410 = vmul.f32 %v378, %v378
        %v411 = vmul.f32 %v379, %v379
        %v412 = vld [vmem:[%s310] sm:$0xff]
        %v413 = vld [vmem:[%s310 + $0x8] sm:$0xff]
        %v414 = vld [vmem:[%s317] sm:$0xff]
        %v415 = vld [vmem:[%s317 + $0x8] sm:$0xff]
        %v416 = vld [vmem:[%s2] sm:$0x3f]
        %v417 = vld [vmem:[%s2 + $0x8] sm:$0x3f]
        %v418 = vld [vmem:[%s3] sm:$0x3f]
        %v419 = vld [vmem:[%s3 + $0x8] sm:$0x3f]
        %v420 = vmul.f32 %v412, %v412
        %v421 = vmul.f32 %v413, %v413
        %v422 = vmul.f32 %v416, %v416
        %v423 = vmul.f32 %v417, %v417
        %vm424 = vcmask 261120
        %v426 = vsel %vm424, %v412, 0
        %v429 = vsel %vm424, %v416, 0
        %431 = vmatpush.xpose.msra.mxu0 0.0
        %432 = vmatpush.xpose.msra.mxu0 0.0
        %433 = vmatpush.xpose.msra.mxu0 0.0
        %434 = vmatpush.xpose.msra.mxu0 0.0
        %435 = vmatpush.xpose.msra.mxu0 0.0
        %436 = vmatpush.xpose.msra.mxu0 0.0
        %437 = vmatpush.xpose.msra.mxu0 0.0
        %438 = vmatpush.xpose.msra.mxu0 0.0
        %439 = vmatpush.xpose.msra.mxu0 0.0
        %440 = vmatpush.xpose.msra.mxu0 0.0
        %441 = vmatpush.xpose.msra.mxu0 0.0
        %442 = vmatpush.xpose.msra.mxu0 0.0
        %443 = vmatpush.xpose.msra.mxu0 0.0
        %444 = vmatpush.xpose.msra.mxu0 0.0
        %445 = vmatpush.xpose.msra.mxu0 0.0
        %446 = vmatpush.xpose.msra.mxu0 %v429
        %447 = vmatmul.f32.gmra.mxu0 %v426
        %v448 = vpop.f32.mrf.mxu0
        %v449 = vadd.f32 0.0, %v448
        %450 = vdwg.mxu0
        %v452 = vsel %vm424, %v413, 0
        %v455 = vsel %vm424, %v417, 0
        %457 = vmatpush.xpose.msra.mxu0 0.0
        %458 = vmatpush.xpose.msra.mxu0 0.0
        %459 = vmatpush.xpose.msra.mxu0 0.0
        %460 = vmatpush.xpose.msra.mxu0 0.0
        %461 = vmatpush.xpose.msra.mxu0 0.0
        %462 = vmatpush.xpose.msra.mxu0 0.0
        %463 = vmatpush.xpose.msra.mxu0 0.0
        %464 = vmatpush.xpose.msra.mxu0 0.0
        %465 = vmatpush.xpose.msra.mxu0 0.0
        %466 = vmatpush.xpose.msra.mxu0 0.0
        %467 = vmatpush.xpose.msra.mxu0 0.0
        %468 = vmatpush.xpose.msra.mxu0 0.0
        %469 = vmatpush.xpose.msra.mxu0 0.0
        %470 = vmatpush.xpose.msra.mxu0 0.0
        %471 = vmatpush.xpose.msra.mxu0 0.0
        %472 = vmatpush.xpose.msra.mxu0 %v455
        %473 = vmatmul.f32.gmra.mxu0 %v452
        %v474 = vpop.f32.mrf.mxu0
        %v475 = vadd.f32 0.0, %v474
        %476 = vdwg.mxu0
        %v477 = vsel %vm424, %v420, 0.0
        %478 = vadd.xlane.f32.xlu0 %v477
        %v479 = vpop.xlane.xlu0 %478
        %v480 = vsel %vm424, %v421, 0.0
        %481 = vadd.xlane.f32.xlu0 %v480
        %v482 = vpop.xlane.xlu0 %481
        %v483 = vmax.f32 %v479, 1e-06
        %v484 = vmax.f32 %v482, 1e-06
        %v485 = vrsqrt.pop %v483
        %v486 = vmul.f32 %v485, %v483
        %v487 = vmul.f32 %v486, %v485
        %v488 = vmul.f32 0.5, %v487
        %v489 = vsub.f32 1.5, %v488
        %v490 = vmul.f32 %v485, %v489
        %vm491 = vweird.f32 %v483
        %vm492 = vweird.f32 %v485
        %vm493 = vmor %vm491, %vm492
        %v494 = vsel %vm493, %v485, %v490
        %v495 = vrsqrt.pop %v484
        %v496 = vmul.f32 %v495, %v484
        %v497 = vmul.f32 %v496, %v495
        %v498 = vmul.f32 0.5, %v497
        %v499 = vsub.f32 1.5, %v498
        %v500 = vmul.f32 %v495, %v499
        %vm501 = vweird.f32 %v484
        %vm502 = vweird.f32 %v495
        %vm503 = vmor %vm501, %vm502
        %v504 = vsel %vm503, %v495, %v500
        %vm505 = vcmask 259072
        %v506 = vsel %vm505, %v422, 0.0
        %507 = vadd.xlane.f32.xlu0 %v506
        %v508 = vpop.xlane.xlu0 %507
        %v509 = vsel %vm505, %v423, 0.0
        %510 = vadd.xlane.f32.xlu0 %v509
        %v511 = vpop.xlane.xlu0 %510
        %v512 = vmax.f32 %v508, 1e-06
        %v513 = vmax.f32 %v511, 1e-06
        %v514 = vrsqrt.pop %v512
        %v515 = vmul.f32 %v514, %v512
        %v516 = vmul.f32 %v515, %v514
        %v517 = vmul.f32 0.5, %v516
        %v518 = vsub.f32 1.5, %v517
        %v519 = vmul.f32 %v514, %v518
        %vm520 = vweird.f32 %v512
        %vm521 = vweird.f32 %v514
        %vm522 = vmor %vm520, %vm521
        %v523 = vsel %vm522, %v514, %v519
        %v524 = vrsqrt.pop %v513
        %v525 = vmul.f32 %v524, %v513
        %v526 = vmul.f32 %v525, %v524
        %v527 = vmul.f32 0.5, %v526
        %v528 = vsub.f32 1.5, %v527
        %v529 = vmul.f32 %v524, %v528
        %vm530 = vweird.f32 %v513
        %vm531 = vweird.f32 %v524
        %vm532 = vmor %vm530, %vm531
        %v533 = vsel %vm532, %v524, %v529
        %v534 = vmul.f32 %v449, %v494
        %v535 = vmul.f32 %v475, %v504
        %v538 = vlaneseq
        %v539 = vand.u32 %v538, 127
        %v540 = vperm.slane %v523, %v539
        %v541 = vperm.slane %v533, %v539
        %vm542 = vcmask 1041409
        %vm543 = vcmask 1042434
        %v544 = vsel %vm543, %v540, %v540
        %vm545 = vcmask 1043459
        %v546 = vsel %vm545, %v540, %v544
        %vm547 = vcmask 1044484
        %v548 = vsel %vm547, %v540, %v546
        %vm549 = vcmask 1045509
        %v550 = vsel %vm549, %v540, %v548
        %vm551 = vcmask 1046534
        %v552 = vsel %vm551, %v540, %v550
        %vm553 = vcmask 1047559
        %v554 = vsel %vm553, %v540, %v552
        %v555 = vsel %vm543, %v541, %v541
        %v556 = vsel %vm545, %v541, %v555
        %v557 = vsel %vm547, %v541, %v556
        %v558 = vsel %vm549, %v541, %v557
        %v559 = vsel %vm551, %v541, %v558
        %v560 = vsel %vm553, %v541, %v559
        %v563 = vmul.f32 %v534, %v554
        %v564 = vmul.f32 %v535, %v560
        %v565 = vperm.slane %v416, 5
        %v566 = vperm.slane %v417, 5
        %v567 = vmul.f32 %v412, %v565
        %v568 = vmul.f32 %v413, %v566
        %v570 = vsel %vm424, %v567, 0
        %v573 = vsel %vm424, %v568, 0
        %575 = vmatpush.msra.mxu0 0.0
        %576 = vmatpush.msra.mxu0 0.0
        %577 = vmatpush.msra.mxu0 0.0
        %578 = vmatpush.msra.mxu0 0.0
        %579 = vmatpush.msra.mxu0 0.0
        %580 = vmatpush.msra.mxu0 0.0
        %581 = vmatpush.msra.mxu0 0.0
        %582 = vmatpush.msra.mxu0 0.0
        %583 = vmatpush.msra.mxu0 0.0
        %584 = vmatpush.msra.mxu0 0.0
        %585 = vmatpush.msra.mxu0 0.0
        %586 = vmatpush.msra.mxu0 0.0
        %587 = vmatpush.msra.mxu0 %v383
        %588 = vmatpush.msra.mxu0 %v382
        %589 = vmatpush.msra.mxu0 %v381
        %590 = vmatpush.msra.mxu0 %v380
        %591 = vmatmul.f32.gmra.mxu0 %v570
        %v592 = vpop.f32.mrf.mxu0
        %v593 = vadd.f32 0.0, %v592
        %594 = vmatmul.f32.gmra.mxu0 %v573
        %v595 = vpop.f32.mrf.mxu0
        %v596 = vadd.f32 0.0, %v595
        %597 = vdwg.mxu0
        %v599 = vsel %vm424, %v420, 0
        %v602 = vsel %vm424, %v421, 0
        %604 = vmatpush.msra.mxu0 0.0
        %605 = vmatpush.msra.mxu0 0.0
        %606 = vmatpush.msra.mxu0 0.0
        %607 = vmatpush.msra.mxu0 0.0
        %608 = vmatpush.msra.mxu0 0.0
        %609 = vmatpush.msra.mxu0 0.0
        %610 = vmatpush.msra.mxu0 0.0
        %611 = vmatpush.msra.mxu0 0.0
        %612 = vmatpush.msra.mxu0 0.0
        %613 = vmatpush.msra.mxu0 0.0
        %614 = vmatpush.msra.mxu0 0.0
        %615 = vmatpush.msra.mxu0 0.0
        %616 = vmatpush.msra.mxu0 %v383
        %617 = vmatpush.msra.mxu0 %v382
        %618 = vmatpush.msra.mxu0 %v381
        %619 = vmatpush.msra.mxu0 %v380
        %620 = vmatmul.f32.gmra.mxu0 %v599
        %v621 = vpop.f32.mrf.mxu0
        %v622 = vadd.f32 0.0, %v621
        %623 = vmatmul.f32.gmra.mxu0 %v602
        %v624 = vpop.f32.mrf.mxu0
        %v625 = vadd.f32 0.0, %v624
        %626 = vdwg.mxu0
        %v627 = vmax.f32 %v622, 1e-06
        %v628 = vmax.f32 %v625, 1e-06
        %v629 = vrsqrt.pop %v627
        %v630 = vmul.f32 %v629, %v627
        %v631 = vmul.f32 %v630, %v629
        %v632 = vmul.f32 0.5, %v631
        %v633 = vsub.f32 1.5, %v632
        %v634 = vmul.f32 %v629, %v633
        %vm635 = vweird.f32 %v627
        %vm636 = vweird.f32 %v629
        %vm637 = vmor %vm635, %vm636
        %v638 = vsel %vm637, %v629, %v634
        %v639 = vrsqrt.pop %v628
        %v640 = vmul.f32 %v639, %v628
        %v641 = vmul.f32 %v640, %v639
        %v642 = vmul.f32 0.5, %v641
        %v643 = vsub.f32 1.5, %v642
        %v644 = vmul.f32 %v639, %v643
        %vm645 = vweird.f32 %v628
        %vm646 = vweird.f32 %v639
        %vm647 = vmor %vm645, %vm646
        %v648 = vsel %vm647, %v639, %v644
        %v649 = vmul.f32 %v593, %v638
        %v650 = vmul.f32 %v596, %v648
        %v653 = vrot.slane %v422, 5
        %v654 = vrot.slane %v423, 4
        %v655 = vsel %vm542, %v654, %v653
        %v656 = vsel %vm424, %v655, 0
        %658 = vmatpush.msra.mxu0 0.0
        %659 = vmatpush.msra.mxu0 0.0
        %660 = vmatpush.msra.mxu0 0.0
        %661 = vmatpush.msra.mxu0 0.0
        %662 = vmatpush.msra.mxu0 0.0
        %663 = vmatpush.msra.mxu0 0.0
        %664 = vmatpush.msra.mxu0 0.0
        %665 = vmatpush.msra.mxu0 0.0
        %666 = vmatpush.msra.mxu0 0.0
        %667 = vmatpush.msra.mxu0 0.0
        %668 = vmatpush.msra.mxu0 0.0
        %669 = vmatpush.msra.mxu0 0.0
        %670 = vmatpush.msra.mxu0 %v383
        %671 = vmatpush.msra.mxu0 %v382
        %672 = vmatpush.msra.mxu0 %v381
        %673 = vmatpush.msra.mxu0 %v380
        %674 = vmatmul.f32.gmra.mxu0 %v656
        %v675 = vpop.f32.mrf.mxu0
        %v676 = vadd.f32 0.0, %v675
        %677 = vdwg.mxu0
        %v679 = vrot.slane %v676, 1
        %v681 = vmax.f32 %v676, 1e-06
        %v682 = vmax.f32 %v679, 1e-06
        %v683 = vrsqrt.pop %v681
        %v684 = vmul.f32 %v683, %v681
        %v685 = vmul.f32 %v684, %v683
        %v686 = vmul.f32 0.5, %v685
        %v687 = vsub.f32 1.5, %v686
        %v688 = vmul.f32 %v683, %v687
        %vm689 = vweird.f32 %v681
        %vm690 = vweird.f32 %v683
        %vm691 = vmor %vm689, %vm690
        %v692 = vsel %vm691, %v683, %v688
        %v693 = vrsqrt.pop %v682
        %v694 = vmul.f32 %v693, %v682
        %v695 = vmul.f32 %v694, %v693
        %v696 = vmul.f32 0.5, %v695
        %v697 = vsub.f32 1.5, %v696
        %v698 = vmul.f32 %v693, %v697
        %vm699 = vweird.f32 %v682
        %vm700 = vweird.f32 %v693
        %vm701 = vmor %vm699, %vm700
        %v702 = vsel %vm701, %v693, %v698
        %v705 = vperm.slane %v692, 0
        %v706 = vperm.slane %v702, 0
        %v709 = vmul.f32 %v649, %v705
        %v710 = vmul.f32 %v650, %v706
        %711 = vxpose.xlu0.b32.start [1/16] %v388, 128
        %712 = vxpose.xlu0.b32.cont [2/16] %v389, 128
        %713 = vxpose.xlu0.b32.cont [3/16] %v390, 128
        %714 = vxpose.xlu0.b32.cont [4/16] %v391, 128
        %715 = vxpose.xlu0.b32.cont [5/16] 0.0, 128
        %716 = vxpose.xlu0.b32.cont [6/16] 0.0, 128
        %717 = vxpose.xlu0.b32.cont [7/16] 0.0, 128
        %718 = vxpose.xlu0.b32.cont [8/16] 0.0, 128
        %719 = vxpose.xlu0.b32.cont [9/16] 0.0, 128
        %720 = vxpose.xlu0.b32.cont [10/16] 0.0, 128
        %721 = vxpose.xlu0.b32.cont [11/16] 0.0, 128
        %722 = vxpose.xlu0.b32.cont [12/16] 0.0, 128
        %723 = vxpose.xlu0.b32.cont [13/16] 0.0, 128
        %724 = vxpose.xlu0.b32.cont [14/16] 0.0, 128
        %725 = vxpose.xlu0.b32.cont [15/16] 0.0, 128
        %726 = vxpose.xlu0.b32.end [16/16] 0.0, 128
        %v727 = vpop.trf.xlu0
        %v728 = vpop.trf.xlu0
        %v729 = vpop.trf.xlu0
        %v730 = vpop.trf.xlu0
        %v731 = vpop.trf.xlu0
        %v732 = vpop.trf.xlu0
        %v733 = vpop.trf.xlu0
        %v734 = vpop.trf.xlu0
        %v735 = vpop.trf.xlu0
        %v736 = vpop.trf.xlu0
        %v737 = vpop.trf.xlu0
        %v738 = vpop.trf.xlu0
        %v739 = vpop.trf.xlu0
        %v740 = vpop.trf.xlu0
        %v741 = vpop.trf.xlu0
        %v742 = vpop.trf.xlu0
        %v743 = vrot.slane %v412, 1
        %v744 = vrot.slane %v412, 2
        %v745 = vrot.slane %v412, 3
        %v746 = vrot.slane %v412, 4
        %v747 = vrot.slane %v412, 5
        %v748 = vrot.slane %v412, 6
        %v749 = vrot.slane %v412, 7
        %v750 = vrot.slane %v413, 1
        %v751 = vrot.slane %v413, 2
        %v752 = vrot.slane %v413, 3
        %v753 = vrot.slane %v413, 4
        %v754 = vrot.slane %v413, 5
        %v755 = vrot.slane %v413, 6
        %v756 = vrot.slane %v413, 7
        %v757 = vperm.slane %v412, 0
        %v758 = vperm.slane %v743, 0
        %v759 = vperm.slane %v744, 0
        %v760 = vperm.slane %v745, 0
        %v761 = vperm.slane %v746, 0
        %v762 = vperm.slane %v747, 0
        %v763 = vperm.slane %v748, 0
        %v764 = vperm.slane %v749, 0
        %v765 = vperm.slane %v413, 0
        %v766 = vperm.slane %v750, 0
        %v767 = vperm.slane %v751, 0
        %v768 = vperm.slane %v752, 0
        %v769 = vperm.slane %v753, 0
        %v770 = vperm.slane %v754, 0
        %v771 = vperm.slane %v755, 0
        %v772 = vperm.slane %v756, 0
        %v789 = vmul.f32 %v757, %v727
        %v790 = vmul.f32 %v758, %v727
        %v791 = vmul.f32 %v759, %v727
        %v792 = vmul.f32 %v760, %v727
        %v793 = vmul.f32 %v761, %v727
        %v794 = vmul.f32 %v762, %v727
        %v795 = vmul.f32 %v763, %v727
        %v796 = vmul.f32 %v764, %v727
        %v797 = vmul.f32 %v765, %v727
        %v798 = vmul.f32 %v766, %v727
        %v799 = vmul.f32 %v767, %v727
        %v800 = vmul.f32 %v768, %v727
        %v801 = vmul.f32 %v769, %v727
        %v802 = vmul.f32 %v770, %v727
        %v803 = vmul.f32 %v771, %v727
        %v804 = vmul.f32 %v772, %v727
        %v806 = vsel %vm424, %v789, 0
        %v809 = vsel %vm424, %v790, 0
        %v812 = vsel %vm424, %v791, 0
        %v815 = vsel %vm424, %v792, 0
        %v818 = vsel %vm424, %v793, 0
        %v821 = vsel %vm424, %v794, 0
        %v824 = vsel %vm424, %v795, 0
        %v827 = vsel %vm424, %v796, 0
        %829 = vmatpush.xpose.msra.mxu0 0.0
        %830 = vmatpush.xpose.msra.mxu0 0.0
        %831 = vmatpush.xpose.msra.mxu0 0.0
        %832 = vmatpush.xpose.msra.mxu0 0.0
        %833 = vmatpush.xpose.msra.mxu0 0.0
        %834 = vmatpush.xpose.msra.mxu0 0.0
        %835 = vmatpush.xpose.msra.mxu0 0.0
        %836 = vmatpush.xpose.msra.mxu0 0.0
        %837 = vmatpush.xpose.msra.mxu0 0.0
        %838 = vmatpush.xpose.msra.mxu0 0.0
        %839 = vmatpush.xpose.msra.mxu0 0.0
        %840 = vmatpush.xpose.msra.mxu0 0.0
        %841 = vmatpush.xpose.msra.mxu0 0.0
        %842 = vmatpush.xpose.msra.mxu0 0.0
        %843 = vmatpush.xpose.msra.mxu0 0.0
        %844 = vmatpush.xpose.msra.mxu0 %v429
        %845 = vmatmul.f32.gmra.mxu0 %v806
        %v846 = vpop.f32.mrf.mxu0
        %v847 = vadd.f32 0.0, %v846
        %848 = vmatmul.f32.gmra.mxu0 %v809
        %v849 = vpop.f32.mrf.mxu0
        %v850 = vadd.f32 0.0, %v849
        %851 = vmatmul.f32.gmra.mxu0 %v812
        %v852 = vpop.f32.mrf.mxu0
        %v853 = vadd.f32 0.0, %v852
        %854 = vmatmul.f32.gmra.mxu0 %v815
        %v855 = vpop.f32.mrf.mxu0
        %v856 = vadd.f32 0.0, %v855
        %857 = vmatmul.f32.gmra.mxu0 %v818
        %v858 = vpop.f32.mrf.mxu0
        %v859 = vadd.f32 0.0, %v858
        %860 = vmatmul.f32.gmra.mxu0 %v821
        %v861 = vpop.f32.mrf.mxu0
        %v862 = vadd.f32 0.0, %v861
        %863 = vmatmul.f32.gmra.mxu0 %v824
        %v864 = vpop.f32.mrf.mxu0
        %v865 = vadd.f32 0.0, %v864
        %866 = vmatmul.f32.gmra.mxu0 %v827
        %v867 = vpop.f32.mrf.mxu0
        %v868 = vadd.f32 0.0, %v867
        %869 = vdwg.mxu0
        %v871 = vsel %vm424, %v797, 0
        %v874 = vsel %vm424, %v798, 0
        %v877 = vsel %vm424, %v799, 0
        %v880 = vsel %vm424, %v800, 0
        %v883 = vsel %vm424, %v801, 0
        %v886 = vsel %vm424, %v802, 0
        %v889 = vsel %vm424, %v803, 0
        %v892 = vsel %vm424, %v804, 0
        %894 = vmatpush.xpose.msra.mxu0 0.0
        %895 = vmatpush.xpose.msra.mxu0 0.0
        %896 = vmatpush.xpose.msra.mxu0 0.0
        %897 = vmatpush.xpose.msra.mxu0 0.0
        %898 = vmatpush.xpose.msra.mxu0 0.0
        %899 = vmatpush.xpose.msra.mxu0 0.0
        %900 = vmatpush.xpose.msra.mxu0 0.0
        %901 = vmatpush.xpose.msra.mxu0 0.0
        %902 = vmatpush.xpose.msra.mxu0 0.0
        %903 = vmatpush.xpose.msra.mxu0 0.0
        %904 = vmatpush.xpose.msra.mxu0 0.0
        %905 = vmatpush.xpose.msra.mxu0 0.0
        %906 = vmatpush.xpose.msra.mxu0 0.0
        %907 = vmatpush.xpose.msra.mxu0 0.0
        %908 = vmatpush.xpose.msra.mxu0 0.0
        %909 = vmatpush.xpose.msra.mxu0 %v455
        %910 = vmatmul.f32.gmra.mxu0 %v871
        %v911 = vpop.f32.mrf.mxu0
        %v912 = vadd.f32 0.0, %v911
        %913 = vmatmul.f32.gmra.mxu0 %v874
        %v914 = vpop.f32.mrf.mxu0
        %v915 = vadd.f32 0.0, %v914
        %916 = vmatmul.f32.gmra.mxu0 %v877
        %v917 = vpop.f32.mrf.mxu0
        %v918 = vadd.f32 0.0, %v917
        %919 = vmatmul.f32.gmra.mxu0 %v880
        %v920 = vpop.f32.mrf.mxu0
        %v921 = vadd.f32 0.0, %v920
        %922 = vmatmul.f32.gmra.mxu0 %v883
        %v923 = vpop.f32.mrf.mxu0
        %v924 = vadd.f32 0.0, %v923
        %925 = vmatmul.f32.gmra.mxu0 %v886
        %v926 = vpop.f32.mrf.mxu0
        %v927 = vadd.f32 0.0, %v926
        %928 = vmatmul.f32.gmra.mxu0 %v889
        %v929 = vpop.f32.mrf.mxu0
        %v930 = vadd.f32 0.0, %v929
        %931 = vmatmul.f32.gmra.mxu0 %v892
        %v932 = vpop.f32.mrf.mxu0
        %v933 = vadd.f32 0.0, %v932
        %934 = vdwg.mxu0
        %935 = vmatpush.msra.mxu0 0.0
        %936 = vmatpush.msra.mxu0 0.0
        %937 = vmatpush.msra.mxu0 0.0
        %938 = vmatpush.msra.mxu0 0.0
        %939 = vmatpush.msra.mxu0 0.0
        %940 = vmatpush.msra.mxu0 0.0
        %941 = vmatpush.msra.mxu0 0.0
        %942 = vmatpush.msra.mxu0 0.0
        %943 = vmatpush.msra.mxu0 0.0
        %944 = vmatpush.msra.mxu0 0.0
        %945 = vmatpush.msra.mxu0 0.0
        %946 = vmatpush.msra.mxu0 0.0
        %947 = vmatpush.msra.mxu0 %v391
        %948 = vmatpush.msra.mxu0 %v390
        %949 = vmatpush.msra.mxu0 %v389
        %950 = vmatpush.msra.mxu0 %v388
        %951 = vmatmul.f32.gmra.mxu0 %v599
        %v952 = vpop.f32.mrf.mxu0
        %v953 = vadd.f32 0.0, %v952
        %954 = vmatmul.f32.gmra.mxu0 %v602
        %v955 = vpop.f32.mrf.mxu0
        %v956 = vadd.f32 0.0, %v955
        %957 = vdwg.mxu0
        %v958 = vmax.f32 %v953, 1e-06
        %v959 = vmax.f32 %v956, 1e-06
        %v960 = vrsqrt.pop %v958
        %v961 = vmul.f32 %v960, %v958
        %v962 = vmul.f32 %v961, %v960
        %v963 = vmul.f32 0.5, %v962
        %v964 = vsub.f32 1.5, %v963
        %v965 = vmul.f32 %v960, %v964
        %vm966 = vweird.f32 %v958
        %vm967 = vweird.f32 %v960
        %vm968 = vmor %vm966, %vm967
        %v969 = vsel %vm968, %v960, %v965
        %v970 = vrsqrt.pop %v959
        %v971 = vmul.f32 %v970, %v959
        %v972 = vmul.f32 %v971, %v970
        %v973 = vmul.f32 0.5, %v972
        %v974 = vsub.f32 1.5, %v973
        %v975 = vmul.f32 %v970, %v974
        %vm976 = vweird.f32 %v959
        %vm977 = vweird.f32 %v970
        %vm978 = vmor %vm976, %vm977
        %v979 = vsel %vm978, %v970, %v975
        %v980 = vrot.slane %v422, 2
        %v981 = vrot.slane %v422, 4
        %v982 = vrot.slane %v423, 2
        %983 = vst [vmem:[#allocation1] ss:$4 sm:$0xff] %v422
        %s984 = scalar_lea.vmem [#allocation1], 1
        %985 = vst [vmem:[%s984] ss:$4 sm:$0xff] %v980
        %s986 = scalar_lea.vmem [#allocation1], 2
        %987 = vst [vmem:[%s986] ss:$4 sm:$0xff] %v981
        %s988 = scalar_lea.vmem [#allocation1], 3
        %989 = vst [vmem:[%s988] ss:$4 sm:$0xff] %v423
        %s990 = scalar_lea.vmem [#allocation1], 32
        %991 = vst [vmem:[%s990] ss:$4 sm:$0xff] %v982
        %s992 = scalar_lea.vmem [#allocation1], 33
        %993 = vst [vmem:[%s992] ss:$4 sm:$0xff] %v654
        %v994 = vld.sshfl [vmem:[#allocation1] sm:$0xff pattern:$0x73625140]
        %v995 = vld.sshfl [vmem:[#allocation1 + $0x20] sm:$0xff pattern:$0x73625140]
        %v996 = vsel %vm424, %v994, 0
        %v998 = vsel %vm424, %v995, 0
        %1000 = vmatpush.msra.mxu0 0.0
        %1001 = vmatpush.msra.mxu0 0.0
        %1002 = vmatpush.msra.mxu0 0.0
        %1003 = vmatpush.msra.mxu0 0.0
        %1004 = vmatpush.msra.mxu0 0.0
        %1005 = vmatpush.msra.mxu0 0.0
        %1006 = vmatpush.msra.mxu0 0.0
        %1007 = vmatpush.msra.mxu0 0.0
        %1008 = vmatpush.msra.mxu0 0.0
        %1009 = vmatpush.msra.mxu0 0.0
        %1010 = vmatpush.msra.mxu0 0.0
        %1011 = vmatpush.msra.mxu0 0.0
        %1012 = vmatpush.msra.mxu0 %v391
        %1013 = vmatpush.msra.mxu0 %v390
        %1014 = vmatpush.msra.mxu0 %v389
        %1015 = vmatpush.msra.mxu0 %v388
        %1016 = vmatmul.f32.gmra.mxu0 %v996
        %v1017 = vpop.f32.mrf.mxu0
        %v1018 = vadd.f32 0.0, %v1017
        %1019 = vmatmul.f32.gmra.mxu0 %v998
        %v1020 = vpop.f32.mrf.mxu0
        %v1021 = vadd.f32 0.0, %v1020
        %1022 = vdwg.mxu0
        %v1025 = vrot.slane %v1018, 2
        %v1026 = vrot.slane %v1018, 4
        %v1027 = vrot.slane %v1018, 6
        %v1028 = vrot.slane %v1021, 2
        %v1033 = vmax.f32 %v1018, 1e-06
        %v1034 = vmax.f32 %v1025, 1e-06
        %v1035 = vmax.f32 %v1026, 1e-06
        %v1036 = vmax.f32 %v1027, 1e-06
        %v1037 = vmax.f32 %v1021, 1e-06
        %v1038 = vmax.f32 %v1028, 1e-06
        %v1039 = vrsqrt.pop %v1033
        %v1040 = vmul.f32 %v1039, %v1033
        %v1041 = vmul.f32 %v1040, %v1039
        %v1042 = vmul.f32 0.5, %v1041
        %v1043 = vsub.f32 1.5, %v1042
        %v1044 = vmul.f32 %v1039, %v1043
        %vm1045 = vweird.f32 %v1033
        %vm1046 = vweird.f32 %v1039
        %vm1047 = vmor %vm1045, %vm1046
        %v1048 = vsel %vm1047, %v1039, %v1044
        %v1049 = vrsqrt.pop %v1034
        %v1050 = vmul.f32 %v1049, %v1034
        %v1051 = vmul.f32 %v1050, %v1049
        %v1052 = vmul.f32 0.5, %v1051
        %v1053 = vsub.f32 1.5, %v1052
        %v1054 = vmul.f32 %v1049, %v1053
        %vm1055 = vweird.f32 %v1034
        %vm1056 = vweird.f32 %v1049
        %vm1057 = vmor %vm1055, %vm1056
        %v1058 = vsel %vm1057, %v1049, %v1054
        %v1059 = vrsqrt.pop %v1035
        %v1060 = vmul.f32 %v1059, %v1035
        %v1061 = vmul.f32 %v1060, %v1059
        %v1062 = vmul.f32 0.5, %v1061
        %v1063 = vsub.f32 1.5, %v1062
        %v1064 = vmul.f32 %v1059, %v1063
        %vm1065 = vweird.f32 %v1035
        %vm1066 = vweird.f32 %v1059
        %vm1067 = vmor %vm1065, %vm1066
        %v1068 = vsel %vm1067, %v1059, %v1064
        %v1069 = vrsqrt.pop %v1036
        %v1070 = vmul.f32 %v1069, %v1036
        %v1071 = vmul.f32 %v1070, %v1069
        %v1072 = vmul.f32 0.5, %v1071
        %v1073 = vsub.f32 1.5, %v1072
        %v1074 = vmul.f32 %v1069, %v1073
        %vm1075 = vweird.f32 %v1036
        %vm1076 = vweird.f32 %v1069
        %vm1077 = vmor %vm1075, %vm1076
        %v1078 = vsel %vm1077, %v1069, %v1074
        %v1079 = vrsqrt.pop %v1037
        %v1080 = vmul.f32 %v1079, %v1037
        %v1081 = vmul.f32 %v1080, %v1079
        %v1082 = vmul.f32 0.5, %v1081
        %v1083 = vsub.f32 1.5, %v1082
        %v1084 = vmul.f32 %v1079, %v1083
        %vm1085 = vweird.f32 %v1037
        %vm1086 = vweird.f32 %v1079
        %vm1087 = vmor %vm1085, %vm1086
        %v1088 = vsel %vm1087, %v1079, %v1084
        %v1089 = vrsqrt.pop %v1038
        %v1090 = vmul.f32 %v1089, %v1038
        %v1091 = vmul.f32 %v1090, %v1089
        %v1092 = vmul.f32 0.5, %v1091
        %v1093 = vsub.f32 1.5, %v1092
        %v1094 = vmul.f32 %v1089, %v1093
        %vm1095 = vweird.f32 %v1038
        %vm1096 = vweird.f32 %v1089
        %vm1097 = vmor %vm1095, %vm1096
        %v1098 = vsel %vm1097, %v1089, %v1094
        %v1099 = vperm.slane %v969, 0
        %v1100 = vlaneseq
        %v1101 = vshrl.u32 %v1100, 7
        %1103 = vset.pattern.permute.xlu0 %v1101
        %1104 = vperm.xlu0 %1103, %v1099
        %v1105 = vpop.permute.xlu0 %1104
        %v1106 = vperm.slane %v969, 1
        %v1107 = vlaneseq
        %v1108 = vshrl.u32 %v1107, 7
        %1110 = vset.pattern.permute.xlu0 %v1108
        %1111 = vperm.xlu0 %1110, %v1106
        %v1112 = vpop.permute.xlu0 %1111
        %v1113 = vperm.slane %v969, 2
        %v1114 = vlaneseq
        %v1115 = vshrl.u32 %v1114, 7
        %1117 = vset.pattern.permute.xlu0 %v1115
        %1118 = vperm.xlu0 %1117, %v1113
        %v1119 = vpop.permute.xlu0 %1118
        %v1120 = vperm.slane %v969, 3
        %v1121 = vlaneseq
        %v1122 = vshrl.u32 %v1121, 7
        %1124 = vset.pattern.permute.xlu0 %v1122
        %1125 = vperm.xlu0 %1124, %v1120
        %v1126 = vpop.permute.xlu0 %1125
        %v1127 = vperm.slane %v969, 4
        %v1128 = vlaneseq
        %v1129 = vshrl.u32 %v1128, 7
        %1131 = vset.pattern.permute.xlu0 %v1129
        %1132 = vperm.xlu0 %1131, %v1127
        %v1133 = vpop.permute.xlu0 %1132
        %v1134 = vperm.slane %v969, 5
        %v1135 = vlaneseq
        %v1136 = vshrl.u32 %v1135, 7
        %1138 = vset.pattern.permute.xlu0 %v1136
        %1139 = vperm.xlu0 %1138, %v1134
        %v1140 = vpop.permute.xlu0 %1139
        %v1141 = vperm.slane %v969, 6
        %v1142 = vlaneseq
        %v1143 = vshrl.u32 %v1142, 7
        %1145 = vset.pattern.permute.xlu0 %v1143
        %1146 = vperm.xlu0 %1145, %v1141
        %v1147 = vpop.permute.xlu0 %1146
        %v1148 = vperm.slane %v969, 7
        %v1149 = vlaneseq
        %v1150 = vshrl.u32 %v1149, 7
        %1152 = vset.pattern.permute.xlu0 %v1150
        %1153 = vperm.xlu0 %1152, %v1148
        %v1154 = vpop.permute.xlu0 %1153
        %v1155 = vperm.slane %v979, 0
        %v1156 = vlaneseq
        %v1157 = vshrl.u32 %v1156, 7
        %1159 = vset.pattern.permute.xlu0 %v1157
        %1160 = vperm.xlu0 %1159, %v1155
        %v1161 = vpop.permute.xlu0 %1160
        %v1162 = vperm.slane %v979, 1
        %v1163 = vlaneseq
        %v1164 = vshrl.u32 %v1163, 7
        %1166 = vset.pattern.permute.xlu0 %v1164
        %1167 = vperm.xlu0 %1166, %v1162
        %v1168 = vpop.permute.xlu0 %1167
        %v1169 = vperm.slane %v979, 2
        %v1170 = vlaneseq
        %v1171 = vshrl.u32 %v1170, 7
        %1173 = vset.pattern.permute.xlu0 %v1171
        %1174 = vperm.xlu0 %1173, %v1169
        %v1175 = vpop.permute.xlu0 %1174
        %v1176 = vperm.slane %v979, 3
        %v1177 = vlaneseq
        %v1178 = vshrl.u32 %v1177, 7
        %1180 = vset.pattern.permute.xlu0 %v1178
        %1181 = vperm.xlu0 %1180, %v1176
        %v1182 = vpop.permute.xlu0 %1181
        %v1183 = vperm.slane %v979, 4
        %v1184 = vlaneseq
        %v1185 = vshrl.u32 %v1184, 7
        %1187 = vset.pattern.permute.xlu0 %v1185
        %1188 = vperm.xlu0 %1187, %v1183
        %v1189 = vpop.permute.xlu0 %1188
        %v1190 = vperm.slane %v979, 5
        %v1191 = vlaneseq
        %v1192 = vshrl.u32 %v1191, 7
        %1194 = vset.pattern.permute.xlu0 %v1192
        %1195 = vperm.xlu0 %1194, %v1190
        %v1196 = vpop.permute.xlu0 %1195
        %v1197 = vperm.slane %v979, 6
        %v1198 = vlaneseq
        %v1199 = vshrl.u32 %v1198, 7
        %1201 = vset.pattern.permute.xlu0 %v1199
        %1202 = vperm.xlu0 %1201, %v1197
        %v1203 = vpop.permute.xlu0 %1202
        %v1204 = vperm.slane %v979, 7
        %v1205 = vlaneseq
        %v1206 = vshrl.u32 %v1205, 7
        %1208 = vset.pattern.permute.xlu0 %v1206
        %1209 = vperm.xlu0 %1208, %v1204
        %v1210 = vpop.permute.xlu0 %1209
        %v1211 = vmul.f32 %v847, %v1105
        %v1212 = vmul.f32 %v850, %v1112
        %v1213 = vmul.f32 %v853, %v1119
        %v1214 = vmul.f32 %v856, %v1126
        %v1215 = vmul.f32 %v859, %v1133
        %v1216 = vmul.f32 %v862, %v1140
        %v1217 = vmul.f32 %v865, %v1147
        %v1218 = vmul.f32 %v868, %v1154
        %v1219 = vmul.f32 %v912, %v1161
        %v1220 = vmul.f32 %v915, %v1168
        %v1221 = vmul.f32 %v918, %v1175
        %v1222 = vmul.f32 %v921, %v1182
        %v1223 = vmul.f32 %v924, %v1189
        %v1224 = vmul.f32 %v927, %v1196
        %v1225 = vmul.f32 %v930, %v1203
        %v1226 = vmul.f32 %v933, %v1210
        %1233 = vst [vmem:[#allocation1] ss:$4 sm:$0xff] %v1048
        %s1234 = scalar_lea.vmem [#allocation1], 1
        %1235 = vst [vmem:[%s1234] ss:$4 sm:$0xff] %v1058
        %s1236 = scalar_lea.vmem [#allocation1], 2
        %1237 = vst [vmem:[%s1236] ss:$4 sm:$0xff] %v1068
        %v1238 = vld.sshfl [vmem:[#allocation1] sm:$0xff pattern:$0x73625140]
        %s1239 = scalar_lea.vmem [#allocation1], 32
        %1240 = vst [vmem:[%s1239] ss:$4 sm:$0xff] %v1078
        %s1241 = scalar_lea.vmem [#allocation1], 33
        %1242 = vst [vmem:[%s1241] ss:$4 sm:$0xff] %v1088
        %s1243 = scalar_lea.vmem [#allocation1], 34
        %1244 = vst [vmem:[%s1243] ss:$4 sm:$0xff] %v1098
        %v1245 = vld.sshfl [vmem:[#allocation1 + $0x20] sm:$0xff pattern:$0x73625140]
        %1248 = vxpose.xlu0.b32.start [1/16] %v1238, 128
        %1249 = vxpose.xlu0.b32.cont [2/16] 0.0, 128
        %1250 = vxpose.xlu0.b32.cont [3/16] 0.0, 128
        %1251 = vxpose.xlu0.b32.cont [4/16] 0.0, 128
        %1252 = vxpose.xlu0.b32.cont [5/16] 0.0, 128
        %1253 = vxpose.xlu0.b32.cont [6/16] 0.0, 128
        %1254 = vxpose.xlu0.b32.cont [7/16] 0.0, 128
        %1255 = vxpose.xlu0.b32.cont [8/16] 0.0, 128
        %1256 = vxpose.xlu0.b32.cont [9/16] 0.0, 128
        %1257 = vxpose.xlu0.b32.cont [10/16] 0.0, 128
        %1258 = vxpose.xlu0.b32.cont [11/16] 0.0, 128
        %1259 = vxpose.xlu0.b32.cont [12/16] 0.0, 128
        %1260 = vxpose.xlu0.b32.cont [13/16] 0.0, 128
        %1261 = vxpose.xlu0.b32.cont [14/16] 0.0, 128
        %1262 = vxpose.xlu0.b32.cont [15/16] 0.0, 128
        %1263 = vxpose.xlu0.b32.end [16/16] 0.0, 128
        %v1264 = vpop.trf.xlu0
        %v1265 = vpop.trf.xlu0
        %v1266 = vpop.trf.xlu0
        %v1267 = vpop.trf.xlu0
        %v1268 = vpop.trf.xlu0
        %v1269 = vpop.trf.xlu0
        %v1270 = vpop.trf.xlu0
        %v1271 = vpop.trf.xlu0
        %v1272 = vpop.trf.xlu0
        %v1273 = vpop.trf.xlu0
        %v1274 = vpop.trf.xlu0
        %v1275 = vpop.trf.xlu0
        %v1276 = vpop.trf.xlu0
        %v1277 = vpop.trf.xlu0
        %v1278 = vpop.trf.xlu0
        %v1279 = vpop.trf.xlu0
        %1280 = vxpose.xlu0.b32.start [1/16] %v1245, 128
        %1281 = vxpose.xlu0.b32.cont [2/16] 0.0, 128
        %1282 = vxpose.xlu0.b32.cont [3/16] 0.0, 128
        %1283 = vxpose.xlu0.b32.cont [4/16] 0.0, 128
        %1284 = vxpose.xlu0.b32.cont [5/16] 0.0, 128
        %1285 = vxpose.xlu0.b32.cont [6/16] 0.0, 128
        %1286 = vxpose.xlu0.b32.cont [7/16] 0.0, 128
        %1287 = vxpose.xlu0.b32.cont [8/16] 0.0, 128
        %1288 = vxpose.xlu0.b32.cont [9/16] 0.0, 128
        %1289 = vxpose.xlu0.b32.cont [10/16] 0.0, 128
        %1290 = vxpose.xlu0.b32.cont [11/16] 0.0, 128
        %1291 = vxpose.xlu0.b32.cont [12/16] 0.0, 128
        %1292 = vxpose.xlu0.b32.cont [13/16] 0.0, 128
        %1293 = vxpose.xlu0.b32.cont [14/16] 0.0, 128
        %1294 = vxpose.xlu0.b32.cont [15/16] 0.0, 128
        %1295 = vxpose.xlu0.b32.end [16/16] 0.0, 128
        %v1296 = vpop.trf.xlu0
        %v1297 = vpop.trf.xlu0
        %v1298 = vpop.trf.xlu0
        %v1299 = vpop.trf.xlu0
        %v1300 = vpop.trf.xlu0
        %v1301 = vpop.trf.xlu0
        %v1302 = vpop.trf.xlu0
        %v1303 = vpop.trf.xlu0
        %v1304 = vpop.trf.xlu0
        %v1305 = vpop.trf.xlu0
        %v1306 = vpop.trf.xlu0
        %v1307 = vpop.trf.xlu0
        %v1308 = vpop.trf.xlu0
        %v1309 = vpop.trf.xlu0
        %v1310 = vpop.trf.xlu0
        %v1311 = vpop.trf.xlu0
        %v1312 = vmul.f32 %v1211, %v1264
        %v1313 = vmul.f32 %v1212, %v1264
        %v1314 = vmul.f32 %v1213, %v1264
        %v1315 = vmul.f32 %v1214, %v1264
        %v1316 = vmul.f32 %v1215, %v1264
        %v1317 = vmul.f32 %v1216, %v1264
        %v1318 = vmul.f32 %v1217, %v1264
        %v1319 = vmul.f32 %v1218, %v1264
        %v1320 = vmul.f32 %v1219, %v1296
        %v1321 = vmul.f32 %v1220, %v1296
        %v1322 = vmul.f32 %v1221, %v1296
        %v1323 = vmul.f32 %v1222, %v1296
        %v1324 = vmul.f32 %v1223, %v1296
        %v1325 = vmul.f32 %v1224, %v1296
        %v1326 = vmul.f32 %v1225, %v1296
        %v1327 = vmul.f32 %v1226, %v1296
        %vm1328 = vcmask 48128
        %v1329 = vsel %vm1328, %v1312, -inf
        %1330 = vmax.xlane.f32.xlu0 %v1329
        %v1331 = vpop.xlane.xlu0 %1330
        %v1332 = vsel %vm1328, %v1313, -inf
        %1333 = vmax.xlane.f32.xlu0 %v1332
        %v1334 = vpop.xlane.xlu0 %1333
        %v1335 = vsel %vm1328, %v1314, -inf
        %1336 = vmax.xlane.f32.xlu0 %v1335
        %v1337 = vpop.xlane.xlu0 %1336
        %v1338 = vsel %vm1328, %v1315, -inf
        %1339 = vmax.xlane.f32.xlu0 %v1338
        %v1340 = vpop.xlane.xlu0 %1339
        %v1341 = vsel %vm1328, %v1316, -inf
        %1342 = vmax.xlane.f32.xlu0 %v1341
        %v1343 = vpop.xlane.xlu0 %1342
        %v1344 = vsel %vm1328, %v1317, -inf
        %1345 = vmax.xlane.f32.xlu0 %v1344
        %v1346 = vpop.xlane.xlu0 %1345
        %v1347 = vsel %vm1328, %v1318, -inf
        %1348 = vmax.xlane.f32.xlu0 %v1347
        %v1349 = vpop.xlane.xlu0 %1348
        %v1350 = vsel %vm1328, %v1319, -inf
        %1351 = vmax.xlane.f32.xlu0 %v1350
        %v1352 = vpop.xlane.xlu0 %1351
        %v1353 = vsel %vm1328, %v1320, -inf
        %1354 = vmax.xlane.f32.xlu0 %v1353
        %v1355 = vpop.xlane.xlu0 %1354
        %v1356 = vsel %vm1328, %v1321, -inf
        %1357 = vmax.xlane.f32.xlu0 %v1356
        %v1358 = vpop.xlane.xlu0 %1357
        %v1359 = vsel %vm1328, %v1322, -inf
        %1360 = vmax.xlane.f32.xlu0 %v1359
        %v1361 = vpop.xlane.xlu0 %1360
        %v1362 = vsel %vm1328, %v1323, -inf
        %1363 = vmax.xlane.f32.xlu0 %v1362
        %v1364 = vpop.xlane.xlu0 %1363
        %v1365 = vsel %vm1328, %v1324, -inf
        %1366 = vmax.xlane.f32.xlu0 %v1365
        %v1367 = vpop.xlane.xlu0 %1366
        %v1368 = vsel %vm1328, %v1325, -inf
        %1369 = vmax.xlane.f32.xlu0 %v1368
        %v1370 = vpop.xlane.xlu0 %1369
        %v1371 = vsel %vm1328, %v1326, -inf
        %1372 = vmax.xlane.f32.xlu0 %v1371
        %v1373 = vpop.xlane.xlu0 %1372
        %v1374 = vsel %vm1328, %v1327, -inf
        %1375 = vmax.xlane.f32.xlu0 %v1374
        %v1376 = vpop.xlane.xlu0 %1375
        %v1378 = vsel %vm1328, %v563, 0
        %vm1380 = vcmask 1045504
        %v1381 = vsel %vm1380, %v416, 0
        %1383 = vmatpush.msra.mxu0 0.0
        %1384 = vmatpush.msra.mxu0 0.0
        %1385 = vmatpush.msra.mxu0 0.0
        %1386 = vmatpush.msra.mxu0 0.0
        %1387 = vmatpush.msra.mxu0 0.0
        %1388 = vmatpush.msra.mxu0 0.0
        %1389 = vmatpush.msra.mxu0 0.0
        %1390 = vmatpush.msra.mxu0 0.0
        %1391 = vmatpush.msra.mxu0 0.0
        %1392 = vmatpush.msra.mxu0 0.0
        %1393 = vmatpush.msra.mxu0 0.0
        %1394 = vmatpush.msra.mxu0 0.0
        %1395 = vmatpush.msra.mxu0 0.0
        %1396 = vmatpush.msra.mxu0 0.0
        %1397 = vmatpush.msra.mxu0 0.0
        %1398 = vmatpush.msra.mxu0 %v1381
        %1399 = vmatmul.f32.gmra.mxu0 %v1378
        %v1400 = vpop.f32.mrf.mxu0
        %v1401 = vadd.f32 0.0, %v1400
        %1402 = vdwg.mxu0
        %v1404 = vsel %vm1328, %v564, 0
        %v1406 = vsel %vm1380, %v417, 0
        %1408 = vmatpush.msra.mxu0 0.0
        %1409 = vmatpush.msra.mxu0 0.0
        %1410 = vmatpush.msra.mxu0 0.0
        %1411 = vmatpush.msra.mxu0 0.0
        %1412 = vmatpush.msra.mxu0 0.0
        %1413 = vmatpush.msra.mxu0 0.0
        %1414 = vmatpush.msra.mxu0 0.0
        %1415 = vmatpush.msra.mxu0 0.0
        %1416 = vmatpush.msra.mxu0 0.0
        %1417 = vmatpush.msra.mxu0 0.0
        %1418 = vmatpush.msra.mxu0 0.0
        %1419 = vmatpush.msra.mxu0 0.0
        %1420 = vmatpush.msra.mxu0 0.0
        %1421 = vmatpush.msra.mxu0 0.0
        %1422 = vmatpush.msra.mxu0 0.0
        %1423 = vmatpush.msra.mxu0 %v1406
        %1424 = vmatmul.f32.gmra.mxu0 %v1404
        %v1425 = vpop.f32.mrf.mxu0
        %v1426 = vadd.f32 0.0, %v1425
        %1427 = vdwg.mxu0
        %v1428 = vsel %vm1328, %v563, 0.0
        %1429 = vadd.xlane.f32.xlu0 %v1428
        %v1430 = vpop.xlane.xlu0 %1429
        %v1431 = vsel %vm1328, %v564, 0.0
        %1432 = vadd.xlane.f32.xlu0 %v1431
        %v1433 = vpop.xlane.xlu0 %1432
        %v1434 = vadd.f32 %v1430, 1e-06
        %v1435 = vadd.f32 %v1433, 1e-06
        %v1436 = vrcp.pop %v1434
        %v1437 = vmul.f32 %v1434, %v1436
        %v1438 = vsub.f32 1.0, %v1437
        %v1439 = vmul.f32 %v1436, %v1438
        %v1440 = vadd.f32 %v1436, %v1439
        %vm1441 = vweird.f32 %v1434
        %vm1442 = vweird.f32 %v1436
        %vm1443 = vmor %vm1441, %vm1442
        %v1444 = vsel %vm1443, %v1436, %v1440
        %v1445 = vand.u32 2147483647, %v1434
        %vm1446 = vcmp.eq.f32.partialorder %v1445, 8.507059e+37
        %v1447 = vand.u32 %v1434, 2147483648
        %v1448 = vor.u32 1.1754944e-38, %v1447
        %v1449 = vsel %vm1446, %v1448, %v1444
        %v1450 = vmul.f32 1.0, %v1449
        %v1451 = vrcp.pop %v1435
        %v1452 = vmul.f32 %v1435, %v1451
        %v1453 = vsub.f32 1.0, %v1452
        %v1454 = vmul.f32 %v1451, %v1453
        %v1455 = vadd.f32 %v1451, %v1454
        %vm1456 = vweird.f32 %v1435
        %vm1457 = vweird.f32 %v1451
        %vm1458 = vmor %vm1456, %vm1457
        %v1459 = vsel %vm1458, %v1451, %v1455
        %v1460 = vand.u32 2147483647, %v1435
        %vm1461 = vcmp.eq.f32.partialorder %v1460, 8.507059e+37
        %v1462 = vand.u32 %v1435, 2147483648
        %v1463 = vor.u32 1.1754944e-38, %v1462
        %v1464 = vsel %vm1461, %v1463, %v1459
        %v1465 = vmul.f32 1.0, %v1464
        %v1466 = vmul.f32 %v1401, %v1450
        %v1467 = vmul.f32 %v1426, %v1465
        %v1468 = vmul.f32 %v412, %v1466
        %v1469 = vmul.f32 %v413, %v1467
        %v1471 = vsel %vm424, %v1468, 0
        %v1474 = vsel %vm424, %v1469, 0
        %1476 = vmatpush.msra.mxu0 0.0
        %1477 = vmatpush.msra.mxu0 0.0
        %1478 = vmatpush.msra.mxu0 0.0
        %1479 = vmatpush.msra.mxu0 0.0
        %1480 = vmatpush.msra.mxu0 0.0
        %1481 = vmatpush.msra.mxu0 0.0
        %1482 = vmatpush.msra.mxu0 0.0
        %1483 = vmatpush.msra.mxu0 0.0
        %1484 = vmatpush.msra.mxu0 0.0
        %1485 = vmatpush.msra.mxu0 0.0
        %1486 = vmatpush.msra.mxu0 0.0
        %1487 = vmatpush.msra.mxu0 0.0
        %1488 = vmatpush.msra.mxu0 %v399
        %1489 = vmatpush.msra.mxu0 %v398
        %1490 = vmatpush.msra.mxu0 %v397
        %1491 = vmatpush.msra.mxu0 %v396
        %1492 = vmatmul.f32.gmra.mxu0 %v1471
        %v1493 = vpop.f32.mrf.mxu0
        %v1494 = vadd.f32 0.0, %v1493
        %1495 = vmatmul.f32.gmra.mxu0 %v1474
        %v1496 = vpop.f32.mrf.mxu0
        %v1497 = vadd.f32 0.0, %v1496
        %1498 = vdwg.mxu0
        %1499 = vmatpush.msra.mxu0 0.0
        %1500 = vmatpush.msra.mxu0 0.0
        %1501 = vmatpush.msra.mxu0 0.0
        %1502 = vmatpush.msra.mxu0 0.0
        %1503 = vmatpush.msra.mxu0 0.0
        %1504 = vmatpush.msra.mxu0 0.0
        %1505 = vmatpush.msra.mxu0 0.0
        %1506 = vmatpush.msra.mxu0 0.0
        %1507 = vmatpush.msra.mxu0 0.0
        %1508 = vmatpush.msra.mxu0 0.0
        %1509 = vmatpush.msra.mxu0 0.0
        %1510 = vmatpush.msra.mxu0 0.0
        %1511 = vmatpush.msra.mxu0 %v399
        %1512 = vmatpush.msra.mxu0 %v398
        %1513 = vmatpush.msra.mxu0 %v397
        %1514 = vmatpush.msra.mxu0 %v396
        %1515 = vmatmul.f32.gmra.mxu0 %v599
        %v1516 = vpop.f32.mrf.mxu0
        %v1517 = vadd.f32 0.0, %v1516
        %1518 = vmatmul.f32.gmra.mxu0 %v602
        %v1519 = vpop.f32.mrf.mxu0
        %v1520 = vadd.f32 0.0, %v1519
        %1521 = vdwg.mxu0
        %v1522 = vmax.f32 %v1517, 1e-06
        %v1523 = vmax.f32 %v1520, 1e-06
        %v1524 = vrsqrt.pop %v1522
        %v1525 = vmul.f32 %v1524, %v1522
        %v1526 = vmul.f32 %v1525, %v1524
        %v1527 = vmul.f32 0.5, %v1526
        %v1528 = vsub.f32 1.5, %v1527
        %v1529 = vmul.f32 %v1524, %v1528
        %vm1530 = vweird.f32 %v1522
        %vm1531 = vweird.f32 %v1524
        %vm1532 = vmor %vm1530, %vm1531
        %v1533 = vsel %vm1532, %v1524, %v1529
        %v1534 = vrsqrt.pop %v1523
        %v1535 = vmul.f32 %v1534, %v1523
        %v1536 = vmul.f32 %v1535, %v1534
        %v1537 = vmul.f32 0.5, %v1536
        %v1538 = vsub.f32 1.5, %v1537
        %v1539 = vmul.f32 %v1534, %v1538
        %vm1540 = vweird.f32 %v1523
        %vm1541 = vweird.f32 %v1534
        %vm1542 = vmor %vm1540, %vm1541
        %v1543 = vsel %vm1542, %v1534, %v1539
        %v1544 = vmul.f32 %v1494, %v1533
        %v1545 = vmul.f32 %v1497, %v1543
        %v1546 = vmul.f32 %v1466, %v1466
        %v1547 = vmul.f32 %v1467, %v1467
        %v1549 = vsel %vm424, %v1546, 0
        %v1552 = vsel %vm424, %v1547, 0
        %1554 = vmatpush.msra.mxu0 0.0
        %1555 = vmatpush.msra.mxu0 0.0
        %1556 = vmatpush.msra.mxu0 0.0
        %1557 = vmatpush.msra.mxu0 0.0
        %1558 = vmatpush.msra.mxu0 0.0
        %1559 = vmatpush.msra.mxu0 0.0
        %1560 = vmatpush.msra.mxu0 0.0
        %1561 = vmatpush.msra.mxu0 0.0
        %1562 = vmatpush.msra.mxu0 0.0
        %1563 = vmatpush.msra.mxu0 0.0
        %1564 = vmatpush.msra.mxu0 0.0
        %1565 = vmatpush.msra.mxu0 0.0
        %1566 = vmatpush.msra.mxu0 %v399
        %1567 = vmatpush.msra.mxu0 %v398
        %1568 = vmatpush.msra.mxu0 %v397
        %1569 = vmatpush.msra.mxu0 %v396
        %1570 = vmatmul.f32.gmra.mxu0 %v1549
        %v1571 = vpop.f32.mrf.mxu0
        %v1572 = vadd.f32 0.0, %v1571
        %1573 = vmatmul.f32.gmra.mxu0 %v1552
        %v1574 = vpop.f32.mrf.mxu0
        %v1575 = vadd.f32 0.0, %v1574
        %1576 = vdwg.mxu0
        %v1577 = vmax.f32 %v1572, 1e-06
        %v1578 = vmax.f32 %v1575, 1e-06
        %v1579 = vrsqrt.pop %v1577
        %v1580 = vmul.f32 %v1579, %v1577
        %v1581 = vmul.f32 %v1580, %v1579
        %v1582 = vmul.f32 0.5, %v1581
        %v1583 = vsub.f32 1.5, %v1582
        %v1584 = vmul.f32 %v1579, %v1583
        %vm1585 = vweird.f32 %v1577
        %vm1586 = vweird.f32 %v1579
        %vm1587 = vmor %vm1585, %vm1586
        %v1588 = vsel %vm1587, %v1579, %v1584
        %v1589 = vrsqrt.pop %v1578
        %v1590 = vmul.f32 %v1589, %v1578
        %v1591 = vmul.f32 %v1590, %v1589
        %v1592 = vmul.f32 0.5, %v1591
        %v1593 = vsub.f32 1.5, %v1592
        %v1594 = vmul.f32 %v1589, %v1593
        %vm1595 = vweird.f32 %v1578
        %vm1596 = vweird.f32 %v1589
        %vm1597 = vmor %vm1595, %vm1596
        %v1598 = vsel %vm1597, %v1589, %v1594
        %v1599 = vmul.f32 %v1544, %v1588
        %v1600 = vmul.f32 %v1545, %v1598
        %v1601 = vmul.f32 %v414, %v414
        %v1602 = vmul.f32 %v415, %v415
        %v1603 = vmul.f32 %v418, %v418
        %v1604 = vmul.f32 %v419, %v419
        %v1606 = vsel %vm424, %v414, 0
        %v1609 = vsel %vm424, %v418, 0
        %1611 = vmatpush.xpose.msra.mxu0 0.0
        %1612 = vmatpush.xpose.msra.mxu0 0.0
        %1613 = vmatpush.xpose.msra.mxu0 0.0
        %1614 = vmatpush.xpose.msra.mxu0 0.0
        %1615 = vmatpush.xpose.msra.mxu0 0.0
        %1616 = vmatpush.xpose.msra.mxu0 0.0
        %1617 = vmatpush.xpose.msra.mxu0 0.0
        %1618 = vmatpush.xpose.msra.mxu0 0.0
        %1619 = vmatpush.xpose.msra.mxu0 0.0
        %1620 = vmatpush.xpose.msra.mxu0 0.0
        %1621 = vmatpush.xpose.msra.mxu0 0.0
        %1622 = vmatpush.xpose.msra.mxu0 0.0
        %1623 = vmatpush.xpose.msra.mxu0 0.0
        %1624 = vmatpush.xpose.msra.mxu0 0.0
        %1625 = vmatpush.xpose.msra.mxu0 0.0
        %1626 = vmatpush.xpose.msra.mxu0 %v1609
        %1627 = vmatmul.f32.gmra.mxu0 %v1606
        %v1628 = vpop.f32.mrf.mxu0
        %v1629 = vadd.f32 0.0, %v1628
        %1630 = vdwg.mxu0
        %v1632 = vsel %vm424, %v415, 0
        %v1635 = vsel %vm424, %v419, 0
        %1637 = vmatpush.xpose.msra.mxu0 0.0
        %1638 = vmatpush.xpose.msra.mxu0 0.0
        %1639 = vmatpush.xpose.msra.mxu0 0.0
        %1640 = vmatpush.xpose.msra.mxu0 0.0
        %1641 = vmatpush.xpose.msra.mxu0 0.0
        %1642 = vmatpush.xpose.msra.mxu0 0.0
        %1643 = vmatpush.xpose.msra.mxu0 0.0
        %1644 = vmatpush.xpose.msra.mxu0 0.0
        %1645 = vmatpush.xpose.msra.mxu0 0.0
        %1646 = vmatpush.xpose.msra.mxu0 0.0
        %1647 = vmatpush.xpose.msra.mxu0 0.0
        %1648 = vmatpush.xpose.msra.mxu0 0.0
        %1649 = vmatpush.xpose.msra.mxu0 0.0
        %1650 = vmatpush.xpose.msra.mxu0 0.0
        %1651 = vmatpush.xpose.msra.mxu0 0.0
        %1652 = vmatpush.xpose.msra.mxu0 %v1635
        %1653 = vmatmul.f32.gmra.mxu0 %v1632
        %v1654 = vpop.f32.mrf.mxu0
        %v1655 = vadd.f32 0.0, %v1654
        %1656 = vdwg.mxu0
        %v1657 = vsel %vm424, %v1601, 0.0
        %1658 = vadd.xlane.f32.xlu0 %v1657
        %v1659 = vpop.xlane.xlu0 %1658
        %v1660 = vsel %vm424, %v1602, 0.0
        %1661 = vadd.xlane.f32.xlu0 %v1660
        %v1662 = vpop.xlane.xlu0 %1661
        %v1663 = vmax.f32 %v1659, 1e-06
        %v1664 = vmax.f32 %v1662, 1e-06
        %v1665 = vrsqrt.pop %v1663
        %v1666 = vmul.f32 %v1665, %v1663
        %v1667 = vmul.f32 %v1666, %v1665
        %v1668 = vmul.f32 0.5, %v1667
        %v1669 = vsub.f32 1.5, %v1668
        %v1670 = vmul.f32 %v1665, %v1669
        %vm1671 = vweird.f32 %v1663
        %vm1672 = vweird.f32 %v1665
        %vm1673 = vmor %vm1671, %vm1672
        %v1674 = vsel %vm1673, %v1665, %v1670
        %v1675 = vrsqrt.pop %v1664
        %v1676 = vmul.f32 %v1675, %v1664
        %v1677 = vmul.f32 %v1676, %v1675
        %v1678 = vmul.f32 0.5, %v1677
        %v1679 = vsub.f32 1.5, %v1678
        %v1680 = vmul.f32 %v1675, %v1679
        %vm1681 = vweird.f32 %v1664
        %vm1682 = vweird.f32 %v1675
        %vm1683 = vmor %vm1681, %vm1682
        %v1684 = vsel %vm1683, %v1675, %v1680
        %v1685 = vsel %vm505, %v1603, 0.0
        %1686 = vadd.xlane.f32.xlu0 %v1685
        %v1687 = vpop.xlane.xlu0 %1686
        %v1688 = vsel %vm505, %v1604, 0.0
        %1689 = vadd.xlane.f32.xlu0 %v1688
        %v1690 = vpop.xlane.xlu0 %1689
        %v1691 = vmax.f32 %v1687, 1e-06
        %v1692 = vmax.f32 %v1690, 1e-06
        %v1693 = vrsqrt.pop %v1691
        %v1694 = vmul.f32 %v1693, %v1691
        %v1695 = vmul.f32 %v1694, %v1693
        %v1696 = vmul.f32 0.5, %v1695
        %v1697 = vsub.f32 1.5, %v1696
        %v1698 = vmul.f32 %v1693, %v1697
        %vm1699 = vweird.f32 %v1691
        %vm1700 = vweird.f32 %v1693
        %vm1701 = vmor %vm1699, %vm1700
        %v1702 = vsel %vm1701, %v1693, %v1698
        %v1703 = vrsqrt.pop %v1692
        %v1704 = vmul.f32 %v1703, %v1692
        %v1705 = vmul.f32 %v1704, %v1703
        %v1706 = vmul.f32 0.5, %v1705
        %v1707 = vsub.f32 1.5, %v1706
        %v1708 = vmul.f32 %v1703, %v1707
        %vm1709 = vweird.f32 %v1692
        %vm1710 = vweird.f32 %v1703
        %vm1711 = vmor %vm1709, %vm1710
        %v1712 = vsel %vm1711, %v1703, %v1708
        %v1713 = vmul.f32 %v1629, %v1674
        %v1714 = vmul.f32 %v1655, %v1684
        %v1717 = vperm.slane %v1702, %v539
        %v1718 = vperm.slane %v1712, %v539
        %v1719 = vsel %vm543, %v1717, %v1717
        %v1720 = vsel %vm545, %v1717, %v1719
        %v1721 = vsel %vm547, %v1717, %v1720
        %v1722 = vsel %vm549, %v1717, %v1721
        %v1723 = vsel %vm551, %v1717, %v1722
        %v1724 = vsel %vm553, %v1717, %v1723
        %v1725 = vsel %vm543, %v1718, %v1718
        %v1726 = vsel %vm545, %v1718, %v1725
        %v1727 = vsel %vm547, %v1718, %v1726
        %v1728 = vsel %vm549, %v1718, %v1727
        %v1729 = vsel %vm551, %v1718, %v1728
        %v1730 = vsel %vm553, %v1718, %v1729
        %v1733 = vmul.f32 %v1713, %v1724
        %v1734 = vmul.f32 %v1714, %v1730
        %v1735 = vperm.slane %v418, 5
        %v1736 = vperm.slane %v419, 5
        %v1737 = vmul.f32 %v414, %v1735
        %v1738 = vmul.f32 %v415, %v1736
        %v1740 = vsel %vm424, %v1737, 0
        %v1743 = vsel %vm424, %v1738, 0
        %1745 = vmatpush.msra.mxu0 0.0
        %1746 = vmatpush.msra.mxu0 0.0
        %1747 = vmatpush.msra.mxu0 0.0
        %1748 = vmatpush.msra.mxu0 0.0
        %1749 = vmatpush.msra.mxu0 0.0
        %1750 = vmatpush.msra.mxu0 0.0
        %1751 = vmatpush.msra.mxu0 0.0
        %1752 = vmatpush.msra.mxu0 0.0
        %1753 = vmatpush.msra.mxu0 0.0
        %1754 = vmatpush.msra.mxu0 0.0
        %1755 = vmatpush.msra.mxu0 0.0
        %1756 = vmatpush.msra.mxu0 0.0
        %1757 = vmatpush.msra.mxu0 %v387
        %1758 = vmatpush.msra.mxu0 %v386
        %1759 = vmatpush.msra.mxu0 %v385
        %1760 = vmatpush.msra.mxu0 %v384
        %1761 = vmatmul.f32.gmra.mxu0 %v1740
        %v1762 = vpop.f32.mrf.mxu0
        %v1763 = vadd.f32 0.0, %v1762
        %1764 = vmatmul.f32.gmra.mxu0 %v1743
        %v1765 = vpop.f32.mrf.mxu0
        %v1766 = vadd.f32 0.0, %v1765
        %1767 = vdwg.mxu0
        %v1769 = vsel %vm424, %v1601, 0
        %v1772 = vsel %vm424, %v1602, 0
        %1774 = vmatpush.msra.mxu0 0.0
        %1775 = vmatpush.msra.mxu0 0.0
        %1776 = vmatpush.msra.mxu0 0.0
        %1777 = vmatpush.msra.mxu0 0.0
        %1778 = vmatpush.msra.mxu0 0.0
        %1779 = vmatpush.msra.mxu0 0.0
        %1780 = vmatpush.msra.mxu0 0.0
        %1781 = vmatpush.msra.mxu0 0.0
        %1782 = vmatpush.msra.mxu0 0.0
        %1783 = vmatpush.msra.mxu0 0.0
        %1784 = vmatpush.msra.mxu0 0.0
        %1785 = vmatpush.msra.mxu0 0.0
        %1786 = vmatpush.msra.mxu0 %v387
        %1787 = vmatpush.msra.mxu0 %v386
        %1788 = vmatpush.msra.mxu0 %v385
        %1789 = vmatpush.msra.mxu0 %v384
        %1790 = vmatmul.f32.gmra.mxu0 %v1769
        %v1791 = vpop.f32.mrf.mxu0
        %v1792 = vadd.f32 0.0, %v1791
        %1793 = vmatmul.f32.gmra.mxu0 %v1772
        %v1794 = vpop.f32.mrf.mxu0
        %v1795 = vadd.f32 0.0, %v1794
        %1796 = vdwg.mxu0
        %v1797 = vmax.f32 %v1792, 1e-06
        %v1798 = vmax.f32 %v1795, 1e-06
        %v1799 = vrsqrt.pop %v1797
        %v1800 = vmul.f32 %v1799, %v1797
        %v1801 = vmul.f32 %v1800, %v1799
        %v1802 = vmul.f32 0.5, %v1801
        %v1803 = vsub.f32 1.5, %v1802
        %v1804 = vmul.f32 %v1799, %v1803
        %vm1805 = vweird.f32 %v1797
        %vm1806 = vweird.f32 %v1799
        %vm1807 = vmor %vm1805, %vm1806
        %v1808 = vsel %vm1807, %v1799, %v1804
        %v1809 = vrsqrt.pop %v1798
        %v1810 = vmul.f32 %v1809, %v1798
        %v1811 = vmul.f32 %v1810, %v1809
        %v1812 = vmul.f32 0.5, %v1811
        %v1813 = vsub.f32 1.5, %v1812
        %v1814 = vmul.f32 %v1809, %v1813
        %vm1815 = vweird.f32 %v1798
        %vm1816 = vweird.f32 %v1809
        %vm1817 = vmor %vm1815, %vm1816
        %v1818 = vsel %vm1817, %v1809, %v1814
        %v1819 = vmul.f32 %v1763, %v1808
        %v1820 = vmul.f32 %v1766, %v1818
        %v1823 = vrot.slane %v1603, 5
        %v1824 = vrot.slane %v1604, 4
        %v1825 = vsel %vm542, %v1824, %v1823
        %v1826 = vsel %vm424, %v1825, 0
        %1828 = vmatpush.msra.mxu0 0.0
        %1829 = vmatpush.msra.mxu0 0.0
        %1830 = vmatpush.msra.mxu0 0.0
        %1831 = vmatpush.msra.mxu0 0.0
        %1832 = vmatpush.msra.mxu0 0.0
        %1833 = vmatpush.msra.mxu0 0.0
        %1834 = vmatpush.msra.mxu0 0.0
        %1835 = vmatpush.msra.mxu0 0.0
        %1836 = vmatpush.msra.mxu0 0.0
        %1837 = vmatpush.msra.mxu0 0.0
        %1838 = vmatpush.msra.mxu0 0.0
        %1839 = vmatpush.msra.mxu0 0.0
        %1840 = vmatpush.msra.mxu0 %v387
        %1841 = vmatpush.msra.mxu0 %v386
        %1842 = vmatpush.msra.mxu0 %v385
        %1843 = vmatpush.msra.mxu0 %v384
        %1844 = vmatmul.f32.gmra.mxu0 %v1826
        %v1845 = vpop.f32.mrf.mxu0
        %v1846 = vadd.f32 0.0, %v1845
        %1847 = vdwg.mxu0
        %v1849 = vrot.slane %v1846, 1
        %v1851 = vmax.f32 %v1846, 1e-06
        %v1852 = vmax.f32 %v1849, 1e-06
        %v1853 = vrsqrt.pop %v1851
        %v1854 = vmul.f32 %v1853, %v1851
        %v1855 = vmul.f32 %v1854, %v1853
        %v1856 = vmul.f32 0.5, %v1855
        %v1857 = vsub.f32 1.5, %v1856
        %v1858 = vmul.f32 %v1853, %v1857
        %vm1859 = vweird.f32 %v1851
        %vm1860 = vweird.f32 %v1853
        %vm1861 = vmor %vm1859, %vm1860
        %v1862 = vsel %vm1861, %v1853, %v1858
        %v1863 = vrsqrt.pop %v1852
        %v1864 = vmul.f32 %v1863, %v1852
        %v1865 = vmul.f32 %v1864, %v1863
        %v1866 = vmul.f32 0.5, %v1865
        %v1867 = vsub.f32 1.5, %v1866
        %v1868 = vmul.f32 %v1863, %v1867
        %vm1869 = vweird.f32 %v1852
        %vm1870 = vweird.f32 %v1863
        %vm1871 = vmor %vm1869, %vm1870
        %v1872 = vsel %vm1871, %v1863, %v1868
        %v1875 = vperm.slane %v1862, 0
        %v1876 = vperm.slane %v1872, 0
        %v1879 = vmul.f32 %v1819, %v1875
        %v1880 = vmul.f32 %v1820, %v1876
        %1881 = vxpose.xlu0.b32.start [1/16] %v392, 128
        %1882 = vxpose.xlu0.b32.cont [2/16] %v393, 128
        %1883 = vxpose.xlu0.b32.cont [3/16] %v394, 128
        %1884 = vxpose.xlu0.b32.cont [4/16] %v395, 128
        %1885 = vxpose.xlu0.b32.cont [5/16] 0.0, 128
        %1886 = vxpose.xlu0.b32.cont [6/16] 0.0, 128
        %1887 = vxpose.xlu0.b32.cont [7/16] 0.0, 128
        %1888 = vxpose.xlu0.b32.cont [8/16] 0.0, 128
        %1889 = vxpose.xlu0.b32.cont [9/16] 0.0, 128
        %1890 = vxpose.xlu0.b32.cont [10/16] 0.0, 128
        %1891 = vxpose.xlu0.b32.cont [11/16] 0.0, 128
        %1892 = vxpose.xlu0.b32.cont [12/16] 0.0, 128
        %1893 = vxpose.xlu0.b32.cont [13/16] 0.0, 128
        %1894 = vxpose.xlu0.b32.cont [14/16] 0.0, 128
        %1895 = vxpose.xlu0.b32.cont [15/16] 0.0, 128
        %1896 = vxpose.xlu0.b32.end [16/16] 0.0, 128
        %v1897 = vpop.trf.xlu0
        %v1898 = vpop.trf.xlu0
        %v1899 = vpop.trf.xlu0
        %v1900 = vpop.trf.xlu0
        %v1901 = vpop.trf.xlu0
        %v1902 = vpop.trf.xlu0
        %v1903 = vpop.trf.xlu0
        %v1904 = vpop.trf.xlu0
        %v1905 = vpop.trf.xlu0
        %v1906 = vpop.trf.xlu0
        %v1907 = vpop.trf.xlu0
        %v1908 = vpop.trf.xlu0
        %v1909 = vpop.trf.xlu0
        %v1910 = vpop.trf.xlu0
        %v1911 = vpop.trf.xlu0
        %v1912 = vpop.trf.xlu0
        %v1913 = vrot.slane %v414, 1
        %v1914 = vrot.slane %v414, 2
        %v1915 = vrot.slane %v414, 3
        %v1916 = vrot.slane %v414, 4
        %v1917 = vrot.slane %v414, 5
        %v1918 = vrot.slane %v414, 6
        %v1919 = vrot.slane %v414, 7
        %v1920 = vrot.slane %v415, 1
        %v1921 = vrot.slane %v415, 2
        %v1922 = vrot.slane %v415, 3
        %v1923 = vrot.slane %v415, 4
        %v1924 = vrot.slane %v415, 5
        %v1925 = vrot.slane %v415, 6
        %v1926 = vrot.slane %v415, 7
        %v1927 = vperm.slane %v414, 0
        %v1928 = vperm.slane %v1913, 0
        %v1929 = vperm.slane %v1914, 0
        %v1930 = vperm.slane %v1915, 0
        %v1931 = vperm.slane %v1916, 0
        %v1932 = vperm.slane %v1917, 0
        %v1933 = vperm.slane %v1918, 0
        %v1934 = vperm.slane %v1919, 0
        %v1935 = vperm.slane %v415, 0
        %v1936 = vperm.slane %v1920, 0
        %v1937 = vperm.slane %v1921, 0
        %v1938 = vperm.slane %v1922, 0
        %v1939 = vperm.slane %v1923, 0
        %v1940 = vperm.slane %v1924, 0
        %v1941 = vperm.slane %v1925, 0
        %v1942 = vperm.slane %v1926, 0
        %v1959 = vmul.f32 %v1927, %v1897
        %v1960 = vmul.f32 %v1928, %v1897
        %v1961 = vmul.f32 %v1929, %v1897
        %v1962 = vmul.f32 %v1930, %v1897
        %v1963 = vmul.f32 %v1931, %v1897
        %v1964 = vmul.f32 %v1932, %v1897
        %v1965 = vmul.f32 %v1933, %v1897
        %v1966 = vmul.f32 %v1934, %v1897
        %v1967 = vmul.f32 %v1935, %v1897
        %v1968 = vmul.f32 %v1936, %v1897
        %v1969 = vmul.f32 %v1937, %v1897
        %v1970 = vmul.f32 %v1938, %v1897
        %v1971 = vmul.f32 %v1939, %v1897
        %v1972 = vmul.f32 %v1940, %v1897
        %v1973 = vmul.f32 %v1941, %v1897
        %v1974 = vmul.f32 %v1942, %v1897
        %v1976 = vsel %vm424, %v1959, 0
        %v1979 = vsel %vm424, %v1960, 0
        %v1982 = vsel %vm424, %v1961, 0
        %v1985 = vsel %vm424, %v1962, 0
        %v1988 = vsel %vm424, %v1963, 0
        %v1991 = vsel %vm424, %v1964, 0
        %v1994 = vsel %vm424, %v1965, 0
        %v1997 = vsel %vm424, %v1966, 0
        %1999 = vmatpush.xpose.msra.mxu0 0.0
        %2000 = vmatpush.xpose.msra.mxu0 0.0
        %2001 = vmatpush.xpose.msra.mxu0 0.0
        %2002 = vmatpush.xpose.msra.mxu0 0.0
        %2003 = vmatpush.xpose.msra.mxu0 0.0
        %2004 = vmatpush.xpose.msra.mxu0 0.0
        %2005 = vmatpush.xpose.msra.mxu0 0.0
        %2006 = vmatpush.xpose.msra.mxu0 0.0
        %2007 = vmatpush.xpose.msra.mxu0 0.0
        %2008 = vmatpush.xpose.msra.mxu0 0.0
        %2009 = vmatpush.xpose.msra.mxu0 0.0
        %2010 = vmatpush.xpose.msra.mxu0 0.0
        %2011 = vmatpush.xpose.msra.mxu0 0.0
        %2012 = vmatpush.xpose.msra.mxu0 0.0
        %2013 = vmatpush.xpose.msra.mxu0 0.0
        %2014 = vmatpush.xpose.msra.mxu0 %v1609
        %2015 = vmatmul.f32.gmra.mxu0 %v1976
        %v2016 = vpop.f32.mrf.mxu0
        %v2017 = vadd.f32 0.0, %v2016
        %2018 = vmatmul.f32.gmra.mxu0 %v1979
        %v2019 = vpop.f32.mrf.mxu0
        %v2020 = vadd.f32 0.0, %v2019
        %2021 = vmatmul.f32.gmra.mxu0 %v1982
        %v2022 = vpop.f32.mrf.mxu0
        %v2023 = vadd.f32 0.0, %v2022
        %2024 = vmatmul.f32.gmra.mxu0 %v1985
        %v2025 = vpop.f32.mrf.mxu0
        %v2026 = vadd.f32 0.0, %v2025
        %2027 = vmatmul.f32.gmra.mxu0 %v1988
        %v2028 = vpop.f32.mrf.mxu0
        %v2029 = vadd.f32 0.0, %v2028
        %2030 = vmatmul.f32.gmra.mxu0 %v1991
        %v2031 = vpop.f32.mrf.mxu0
        %v2032 = vadd.f32 0.0, %v2031
        %2033 = vmatmul.f32.gmra.mxu0 %v1994
        %v2034 = vpop.f32.mrf.mxu0
        %v2035 = vadd.f32 0.0, %v2034
        %2036 = vmatmul.f32.gmra.mxu0 %v1997
        %v2037 = vpop.f32.mrf.mxu0
        %v2038 = vadd.f32 0.0, %v2037
        %2039 = vdwg.mxu0
        %v2041 = vsel %vm424, %v1967, 0
        %v2044 = vsel %vm424, %v1968, 0
        %v2047 = vsel %vm424, %v1969, 0
        %v2050 = vsel %vm424, %v1970, 0
        %v2053 = vsel %vm424, %v1971, 0
        %v2056 = vsel %vm424, %v1972, 0
        %v2059 = vsel %vm424, %v1973, 0
        %v2062 = vsel %vm424, %v1974, 0
        %2064 = vmatpush.xpose.msra.mxu0 0.0
        %2065 = vmatpush.xpose.msra.mxu0 0.0
        %2066 = vmatpush.xpose.msra.mxu0 0.0
        %2067 = vmatpush.xpose.msra.mxu0 0.0
        %2068 = vmatpush.xpose.msra.mxu0 0.0
        %2069 = vmatpush.xpose.msra.mxu0 0.0
        %2070 = vmatpush.xpose.msra.mxu0 0.0
        %2071 = vmatpush.xpose.msra.mxu0 0.0
        %2072 = vmatpush.xpose.msra.mxu0 0.0
        %2073 = vmatpush.xpose.msra.mxu0 0.0
        %2074 = vmatpush.xpose.msra.mxu0 0.0
        %2075 = vmatpush.xpose.msra.mxu0 0.0
        %2076 = vmatpush.xpose.msra.mxu0 0.0
        %2077 = vmatpush.xpose.msra.mxu0 0.0
        %2078 = vmatpush.xpose.msra.mxu0 0.0
        %2079 = vmatpush.xpose.msra.mxu0 %v1635
        %2080 = vmatmul.f32.gmra.mxu0 %v2041
        %v2081 = vpop.f32.mrf.mxu0
        %v2082 = vadd.f32 0.0, %v2081
        %2083 = vmatmul.f32.gmra.mxu0 %v2044
        %v2084 = vpop.f32.mrf.mxu0
        %v2085 = vadd.f32 0.0, %v2084
        %2086 = vmatmul.f32.gmra.mxu0 %v2047
        %v2087 = vpop.f32.mrf.mxu0
        %v2088 = vadd.f32 0.0, %v2087
        %2089 = vmatmul.f32.gmra.mxu0 %v2050
        %v2090 = vpop.f32.mrf.mxu0
        %v2091 = vadd.f32 0.0, %v2090
        %2092 = vmatmul.f32.gmra.mxu0 %v2053
        %v2093 = vpop.f32.mrf.mxu0
        %v2094 = vadd.f32 0.0, %v2093
        %2095 = vmatmul.f32.gmra.mxu0 %v2056
        %v2096 = vpop.f32.mrf.mxu0
        %v2097 = vadd.f32 0.0, %v2096
        %2098 = vmatmul.f32.gmra.mxu0 %v2059
        %v2099 = vpop.f32.mrf.mxu0
        %v2100 = vadd.f32 0.0, %v2099
        %2101 = vmatmul.f32.gmra.mxu0 %v2062
        %v2102 = vpop.f32.mrf.mxu0
        %v2103 = vadd.f32 0.0, %v2102
        %2104 = vdwg.mxu0
        %2105 = vmatpush.msra.mxu0 0.0
        %2106 = vmatpush.msra.mxu0 0.0
        %2107 = vmatpush.msra.mxu0 0.0
        %2108 = vmatpush.msra.mxu0 0.0
        %2109 = vmatpush.msra.mxu0 0.0
        %2110 = vmatpush.msra.mxu0 0.0
        %2111 = vmatpush.msra.mxu0 0.0
        %2112 = vmatpush.msra.mxu0 0.0
        %2113 = vmatpush.msra.mxu0 0.0
        %2114 = vmatpush.msra.mxu0 0.0
        %2115 = vmatpush.msra.mxu0 0.0
        %2116 = vmatpush.msra.mxu0 0.0
        %2117 = vmatpush.msra.mxu0 %v395
        %2118 = vmatpush.msra.mxu0 %v394
        %2119 = vmatpush.msra.mxu0 %v393
        %2120 = vmatpush.msra.mxu0 %v392
        %2121 = vmatmul.f32.gmra.mxu0 %v1769
        %v2122 = vpop.f32.mrf.mxu0
        %v2123 = vadd.f32 0.0, %v2122
        %2124 = vmatmul.f32.gmra.mxu0 %v1772
        %v2125 = vpop.f32.mrf.mxu0
        %v2126 = vadd.f32 0.0, %v2125
        %2127 = vdwg.mxu0
        %v2128 = vmax.f32 %v2123, 1e-06
        %v2129 = vmax.f32 %v2126, 1e-06
        %v2130 = vrsqrt.pop %v2128
        %v2131 = vmul.f32 %v2130, %v2128
        %v2132 = vmul.f32 %v2131, %v2130
        %v2133 = vmul.f32 0.5, %v2132
        %v2134 = vsub.f32 1.5, %v2133
        %v2135 = vmul.f32 %v2130, %v2134
        %vm2136 = vweird.f32 %v2128
        %vm2137 = vweird.f32 %v2130
        %vm2138 = vmor %vm2136, %vm2137
        %v2139 = vsel %vm2138, %v2130, %v2135
        %v2140 = vrsqrt.pop %v2129
        %v2141 = vmul.f32 %v2140, %v2129
        %v2142 = vmul.f32 %v2141, %v2140
        %v2143 = vmul.f32 0.5, %v2142
        %v2144 = vsub.f32 1.5, %v2143
        %v2145 = vmul.f32 %v2140, %v2144
        %vm2146 = vweird.f32 %v2129
        %vm2147 = vweird.f32 %v2140
        %vm2148 = vmor %vm2146, %vm2147
        %v2149 = vsel %vm2148, %v2140, %v2145
        %v2150 = vrot.slane %v1603, 2
        %v2151 = vrot.slane %v1603, 4
        %v2152 = vrot.slane %v1604, 2
        %2153 = vst [vmem:[#allocation1] ss:$4 sm:$0xff] %v1603
        %s2154 = scalar_lea.vmem [#allocation1], 1
        %2155 = vst [vmem:[%s2154] ss:$4 sm:$0xff] %v2150
        %s2156 = scalar_lea.vmem [#allocation1], 2
        %2157 = vst [vmem:[%s2156] ss:$4 sm:$0xff] %v2151
        %s2158 = scalar_lea.vmem [#allocation1], 3
        %2159 = vst [vmem:[%s2158] ss:$4 sm:$0xff] %v1604
        %s2160 = scalar_lea.vmem [#allocation1], 32
        %2161 = vst [vmem:[%s2160] ss:$4 sm:$0xff] %v2152
        %s2162 = scalar_lea.vmem [#allocation1], 33
        %2163 = vst [vmem:[%s2162] ss:$4 sm:$0xff] %v1824
        %v2164 = vld.sshfl [vmem:[#allocation1] sm:$0xff pattern:$0x73625140]
        %v2165 = vld.sshfl [vmem:[#allocation1 + $0x20] sm:$0xff pattern:$0x73625140]
        %v2166 = vsel %vm424, %v2164, 0
        %v2168 = vsel %vm424, %v2165, 0
        %2170 = vmatpush.msra.mxu0 0.0
        %2171 = vmatpush.msra.mxu0 0.0
        %2172 = vmatpush.msra.mxu0 0.0
        %2173 = vmatpush.msra.mxu0 0.0
        %2174 = vmatpush.msra.mxu0 0.0
        %2175 = vmatpush.msra.mxu0 0.0
        %2176 = vmatpush.msra.mxu0 0.0
        %2177 = vmatpush.msra.mxu0 0.0
        %2178 = vmatpush.msra.mxu0 0.0
        %2179 = vmatpush.msra.mxu0 0.0
        %2180 = vmatpush.msra.mxu0 0.0
        %2181 = vmatpush.msra.mxu0 0.0
        %2182 = vmatpush.msra.mxu0 %v395
        %2183 = vmatpush.msra.mxu0 %v394
        %2184 = vmatpush.msra.mxu0 %v393
        %2185 = vmatpush.msra.mxu0 %v392
        %2186 = vmatmul.f32.gmra.mxu0 %v2166
        %v2187 = vpop.f32.mrf.mxu0
        %v2188 = vadd.f32 0.0, %v2187
        %2189 = vmatmul.f32.gmra.mxu0 %v2168
        %v2190 = vpop.f32.mrf.mxu0
        %v2191 = vadd.f32 0.0, %v2190
        %2192 = vdwg.mxu0
        %v2195 = vrot.slane %v2188, 2
        %v2196 = vrot.slane %v2188, 4
        %v2197 = vrot.slane %v2188, 6
        %v2198 = vrot.slane %v2191, 2
        %v2203 = vmax.f32 %v2188, 1e-06
        %v2204 = vmax.f32 %v2195, 1e-06
        %v2205 = vmax.f32 %v2196, 1e-06
        %v2206 = vmax.f32 %v2197, 1e-06
        %v2207 = vmax.f32 %v2191, 1e-06
        %v2208 = vmax.f32 %v2198, 1e-06
        %v2209 = vrsqrt.pop %v2203
        %v2210 = vmul.f32 %v2209, %v2203
        %v2211 = vmul.f32 %v2210, %v2209
        %v2212 = vmul.f32 0.5, %v2211
        %v2213 = vsub.f32 1.5, %v2212
        %v2214 = vmul.f32 %v2209, %v2213
        %vm2215 = vweird.f32 %v2203
        %vm2216 = vweird.f32 %v2209
        %vm2217 = vmor %vm2215, %vm2216
        %v2218 = vsel %vm2217, %v2209, %v2214
        %v2219 = vrsqrt.pop %v2204
        %v2220 = vmul.f32 %v2219, %v2204
        %v2221 = vmul.f32 %v2220, %v2219
        %v2222 = vmul.f32 0.5, %v2221
        %v2223 = vsub.f32 1.5, %v2222
        %v2224 = vmul.f32 %v2219, %v2223
        %vm2225 = vweird.f32 %v2204
        %vm2226 = vweird.f32 %v2219
        %vm2227 = vmor %vm2225, %vm2226
        %v2228 = vsel %vm2227, %v2219, %v2224
        %v2229 = vrsqrt.pop %v2205
        %v2230 = vmul.f32 %v2229, %v2205
        %v2231 = vmul.f32 %v2230, %v2229
        %v2232 = vmul.f32 0.5, %v2231
        %v2233 = vsub.f32 1.5, %v2232
        %v2234 = vmul.f32 %v2229, %v2233
        %vm2235 = vweird.f32 %v2205
        %vm2236 = vweird.f32 %v2229
        %vm2237 = vmor %vm2235, %vm2236
        %v2238 = vsel %vm2237, %v2229, %v2234
        %v2239 = vrsqrt.pop %v2206
        %v2240 = vmul.f32 %v2239, %v2206
        %v2241 = vmul.f32 %v2240, %v2239
        %v2242 = vmul.f32 0.5, %v2241
        %v2243 = vsub.f32 1.5, %v2242
        %v2244 = vmul.f32 %v2239, %v2243
        %vm2245 = vweird.f32 %v2206
        %vm2246 = vweird.f32 %v2239
        %vm2247 = vmor %vm2245, %vm2246
        %v2248 = vsel %vm2247, %v2239, %v2244
        %v2249 = vrsqrt.pop %v2207
        %v2250 = vmul.f32 %v2249, %v2207
        %v2251 = vmul.f32 %v2250, %v2249
        %v2252 = vmul.f32 0.5, %v2251
        %v2253 = vsub.f32 1.5, %v2252
        %v2254 = vmul.f32 %v2249, %v2253
        %vm2255 = vweird.f32 %v2207
        %vm2256 = vweird.f32 %v2249
        %vm2257 = vmor %vm2255, %vm2256
        %v2258 = vsel %vm2257, %v2249, %v2254
        %v2259 = vrsqrt.pop %v2208
        %v2260 = vmul.f32 %v2259, %v2208
        %v2261 = vmul.f32 %v2260, %v2259
        %v2262 = vmul.f32 0.5, %v2261
        %v2263 = vsub.f32 1.5, %v2262
        %v2264 = vmul.f32 %v2259, %v2263
        %vm2265 = vweird.f32 %v2208
        %vm2266 = vweird.f32 %v2259
        %vm2267 = vmor %vm2265, %vm2266
        %v2268 = vsel %vm2267, %v2259, %v2264
        %v2269 = vperm.slane %v2139, 0
        %v2270 = vlaneseq
        %v2271 = vshrl.u32 %v2270, 7
        %2273 = vset.pattern.permute.xlu0 %v2271
        %2274 = vperm.xlu0 %2273, %v2269
        %v2275 = vpop.permute.xlu0 %2274
        %v2276 = vperm.slane %v2139, 1
        %v2277 = vlaneseq
        %v2278 = vshrl.u32 %v2277, 7
        %2280 = vset.pattern.permute.xlu0 %v2278
        %2281 = vperm.xlu0 %2280, %v2276
        %v2282 = vpop.permute.xlu0 %2281
        %v2283 = vperm.slane %v2139, 2
        %v2284 = vlaneseq
        %v2285 = vshrl.u32 %v2284, 7
        %2287 = vset.pattern.permute.xlu0 %v2285
        %2288 = vperm.xlu0 %2287, %v2283
        %v2289 = vpop.permute.xlu0 %2288
        %v2290 = vperm.slane %v2139, 3
        %v2291 = vlaneseq
        %v2292 = vshrl.u32 %v2291, 7
        %2294 = vset.pattern.permute.xlu0 %v2292
        %2295 = vperm.xlu0 %2294, %v2290
        %v2296 = vpop.permute.xlu0 %2295
        %v2297 = vperm.slane %v2139, 4
        %v2298 = vlaneseq
        %v2299 = vshrl.u32 %v2298, 7
        %2301 = vset.pattern.permute.xlu0 %v2299
        %2302 = vperm.xlu0 %2301, %v2297
        %v2303 = vpop.permute.xlu0 %2302
        %v2304 = vperm.slane %v2139, 5
        %v2305 = vlaneseq
        %v2306 = vshrl.u32 %v2305, 7
        %2308 = vset.pattern.permute.xlu0 %v2306
        %2309 = vperm.xlu0 %2308, %v2304
        %v2310 = vpop.permute.xlu0 %2309
        %v2311 = vperm.slane %v2139, 6
        %v2312 = vlaneseq
        %v2313 = vshrl.u32 %v2312, 7
        %2315 = vset.pattern.permute.xlu0 %v2313
        %2316 = vperm.xlu0 %2315, %v2311
        %v2317 = vpop.permute.xlu0 %2316
        %v2318 = vperm.slane %v2139, 7
        %v2319 = vlaneseq
        %v2320 = vshrl.u32 %v2319, 7
        %2322 = vset.pattern.permute.xlu0 %v2320
        %2323 = vperm.xlu0 %2322, %v2318
        %v2324 = vpop.permute.xlu0 %2323
        %v2325 = vperm.slane %v2149, 0
        %v2326 = vlaneseq
        %v2327 = vshrl.u32 %v2326, 7
        %2329 = vset.pattern.permute.xlu0 %v2327
        %2330 = vperm.xlu0 %2329, %v2325
        %v2331 = vpop.permute.xlu0 %2330
        %v2332 = vperm.slane %v2149, 1
        %v2333 = vlaneseq
        %v2334 = vshrl.u32 %v2333, 7
        %2336 = vset.pattern.permute.xlu0 %v2334
        %2337 = vperm.xlu0 %2336, %v2332
        %v2338 = vpop.permute.xlu0 %2337
        %v2339 = vperm.slane %v2149, 2
        %v2340 = vlaneseq
        %v2341 = vshrl.u32 %v2340, 7
        %2343 = vset.pattern.permute.xlu0 %v2341
        %2344 = vperm.xlu0 %2343, %v2339
        %v2345 = vpop.permute.xlu0 %2344
        %v2346 = vperm.slane %v2149, 3
        %v2347 = vlaneseq
        %v2348 = vshrl.u32 %v2347, 7
        %2350 = vset.pattern.permute.xlu0 %v2348
        %2351 = vperm.xlu0 %2350, %v2346
        %v2352 = vpop.permute.xlu0 %2351
        %v2353 = vperm.slane %v2149, 4
        %v2354 = vlaneseq
        %v2355 = vshrl.u32 %v2354, 7
        %2357 = vset.pattern.permute.xlu0 %v2355
        %2358 = vperm.xlu0 %2357, %v2353
        %v2359 = vpop.permute.xlu0 %2358
        %v2360 = vperm.slane %v2149, 5
        %v2361 = vlaneseq
        %v2362 = vshrl.u32 %v2361, 7
        %2364 = vset.pattern.permute.xlu0 %v2362
        %2365 = vperm.xlu0 %2364, %v2360
        %v2366 = vpop.permute.xlu0 %2365
        %v2367 = vperm.slane %v2149, 6
        %v2368 = vlaneseq
        %v2369 = vshrl.u32 %v2368, 7
        %2371 = vset.pattern.permute.xlu0 %v2369
        %2372 = vperm.xlu0 %2371, %v2367
        %v2373 = vpop.permute.xlu0 %2372
        %v2374 = vperm.slane %v2149, 7
        %v2375 = vlaneseq
        %v2376 = vshrl.u32 %v2375, 7
        %2378 = vset.pattern.permute.xlu0 %v2376
        %2379 = vperm.xlu0 %2378, %v2374
        %v2380 = vpop.permute.xlu0 %2379
        %v2381 = vmul.f32 %v2017, %v2275
        %v2382 = vmul.f32 %v2020, %v2282
        %v2383 = vmul.f32 %v2023, %v2289
        %v2384 = vmul.f32 %v2026, %v2296
        %v2385 = vmul.f32 %v2029, %v2303
        %v2386 = vmul.f32 %v2032, %v2310
        %v2387 = vmul.f32 %v2035, %v2317
        %v2388 = vmul.f32 %v2038, %v2324
        %v2389 = vmul.f32 %v2082, %v2331
        %v2390 = vmul.f32 %v2085, %v2338
        %v2391 = vmul.f32 %v2088, %v2345
        %v2392 = vmul.f32 %v2091, %v2352
        %v2393 = vmul.f32 %v2094, %v2359
        %v2394 = vmul.f32 %v2097, %v2366
        %v2395 = vmul.f32 %v2100, %v2373
        %v2396 = vmul.f32 %v2103, %v2380
        %2403 = vst [vmem:[#allocation1] ss:$4 sm:$0xff] %v2218
        %s2404 = scalar_lea.vmem [#allocation1], 1
        %2405 = vst [vmem:[%s2404] ss:$4 sm:$0xff] %v2228
        %s2406 = scalar_lea.vmem [#allocation1], 2
        %2407 = vst [vmem:[%s2406] ss:$4 sm:$0xff] %v2238
        %v2408 = vld.sshfl [vmem:[#allocation1] sm:$0xff pattern:$0x73625140]
        %s2409 = scalar_lea.vmem [#allocation1], 32
        %2410 = vst [vmem:[%s2409] ss:$4 sm:$0xff] %v2248
        %s2411 = scalar_lea.vmem [#allocation1], 33
        %2412 = vst [vmem:[%s2411] ss:$4 sm:$0xff] %v2258
        %s2413 = scalar_lea.vmem [#allocation1], 34
        %2414 = vst [vmem:[%s2413] ss:$4 sm:$0xff] %v2268
        %v2415 = vld.sshfl [vmem:[#allocation1 + $0x20] sm:$0xff pattern:$0x73625140]
        %2418 = vxpose.xlu0.b32.start [1/16] %v2408, 128
        %2419 = vxpose.xlu0.b32.cont [2/16] 0.0, 128
        %2420 = vxpose.xlu0.b32.cont [3/16] 0.0, 128
        %2421 = vxpose.xlu0.b32.cont [4/16] 0.0, 128
        %2422 = vxpose.xlu0.b32.cont [5/16] 0.0, 128
        %2423 = vxpose.xlu0.b32.cont [6/16] 0.0, 128
        %2424 = vxpose.xlu0.b32.cont [7/16] 0.0, 128
        %2425 = vxpose.xlu0.b32.cont [8/16] 0.0, 128
        %2426 = vxpose.xlu0.b32.cont [9/16] 0.0, 128
        %2427 = vxpose.xlu0.b32.cont [10/16] 0.0, 128
        %2428 = vxpose.xlu0.b32.cont [11/16] 0.0, 128
        %2429 = vxpose.xlu0.b32.cont [12/16] 0.0, 128
        %2430 = vxpose.xlu0.b32.cont [13/16] 0.0, 128
        %2431 = vxpose.xlu0.b32.cont [14/16] 0.0, 128
        %2432 = vxpose.xlu0.b32.cont [15/16] 0.0, 128
        %2433 = vxpose.xlu0.b32.end [16/16] 0.0, 128
        %v2434 = vpop.trf.xlu0
        %v2435 = vpop.trf.xlu0
        %v2436 = vpop.trf.xlu0
        %v2437 = vpop.trf.xlu0
        %v2438 = vpop.trf.xlu0
        %v2439 = vpop.trf.xlu0
        %v2440 = vpop.trf.xlu0
        %v2441 = vpop.trf.xlu0
        %v2442 = vpop.trf.xlu0
        %v2443 = vpop.trf.xlu0
        %v2444 = vpop.trf.xlu0
        %v2445 = vpop.trf.xlu0
        %v2446 = vpop.trf.xlu0
        %v2447 = vpop.trf.xlu0
        %v2448 = vpop.trf.xlu0
        %v2449 = vpop.trf.xlu0
        %2450 = vxpose.xlu0.b32.start [1/16] %v2415, 128
        %2451 = vxpose.xlu0.b32.cont [2/16] 0.0, 128
        %2452 = vxpose.xlu0.b32.cont [3/16] 0.0, 128
        %2453 = vxpose.xlu0.b32.cont [4/16] 0.0, 128
        %2454 = vxpose.xlu0.b32.cont [5/16] 0.0, 128
        %2455 = vxpose.xlu0.b32.cont [6/16] 0.0, 128
        %2456 = vxpose.xlu0.b32.cont [7/16] 0.0, 128
        %2457 = vxpose.xlu0.b32.cont [8/16] 0.0, 128
        %2458 = vxpose.xlu0.b32.cont [9/16] 0.0, 128
        %2459 = vxpose.xlu0.b32.cont [10/16] 0.0, 128
        %2460 = vxpose.xlu0.b32.cont [11/16] 0.0, 128
        %2461 = vxpose.xlu0.b32.cont [12/16] 0.0, 128
        %2462 = vxpose.xlu0.b32.cont [13/16] 0.0, 128
        %2463 = vxpose.xlu0.b32.cont [14/16] 0.0, 128
        %2464 = vxpose.xlu0.b32.cont [15/16] 0.0, 128
        %2465 = vxpose.xlu0.b32.end [16/16] 0.0, 128
        %v2466 = vpop.trf.xlu0
        %v2467 = vpop.trf.xlu0
        %v2468 = vpop.trf.xlu0
        %v2469 = vpop.trf.xlu0
        %v2470 = vpop.trf.xlu0
        %v2471 = vpop.trf.xlu0
        %v2472 = vpop.trf.xlu0
        %v2473 = vpop.trf.xlu0
        %v2474 = vpop.trf.xlu0
        %v2475 = vpop.trf.xlu0
        %v2476 = vpop.trf.xlu0
        %v2477 = vpop.trf.xlu0
        %v2478 = vpop.trf.xlu0
        %v2479 = vpop.trf.xlu0
        %v2480 = vpop.trf.xlu0
        %v2481 = vpop.trf.xlu0
        %v2482 = vmul.f32 %v2381, %v2434
        %v2483 = vmul.f32 %v2382, %v2434
        %v2484 = vmul.f32 %v2383, %v2434
        %v2485 = vmul.f32 %v2384, %v2434
        %v2486 = vmul.f32 %v2385, %v2434
        %v2487 = vmul.f32 %v2386, %v2434
        %v2488 = vmul.f32 %v2387, %v2434
        %v2489 = vmul.f32 %v2388, %v2434
        %v2490 = vmul.f32 %v2389, %v2466
        %v2491 = vmul.f32 %v2390, %v2466
        %v2492 = vmul.f32 %v2391, %v2466
        %v2493 = vmul.f32 %v2392, %v2466
        %v2494 = vmul.f32 %v2393, %v2466
        %v2495 = vmul.f32 %v2394, %v2466
        %v2496 = vmul.f32 %v2395, %v2466
        %v2497 = vmul.f32 %v2396, %v2466
        %v2498 = vsel %vm1328, %v2482, -inf
        %2499 = vmax.xlane.f32.xlu0 %v2498
        %v2500 = vpop.xlane.xlu0 %2499
        %v2501 = vsel %vm1328, %v2483, -inf
        %2502 = vmax.xlane.f32.xlu0 %v2501
        %v2503 = vpop.xlane.xlu0 %2502
        %v2504 = vsel %vm1328, %v2484, -inf
        %2505 = vmax.xlane.f32.xlu0 %v2504
        %v2506 = vpop.xlane.xlu0 %2505
        %v2507 = vsel %vm1328, %v2485, -inf
        %2508 = vmax.xlane.f32.xlu0 %v2507
        %v2509 = vpop.xlane.xlu0 %2508
        %v2510 = vsel %vm1328, %v2486, -inf
        %2511 = vmax.xlane.f32.xlu0 %v2510
        %v2512 = vpop.xlane.xlu0 %2511
        %v2513 = vsel %vm1328, %v2487, -inf
        %2514 = vmax.xlane.f32.xlu0 %v2513
        %v2515 = vpop.xlane.xlu0 %2514
        %v2516 = vsel %vm1328, %v2488, -inf
        %2517 = vmax.xlane.f32.xlu0 %v2516
        %v2518 = vpop.xlane.xlu0 %2517
        %v2519 = vsel %vm1328, %v2489, -inf
        %2520 = vmax.xlane.f32.xlu0 %v2519
        %v2521 = vpop.xlane.xlu0 %2520
        %v2522 = vsel %vm1328, %v2490, -inf
        %2523 = vmax.xlane.f32.xlu0 %v2522
        %v2524 = vpop.xlane.xlu0 %2523
        %v2525 = vsel %vm1328, %v2491, -inf
        %2526 = vmax.xlane.f32.xlu0 %v2525
        %v2527 = vpop.xlane.xlu0 %2526
        %v2528 = vsel %vm1328, %v2492, -inf
        %2529 = vmax.xlane.f32.xlu0 %v2528
        %v2530 = vpop.xlane.xlu0 %2529
        %v2531 = vsel %vm1328, %v2493, -inf
        %2532 = vmax.xlane.f32.xlu0 %v2531
        %v2533 = vpop.xlane.xlu0 %2532
        %v2534 = vsel %vm1328, %v2494, -inf
        %2535 = vmax.xlane.f32.xlu0 %v2534
        %v2536 = vpop.xlane.xlu0 %2535
        %v2537 = vsel %vm1328, %v2495, -inf
        %2538 = vmax.xlane.f32.xlu0 %v2537
        %v2539 = vpop.xlane.xlu0 %2538
        %v2540 = vsel %vm1328, %v2496, -inf
        %2541 = vmax.xlane.f32.xlu0 %v2540
        %v2542 = vpop.xlane.xlu0 %2541
        %v2543 = vsel %vm1328, %v2497, -inf
        %2544 = vmax.xlane.f32.xlu0 %v2543
        %v2545 = vpop.xlane.xlu0 %2544
        %v2547 = vsel %vm1328, %v1733, 0
        %v2549 = vsel %vm1380, %v418, 0
        %2551 = vmatpush.msra.mxu0 0.0
        %2552 = vmatpush.msra.mxu0 0.0
        %2553 = vmatpush.msra.mxu0 0.0
        %2554 = vmatpush.msra.mxu0 0.0
        %2555 = vmatpush.msra.mxu0 0.0
        %2556 = vmatpush.msra.mxu0 0.0
        %2557 = vmatpush.msra.mxu0 0.0
        %2558 = vmatpush.msra.mxu0 0.0
        %2559 = vmatpush.msra.mxu0 0.0
        %2560 = vmatpush.msra.mxu0 0.0
        %2561 = vmatpush.msra.mxu0 0.0
        %2562 = vmatpush.msra.mxu0 0.0
        %2563 = vmatpush.msra.mxu0 0.0
        %2564 = vmatpush.msra.mxu0 0.0
        %2565 = vmatpush.msra.mxu0 0.0
        %2566 = vmatpush.msra.mxu0 %v2549
        %2567 = vmatmul.f32.gmra.mxu0 %v2547
        %v2568 = vpop.f32.mrf.mxu0
        %v2569 = vadd.f32 0.0, %v2568
        %2570 = vdwg.mxu0
        %v2572 = vsel %vm1328, %v1734, 0
        %v2574 = vsel %vm1380, %v419, 0
        %2576 = vmatpush.msra.mxu0 0.0
        %2577 = vmatpush.msra.mxu0 0.0
        %2578 = vmatpush.msra.mxu0 0.0
        %2579 = vmatpush.msra.mxu0 0.0
        %2580 = vmatpush.msra.mxu0 0.0
        %2581 = vmatpush.msra.mxu0 0.0
        %2582 = vmatpush.msra.mxu0 0.0
        %2583 = vmatpush.msra.mxu0 0.0
        %2584 = vmatpush.msra.mxu0 0.0
        %2585 = vmatpush.msra.mxu0 0.0
        %2586 = vmatpush.msra.mxu0 0.0
        %2587 = vmatpush.msra.mxu0 0.0
        %2588 = vmatpush.msra.mxu0 0.0
        %2589 = vmatpush.msra.mxu0 0.0
        %2590 = vmatpush.msra.mxu0 0.0
        %2591 = vmatpush.msra.mxu0 %v2574
        %2592 = vmatmul.f32.gmra.mxu0 %v2572
        %v2593 = vpop.f32.mrf.mxu0
        %v2594 = vadd.f32 0.0, %v2593
        %2595 = vdwg.mxu0
        %v2596 = vsel %vm1328, %v1733, 0.0
        %2597 = vadd.xlane.f32.xlu0 %v2596
        %v2598 = vpop.xlane.xlu0 %2597
        %v2599 = vsel %vm1328, %v1734, 0.0
        %2600 = vadd.xlane.f32.xlu0 %v2599
        %v2601 = vpop.xlane.xlu0 %2600
        %v2602 = vadd.f32 %v2598, 1e-06
        %v2603 = vadd.f32 %v2601, 1e-06
        %v2604 = vrcp.pop %v2602
        %v2605 = vmul.f32 %v2602, %v2604
        %v2606 = vsub.f32 1.0, %v2605
        %v2607 = vmul.f32 %v2604, %v2606
        %v2608 = vadd.f32 %v2604, %v2607
        %vm2609 = vweird.f32 %v2602
        %vm2610 = vweird.f32 %v2604
        %vm2611 = vmor %vm2609, %vm2610
        %v2612 = vsel %vm2611, %v2604, %v2608
        %v2613 = vand.u32 2147483647, %v2602
        %vm2614 = vcmp.eq.f32.partialorder %v2613, 8.507059e+37
        %v2615 = vand.u32 %v2602, 2147483648
        %v2616 = vor.u32 1.1754944e-38, %v2615
        %v2617 = vsel %vm2614, %v2616, %v2612
        %v2618 = vmul.f32 1.0, %v2617
        %v2619 = vrcp.pop %v2603
        %v2620 = vmul.f32 %v2603, %v2619
        %v2621 = vsub.f32 1.0, %v2620
        %v2622 = vmul.f32 %v2619, %v2621
        %v2623 = vadd.f32 %v2619, %v2622
        %vm2624 = vweird.f32 %v2603
        %vm2625 = vweird.f32 %v2619
        %vm2626 = vmor %vm2624, %vm2625
        %v2627 = vsel %vm2626, %v2619, %v2623
        %v2628 = vand.u32 2147483647, %v2603
        %vm2629 = vcmp.eq.f32.partialorder %v2628, 8.507059e+37
        %v2630 = vand.u32 %v2603, 2147483648
        %v2631 = vor.u32 1.1754944e-38, %v2630
        %v2632 = vsel %vm2629, %v2631, %v2627
        %v2633 = vmul.f32 1.0, %v2632
        %v2634 = vmul.f32 %v2569, %v2618
        %v2635 = vmul.f32 %v2594, %v2633
        %v2636 = vmul.f32 %v414, %v2634
        %v2637 = vmul.f32 %v415, %v2635
        %v2639 = vsel %vm424, %v2636, 0
        %v2642 = vsel %vm424, %v2637, 0
        %2644 = vmatpush.msra.mxu0 0.0
        %2645 = vmatpush.msra.mxu0 0.0
        %2646 = vmatpush.msra.mxu0 0.0
        %2647 = vmatpush.msra.mxu0 0.0
        %2648 = vmatpush.msra.mxu0 0.0
        %2649 = vmatpush.msra.mxu0 0.0
        %2650 = vmatpush.msra.mxu0 0.0
        %2651 = vmatpush.msra.mxu0 0.0
        %2652 = vmatpush.msra.mxu0 0.0
        %2653 = vmatpush.msra.mxu0 0.0
        %2654 = vmatpush.msra.mxu0 0.0
        %2655 = vmatpush.msra.mxu0 0.0
        %2656 = vmatpush.msra.mxu0 %v403
        %2657 = vmatpush.msra.mxu0 %v402
        %2658 = vmatpush.msra.mxu0 %v401
        %2659 = vmatpush.msra.mxu0 %v400
        %2660 = vmatmul.f32.gmra.mxu0 %v2639
        %v2661 = vpop.f32.mrf.mxu0
        %v2662 = vadd.f32 0.0, %v2661
        %2663 = vmatmul.f32.gmra.mxu0 %v2642
        %v2664 = vpop.f32.mrf.mxu0
        %v2665 = vadd.f32 0.0, %v2664
        %2666 = vdwg.mxu0
        %2667 = vmatpush.msra.mxu0 0.0
        %2668 = vmatpush.msra.mxu0 0.0
        %2669 = vmatpush.msra.mxu0 0.0
        %2670 = vmatpush.msra.mxu0 0.0
        %2671 = vmatpush.msra.mxu0 0.0
        %2672 = vmatpush.msra.mxu0 0.0
        %2673 = vmatpush.msra.mxu0 0.0
        %2674 = vmatpush.msra.mxu0 0.0
        %2675 = vmatpush.msra.mxu0 0.0
        %2676 = vmatpush.msra.mxu0 0.0
        %2677 = vmatpush.msra.mxu0 0.0
        %2678 = vmatpush.msra.mxu0 0.0
        %2679 = vmatpush.msra.mxu0 %v403
        %2680 = vmatpush.msra.mxu0 %v402
        %2681 = vmatpush.msra.mxu0 %v401
        %2682 = vmatpush.msra.mxu0 %v400
        %2683 = vmatmul.f32.gmra.mxu0 %v1769
        %v2684 = vpop.f32.mrf.mxu0
        %v2685 = vadd.f32 0.0, %v2684
        %2686 = vmatmul.f32.gmra.mxu0 %v1772
        %v2687 = vpop.f32.mrf.mxu0
        %v2688 = vadd.f32 0.0, %v2687
        %2689 = vdwg.mxu0
        %v2690 = vmax.f32 %v2685, 1e-06
        %v2691 = vmax.f32 %v2688, 1e-06
        %v2692 = vrsqrt.pop %v2690
        %v2693 = vmul.f32 %v2692, %v2690
        %v2694 = vmul.f32 %v2693, %v2692
        %v2695 = vmul.f32 0.5, %v2694
        %v2696 = vsub.f32 1.5, %v2695
        %v2697 = vmul.f32 %v2692, %v2696
        %vm2698 = vweird.f32 %v2690
        %vm2699 = vweird.f32 %v2692
        %vm2700 = vmor %vm2698, %vm2699
        %v2701 = vsel %vm2700, %v2692, %v2697
        %v2702 = vrsqrt.pop %v2691
        %v2703 = vmul.f32 %v2702, %v2691
        %v2704 = vmul.f32 %v2703, %v2702
        %v2705 = vmul.f32 0.5, %v2704
        %v2706 = vsub.f32 1.5, %v2705
        %v2707 = vmul.f32 %v2702, %v2706
        %vm2708 = vweird.f32 %v2691
        %vm2709 = vweird.f32 %v2702
        %vm2710 = vmor %vm2708, %vm2709
        %v2711 = vsel %vm2710, %v2702, %v2707
        %v2712 = vmul.f32 %v2662, %v2701
        %v2713 = vmul.f32 %v2665, %v2711
        %v2714 = vmul.f32 %v2634, %v2634
        %v2715 = vmul.f32 %v2635, %v2635
        %v2717 = vsel %vm424, %v2714, 0
        %v2720 = vsel %vm424, %v2715, 0
        %2722 = vmatpush.msra.mxu0 0.0
        %2723 = vmatpush.msra.mxu0 0.0
        %2724 = vmatpush.msra.mxu0 0.0
        %2725 = vmatpush.msra.mxu0 0.0
        %2726 = vmatpush.msra.mxu0 0.0
        %2727 = vmatpush.msra.mxu0 0.0
        %2728 = vmatpush.msra.mxu0 0.0
        %2729 = vmatpush.msra.mxu0 0.0
        %2730 = vmatpush.msra.mxu0 0.0
        %2731 = vmatpush.msra.mxu0 0.0
        %2732 = vmatpush.msra.mxu0 0.0
        %2733 = vmatpush.msra.mxu0 0.0
        %2734 = vmatpush.msra.mxu0 %v403
        %2735 = vmatpush.msra.mxu0 %v402
        %2736 = vmatpush.msra.mxu0 %v401
        %2737 = vmatpush.msra.mxu0 %v400
        %2738 = vmatmul.f32.gmra.mxu0 %v2717
        %v2739 = vpop.f32.mrf.mxu0
        %v2740 = vadd.f32 0.0, %v2739
        %2741 = vmatmul.f32.gmra.mxu0 %v2720
        %v2742 = vpop.f32.mrf.mxu0
        %v2743 = vadd.f32 0.0, %v2742
        %2744 = vdwg.mxu0
        %v2745 = vmax.f32 %v2740, 1e-06
        %v2746 = vmax.f32 %v2743, 1e-06
        %v2747 = vrsqrt.pop %v2745
        %v2748 = vmul.f32 %v2747, %v2745
        %v2749 = vmul.f32 %v2748, %v2747
        %v2750 = vmul.f32 0.5, %v2749
        %v2751 = vsub.f32 1.5, %v2750
        %v2752 = vmul.f32 %v2747, %v2751
        %vm2753 = vweird.f32 %v2745
        %vm2754 = vweird.f32 %v2747
        %vm2755 = vmor %vm2753, %vm2754
        %v2756 = vsel %vm2755, %v2747, %v2752
        %v2757 = vrsqrt.pop %v2746
        %v2758 = vmul.f32 %v2757, %v2746
        %v2759 = vmul.f32 %v2758, %v2757
        %v2760 = vmul.f32 0.5, %v2759
        %v2761 = vsub.f32 1.5, %v2760
        %v2762 = vmul.f32 %v2757, %v2761
        %vm2763 = vweird.f32 %v2746
        %vm2764 = vweird.f32 %v2757
        %vm2765 = vmor %vm2763, %vm2764
        %v2766 = vsel %vm2765, %v2757, %v2762
        %v2767 = vmul.f32 %v2712, %v2756
        %v2768 = vmul.f32 %v2713, %v2766
        %v2769 = vsel %vm1328, %v563, -inf
        %2770 = vmax.xlane.f32.xlu0 %v2769
        %v2771 = vpop.xlane.xlu0 %2770
        %v2772 = vsel %vm1328, %v564, -inf
        %2773 = vmax.xlane.f32.xlu0 %v2772
        %v2774 = vpop.xlane.xlu0 %2773
        %vm2775 = vcmp.ge.f32.partialorder %v563, %v2771
        %vm2776 = vcmp.ge.f32.partialorder %v564, %v2774
        %v2777 = vsel %vm2775, %v539, 6
        %v2778 = vsel %vm2776, %v539, 6
        %v2779 = vsel %vm1328, %v2777, 2147483647
        %v2780 = vand.u32 %v2779, 65535
        %v2781 = vshra.s32 %v2779, 16
        %v2782 = vcvt.s32.f32 %v2780
        %v2783 = vcvt.s32.f32 %v2781
        %2784 = vmin.xlane.f32.xlu0 %v2783
        %v2785 = vpop.xlane.xlu0 %2784
        %vm2786 = vcmp.eq.f32.partialorder %v2783, %v2785
        %v2787 = vsel %vm2786, %v2782, inf
        %2788 = vmin.xlane.f32.xlu0 %v2787
        %v2789 = vpop.xlane.xlu0 %2788
        %v2790 = vcvt.f32.s32 %v2789
        %v2791 = vcvt.f32.s32 %v2785
        %v2792 = vshll.u32 %v2791, 16
        %v2793 = vadd.s32 %v2792, %v2790
        %v2794 = vsel %vm1328, %v2778, 2147483647
        %v2795 = vand.u32 %v2794, 65535
        %v2796 = vshra.s32 %v2794, 16
        %v2797 = vcvt.s32.f32 %v2795
        %v2798 = vcvt.s32.f32 %v2796
        %2799 = vmin.xlane.f32.xlu0 %v2798
        %v2800 = vpop.xlane.xlu0 %2799
        %vm2801 = vcmp.eq.f32.partialorder %v2798, %v2800
        %v2802 = vsel %vm2801, %v2797, inf
        %2803 = vmin.xlane.f32.xlu0 %v2802
        %v2804 = vpop.xlane.xlu0 %2803
        %v2805 = vcvt.f32.s32 %v2804
        %v2806 = vcvt.f32.s32 %v2800
        %v2807 = vshll.u32 %v2806, 16
        %v2808 = vadd.s32 %v2807, %v2805
        %vm2809 = vcmp.eq.s32.totalorder %v539, %v2793
        %vm2810 = vcmp.eq.s32.totalorder %v539, %v2808
        %v2811 = vsel %vm2809, 1, 0
        %v2812 = vsel %vm2810, 1, 0
        %v2813 = vcvt.s32.f32 %v2811
        %v2814 = vcvt.s32.f32 %v2812
        %v2815 = vld [vmem:[%s4] sm:$0x3f]
        %v2817 = vsel %vm1328, %v2813, 0
        %v2820 = vsel %vm1328, %v2814, 0
        %v2823 = vsel %vm1380, %v2815, 0
        %2825 = vmatpush.msra.mxu0 0.0
        %2826 = vmatpush.msra.mxu0 0.0
        %2827 = vmatpush.msra.mxu0 0.0
        %2828 = vmatpush.msra.mxu0 0.0
        %2829 = vmatpush.msra.mxu0 0.0
        %2830 = vmatpush.msra.mxu0 0.0
        %2831 = vmatpush.msra.mxu0 0.0
        %2832 = vmatpush.msra.mxu0 0.0
        %2833 = vmatpush.msra.mxu0 0.0
        %2834 = vmatpush.msra.mxu0 0.0
        %2835 = vmatpush.msra.mxu0 0.0
        %2836 = vmatpush.msra.mxu0 0.0
        %2837 = vmatpush.msra.mxu0 0.0
        %2838 = vmatpush.msra.mxu0 0.0
        %2839 = vmatpush.msra.mxu0 0.0
        %2840 = vmatpush.msra.mxu0 %v2823
        %2841 = vmatmul.f32.gmra.mxu0 %v2817
        %v2842 = vpop.f32.mrf.mxu0
        %v2843 = vadd.f32 0.0, %v2842
        %2844 = vmatmul.f32.gmra.mxu0 %v2820
        %v2845 = vpop.f32.mrf.mxu0
        %v2846 = vadd.f32 0.0, %v2845
        %2847 = vdwg.mxu0
        %v2848 = vmul.f32 %v412, %v2843
        %v2849 = vmul.f32 %v413, %v2846
        %v2851 = vsel %vm424, %v2848, 0
        %v2854 = vsel %vm424, %v2849, 0
        %2856 = vmatpush.msra.mxu0 0.0
        %2857 = vmatpush.msra.mxu0 0.0
        %2858 = vmatpush.msra.mxu0 0.0
        %2859 = vmatpush.msra.mxu0 0.0
        %2860 = vmatpush.msra.mxu0 0.0
        %2861 = vmatpush.msra.mxu0 0.0
        %2862 = vmatpush.msra.mxu0 0.0
        %2863 = vmatpush.msra.mxu0 0.0
        %2864 = vmatpush.msra.mxu0 0.0
        %2865 = vmatpush.msra.mxu0 0.0
        %2866 = vmatpush.msra.mxu0 0.0
        %2867 = vmatpush.msra.mxu0 0.0
        %2868 = vmatpush.msra.mxu0 %v407
        %2869 = vmatpush.msra.mxu0 %v406
        %2870 = vmatpush.msra.mxu0 %v405
        %2871 = vmatpush.msra.mxu0 %v404
        %2872 = vmatmul.f32.gmra.mxu0 %v2851
        %v2873 = vpop.f32.mrf.mxu0
        %v2874 = vadd.f32 0.0, %v2873
        %2875 = vmatmul.f32.gmra.mxu0 %v2854
        %v2876 = vpop.f32.mrf.mxu0
        %v2877 = vadd.f32 0.0, %v2876
        %2878 = vdwg.mxu0
        %2879 = vmatpush.msra.mxu0 0.0
        %2880 = vmatpush.msra.mxu0 0.0
        %2881 = vmatpush.msra.mxu0 0.0
        %2882 = vmatpush.msra.mxu0 0.0
        %2883 = vmatpush.msra.mxu0 0.0
        %2884 = vmatpush.msra.mxu0 0.0
        %2885 = vmatpush.msra.mxu0 0.0
        %2886 = vmatpush.msra.mxu0 0.0
        %2887 = vmatpush.msra.mxu0 0.0
        %2888 = vmatpush.msra.mxu0 0.0
        %2889 = vmatpush.msra.mxu0 0.0
        %2890 = vmatpush.msra.mxu0 0.0
        %2891 = vmatpush.msra.mxu0 %v407
        %2892 = vmatpush.msra.mxu0 %v406
        %2893 = vmatpush.msra.mxu0 %v405
        %2894 = vmatpush.msra.mxu0 %v404
        %2895 = vmatmul.f32.gmra.mxu0 %v599
        %v2896 = vpop.f32.mrf.mxu0
        %v2897 = vadd.f32 0.0, %v2896
        %2898 = vmatmul.f32.gmra.mxu0 %v602
        %v2899 = vpop.f32.mrf.mxu0
        %v2900 = vadd.f32 0.0, %v2899
        %2901 = vdwg.mxu0
        %v2902 = vmax.f32 %v2897, 1e-06
        %v2903 = vmax.f32 %v2900, 1e-06
        %v2904 = vrsqrt.pop %v2902
        %v2905 = vmul.f32 %v2904, %v2902
        %v2906 = vmul.f32 %v2905, %v2904
        %v2907 = vmul.f32 0.5, %v2906
        %v2908 = vsub.f32 1.5, %v2907
        %v2909 = vmul.f32 %v2904, %v2908
        %vm2910 = vweird.f32 %v2902
        %vm2911 = vweird.f32 %v2904
        %vm2912 = vmor %vm2910, %vm2911
        %v2913 = vsel %vm2912, %v2904, %v2909
        %v2914 = vrsqrt.pop %v2903
        %v2915 = vmul.f32 %v2914, %v2903
        %v2916 = vmul.f32 %v2915, %v2914
        %v2917 = vmul.f32 0.5, %v2916
        %v2918 = vsub.f32 1.5, %v2917
        %v2919 = vmul.f32 %v2914, %v2918
        %vm2920 = vweird.f32 %v2903
        %vm2921 = vweird.f32 %v2914
        %vm2922 = vmor %vm2920, %vm2921
        %v2923 = vsel %vm2922, %v2914, %v2919
        %v2924 = vmul.f32 %v2874, %v2913
        %v2925 = vmul.f32 %v2877, %v2923
        %v2926 = vmul.f32 %v2843, %v2843
        %v2927 = vmul.f32 %v2846, %v2846
        %v2929 = vsel %vm424, %v2926, 0
        %v2932 = vsel %vm424, %v2927, 0
        %2934 = vmatpush.msra.mxu0 0.0
        %2935 = vmatpush.msra.mxu0 0.0
        %2936 = vmatpush.msra.mxu0 0.0
        %2937 = vmatpush.msra.mxu0 0.0
        %2938 = vmatpush.msra.mxu0 0.0
        %2939 = vmatpush.msra.mxu0 0.0
        %2940 = vmatpush.msra.mxu0 0.0
        %2941 = vmatpush.msra.mxu0 0.0
        %2942 = vmatpush.msra.mxu0 0.0
        %2943 = vmatpush.msra.mxu0 0.0
        %2944 = vmatpush.msra.mxu0 0.0
        %2945 = vmatpush.msra.mxu0 0.0
        %2946 = vmatpush.msra.mxu0 %v407
        %2947 = vmatpush.msra.mxu0 %v406
        %2948 = vmatpush.msra.mxu0 %v405
        %2949 = vmatpush.msra.mxu0 %v404
        %2950 = vmatmul.f32.gmra.mxu0 %v2929
        %v2951 = vpop.f32.mrf.mxu0
        %v2952 = vadd.f32 0.0, %v2951
        %2953 = vmatmul.f32.gmra.mxu0 %v2932
        %v2954 = vpop.f32.mrf.mxu0
        %v2955 = vadd.f32 0.0, %v2954
        %2956 = vdwg.mxu0
        %v2957 = vmax.f32 %v2952, 1e-06
        %v2958 = vmax.f32 %v2955, 1e-06
        %v2959 = vrsqrt.pop %v2957
        %v2960 = vmul.f32 %v2959, %v2957
        %v2961 = vmul.f32 %v2960, %v2959
        %v2962 = vmul.f32 0.5, %v2961
        %v2963 = vsub.f32 1.5, %v2962
        %v2964 = vmul.f32 %v2959, %v2963
        %vm2965 = vweird.f32 %v2957
        %vm2966 = vweird.f32 %v2959
        %vm2967 = vmor %vm2965, %vm2966
        %v2968 = vsel %vm2967, %v2959, %v2964
        %v2969 = vrsqrt.pop %v2958
        %v2970 = vmul.f32 %v2969, %v2958
        %v2971 = vmul.f32 %v2970, %v2969
        %v2972 = vmul.f32 0.5, %v2971
        %v2973 = vsub.f32 1.5, %v2972
        %v2974 = vmul.f32 %v2969, %v2973
        %vm2975 = vweird.f32 %v2958
        %vm2976 = vweird.f32 %v2969
        %vm2977 = vmor %vm2975, %vm2976
        %v2978 = vsel %vm2977, %v2969, %v2974
        %v2979 = vmul.f32 %v2924, %v2968
        %v2980 = vmul.f32 %v2925, %v2978
        %2981 = vmatpush.msra.mxu0 0.0
        %2982 = vmatpush.msra.mxu0 0.0
        %2983 = vmatpush.msra.mxu0 0.0
        %2984 = vmatpush.msra.mxu0 0.0
        %2985 = vmatpush.msra.mxu0 0.0
        %2986 = vmatpush.msra.mxu0 0.0
        %2987 = vmatpush.msra.mxu0 0.0
        %2988 = vmatpush.msra.mxu0 0.0
        %2989 = vmatpush.msra.mxu0 0.0
        %2990 = vmatpush.msra.mxu0 0.0
        %2991 = vmatpush.msra.mxu0 0.0
        %2992 = vmatpush.msra.mxu0 0.0
        %2993 = vmatpush.msra.mxu0 %v411
        %2994 = vmatpush.msra.mxu0 %v410
        %2995 = vmatpush.msra.mxu0 %v409
        %2996 = vmatpush.msra.mxu0 %v408
        %2997 = vmatmul.f32.gmra.mxu0 %v2639
        %v2998 = vpop.f32.mrf.mxu0
        %v2999 = vadd.f32 0.0, %v2998
        %3000 = vmatmul.f32.gmra.mxu0 %v2642
        %v3001 = vpop.f32.mrf.mxu0
        %v3002 = vadd.f32 0.0, %v3001
        %3003 = vdwg.mxu0
        %3004 = vmatpush.msra.mxu0 0.0
        %3005 = vmatpush.msra.mxu0 0.0
        %3006 = vmatpush.msra.mxu0 0.0
        %3007 = vmatpush.msra.mxu0 0.0
        %3008 = vmatpush.msra.mxu0 0.0
        %3009 = vmatpush.msra.mxu0 0.0
        %3010 = vmatpush.msra.mxu0 0.0
        %3011 = vmatpush.msra.mxu0 0.0
        %3012 = vmatpush.msra.mxu0 0.0
        %3013 = vmatpush.msra.mxu0 0.0
        %3014 = vmatpush.msra.mxu0 0.0
        %3015 = vmatpush.msra.mxu0 0.0
        %3016 = vmatpush.msra.mxu0 %v411
        %3017 = vmatpush.msra.mxu0 %v410
        %3018 = vmatpush.msra.mxu0 %v409
        %3019 = vmatpush.msra.mxu0 %v408
        %3020 = vmatmul.f32.gmra.mxu0 %v1769
        %v3021 = vpop.f32.mrf.mxu0
        %v3022 = vadd.f32 0.0, %v3021
        %3023 = vmatmul.f32.gmra.mxu0 %v1772
        %v3024 = vpop.f32.mrf.mxu0
        %v3025 = vadd.f32 0.0, %v3024
        %3026 = vdwg.mxu0
        %v3027 = vmax.f32 %v3022, 1e-06
        %v3028 = vmax.f32 %v3025, 1e-06
        %v3029 = vrsqrt.pop %v3027
        %v3030 = vmul.f32 %v3029, %v3027
        %v3031 = vmul.f32 %v3030, %v3029
        %v3032 = vmul.f32 0.5, %v3031
        %v3033 = vsub.f32 1.5, %v3032
        %v3034 = vmul.f32 %v3029, %v3033
        %vm3035 = vweird.f32 %v3027
        %vm3036 = vweird.f32 %v3029
        %vm3037 = vmor %vm3035, %vm3036
        %v3038 = vsel %vm3037, %v3029, %v3034
        %v3039 = vrsqrt.pop %v3028
        %v3040 = vmul.f32 %v3039, %v3028
        %v3041 = vmul.f32 %v3040, %v3039
        %v3042 = vmul.f32 0.5, %v3041
        %v3043 = vsub.f32 1.5, %v3042
        %v3044 = vmul.f32 %v3039, %v3043
        %vm3045 = vweird.f32 %v3028
        %vm3046 = vweird.f32 %v3039
        %vm3047 = vmor %vm3045, %vm3046
        %v3048 = vsel %vm3047, %v3039, %v3044
        %v3049 = vmul.f32 %v2999, %v3038
        %v3050 = vmul.f32 %v3002, %v3048
        %3051 = vmatpush.msra.mxu0 0.0
        %3052 = vmatpush.msra.mxu0 0.0
        %3053 = vmatpush.msra.mxu0 0.0
        %3054 = vmatpush.msra.mxu0 0.0
        %3055 = vmatpush.msra.mxu0 0.0
        %3056 = vmatpush.msra.mxu0 0.0
        %3057 = vmatpush.msra.mxu0 0.0
        %3058 = vmatpush.msra.mxu0 0.0
        %3059 = vmatpush.msra.mxu0 0.0
        %3060 = vmatpush.msra.mxu0 0.0
        %3061 = vmatpush.msra.mxu0 0.0
        %3062 = vmatpush.msra.mxu0 0.0
        %3063 = vmatpush.msra.mxu0 %v411
        %3064 = vmatpush.msra.mxu0 %v410
        %3065 = vmatpush.msra.mxu0 %v409
        %3066 = vmatpush.msra.mxu0 %v408
        %3067 = vmatmul.f32.gmra.mxu0 %v2717
        %v3068 = vpop.f32.mrf.mxu0
        %v3069 = vadd.f32 0.0, %v3068
        %3070 = vmatmul.f32.gmra.mxu0 %v2720
        %v3071 = vpop.f32.mrf.mxu0
        %v3072 = vadd.f32 0.0, %v3071
        %3073 = vdwg.mxu0
        %v3074 = vmax.f32 %v3069, 1e-06
        %v3075 = vmax.f32 %v3072, 1e-06
        %v3076 = vrsqrt.pop %v3074
        %v3077 = vmul.f32 %v3076, %v3074
        %v3078 = vmul.f32 %v3077, %v3076
        %v3079 = vmul.f32 0.5, %v3078
        %v3080 = vsub.f32 1.5, %v3079
        %v3081 = vmul.f32 %v3076, %v3080
        %vm3082 = vweird.f32 %v3074
        %vm3083 = vweird.f32 %v3076
        %vm3084 = vmor %vm3082, %vm3083
        %v3085 = vsel %vm3084, %v3076, %v3081
        %v3086 = vrsqrt.pop %v3075
        %v3087 = vmul.f32 %v3086, %v3075
        %v3088 = vmul.f32 %v3087, %v3086
        %v3089 = vmul.f32 0.5, %v3088
        %v3090 = vsub.f32 1.5, %v3089
        %v3091 = vmul.f32 %v3086, %v3090
        %vm3092 = vweird.f32 %v3075
        %vm3093 = vweird.f32 %v3086
        %vm3094 = vmor %vm3092, %vm3093
        %v3095 = vsel %vm3094, %v3086, %v3091
        %v3096 = vmul.f32 %v3049, %v3085
        %v3097 = vmul.f32 %v3050, %v3095
        %3100 = vrot.lane.b32.xlu0 %v1879, 8
        %v3101 = vpop.permute.xlu0 %3100
        %3102 = vrot.lane.b32.xlu0 %v1880, 8
        %v3103 = vpop.permute.xlu0 %3102
        %v3122 = vadd.s32 %v539, 4294967280
        %v3123 = vperm.slane %v1331, %v3122
        %v3124 = vperm.slane %v1334, %v3122
        %v3125 = vperm.slane %v1337, %v3122
        %v3126 = vperm.slane %v1340, %v3122
        %v3127 = vperm.slane %v1343, %v3122
        %v3128 = vperm.slane %v1346, %v3122
        %v3129 = vperm.slane %v1349, %v3122
        %v3130 = vperm.slane %v1352, %v3122
        %v3131 = vperm.slane %v1355, %v3122
        %v3132 = vperm.slane %v1358, %v3122
        %v3133 = vperm.slane %v1361, %v3122
        %v3134 = vperm.slane %v1364, %v3122
        %v3135 = vperm.slane %v1367, %v3122
        %v3136 = vperm.slane %v1370, %v3122
        %v3137 = vperm.slane %v1373, %v3122
        %v3138 = vperm.slane %v1376, %v3122
        %v3139 = vsel %vm542, %v3124, %v3123
        %v3140 = vsel %vm543, %v3125, %v3139
        %v3141 = vsel %vm545, %v3126, %v3140
        %v3142 = vsel %vm547, %v3127, %v3141
        %v3143 = vsel %vm549, %v3128, %v3142
        %v3144 = vsel %vm551, %v3129, %v3143
        %v3145 = vsel %vm553, %v3130, %v3144
        %v3146 = vsel %vm542, %v3132, %v3131
        %v3147 = vsel %vm543, %v3133, %v3146
        %v3148 = vsel %vm545, %v3134, %v3147
        %v3149 = vsel %vm547, %v3135, %v3148
        %v3150 = vsel %vm549, %v3136, %v3149
        %v3151 = vsel %vm551, %v3137, %v3150
        %v3152 = vsel %vm553, %v3138, %v3151
        %v3171 = vadd.s32 %v539, 4294967272
        %v3172 = vperm.slane %v2500, %v3171
        %v3173 = vperm.slane %v2503, %v3171
        %v3174 = vperm.slane %v2506, %v3171
        %v3175 = vperm.slane %v2509, %v3171
        %v3176 = vperm.slane %v2512, %v3171
        %v3177 = vperm.slane %v2515, %v3171
        %v3178 = vperm.slane %v2518, %v3171
        %v3179 = vperm.slane %v2521, %v3171
        %v3180 = vperm.slane %v2524, %v3171
        %v3181 = vperm.slane %v2527, %v3171
        %v3182 = vperm.slane %v2530, %v3171
        %v3183 = vperm.slane %v2533, %v3171
        %v3184 = vperm.slane %v2536, %v3171
        %v3185 = vperm.slane %v2539, %v3171
        %v3186 = vperm.slane %v2542, %v3171
        %v3187 = vperm.slane %v2545, %v3171
        %v3188 = vsel %vm542, %v3173, %v3172
        %v3189 = vsel %vm543, %v3174, %v3188
        %v3190 = vsel %vm545, %v3175, %v3189
        %v3191 = vsel %vm547, %v3176, %v3190
        %v3192 = vsel %vm549, %v3177, %v3191
        %v3193 = vsel %vm551, %v3178, %v3192
        %v3194 = vsel %vm553, %v3179, %v3193
        %v3195 = vsel %vm542, %v3181, %v3180
        %v3196 = vsel %vm543, %v3182, %v3195
        %v3197 = vsel %vm545, %v3183, %v3196
        %v3198 = vsel %vm547, %v3184, %v3197
        %v3199 = vsel %vm549, %v3185, %v3198
        %v3200 = vsel %vm551, %v3186, %v3199
        %v3201 = vsel %vm553, %v3187, %v3200
        %3206 = vrot.lane.b32.xlu0 %v1599, 32
        %v3207 = vpop.permute.xlu0 %3206
        %3208 = vrot.lane.b32.xlu0 %v1600, 32
        %v3209 = vpop.permute.xlu0 %3208
        %3214 = vrot.lane.b32.xlu0 %v2767, 40
        %v3215 = vpop.permute.xlu0 %3214
        %3216 = vrot.lane.b32.xlu0 %v2768, 40
        %v3217 = vpop.permute.xlu0 %3216
        %3222 = vrot.lane.b32.xlu0 %v2979, 48
        %v3223 = vpop.permute.xlu0 %3222
        %3224 = vrot.lane.b32.xlu0 %v2980, 48
        %v3225 = vpop.permute.xlu0 %3224
        %3230 = vrot.lane.b32.xlu0 %v3096, 56
        %v3231 = vpop.permute.xlu0 %3230
        %3232 = vrot.lane.b32.xlu0 %v3097, 56
        %v3233 = vpop.permute.xlu0 %3232
        %vm3236 = vcmask 64512
        %v3237 = vsel %vm3236, %v709, %v3101
        %v3238 = vsel %vm3236, %v710, %v3103
        %vm3239 = vcmask 130048
        %v3240 = vsel %vm3239, %v3237, %v3145
        %v3241 = vsel %vm3239, %v3238, %v3152
        %vm3242 = vcmask 195584
        %v3243 = vsel %vm3242, %v3240, %v3194
        %v3244 = vsel %vm3242, %v3241, %v3201
        %v3245 = vsel %vm424, %v3243, %v3207
        %v3246 = vsel %vm424, %v3244, %v3209
        %vm3247 = vcmask 326656
        %v3248 = vsel %vm3247, %v3245, %v3215
        %v3249 = vsel %vm3247, %v3246, %v3217
        %vm3250 = vcmask 392192
        %v3251 = vsel %vm3250, %v3248, %v3223
        %v3252 = vsel %vm3250, %v3249, %v3225
        %vm3253 = vcmask 457728
        %v3254 = vsel %vm3253, %v3251, %v3231
        %v3255 = vsel %vm3253, %v3252, %v3233
        %3257 = vrot.lane.b32.xlu0 %v3255, 64
        %v3258 = vpop.permute.xlu0 %3257
        %vm3260 = vcmask 523264
        %v3261 = vsel %vm3260, %v3254, %v3258
        %3262 = vst [vmem:[%s347] sm:$0xff] %v3261
        %s3263 = sand.u32 %s164, 1
        %s3264 = scalar_lea.sflag [#allocation5], %s3263
        %s3265 = sand.u32 %s164, 1
        %s3266 = smul.addr %s3265, 8
        %s3267 = scalar_lea.vmem [#allocation4], %s3266
        // Predicated region
        $region121: #{tpu_custom_call.1} parent=111 // pred_check
          %p3268 = pneg %p174
        $region122: #{tpu_custom_call.1} parent=111 // pred_check_branch
          %3270 = sbr.rel (%p3268) target = $region124
        $region123: #{tpu_custom_call.1} parent=111 // pred_region
          %3272 = vsyncadd %s3264, 0
          %s3273 = smul.addr %s20, 8
          %s3274 = scalar_lea.hbm %s6, %s3273
          %s3276 = sshll.u32 %s3267, 4
          %s3277 = int_to_ptr.vmem [resolvable:$true] %s3276
          %s3278 = sshll.u32 %s3274, 4
          %s3279 = int_to_ptr.hbm [resolvable:$true] %s3278
          %3281 = dma.vmem_to_hbm [thread:$0]  %s3277, 128, %s3279, %s3264
        $region124: #{tpu_custom_call.1} parent=111 // pred_fallthru
          _
      $region112: #{tpu_custom_call.1} parent=5 // pred_fallthru
        _
      %p3282 = scmp.le.s32.totalorder 2, %s15
      // Predicated region
      $region125: #{tpu_custom_call.1} parent=5 // pred_check
        %p3283 = pneg %p3282
      $region126: #{tpu_custom_call.1} parent=5 // pred_check_branch
        %3285 = sbr.rel (%p3283) target = $region128
      $region127: #{tpu_custom_call.1} parent=5 // pred_region
        %s3286 = ssub.s32 %s15, 2
        // Predicated region
        $region129: #{tpu_custom_call.1} parent=127 // pred_check
          %p3287 = pneg %p180
        $region130: #{tpu_custom_call.1} parent=127 // pred_check_branch
          %3289 = sbr.rel (%p3287) target = $region132
        $region131: #{tpu_custom_call.1} parent=127 // pred_region
          %s3290 = sand.u32 %s165, 1
          %s3291 = scalar_lea.sflag [#allocation5], %s3290
          %s3292 = sand.u32 %s165, 1
          %s3293 = smul.addr %s3292, 8
          %s3294 = scalar_lea.vmem [#allocation4], %s3293
          %3296 = dma.done %s3291, 128
        $region132: #{tpu_custom_call.1} parent=127 // pred_fallthru
          _
      $region128: #{tpu_custom_call.1} parent=5 // pred_fallthru
        _
    $region6: #{tpu_custom_call.1} parent=1 // loop_footer
      %s19 = sadd.s32 1, %s15
    $region7: #{tpu_custom_call.1} parent=1 // loop_footer_branch
      %14 = sbr.rel target = $region3
    $region8: #{tpu_custom_call.1} parent=1 // loop_exit
      _
    %3297 = vsyncpa [#allocation5], 1
    %s3298 = scalar_lea.sflag [#allocation5], 1
    %3299 = vsyncpa %s3298, 1

// kernel: tpu_custom_call.1
$region0: #{tpu_custom_call.1}
  #allocation0 [shape = 'u32[]', space=smem, size = 0x4, offset = 0x4, fixed_abs, tag = 'smem constant byte address 0x4 - core index']
  #allocation1 [shape = 'u32[72,128]{1,0:T(1,128)}', space=vmem, size = 0x9000, scoped, tag = 'internal scratch']
  %s0 = inlined_call_operand.vmem [shape: f32[2,16,32], index: 0, kind: input, shape index: {}]
  %s1 = inlined_call_operand.vmem [shape: f32[2,16,32], index: 1, kind: input, shape index: {}]
  %s2 = inlined_call_operand.vmem [shape: f32[2,6,32], index: 2, kind: input, shape index: {}]
  %s3 = inlined_call_operand.vmem [shape: f32[2,6,32], index: 3, kind: input, shape index: {}]
  %s4 = inlined_call_operand.vmem [shape: f32[6,32], index: 4, kind: input, shape index: {}]
  %s5 = inlined_call_operand.vmem [shape: f32[8,32,8], index: 5, kind: input, shape index: {}]
  %s6 = inlined_call_operand.hbm [shape: f32[16,128], index: 6, kind: output, shape index: {}]
  %s7 = sld [smem:[#allocation0]]
  $region133: #{tpu_custom_call.1} parent=0
    _
  %s9 = ssub.s32 1, %s7
  %s10 = scalar_select 0, %s9, %s7
  $region1: #{tpu_custom_call.1} parent=0
    #allocation2 [shape = 'u8[16384]{0}', space=vmem, size = 0x4000, scoped, tag = 'input window, operand 0']
    #allocation3 [shape = 'u8[16384]{0}', space=vmem, size = 0x4000, scoped, tag = 'input window, operand 1']
    #allocation4 [shape = 'u8[8192]{0}', space=vmem, size = 0x2000, scoped, tag = 'output window, operand 0']
    #allocation5 [shape = 's32[2]{0}', space=sflag, size = 0x8, scoped, tag = 'scoped memory for tpu_custom_call.1']
    %11 = vsyncpa [#allocation5], 0
    %s12 = scalar_lea.sflag [#allocation5], 1
    %13 = vsyncpa %s12, 0
    loop: start=0, step=1, limit=4
    $region2: #{tpu_custom_call.1} parent=1 // loop_pre_header
      _
    $region3: #{tpu_custom_call.1} parent=1 // loop_header
      %s15 = sphi 0, %s19
      %p16 = scmp.ge.s32.totalorder %s15, 4
      %s25 = sphi 0, %s27
      %s28 = sphi 0, %s25
      %s29 = sphi 0, %s28
      %s45 = sphi 0, %s29
      %s51 = sphi 0, %s53
      %s54 = sphi 0, %s51
      %s55 = sphi 0, %s54
      %s71 = sphi 0, %s55
      %s75 = sphi 0, %s75
      %s77 = sphi 0, %s75
      %s78 = sphi 0, %s77
      %s92 = sphi 0, %s78
      %s96 = sphi 0, %s96
      %s98 = sphi 0, %s96
      %s99 = sphi 0, %s98
      %s113 = sphi 0, %s99
      %s117 = sphi 0, %s117
      %s119 = sphi 0, %s117
      %s120 = sphi 0, %s119
      %s134 = sphi 0, %s120
      %s138 = sphi 0, %s138
      %s140 = sphi 0, %s138
      %s141 = sphi 0, %s140
      %s155 = sphi 0, %s141
      %s161 = sphi 0, %s163
      %s164 = sphi 0, %s161
      %s165 = sphi 0, %s164
      %s181 = sphi 0, %s165
    $region4: #{tpu_custom_call.1} parent=1 // loop_header_branch
      %18 = sbr.rel (%p16) target = $region8
    $region5: #{tpu_custom_call.1} parent=1 // loop_body
      %s20 = ssub.s32 %s15, 1
      %s21 = ssub.s32 %s15, 2
      %s22 = sadd.s32 %s15, 1
      %s23 = ssub.s32 %s15, %s22
      %p24 = scmp.eq.s32.totalorder %s23, 0
      %s26 = sadd.s32 %s25, 1
      %s27 = scalar_select %p24, %s25, %s26
      %p30 = pneg %p24
      %p31 = scmp.eq.s32.totalorder %s15, 1
      %p32 = por %p30, %p31
      %p33 = scmp.ne.s32.totalorder %s25, %s28
      %p34 = scmp.eq.s32.totalorder %s15, 0
      %p35 = por %p33, %p34
      %p36 = scmp.ne.s32.totalorder %s25, %s28
      %p37 = scmp.eq.s32.totalorder %s20, 1
      %p38 = por %p36, %p37
      %p39 = scmp.ne.s32.totalorder %s28, %s29
      %p40 = scmp.eq.s32.totalorder %s20, 0
      %p41 = por %p39, %p40
      %p42 = scmp.ne.s32.totalorder %s28, %s29
      %p43 = scmp.eq.s32.totalorder %s21, 1
      %p44 = por %p42, %p43
      %p46 = scmp.ne.s32.totalorder %s29, %s45
      %p47 = scmp.eq.s32.totalorder %s21, 0
      %p48 = por %p46, %p47
      %s49 = ssub.s32 %s15, %s22
      %p50 = scmp.eq.s32.totalorder %s49, 0
      %s52 = sadd.s32 %s51, 1
      %s53 = scalar_select %p50, %s51, %s52
      %p56 = pneg %p50
      %p57 = scmp.eq.s32.totalorder %s15, 1
      %p58 = por %p56, %p57
      %p59 = scmp.ne.s32.totalorder %s51, %s54
      %p60 = scmp.eq.s32.totalorder %s15, 0
      %p61 = por %p59, %p60
      %p62 = scmp.ne.s32.totalorder %s51, %s54
      %p63 = scmp.eq.s32.totalorder %s20, 1
      %p64 = por %p62, %p63
      %p65 = scmp.ne.s32.totalorder %s54, %s55
      %p66 = scmp.eq.s32.totalorder %s20, 0
      %p67 = por %p65, %p66
      %p68 = scmp.ne.s32.totalorder %s54, %s55
      %p69 = scmp.eq.s32.totalorder %s21, 1
      %p70 = por %p68, %p69
      %p72 = scmp.ne.s32.totalorder %s55, %s71
      %p73 = scmp.eq.s32.totalorder %s21, 0
      %p74 = por %p72, %p73
      %s76 = sadd.s32 %s75, 1
      %p79 = scmp.eq.s32.totalorder %s15, 1
      %p80 = scmp.ne.s32.totalorder %s75, %s77
      %p81 = scmp.eq.s32.totalorder %s15, 0
      %p82 = por %p80, %p81
      %p83 = scmp.ne.s32.totalorder %s75, %s77
      %p84 = scmp.eq.s32.totalorder %s20, 1
      %p85 = por %p83, %p84
      %p86 = scmp.ne.s32.totalorder %s77, %s78
      %p87 = scmp.eq.s32.totalorder %s20, 0
      %p88 = por %p86, %p87
      %p89 = scmp.ne.s32.totalorder %s77, %s78
      %p90 = scmp.eq.s32.totalorder %s21, 1
      %p91 = por %p89, %p90
      %p93 = scmp.ne.s32.totalorder %s78, %s92
      %p94 = scmp.eq.s32.totalorder %s21, 0
      %p95 = por %p93, %p94
      %s97 = sadd.s32 %s96, 1
      %p100 = scmp.eq.s32.totalorder %s15, 1
      %p101 = scmp.ne.s32.totalorder %s96, %s98
      %p102 = scmp.eq.s32.totalorder %s15, 0
      %p103 = por %p101, %p102
      %p104 = scmp.ne.s32.totalorder %s96, %s98
      %p105 = scmp.eq.s32.totalorder %s20, 1
      %p106 = por %p104, %p105
      %p107 = scmp.ne.s32.totalorder %s98, %s99
      %p108 = scmp.eq.s32.totalorder %s20, 0
      %p109 = por %p107, %p108
      %p110 = scmp.ne.s32.totalorder %s98, %s99
      %p111 = scmp.eq.s32.totalorder %s21, 1
      %p112 = por %p110, %p111
      %p114 = scmp.ne.s32.totalorder %s99, %s113
      %p115 = scmp.eq.s32.totalorder %s21, 0
      %p116 = por %p114, %p115
      %s118 = sadd.s32 %s117, 1
      %p121 = scmp.eq.s32.totalorder %s15, 1
      %p122 = scmp.ne.s32.totalorder %s117, %s119
      %p123 = scmp.eq.s32.totalorder %s15, 0
      %p124 = por %p122, %p123
      %p125 = scmp.ne.s32.totalorder %s117, %s119
      %p126 = scmp.eq.s32.totalorder %s20, 1
      %p127 = por %p125, %p126
      %p128 = scmp.ne.s32.totalorder %s119, %s120
      %p129 = scmp.eq.s32.totalorder %s20, 0
      %p130 = por %p128, %p129
      %p131 = scmp.ne.s32.totalorder %s119, %s120
      %p132 = scmp.eq.s32.totalorder %s21, 1
      %p133 = por %p131, %p132
      %p135 = scmp.ne.s32.totalorder %s120, %s134
      %p136 = scmp.eq.s32.totalorder %s21, 0
      %p137 = por %p135, %p136
      %s139 = sadd.s32 %s138, 1
      %p142 = scmp.eq.s32.totalorder %s15, 1
      %p143 = scmp.ne.s32.totalorder %s138, %s140
      %p144 = scmp.eq.s32.totalorder %s15, 0
      %p145 = por %p143, %p144
      %p146 = scmp.ne.s32.totalorder %s138, %s140
      %p147 = scmp.eq.s32.totalorder %s20, 1
      %p148 = por %p146, %p147
      %p149 = scmp.ne.s32.totalorder %s140, %s141
      %p150 = scmp.eq.s32.totalorder %s20, 0
      %p151 = por %p149, %p150
      %p152 = scmp.ne.s32.totalorder %s140, %s141
      %p153 = scmp.eq.s32.totalorder %s21, 1
      %p154 = por %p152, %p153
      %p156 = scmp.ne.s32.totalorder %s141, %s155
      %p157 = scmp.eq.s32.totalorder %s21, 0
      %p158 = por %p156, %p157
      %s159 = ssub.s32 %s15, %s22
      %p160 = scmp.eq.s32.totalorder %s159, 0
      %s162 = sadd.s32 %s161, 1
      %s163 = scalar_select %p160, %s161, %s162
      %p166 = pneg %p160
      %p167 = scmp.eq.s32.totalorder %s15, 1
      %p168 = por %p166, %p167
      %p169 = scmp.ne.s32.totalorder %s161, %s164
      %p170 = scmp.eq.s32.totalorder %s15, 0
      %p171 = por %p169, %p170
      %p172 = scmp.ne.s32.totalorder %s161, %s164
      %p173 = scmp.eq.s32.totalorder %s20, 1
      %p174 = por %p172, %p173
      %p175 = scmp.ne.s32.totalorder %s164, %s165
      %p176 = scmp.eq.s32.totalorder %s20, 0
      %p177 = por %p175, %p176
      %p178 = scmp.ne.s32.totalorder %s164, %s165
      %p179 = scmp.eq.s32.totalorder %s21, 1
      %p180 = por %p178, %p179
      %p182 = scmp.ne.s32.totalorder %s165, %s181
      %p183 = scmp.eq.s32.totalorder %s21, 0
      %p184 = por %p182, %p183
      %p185 = scmp.le.s32.totalorder 1, %s15
      %p186 = scmp.lt.s32.totalorder %s15, 3
      %p187 = pnand %p185, %p186
      %p188 = pneg %p187
      // Predicated region
      $region9: #{tpu_custom_call.1} parent=5 // pred_check
        _
      $region10: #{tpu_custom_call.1} parent=5 // pred_check_branch
        %190 = sbr.rel (%p187) target = $region12
      $region11: #{tpu_custom_call.1} parent=5 // pred_region
        %s191 = ssub.s32 %s15, 1
        // Predicated region
        $region13: #{tpu_custom_call.1} parent=11 // pred_check
          %p192 = pneg %p88
        $region14: #{tpu_custom_call.1} parent=11 // pred_check_branch
          %194 = sbr.rel (%p192) target = $region16
        $region15: #{tpu_custom_call.1} parent=11 // pred_region
          _
        $region16: #{tpu_custom_call.1} parent=11 // pred_fallthru
          _
        // Predicated region
        $region17: #{tpu_custom_call.1} parent=11 // pred_check
          %p195 = pneg %p109
        $region18: #{tpu_custom_call.1} parent=11 // pred_check_branch
          %197 = sbr.rel (%p195) target = $region20
        $region19: #{tpu_custom_call.1} parent=11 // pred_region
          _
        $region20: #{tpu_custom_call.1} parent=11 // pred_fallthru
          _
        // Predicated region
        $region21: #{tpu_custom_call.1} parent=11 // pred_check
          %p198 = pneg %p130
        $region22: #{tpu_custom_call.1} parent=11 // pred_check_branch
          %200 = sbr.rel (%p198) target = $region24
        $region23: #{tpu_custom_call.1} parent=11 // pred_region
          _
        $region24: #{tpu_custom_call.1} parent=11 // pred_fallthru
          _
        // Predicated region
        $region25: #{tpu_custom_call.1} parent=11 // pred_check
          %p201 = pneg %p151
        $region26: #{tpu_custom_call.1} parent=11 // pred_check_branch
          %203 = sbr.rel (%p201) target = $region28
        $region27: #{tpu_custom_call.1} parent=11 // pred_region
          _
        $region28: #{tpu_custom_call.1} parent=11 // pred_fallthru
          _
      $region12: #{tpu_custom_call.1} parent=5 // pred_fallthru
        _
      %p204 = scmp.lt.s32.totalorder %s15, 2
      // Predicated region
      $region29: #{tpu_custom_call.1} parent=5 // pred_check
        %p205 = pneg %p204
      $region30: #{tpu_custom_call.1} parent=5 // pred_check_branch
        %207 = sbr.rel (%p205) target = $region32
      $region31: #{tpu_custom_call.1} parent=5 // pred_region
        // Predicated region
        $region33: #{tpu_custom_call.1} parent=31 // pred_check
          %p208 = pneg %p35
        $region34: #{tpu_custom_call.1} parent=31 // pred_check_branch
          %210 = sbr.rel (%p208) target = $region36
        $region35: #{tpu_custom_call.1} parent=31 // pred_region
          %s211 = sand.u32 %s25, 1
          %s212 = sand.u32 %s25, 1
          %s213 = smul.addr %s212, 16
          %s214 = scalar_lea.vmem [#allocation2], %s213
          %s215 = smul.addr %s15, 8
          %s216 = scalar_lea.vmem %s0, %s215
          // Predicated region
          $region37: #{tpu_custom_call.1} parent=35 // pred_check
            _
          $region38: #{tpu_custom_call.1} parent=35 // pred_check_branch
            %218 = sbr.rel (0) target = $region40
          $region39: #{tpu_custom_call.1} parent=35 // pred_region
            // Predicated region
            $region41: #{tpu_custom_call.1} parent=39 // pred_check
              _
            $region42: #{tpu_custom_call.1} parent=39 // pred_check_branch
              %220 = sbr.rel (0) target = $region44
            $region43: #{tpu_custom_call.1} parent=39 // pred_region
              // Predicated region
              $region56: #{tpu_custom_call.1} parent=43 // pred_check
                _
              $region57: #{tpu_custom_call.1} parent=43 // pred_check_branch
                %238 = sbr.rel (0) target = $region59
              $region58: #{tpu_custom_call.1} parent=43 // pred_region
                loop: start=0, step=1, limit=1
                $region60: #{tpu_custom_call.1} parent=58 // loop_pre_header
                  _
                $region61: #{tpu_custom_call.1} parent=58 // loop_header
                  %s240 = sphi 0, %s244
                  %p241 = scmp.ge.s32.totalorder %s240, 1
                  %s245 = sphi %s216, %s216
                  %s246 = sphi %s214, %s214
                $region62: #{tpu_custom_call.1} parent=58 // loop_header_branch
                  %243 = sbr.rel (%p241) target = $region66
                $region63: #{tpu_custom_call.1} parent=58 // loop_body
                  %v247 = vld [vmem:[%s245] sm:$0xff]
                  %248 = vst [vmem:[%s246] sm:$0xff] %v247
                  %v249 = vld [vmem:[%s245 + $0x10] sm:$0xff]
                  %250 = vst [vmem:[%s246 + $0x8] sm:$0xff] %v249
                $region64: #{tpu_custom_call.1} parent=58 // loop_footer
                  %s244 = sadd.s32 1, %s240
                $region65: #{tpu_custom_call.1} parent=58 // loop_footer_branch
                  %239 = sbr.rel target = $region61
                $region66: #{tpu_custom_call.1} parent=58 // loop_exit
                  _
              $region59: #{tpu_custom_call.1} parent=43 // pred_fallthru
                _
              // Predicated region
              $region67: #{tpu_custom_call.1} parent=43 // pred_check
                _
              $region68: #{tpu_custom_call.1} parent=43 // pred_check_branch
                %252 = sbr.rel target = $region70
              $region69: #{tpu_custom_call.1} parent=43 // pred_region
                _
              $region70: #{tpu_custom_call.1} parent=43 // pred_fallthru
                _
            $region44: #{tpu_custom_call.1} parent=39 // pred_fallthru
              _
            // Predicated region
            $region45: #{tpu_custom_call.1} parent=39 // pred_check
              _
            $region46: #{tpu_custom_call.1} parent=39 // pred_check_branch
              %222 = sbr.rel target = $region48
            $region47: #{tpu_custom_call.1} parent=39 // pred_region
              %s224 = ssub.s32 256, 1
              loop: start=0, step=1, limit=1
              $region49: #{tpu_custom_call.1} parent=47 // loop_pre_header
                _
              $region50: #{tpu_custom_call.1} parent=47 // loop_header
                %s226 = sphi 0, %s230
                %p227 = scmp.ge.s32.totalorder %s226, 1
                %s231 = sphi %s216, %s216
                %s232 = sphi %s214, %s214
              $region51: #{tpu_custom_call.1} parent=47 // loop_header_branch
                %229 = sbr.rel (%p227) target = $region55
              $region52: #{tpu_custom_call.1} parent=47 // loop_body
                %v233 = vld [vmem:[%s231] sm:%s224]
                %234 = vst [vmem:[%s232] sm:%s224] %v233
                %v235 = vld [vmem:[%s231 + $0x10] sm:%s224]
                %236 = vst [vmem:[%s232 + $0x8] sm:%s224] %v235
              $region53: #{tpu_custom_call.1} parent=47 // loop_footer
                %s230 = sadd.s32 1, %s226
              $region54: #{tpu_custom_call.1} parent=47 // loop_footer_branch
                %225 = sbr.rel target = $region50
              $region55: #{tpu_custom_call.1} parent=47 // loop_exit
                _
            $region48: #{tpu_custom_call.1} parent=39 // pred_fallthru
              _
          $region40: #{tpu_custom_call.1} parent=35 // pred_fallthru
            _
          %253 = vnop
        $region36: #{tpu_custom_call.1} parent=31 // pred_fallthru
          _
        // Predicated region
        $region71: #{tpu_custom_call.1} parent=31 // pred_check
          %p254 = pneg %p61
        $region72: #{tpu_custom_call.1} parent=31 // pred_check_branch
          %256 = sbr.rel (%p254) target = $region74
        $region73: #{tpu_custom_call.1} parent=31 // pred_region
          %s257 = sand.u32 %s51, 1
          %s258 = sand.u32 %s51, 1
          %s259 = smul.addr %s258, 16
          %s260 = scalar_lea.vmem [#allocation3], %s259
          %s261 = smul.addr %s15, 8
          %s262 = scalar_lea.vmem %s1, %s261
          // Predicated region
          $region75: #{tpu_custom_call.1} parent=73 // pred_check
            _
          $region76: #{tpu_custom_call.1} parent=73 // pred_check_branch
            %264 = sbr.rel (0) target = $region78
          $region77: #{tpu_custom_call.1} parent=73 // pred_region
            // Predicated region
            $region79: #{tpu_custom_call.1} parent=77 // pred_check
              _
            $region80: #{tpu_custom_call.1} parent=77 // pred_check_branch
              %266 = sbr.rel (0) target = $region82
            $region81: #{tpu_custom_call.1} parent=77 // pred_region
              // Predicated region
              $region94: #{tpu_custom_call.1} parent=81 // pred_check
                _
              $region95: #{tpu_custom_call.1} parent=81 // pred_check_branch
                %284 = sbr.rel (0) target = $region97
              $region96: #{tpu_custom_call.1} parent=81 // pred_region
                loop: start=0, step=1, limit=1
                $region98: #{tpu_custom_call.1} parent=96 // loop_pre_header
                  _
                $region99: #{tpu_custom_call.1} parent=96 // loop_header
                  %s286 = sphi 0, %s290
                  %p287 = scmp.ge.s32.totalorder %s286, 1
                  %s291 = sphi %s262, %s262
                  %s292 = sphi %s260, %s260
                $region100: #{tpu_custom_call.1} parent=96 // loop_header_branch
                  %289 = sbr.rel (%p287) target = $region104
                $region101: #{tpu_custom_call.1} parent=96 // loop_body
                  %v293 = vld [vmem:[%s291] sm:$0xff]
                  %294 = vst [vmem:[%s292] sm:$0xff] %v293
                  %v295 = vld [vmem:[%s291 + $0x10] sm:$0xff]
                  %296 = vst [vmem:[%s292 + $0x8] sm:$0xff] %v295
                $region102: #{tpu_custom_call.1} parent=96 // loop_footer
                  %s290 = sadd.s32 1, %s286
                $region103: #{tpu_custom_call.1} parent=96 // loop_footer_branch
                  %285 = sbr.rel target = $region99
                $region104: #{tpu_custom_call.1} parent=96 // loop_exit
                  _
              $region97: #{tpu_custom_call.1} parent=81 // pred_fallthru
                _
              // Predicated region
              $region105: #{tpu_custom_call.1} parent=81 // pred_check
                _
              $region106: #{tpu_custom_call.1} parent=81 // pred_check_branch
                %298 = sbr.rel target = $region108
              $region107: #{tpu_custom_call.1} parent=81 // pred_region
                _
              $region108: #{tpu_custom_call.1} parent=81 // pred_fallthru
                _
            $region82: #{tpu_custom_call.1} parent=77 // pred_fallthru
              _
            // Predicated region
            $region83: #{tpu_custom_call.1} parent=77 // pred_check
              _
            $region84: #{tpu_custom_call.1} parent=77 // pred_check_branch
              %268 = sbr.rel target = $region86
            $region85: #{tpu_custom_call.1} parent=77 // pred_region
              %s270 = ssub.s32 256, 1
              loop: start=0, step=1, limit=1
              $region87: #{tpu_custom_call.1} parent=85 // loop_pre_header
                _
              $region88: #{tpu_custom_call.1} parent=85 // loop_header
                %s272 = sphi 0, %s276
                %p273 = scmp.ge.s32.totalorder %s272, 1
                %s277 = sphi %s262, %s262
                %s278 = sphi %s260, %s260
              $region89: #{tpu_custom_call.1} parent=85 // loop_header_branch
                %275 = sbr.rel (%p273) target = $region93
              $region90: #{tpu_custom_call.1} parent=85 // loop_body
                %v279 = vld [vmem:[%s277] sm:%s270]
                %280 = vst [vmem:[%s278] sm:%s270] %v279
                %v281 = vld [vmem:[%s277 + $0x10] sm:%s270]
                %282 = vst [vmem:[%s278 + $0x8] sm:%s270] %v281
              $region91: #{tpu_custom_call.1} parent=85 // loop_footer
                %s276 = sadd.s32 1, %s272
              $region92: #{tpu_custom_call.1} parent=85 // loop_footer_branch
                %271 = sbr.rel target = $region88
              $region93: #{tpu_custom_call.1} parent=85 // loop_exit
                _
            $region86: #{tpu_custom_call.1} parent=77 // pred_fallthru
              _
          $region78: #{tpu_custom_call.1} parent=73 // pred_fallthru
            _
          %299 = vnop
        $region74: #{tpu_custom_call.1} parent=31 // pred_fallthru
          _
      $region32: #{tpu_custom_call.1} parent=5 // pred_fallthru
        _
      %p300 = scmp.le.s32.totalorder 1, %s15
      %p301 = scmp.lt.s32.totalorder %s15, 3
      %p302 = pnand %p300, %p301
      %p303 = pneg %p302
      // Predicated region
      $region109: #{tpu_custom_call.1} parent=5 // pred_check
        _
      $region110: #{tpu_custom_call.1} parent=5 // pred_check_branch
        %305 = sbr.rel (%p302) target = $region112
      $region111: #{tpu_custom_call.1} parent=5 // pred_region
        %s306 = ssub.s32 %s15, 1
        %s307 = sand.u32 %s28, 1
        %s308 = sand.u32 %s28, 1
        %s309 = smul.addr %s308, 16
        %s310 = scalar_lea.vmem [#allocation2], %s309
        // Predicated region
        $region113: #{tpu_custom_call.1} parent=111 // pred_check
          %p311 = pneg %p41
        $region114: #{tpu_custom_call.1} parent=111 // pred_check_branch
          %313 = sbr.rel (%p311) target = $region116
        $region115: #{tpu_custom_call.1} parent=111 // pred_region
          _
        $region116: #{tpu_custom_call.1} parent=111 // pred_fallthru
          _
        %s314 = sand.u32 %s54, 1
        %s315 = sand.u32 %s54, 1
        %s316 = smul.addr %s315, 16
        %s317 = scalar_lea.vmem [#allocation3], %s316
        // Predicated region
        $region117: #{tpu_custom_call.1} parent=111 // pred_check
          %p318 = pneg %p67
        $region118: #{tpu_custom_call.1} parent=111 // pred_check_branch
          %320 = sbr.rel (%p318) target = $region120
        $region119: #{tpu_custom_call.1} parent=111 // pred_region
          _
        $region120: #{tpu_custom_call.1} parent=111 // pred_fallthru
          _
        %s321 = sand.u32 %s28, 1
        %s322 = sand.u32 %s28, 1
        %s323 = smul.addr %s322, 16
        %s324 = scalar_lea.vmem [#allocation2], %s323
        %p325 = pneg %p41
        %p326 = pneg %p38
        %s327 = sand.u32 %s54, 1
        %s328 = sand.u32 %s54, 1
        %s329 = smul.addr %s328, 16
        %s330 = scalar_lea.vmem [#allocation3], %s329
        %p331 = pneg %p67
        %p332 = pneg %p64
        %p333 = pneg %p88
        %p334 = pneg %p85
        %p335 = pneg %p109
        %p336 = pneg %p106
        %p337 = pneg %p130
        %p338 = pneg %p127
        %p339 = pneg %p151
        %p340 = pneg %p148
        %p341 = pneg %p177
        %p342 = pneg %p174
        %s343 = sand.u32 %s164, 1
        %s344 = scalar_lea.sflag [#allocation5], %s343
        %s345 = sand.u32 %s164, 1
        %s346 = smul.addr %s345, 8
        %s347 = scalar_lea.vmem [#allocation4], %s346
        %v348 = vld [vmem:[%s5] sm:$0xff]
        %v349 = vld [vmem:[%s5 + $0x8] sm:$0xff]
        %v350 = vld [vmem:[%s5 + $0x10] sm:$0xff]
        %v351 = vld [vmem:[%s5 + $0x18] sm:$0xff]
        %v352 = vld [vmem:[%s5 + $0x20] sm:$0xff]
        %v353 = vld [vmem:[%s5 + $0x28] sm:$0xff]
        %v354 = vld [vmem:[%s5 + $0x30] sm:$0xff]
        %v355 = vld [vmem:[%s5 + $0x38] sm:$0xff]
        %v356 = vld [vmem:[%s5 + $0x40] sm:$0xff]
        %v357 = vld [vmem:[%s5 + $0x48] sm:$0xff]
        %v358 = vld [vmem:[%s5 + $0x50] sm:$0xff]
        %v359 = vld [vmem:[%s5 + $0x58] sm:$0xff]
        %v360 = vld [vmem:[%s5 + $0x60] sm:$0xff]
        %v361 = vld [vmem:[%s5 + $0x68] sm:$0xff]
        %v362 = vld [vmem:[%s5 + $0x70] sm:$0xff]
        %v363 = vld [vmem:[%s5 + $0x78] sm:$0xff]
        %v364 = vld [vmem:[%s5 + $0x80] sm:$0xff]
        %v365 = vld [vmem:[%s5 + $0x88] sm:$0xff]
        %v366 = vld [vmem:[%s5 + $0x90] sm:$0xff]
        %v367 = vld [vmem:[%s5 + $0x98] sm:$0xff]
        %v368 = vld [vmem:[%s5 + $0xa0] sm:$0xff]
        %v369 = vld [vmem:[%s5 + $0xa8] sm:$0xff]
        %v370 = vld [vmem:[%s5 + $0xb0] sm:$0xff]
        %v371 = vld [vmem:[%s5 + $0xb8] sm:$0xff]
        %v372 = vld [vmem:[%s5 + $0xc0] sm:$0xff]
        %v373 = vld [vmem:[%s5 + $0xc8] sm:$0xff]
        %v374 = vld [vmem:[%s5 + $0xd0] sm:$0xff]
        %v375 = vld [vmem:[%s5 + $0xd8] sm:$0xff]
        %v376 = vld [vmem:[%s5 + $0xe0] sm:$0xff]
        %v377 = vld [vmem:[%s5 + $0xe8] sm:$0xff]
        %v378 = vld [vmem:[%s5 + $0xf0] sm:$0xff]
        %v379 = vld [vmem:[%s5 + $0xf8] sm:$0xff]
        %v380 = vmul.f32 %v348, %v348
        %v381 = vmul.f32 %v349, %v349
        %v382 = vmul.f32 %v350, %v350
        %v383 = vmul.f32 %v351, %v351
        %v384 = vmul.f32 %v352, %v352
        %v385 = vmul.f32 %v353, %v353
        %v386 = vmul.f32 %v354, %v354
        %v387 = vmul.f32 %v355, %v355
        %v388 = vmul.f32 %v356, %v356
        %v389 = vmul.f32 %v357, %v357
        %v390 = vmul.f32 %v358, %v358
        %v391 = vmul.f32 %v359, %v359
        %v392 = vmul.f32 %v360, %v360
        %v393 = vmul.f32 %v361, %v361
        %v394 = vmul.f32 %v362, %v362
        %v395 = vmul.f32 %v363, %v363
        %v396 = vmul.f32 %v364, %v364
        %v397 = vmul.f32 %v365, %v365
        %v398 = vmul.f32 %v366, %v366
        %v399 = vmul.f32 %v367, %v367
        %v400 = vmul.f32 %v368, %v368
        %v401 = vmul.f32 %v369, %v369
        %v402 = vmul.f32 %v370, %v370
        %v403 = vmul.f32 %v371, %v371
        %v404 = vmul.f32 %v372, %v372
        %v405 = vmul.f32 %v373, %v373
        %v406 = vmul.f32 %v374, %v374
        %v407 = vmul.f32 %v375, %v375
        %v408 = vmul.f32 %v376, %v376
        %v409 = vmul.f32 %v377, %v377
        %v410 = vmul.f32 %v378, %v378
        %v411 = vmul.f32 %v379, %v379
        %v412 = vld [vmem:[%s310] sm:$0xff]
        %v413 = vld [vmem:[%s310 + $0x8] sm:$0xff]
        %v414 = vld [vmem:[%s317] sm:$0xff]
        %v415 = vld [vmem:[%s317 + $0x8] sm:$0xff]
        %v416 = vld [vmem:[%s2] sm:$0x3f]
        %v417 = vld [vmem:[%s2 + $0x8] sm:$0x3f]
        %v418 = vld [vmem:[%s3] sm:$0x3f]
        %v419 = vld [vmem:[%s3 + $0x8] sm:$0x3f]
        %v420 = vmul.f32 %v412, %v412
        %v421 = vmul.f32 %v413, %v413
        %v422 = vmul.f32 %v416, %v416
        %v423 = vmul.f32 %v417, %v417
        %vm424 = vcmask 261120
        %v426 = vsel %vm424, %v412, 0
        %v429 = vsel %vm424, %v416, 0
        %431 = vmatpush.xpose.msra.mxu0 0.0
        %432 = vmatpush.xpose.msra.mxu0 0.0
        %433 = vmatpush.xpose.msra.mxu0 0.0
        %434 = vmatpush.xpose.msra.mxu0 0.0
        %435 = vmatpush.xpose.msra.mxu0 0.0
        %436 = vmatpush.xpose.msra.mxu0 0.0
        %437 = vmatpush.xpose.msra.mxu0 0.0
        %438 = vmatpush.xpose.msra.mxu0 0.0
        %439 = vmatpush.xpose.msra.mxu0 0.0
        %440 = vmatpush.xpose.msra.mxu0 0.0
        %441 = vmatpush.xpose.msra.mxu0 0.0
        %442 = vmatpush.xpose.msra.mxu0 0.0
        %443 = vmatpush.xpose.msra.mxu0 0.0
        %444 = vmatpush.xpose.msra.mxu0 0.0
        %445 = vmatpush.xpose.msra.mxu0 0.0
        %446 = vmatpush.xpose.msra.mxu0 %v429
        %447 = vmatmul.f32.gmra.mxu0 %v426
        %v448 = vpop.f32.mrf.mxu0
        %v449 = vadd.f32 0.0, %v448
        %450 = vdwg.mxu0
        %v452 = vsel %vm424, %v413, 0
        %v455 = vsel %vm424, %v417, 0
        %457 = vmatpush.xpose.msra.mxu0 0.0
        %458 = vmatpush.xpose.msra.mxu0 0.0
        %459 = vmatpush.xpose.msra.mxu0 0.0
        %460 = vmatpush.xpose.msra.mxu0 0.0
        %461 = vmatpush.xpose.msra.mxu0 0.0
        %462 = vmatpush.xpose.msra.mxu0 0.0
        %463 = vmatpush.xpose.msra.mxu0 0.0
        %464 = vmatpush.xpose.msra.mxu0 0.0
        %465 = vmatpush.xpose.msra.mxu0 0.0
        %466 = vmatpush.xpose.msra.mxu0 0.0
        %467 = vmatpush.xpose.msra.mxu0 0.0
        %468 = vmatpush.xpose.msra.mxu0 0.0
        %469 = vmatpush.xpose.msra.mxu0 0.0
        %470 = vmatpush.xpose.msra.mxu0 0.0
        %471 = vmatpush.xpose.msra.mxu0 0.0
        %472 = vmatpush.xpose.msra.mxu0 %v455
        %473 = vmatmul.f32.gmra.mxu0 %v452
        %v474 = vpop.f32.mrf.mxu0
        %v475 = vadd.f32 0.0, %v474
        %476 = vdwg.mxu0
        %v477 = vsel %vm424, %v420, 0.0
        %478 = vadd.xlane.f32.xlu0 %v477
        %v479 = vpop.xlane.xlu0 %478
        %v480 = vsel %vm424, %v421, 0.0
        %481 = vadd.xlane.f32.xlu0 %v480
        %v482 = vpop.xlane.xlu0 %481
        %v483 = vmax.f32 %v479, 1e-06
        %v484 = vmax.f32 %v482, 1e-06
        %v485 = vrsqrt.pop %v483
        %v486 = vmul.f32 %v485, %v483
        %v487 = vmul.f32 %v486, %v485
        %v488 = vmul.f32 0.5, %v487
        %v489 = vsub.f32 1.5, %v488
        %v490 = vmul.f32 %v485, %v489
        %vm491 = vweird.f32 %v483
        %vm492 = vweird.f32 %v485
        %vm493 = vmor %vm491, %vm492
        %v494 = vsel %vm493, %v485, %v490
        %v495 = vrsqrt.pop %v484
        %v496 = vmul.f32 %v495, %v484
        %v497 = vmul.f32 %v496, %v495
        %v498 = vmul.f32 0.5, %v497
        %v499 = vsub.f32 1.5, %v498
        %v500 = vmul.f32 %v495, %v499
        %vm501 = vweird.f32 %v484
        %vm502 = vweird.f32 %v495
        %vm503 = vmor %vm501, %vm502
        %v504 = vsel %vm503, %v495, %v500
        %vm505 = vcmask 259072
        %v506 = vsel %vm505, %v422, 0.0
        %507 = vadd.xlane.f32.xlu0 %v506
        %v508 = vpop.xlane.xlu0 %507
        %v509 = vsel %vm505, %v423, 0.0
        %510 = vadd.xlane.f32.xlu0 %v509
        %v511 = vpop.xlane.xlu0 %510
        %v512 = vmax.f32 %v508, 1e-06
        %v513 = vmax.f32 %v511, 1e-06
        %v514 = vrsqrt.pop %v512
        %v515 = vmul.f32 %v514, %v512
        %v516 = vmul.f32 %v515, %v514
        %v517 = vmul.f32 0.5, %v516
        %v518 = vsub.f32 1.5, %v517
        %v519 = vmul.f32 %v514, %v518
        %vm520 = vweird.f32 %v512
        %vm521 = vweird.f32 %v514
        %vm522 = vmor %vm520, %vm521
        %v523 = vsel %vm522, %v514, %v519
        %v524 = vrsqrt.pop %v513
        %v525 = vmul.f32 %v524, %v513
        %v526 = vmul.f32 %v525, %v524
        %v527 = vmul.f32 0.5, %v526
        %v528 = vsub.f32 1.5, %v527
        %v529 = vmul.f32 %v524, %v528
        %vm530 = vweird.f32 %v513
        %vm531 = vweird.f32 %v524
        %vm532 = vmor %vm530, %vm531
        %v533 = vsel %vm532, %v524, %v529
        %v534 = vmul.f32 %v449, %v494
        %v535 = vmul.f32 %v475, %v504
        %v538 = vlaneseq
        %v539 = vand.u32 %v538, 127
        %v540 = vperm.slane %v523, %v539
        %v541 = vperm.slane %v533, %v539
        %vm542 = vcmask 1041409
        %vm543 = vcmask 1042434
        %v544 = vsel %vm543, %v540, %v540
        %vm545 = vcmask 1043459
        %v546 = vsel %vm545, %v540, %v544
        %vm547 = vcmask 1044484
        %v548 = vsel %vm547, %v540, %v546
        %vm549 = vcmask 1045509
        %v550 = vsel %vm549, %v540, %v548
        %vm551 = vcmask 1046534
        %v552 = vsel %vm551, %v540, %v550
        %vm553 = vcmask 1047559
        %v554 = vsel %vm553, %v540, %v552
        %v555 = vsel %vm543, %v541, %v541
        %v556 = vsel %vm545, %v541, %v555
        %v557 = vsel %vm547, %v541, %v556
        %v558 = vsel %vm549, %v541, %v557
        %v559 = vsel %vm551, %v541, %v558
        %v560 = vsel %vm553, %v541, %v559
        %v563 = vmul.f32 %v534, %v554
        %v564 = vmul.f32 %v535, %v560
        %v565 = vperm.slane %v416, 5
        %v566 = vperm.slane %v417, 5
        %v567 = vmul.f32 %v412, %v565
        %v568 = vmul.f32 %v413, %v566
        %v570 = vsel %vm424, %v567, 0
        %v573 = vsel %vm424, %v568, 0
        %575 = vmatpush.msra.mxu0 0.0
        %576 = vmatpush.msra.mxu0 0.0
        %577 = vmatpush.msra.mxu0 0.0
        %578 = vmatpush.msra.mxu0 0.0
        %579 = vmatpush.msra.mxu0 0.0
        %580 = vmatpush.msra.mxu0 0.0
        %581 = vmatpush.msra.mxu0 0.0
        %582 = vmatpush.msra.mxu0 0.0
        %583 = vmatpush.msra.mxu0 0.0
        %584 = vmatpush.msra.mxu0 0.0
        %585 = vmatpush.msra.mxu0 0.0
        %586 = vmatpush.msra.mxu0 0.0
        %587 = vmatpush.msra.mxu0 %v383
        %588 = vmatpush.msra.mxu0 %v382
        %589 = vmatpush.msra.mxu0 %v381
        %590 = vmatpush.msra.mxu0 %v380
        %591 = vmatmul.f32.gmra.mxu0 %v570
        %v592 = vpop.f32.mrf.mxu0
        %v593 = vadd.f32 0.0, %v592
        %594 = vmatmul.f32.gmra.mxu0 %v573
        %v595 = vpop.f32.mrf.mxu0
        %v596 = vadd.f32 0.0, %v595
        %597 = vdwg.mxu0
        %v599 = vsel %vm424, %v420, 0
        %v602 = vsel %vm424, %v421, 0
        %604 = vmatpush.msra.mxu0 0.0
        %605 = vmatpush.msra.mxu0 0.0
        %606 = vmatpush.msra.mxu0 0.0
        %607 = vmatpush.msra.mxu0 0.0
        %608 = vmatpush.msra.mxu0 0.0
        %609 = vmatpush.msra.mxu0 0.0
        %610 = vmatpush.msra.mxu0 0.0
        %611 = vmatpush.msra.mxu0 0.0
        %612 = vmatpush.msra.mxu0 0.0
        %613 = vmatpush.msra.mxu0 0.0
        %614 = vmatpush.msra.mxu0 0.0
        %615 = vmatpush.msra.mxu0 0.0
        %616 = vmatpush.msra.mxu0 %v383
        %617 = vmatpush.msra.mxu0 %v382
        %618 = vmatpush.msra.mxu0 %v381
        %619 = vmatpush.msra.mxu0 %v380
        %620 = vmatmul.f32.gmra.mxu0 %v599
        %v621 = vpop.f32.mrf.mxu0
        %v622 = vadd.f32 0.0, %v621
        %623 = vmatmul.f32.gmra.mxu0 %v602
        %v624 = vpop.f32.mrf.mxu0
        %v625 = vadd.f32 0.0, %v624
        %626 = vdwg.mxu0
        %v627 = vmax.f32 %v622, 1e-06
        %v628 = vmax.f32 %v625, 1e-06
        %v629 = vrsqrt.pop %v627
        %v630 = vmul.f32 %v629, %v627
        %v631 = vmul.f32 %v630, %v629
        %v632 = vmul.f32 0.5, %v631
        %v633 = vsub.f32 1.5, %v632
        %v634 = vmul.f32 %v629, %v633
        %vm635 = vweird.f32 %v627
        %vm636 = vweird.f32 %v629
        %vm637 = vmor %vm635, %vm636
        %v638 = vsel %vm637, %v629, %v634
        %v639 = vrsqrt.pop %v628
        %v640 = vmul.f32 %v639, %v628
        %v641 = vmul.f32 %v640, %v639
        %v642 = vmul.f32 0.5, %v641
        %v643 = vsub.f32 1.5, %v642
        %v644 = vmul.f32 %v639, %v643
        %vm645 = vweird.f32 %v628
        %vm646 = vweird.f32 %v639
        %vm647 = vmor %vm645, %vm646
        %v648 = vsel %vm647, %v639, %v644
        %v649 = vmul.f32 %v593, %v638
        %v650 = vmul.f32 %v596, %v648
        %v653 = vrot.slane %v422, 5
        %v654 = vrot.slane %v423, 4
        %v655 = vsel %vm542, %v654, %v653
        %v656 = vsel %vm424, %v655, 0
        %658 = vmatpush.msra.mxu0 0.0
        %659 = vmatpush.msra.mxu0 0.0
        %660 = vmatpush.msra.mxu0 0.0
        %661 = vmatpush.msra.mxu0 0.0
        %662 = vmatpush.msra.mxu0 0.0
        %663 = vmatpush.msra.mxu0 0.0
        %664 = vmatpush.msra.mxu0 0.0
        %665 = vmatpush.msra.mxu0 0.0
        %666 = vmatpush.msra.mxu0 0.0
        %667 = vmatpush.msra.mxu0 0.0
        %668 = vmatpush.msra.mxu0 0.0
        %669 = vmatpush.msra.mxu0 0.0
        %670 = vmatpush.msra.mxu0 %v383
        %671 = vmatpush.msra.mxu0 %v382
        %672 = vmatpush.msra.mxu0 %v381
        %673 = vmatpush.msra.mxu0 %v380
        %674 = vmatmul.f32.gmra.mxu0 %v656
        %v675 = vpop.f32.mrf.mxu0
        %v676 = vadd.f32 0.0, %v675
        %677 = vdwg.mxu0
        %v679 = vrot.slane %v676, 1
        %v681 = vmax.f32 %v676, 1e-06
        %v682 = vmax.f32 %v679, 1e-06
        %v683 = vrsqrt.pop %v681
        %v684 = vmul.f32 %v683, %v681
        %v685 = vmul.f32 %v684, %v683
        %v686 = vmul.f32 0.5, %v685
        %v687 = vsub.f32 1.5, %v686
        %v688 = vmul.f32 %v683, %v687
        %vm689 = vweird.f32 %v681
        %vm690 = vweird.f32 %v683
        %vm691 = vmor %vm689, %vm690
        %v692 = vsel %vm691, %v683, %v688
        %v693 = vrsqrt.pop %v682
        %v694 = vmul.f32 %v693, %v682
        %v695 = vmul.f32 %v694, %v693
        %v696 = vmul.f32 0.5, %v695
        %v697 = vsub.f32 1.5, %v696
        %v698 = vmul.f32 %v693, %v697
        %vm699 = vweird.f32 %v682
        %vm700 = vweird.f32 %v693
        %vm701 = vmor %vm699, %vm700
        %v702 = vsel %vm701, %v693, %v698
        %v705 = vperm.slane %v692, 0
        %v706 = vperm.slane %v702, 0
        %v709 = vmul.f32 %v649, %v705
        %v710 = vmul.f32 %v650, %v706
        %711 = vxpose.xlu0.b32.start [1/16] %v388, 128
        %712 = vxpose.xlu0.b32.cont [2/16] %v389, 128
        %713 = vxpose.xlu0.b32.cont [3/16] %v390, 128
        %714 = vxpose.xlu0.b32.cont [4/16] %v391, 128
        %715 = vxpose.xlu0.b32.cont [5/16] 0.0, 128
        %716 = vxpose.xlu0.b32.cont [6/16] 0.0, 128
        %717 = vxpose.xlu0.b32.cont [7/16] 0.0, 128
        %718 = vxpose.xlu0.b32.cont [8/16] 0.0, 128
        %719 = vxpose.xlu0.b32.cont [9/16] 0.0, 128
        %720 = vxpose.xlu0.b32.cont [10/16] 0.0, 128
        %721 = vxpose.xlu0.b32.cont [11/16] 0.0, 128
        %722 = vxpose.xlu0.b32.cont [12/16] 0.0, 128
        %723 = vxpose.xlu0.b32.cont [13/16] 0.0, 128
        %724 = vxpose.xlu0.b32.cont [14/16] 0.0, 128
        %725 = vxpose.xlu0.b32.cont [15/16] 0.0, 128
        %726 = vxpose.xlu0.b32.end [16/16] 0.0, 128
        %v727 = vpop.trf.xlu0
        %v728 = vpop.trf.xlu0
        %v729 = vpop.trf.xlu0
        %v730 = vpop.trf.xlu0
        %v731 = vpop.trf.xlu0
        %v732 = vpop.trf.xlu0
        %v733 = vpop.trf.xlu0
        %v734 = vpop.trf.xlu0
        %v735 = vpop.trf.xlu0
        %v736 = vpop.trf.xlu0
        %v737 = vpop.trf.xlu0
        %v738 = vpop.trf.xlu0
        %v739 = vpop.trf.xlu0
        %v740 = vpop.trf.xlu0
        %v741 = vpop.trf.xlu0
        %v742 = vpop.trf.xlu0
        %v743 = vrot.slane %v412, 1
        %v744 = vrot.slane %v412, 2
        %v745 = vrot.slane %v412, 3
        %v746 = vrot.slane %v412, 4
        %v747 = vrot.slane %v412, 5
        %v748 = vrot.slane %v412, 6
        %v749 = vrot.slane %v412, 7
        %v750 = vrot.slane %v413, 1
        %v751 = vrot.slane %v413, 2
        %v752 = vrot.slane %v413, 3
        %v753 = vrot.slane %v413, 4
        %v754 = vrot.slane %v413, 5
        %v755 = vrot.slane %v413, 6
        %v756 = vrot.slane %v413, 7
        %v757 = vperm.slane %v412, 0
        %v758 = vperm.slane %v743, 0
        %v759 = vperm.slane %v744, 0
        %v760 = vperm.slane %v745, 0
        %v761 = vperm.slane %v746, 0
        %v762 = vperm.slane %v747, 0
        %v763 = vperm.slane %v748, 0
        %v764 = vperm.slane %v749, 0
        %v765 = vperm.slane %v413, 0
        %v766 = vperm.slane %v750, 0
        %v767 = vperm.slane %v751, 0
        %v768 = vperm.slane %v752, 0
        %v769 = vperm.slane %v753, 0
        %v770 = vperm.slane %v754, 0
        %v771 = vperm.slane %v755, 0
        %v772 = vperm.slane %v756, 0
        %v789 = vmul.f32 %v757, %v727
        %v790 = vmul.f32 %v758, %v727
        %v791 = vmul.f32 %v759, %v727
        %v792 = vmul.f32 %v760, %v727
        %v793 = vmul.f32 %v761, %v727
        %v794 = vmul.f32 %v762, %v727
        %v795 = vmul.f32 %v763, %v727
        %v796 = vmul.f32 %v764, %v727
        %v797 = vmul.f32 %v765, %v727
        %v798 = vmul.f32 %v766, %v727
        %v799 = vmul.f32 %v767, %v727
        %v800 = vmul.f32 %v768, %v727
        %v801 = vmul.f32 %v769, %v727
        %v802 = vmul.f32 %v770, %v727
        %v803 = vmul.f32 %v771, %v727
        %v804 = vmul.f32 %v772, %v727
        %v806 = vsel %vm424, %v789, 0
        %v809 = vsel %vm424, %v790, 0
        %v812 = vsel %vm424, %v791, 0
        %v815 = vsel %vm424, %v792, 0
        %v818 = vsel %vm424, %v793, 0
        %v821 = vsel %vm424, %v794, 0
        %v824 = vsel %vm424, %v795, 0
        %v827 = vsel %vm424, %v796, 0
        %829 = vmatpush.xpose.msra.mxu0 0.0
        %830 = vmatpush.xpose.msra.mxu0 0.0
        %831 = vmatpush.xpose.msra.mxu0 0.0
        %832 = vmatpush.xpose.msra.mxu0 0.0
        %833 = vmatpush.xpose.msra.mxu0 0.0
        %834 = vmatpush.xpose.msra.mxu0 0.0
        %835 = vmatpush.xpose.msra.mxu0 0.0
        %836 = vmatpush.xpose.msra.mxu0 0.0
        %837 = vmatpush.xpose.msra.mxu0 0.0
        %838 = vmatpush.xpose.msra.mxu0 0.0
        %839 = vmatpush.xpose.msra.mxu0 0.0
        %840 = vmatpush.xpose.msra.mxu0 0.0
        %841 = vmatpush.xpose.msra.mxu0 0.0
        %842 = vmatpush.xpose.msra.mxu0 0.0
        %843 = vmatpush.xpose.msra.mxu0 0.0
        %844 = vmatpush.xpose.msra.mxu0 %v429
        %845 = vmatmul.f32.gmra.mxu0 %v806
        %v846 = vpop.f32.mrf.mxu0
        %v847 = vadd.f32 0.0, %v846
        %848 = vmatmul.f32.gmra.mxu0 %v809
        %v849 = vpop.f32.mrf.mxu0
        %v850 = vadd.f32 0.0, %v849
        %851 = vmatmul.f32.gmra.mxu0 %v812
        %v852 = vpop.f32.mrf.mxu0
        %v853 = vadd.f32 0.0, %v852
        %854 = vmatmul.f32.gmra.mxu0 %v815
        %v855 = vpop.f32.mrf.mxu0
        %v856 = vadd.f32 0.0, %v855
        %857 = vmatmul.f32.gmra.mxu0 %v818
        %v858 = vpop.f32.mrf.mxu0
        %v859 = vadd.f32 0.0, %v858
        %860 = vmatmul.f32.gmra.mxu0 %v821
        %v861 = vpop.f32.mrf.mxu0
        %v862 = vadd.f32 0.0, %v861
        %863 = vmatmul.f32.gmra.mxu0 %v824
        %v864 = vpop.f32.mrf.mxu0
        %v865 = vadd.f32 0.0, %v864
        %866 = vmatmul.f32.gmra.mxu0 %v827
        %v867 = vpop.f32.mrf.mxu0
        %v868 = vadd.f32 0.0, %v867
        %869 = vdwg.mxu0
        %v871 = vsel %vm424, %v797, 0
        %v874 = vsel %vm424, %v798, 0
        %v877 = vsel %vm424, %v799, 0
        %v880 = vsel %vm424, %v800, 0
        %v883 = vsel %vm424, %v801, 0
        %v886 = vsel %vm424, %v802, 0
        %v889 = vsel %vm424, %v803, 0
        %v892 = vsel %vm424, %v804, 0
        %894 = vmatpush.xpose.msra.mxu0 0.0
        %895 = vmatpush.xpose.msra.mxu0 0.0
        %896 = vmatpush.xpose.msra.mxu0 0.0
        %897 = vmatpush.xpose.msra.mxu0 0.0
        %898 = vmatpush.xpose.msra.mxu0 0.0
        %899 = vmatpush.xpose.msra.mxu0 0.0
        %900 = vmatpush.xpose.msra.mxu0 0.0
        %901 = vmatpush.xpose.msra.mxu0 0.0
        %902 = vmatpush.xpose.msra.mxu0 0.0
        %903 = vmatpush.xpose.msra.mxu0 0.0
        %904 = vmatpush.xpose.msra.mxu0 0.0
        %905 = vmatpush.xpose.msra.mxu0 0.0
        %906 = vmatpush.xpose.msra.mxu0 0.0
        %907 = vmatpush.xpose.msra.mxu0 0.0
        %908 = vmatpush.xpose.msra.mxu0 0.0
        %909 = vmatpush.xpose.msra.mxu0 %v455
        %910 = vmatmul.f32.gmra.mxu0 %v871
        %v911 = vpop.f32.mrf.mxu0
        %v912 = vadd.f32 0.0, %v911
        %913 = vmatmul.f32.gmra.mxu0 %v874
        %v914 = vpop.f32.mrf.mxu0
        %v915 = vadd.f32 0.0, %v914
        %916 = vmatmul.f32.gmra.mxu0 %v877
        %v917 = vpop.f32.mrf.mxu0
        %v918 = vadd.f32 0.0, %v917
        %919 = vmatmul.f32.gmra.mxu0 %v880
        %v920 = vpop.f32.mrf.mxu0
        %v921 = vadd.f32 0.0, %v920
        %922 = vmatmul.f32.gmra.mxu0 %v883
        %v923 = vpop.f32.mrf.mxu0
        %v924 = vadd.f32 0.0, %v923
        %925 = vmatmul.f32.gmra.mxu0 %v886
        %v926 = vpop.f32.mrf.mxu0
        %v927 = vadd.f32 0.0, %v926
        %928 = vmatmul.f32.gmra.mxu0 %v889
        %v929 = vpop.f32.mrf.mxu0
        %v930 = vadd.f32 0.0, %v929
        %931 = vmatmul.f32.gmra.mxu0 %v892
        %v932 = vpop.f32.mrf.mxu0
        %v933 = vadd.f32 0.0, %v932
        %934 = vdwg.mxu0
        %935 = vmatpush.msra.mxu0 0.0
        %936 = vmatpush.msra.mxu0 0.0
        %937 = vmatpush.msra.mxu0 0.0
        %938 = vmatpush.msra.mxu0 0.0
        %939 = vmatpush.msra.mxu0 0.0
        %940 = vmatpush.msra.mxu0 0.0
        %941 = vmatpush.msra.mxu0 0.0
        %942 = vmatpush.msra.mxu0 0.0
        %943 = vmatpush.msra.mxu0 0.0
        %944 = vmatpush.msra.mxu0 0.0
        %945 = vmatpush.msra.mxu0 0.0
        %946 = vmatpush.msra.mxu0 0.0
        %947 = vmatpush.msra.mxu0 %v391
        %948 = vmatpush.msra.mxu0 %v390
        %949 = vmatpush.msra.mxu0 %v389
        %950 = vmatpush.msra.mxu0 %v388
        %951 = vmatmul.f32.gmra.mxu0 %v599
        %v952 = vpop.f32.mrf.mxu0
        %v953 = vadd.f32 0.0, %v952
        %954 = vmatmul.f32.gmra.mxu0 %v602
        %v955 = vpop.f32.mrf.mxu0
        %v956 = vadd.f32 0.0, %v955
        %957 = vdwg.mxu0
        %v958 = vmax.f32 %v953, 1e-06
        %v959 = vmax.f32 %v956, 1e-06
        %v960 = vrsqrt.pop %v958
        %v961 = vmul.f32 %v960, %v958
        %v962 = vmul.f32 %v961, %v960
        %v963 = vmul.f32 0.5, %v962
        %v964 = vsub.f32 1.5, %v963
        %v965 = vmul.f32 %v960, %v964
        %vm966 = vweird.f32 %v958
        %vm967 = vweird.f32 %v960
        %vm968 = vmor %vm966, %vm967
        %v969 = vsel %vm968, %v960, %v965
        %v970 = vrsqrt.pop %v959
        %v971 = vmul.f32 %v970, %v959
        %v972 = vmul.f32 %v971, %v970
        %v973 = vmul.f32 0.5, %v972
        %v974 = vsub.f32 1.5, %v973
        %v975 = vmul.f32 %v970, %v974
        %vm976 = vweird.f32 %v959
        %vm977 = vweird.f32 %v970
        %vm978 = vmor %vm976, %vm977
        %v979 = vsel %vm978, %v970, %v975
        %v980 = vrot.slane %v422, 2
        %v981 = vrot.slane %v422, 4
        %v982 = vrot.slane %v423, 2
        %983 = vst [vmem:[#allocation1] ss:$4 sm:$0xff] %v422
        %s984 = scalar_lea.vmem [#allocation1], 1
        %985 = vst [vmem:[%s984] ss:$4 sm:$0xff] %v980
        %s986 = scalar_lea.vmem [#allocation1], 2
        %987 = vst [vmem:[%s986] ss:$4 sm:$0xff] %v981
        %s988 = scalar_lea.vmem [#allocation1], 3
        %989 = vst [vmem:[%s988] ss:$4 sm:$0xff] %v423
        %s990 = scalar_lea.vmem [#allocation1], 32
        %991 = vst [vmem:[%s990] ss:$4 sm:$0xff] %v982
        %s992 = scalar_lea.vmem [#allocation1], 33
        %993 = vst [vmem:[%s992] ss:$4 sm:$0xff] %v654
        %v994 = vld.sshfl [vmem:[#allocation1] sm:$0xff pattern:$0x73625140]
        %v995 = vld.sshfl [vmem:[#allocation1 + $0x20] sm:$0xff pattern:$0x73625140]
        %v996 = vsel %vm424, %v994, 0
        %v998 = vsel %vm424, %v995, 0
        %1000 = vmatpush.msra.mxu0 0.0
        %1001 = vmatpush.msra.mxu0 0.0
        %1002 = vmatpush.msra.mxu0 0.0
        %1003 = vmatpush.msra.mxu0 0.0
        %1004 = vmatpush.msra.mxu0 0.0
        %1005 = vmatpush.msra.mxu0 0.0
        %1006 = vmatpush.msra.mxu0 0.0
        %1007 = vmatpush.msra.mxu0 0.0
        %1008 = vmatpush.msra.mxu0 0.0
        %1009 = vmatpush.msra.mxu0 0.0
        %1010 = vmatpush.msra.mxu0 0.0
        %1011 = vmatpush.msra.mxu0 0.0
        %1012 = vmatpush.msra.mxu0 %v391
        %1013 = vmatpush.msra.mxu0 %v390
        %1014 = vmatpush.msra.mxu0 %v389
        %1015 = vmatpush.msra.mxu0 %v388
        %1016 = vmatmul.f32.gmra.mxu0 %v996
        %v1017 = vpop.f32.mrf.mxu0
        %v1018 = vadd.f32 0.0, %v1017
        %1019 = vmatmul.f32.gmra.mxu0 %v998
        %v1020 = vpop.f32.mrf.mxu0
        %v1021 = vadd.f32 0.0, %v1020
        %1022 = vdwg.mxu0
        %v1025 = vrot.slane %v1018, 2
        %v1026 = vrot.slane %v1018, 4
        %v1027 = vrot.slane %v1018, 6
        %v1028 = vrot.slane %v1021, 2
        %v1033 = vmax.f32 %v1018, 1e-06
        %v1034 = vmax.f32 %v1025, 1e-06
        %v1035 = vmax.f32 %v1026, 1e-06
        %v1036 = vmax.f32 %v1027, 1e-06
        %v1037 = vmax.f32 %v1021, 1e-06
        %v1038 = vmax.f32 %v1028, 1e-06
        %v1039 = vrsqrt.pop %v1033
        %v1040 = vmul.f32 %v1039, %v1033
        %v1041 = vmul.f32 %v1040, %v1039
        %v1042 = vmul.f32 0.5, %v1041
        %v1043 = vsub.f32 1.5, %v1042
        %v1044 = vmul.f32 %v1039, %v1043
        %vm1045 = vweird.f32 %v1033
        %vm1046 = vweird.f32 %v1039
        %vm1047 = vmor %vm1045, %vm1046
        %v1048 = vsel %vm1047, %v1039, %v1044
        %v1049 = vrsqrt.pop %v1034
        %v1050 = vmul.f32 %v1049, %v1034
        %v1051 = vmul.f32 %v1050, %v1049
        %v1052 = vmul.f32 0.5, %v1051
        %v1053 = vsub.f32 1.5, %v1052
        %v1054 = vmul.f32 %v1049, %v1053
        %vm1055 = vweird.f32 %v1034
        %vm1056 = vweird.f32 %v1049
        %vm1057 = vmor %vm1055, %vm1056
        %v1058 = vsel %vm1057, %v1049, %v1054
        %v1059 = vrsqrt.pop %v1035
        %v1060 = vmul.f32 %v1059, %v1035
        %v1061 = vmul.f32 %v1060, %v1059
        %v1062 = vmul.f32 0.5, %v1061
        %v1063 = vsub.f32 1.5, %v1062
        %v1064 = vmul.f32 %v1059, %v1063
        %vm1065 = vweird.f32 %v1035
        %vm1066 = vweird.f32 %v1059
        %vm1067 = vmor %vm1065, %vm1066
        %v1068 = vsel %vm1067, %v1059, %v1064
        %v1069 = vrsqrt.pop %v1036
        %v1070 = vmul.f32 %v1069, %v1036
        %v1071 = vmul.f32 %v1070, %v1069
        %v1072 = vmul.f32 0.5, %v1071
        %v1073 = vsub.f32 1.5, %v1072
        %v1074 = vmul.f32 %v1069, %v1073
        %vm1075 = vweird.f32 %v1036
        %vm1076 = vweird.f32 %v1069
        %vm1077 = vmor %vm1075, %vm1076
        %v1078 = vsel %vm1077, %v1069, %v1074
        %v1079 = vrsqrt.pop %v1037
        %v1080 = vmul.f32 %v1079, %v1037
        %v1081 = vmul.f32 %v1080, %v1079
        %v1082 = vmul.f32 0.5, %v1081
        %v1083 = vsub.f32 1.5, %v1082
        %v1084 = vmul.f32 %v1079, %v1083
        %vm1085 = vweird.f32 %v1037
        %vm1086 = vweird.f32 %v1079
        %vm1087 = vmor %vm1085, %vm1086
        %v1088 = vsel %vm1087, %v1079, %v1084
        %v1089 = vrsqrt.pop %v1038
        %v1090 = vmul.f32 %v1089, %v1038
        %v1091 = vmul.f32 %v1090, %v1089
        %v1092 = vmul.f32 0.5, %v1091
        %v1093 = vsub.f32 1.5, %v1092
        %v1094 = vmul.f32 %v1089, %v1093
        %vm1095 = vweird.f32 %v1038
        %vm1096 = vweird.f32 %v1089
        %vm1097 = vmor %vm1095, %vm1096
        %v1098 = vsel %vm1097, %v1089, %v1094
        %v1099 = vperm.slane %v969, 0
        %v1100 = vlaneseq
        %v1101 = vshrl.u32 %v1100, 7
        %1103 = vset.pattern.permute.xlu0 %v1101
        %1104 = vperm.xlu0 %1103, %v1099
        %v1105 = vpop.permute.xlu0 %1104
        %v1106 = vperm.slane %v969, 1
        %v1107 = vlaneseq
        %v1108 = vshrl.u32 %v1107, 7
        %1110 = vset.pattern.permute.xlu0 %v1108
        %1111 = vperm.xlu0 %1110, %v1106
        %v1112 = vpop.permute.xlu0 %1111
        %v1113 = vperm.slane %v969, 2
        %v1114 = vlaneseq
        %v1115 = vshrl.u32 %v1114, 7
        %1117 = vset.pattern.permute.xlu0 %v1115
        %1118 = vperm.xlu0 %1117, %v1113
        %v1119 = vpop.permute.xlu0 %1118
        %v1120 = vperm.slane %v969, 3
        %v1121 = vlaneseq
        %v1122 = vshrl.u32 %v1121, 7
        %1124 = vset.pattern.permute.xlu0 %v1122
        %1125 = vperm.xlu0 %1124, %v1120
        %v1126 = vpop.permute.xlu0 %1125
        %v1127 = vperm.slane %v969, 4
        %v1128 = vlaneseq
        %v1129 = vshrl.u32 %v1128, 7
        %1131 = vset.pattern.permute.xlu0 %v1129
        %1132 = vperm.xlu0 %1131, %v1127
        %v1133 = vpop.permute.xlu0 %1132
        %v1134 = vperm.slane %v969, 5
        %v1135 = vlaneseq
        %v1136 = vshrl.u32 %v1135, 7
        %1138 = vset.pattern.permute.xlu0 %v1136
        %1139 = vperm.xlu0 %1138, %v1134
        %v1140 = vpop.permute.xlu0 %1139
        %v1141 = vperm.slane %v969, 6
        %v1142 = vlaneseq
        %v1143 = vshrl.u32 %v1142, 7
        %1145 = vset.pattern.permute.xlu0 %v1143
        %1146 = vperm.xlu0 %1145, %v1141
        %v1147 = vpop.permute.xlu0 %1146
        %v1148 = vperm.slane %v969, 7
        %v1149 = vlaneseq
        %v1150 = vshrl.u32 %v1149, 7
        %1152 = vset.pattern.permute.xlu0 %v1150
        %1153 = vperm.xlu0 %1152, %v1148
        %v1154 = vpop.permute.xlu0 %1153
        %v1155 = vperm.slane %v979, 0
        %v1156 = vlaneseq
        %v1157 = vshrl.u32 %v1156, 7
        %1159 = vset.pattern.permute.xlu0 %v1157
        %1160 = vperm.xlu0 %1159, %v1155
        %v1161 = vpop.permute.xlu0 %1160
        %v1162 = vperm.slane %v979, 1
        %v1163 = vlaneseq
        %v1164 = vshrl.u32 %v1163, 7
        %1166 = vset.pattern.permute.xlu0 %v1164
        %1167 = vperm.xlu0 %1166, %v1162
        %v1168 = vpop.permute.xlu0 %1167
        %v1169 = vperm.slane %v979, 2
        %v1170 = vlaneseq
        %v1171 = vshrl.u32 %v1170, 7
        %1173 = vset.pattern.permute.xlu0 %v1171
        %1174 = vperm.xlu0 %1173, %v1169
        %v1175 = vpop.permute.xlu0 %1174
        %v1176 = vperm.slane %v979, 3
        %v1177 = vlaneseq
        %v1178 = vshrl.u32 %v1177, 7
        %1180 = vset.pattern.permute.xlu0 %v1178
        %1181 = vperm.xlu0 %1180, %v1176
        %v1182 = vpop.permute.xlu0 %1181
        %v1183 = vperm.slane %v979, 4
        %v1184 = vlaneseq
        %v1185 = vshrl.u32 %v1184, 7
        %1187 = vset.pattern.permute.xlu0 %v1185
        %1188 = vperm.xlu0 %1187, %v1183
        %v1189 = vpop.permute.xlu0 %1188
        %v1190 = vperm.slane %v979, 5
        %v1191 = vlaneseq
        %v1192 = vshrl.u32 %v1191, 7
        %1194 = vset.pattern.permute.xlu0 %v1192
        %1195 = vperm.xlu0 %1194, %v1190
        %v1196 = vpop.permute.xlu0 %1195
        %v1197 = vperm.slane %v979, 6
        %v1198 = vlaneseq
        %v1199 = vshrl.u32 %v1198, 7
        %1201 = vset.pattern.permute.xlu0 %v1199
        %1202 = vperm.xlu0 %1201, %v1197
        %v1203 = vpop.permute.xlu0 %1202
        %v1204 = vperm.slane %v979, 7
        %v1205 = vlaneseq
        %v1206 = vshrl.u32 %v1205, 7
        %1208 = vset.pattern.permute.xlu0 %v1206
        %1209 = vperm.xlu0 %1208, %v1204
        %v1210 = vpop.permute.xlu0 %1209
        %v1211 = vmul.f32 %v847, %v1105
        %v1212 = vmul.f32 %v850, %v1112
        %v1213 = vmul.f32 %v853, %v1119
        %v1214 = vmul.f32 %v856, %v1126
        %v1215 = vmul.f32 %v859, %v1133
        %v1216 = vmul.f32 %v862, %v1140
        %v1217 = vmul.f32 %v865, %v1147
        %v1218 = vmul.f32 %v868, %v1154
        %v1219 = vmul.f32 %v912, %v1161
        %v1220 = vmul.f32 %v915, %v1168
        %v1221 = vmul.f32 %v918, %v1175
        %v1222 = vmul.f32 %v921, %v1182
        %v1223 = vmul.f32 %v924, %v1189
        %v1224 = vmul.f32 %v927, %v1196
        %v1225 = vmul.f32 %v930, %v1203
        %v1226 = vmul.f32 %v933, %v1210
        %1233 = vst [vmem:[#allocation1] ss:$4 sm:$0xff] %v1048
        %s1234 = scalar_lea.vmem [#allocation1], 1
        %1235 = vst [vmem:[%s1234] ss:$4 sm:$0xff] %v1058
        %s1236 = scalar_lea.vmem [#allocation1], 2
        %1237 = vst [vmem:[%s1236] ss:$4 sm:$0xff] %v1068
        %v1238 = vld.sshfl [vmem:[#allocation1] sm:$0xff pattern:$0x73625140]
        %s1239 = scalar_lea.vmem [#allocation1], 32
        %1240 = vst [vmem:[%s1239] ss:$4 sm:$0xff] %v1078
        %s1241 = scalar_lea.vmem [#allocation1], 33
        %1242 = vst [vmem:[%s1241] ss:$4 sm:$0xff] %v1088
        %s1243 = scalar_lea.vmem [#allocation1], 34
        %1244 = vst [vmem:[%s1243] ss:$4 sm:$0xff] %v1098
        %v1245 = vld.sshfl [vmem:[#allocation1 + $0x20] sm:$0xff pattern:$0x73625140]
        %1248 = vxpose.xlu0.b32.start [1/16] %v1238, 128
        %1249 = vxpose.xlu0.b32.cont [2/16] 0.0, 128
        %1250 = vxpose.xlu0.b32.cont [3/16] 0.0, 128
        %1251 = vxpose.xlu0.b32.cont [4/16] 0.0, 128
        %1252 = vxpose.xlu0.b32.cont [5/16] 0.0, 128
        %1253 = vxpose.xlu0.b32.cont [6/16] 0.0, 128
        %1254 = vxpose.xlu0.b32.cont [7/16] 0.0, 128
        %1255 = vxpose.xlu0.b32.cont [8/16] 0.0, 128
        %1256 = vxpose.xlu0.b32.cont [9/16] 0.0, 128
        %1257 = vxpose.xlu0.b32.cont [10/16] 0.0, 128
        %1258 = vxpose.xlu0.b32.cont [11/16] 0.0, 128
        %1259 = vxpose.xlu0.b32.cont [12/16] 0.0, 128
        %1260 = vxpose.xlu0.b32.cont [13/16] 0.0, 128
        %1261 = vxpose.xlu0.b32.cont [14/16] 0.0, 128
        %1262 = vxpose.xlu0.b32.cont [15/16] 0.0, 128
        %1263 = vxpose.xlu0.b32.end [16/16] 0.0, 128
        %v1264 = vpop.trf.xlu0
        %v1265 = vpop.trf.xlu0
        %v1266 = vpop.trf.xlu0
        %v1267 = vpop.trf.xlu0
        %v1268 = vpop.trf.xlu0
        %v1269 = vpop.trf.xlu0
        %v1270 = vpop.trf.xlu0
        %v1271 = vpop.trf.xlu0
        %v1272 = vpop.trf.xlu0
        %v1273 = vpop.trf.xlu0
        %v1274 = vpop.trf.xlu0
        %v1275 = vpop.trf.xlu0
        %v1276 = vpop.trf.xlu0
        %v1277 = vpop.trf.xlu0
        %v1278 = vpop.trf.xlu0
        %v1279 = vpop.trf.xlu0
        %1280 = vxpose.xlu0.b32.start [1/16] %v1245, 128
        %1281 = vxpose.xlu0.b32.cont [2/16] 0.0, 128
        %1282 = vxpose.xlu0.b32.cont [3/16] 0.0, 128
        %1283 = vxpose.xlu0.b32.cont [4/16] 0.0, 128
        %1284 = vxpose.xlu0.b32.cont [5/16] 0.0, 128
        %1285 = vxpose.xlu0.b32.cont [6/16] 0.0, 128
        %1286 = vxpose.xlu0.b32.cont [7/16] 0.0, 128
        %1287 = vxpose.xlu0.b32.cont [8/16] 0.0, 128
        %1288 = vxpose.xlu0.b32.cont [9/16] 0.0, 128
        %1289 = vxpose.xlu0.b32.cont [10/16] 0.0, 128
        %1290 = vxpose.xlu0.b32.cont [11/16] 0.0, 128
        %1291 = vxpose.xlu0.b32.cont [12/16] 0.0, 128
        %1292 = vxpose.xlu0.b32.cont [13/16] 0.0, 128
        %1293 = vxpose.xlu0.b32.cont [14/16] 0.0, 128
        %1294 = vxpose.xlu0.b32.cont [15/16] 0.0, 128
        %1295 = vxpose.xlu0.b32.end [16/16] 0.0, 128
        %v1296 = vpop.trf.xlu0
        %v1297 = vpop.trf.xlu0
        %v1298 = vpop.trf.xlu0
        %v1299 = vpop.trf.xlu0
        %v1300 = vpop.trf.xlu0
        %v1301 = vpop.trf.xlu0
        %v1302 = vpop.trf.xlu0
        %v1303 = vpop.trf.xlu0
        %v1304 = vpop.trf.xlu0
        %v1305 = vpop.trf.xlu0
        %v1306 = vpop.trf.xlu0
        %v1307 = vpop.trf.xlu0
        %v1308 = vpop.trf.xlu0
        %v1309 = vpop.trf.xlu0
        %v1310 = vpop.trf.xlu0
        %v1311 = vpop.trf.xlu0
        %v1312 = vmul.f32 %v1211, %v1264
        %v1313 = vmul.f32 %v1212, %v1264
        %v1314 = vmul.f32 %v1213, %v1264
        %v1315 = vmul.f32 %v1214, %v1264
        %v1316 = vmul.f32 %v1215, %v1264
        %v1317 = vmul.f32 %v1216, %v1264
        %v1318 = vmul.f32 %v1217, %v1264
        %v1319 = vmul.f32 %v1218, %v1264
        %v1320 = vmul.f32 %v1219, %v1296
        %v1321 = vmul.f32 %v1220, %v1296
        %v1322 = vmul.f32 %v1221, %v1296
        %v1323 = vmul.f32 %v1222, %v1296
        %v1324 = vmul.f32 %v1223, %v1296
        %v1325 = vmul.f32 %v1224, %v1296
        %v1326 = vmul.f32 %v1225, %v1296
        %v1327 = vmul.f32 %v1226, %v1296
        %vm1328 = vcmask 48128
        %v1329 = vsel %vm1328, %v1312, -inf
        %1330 = vmax.xlane.f32.xlu0 %v1329
        %v1331 = vpop.xlane.xlu0 %1330
        %v1332 = vsel %vm1328, %v1313, -inf
        %1333 = vmax.xlane.f32.xlu0 %v1332
        %v1334 = vpop.xlane.xlu0 %1333
        %v1335 = vsel %vm1328, %v1314, -inf
        %1336 = vmax.xlane.f32.xlu0 %v1335
        %v1337 = vpop.xlane.xlu0 %1336
        %v1338 = vsel %vm1328, %v1315, -inf
        %1339 = vmax.xlane.f32.xlu0 %v1338
        %v1340 = vpop.xlane.xlu0 %1339
        %v1341 = vsel %vm1328, %v1316, -inf
        %1342 = vmax.xlane.f32.xlu0 %v1341
        %v1343 = vpop.xlane.xlu0 %1342
        %v1344 = vsel %vm1328, %v1317, -inf
        %1345 = vmax.xlane.f32.xlu0 %v1344
        %v1346 = vpop.xlane.xlu0 %1345
        %v1347 = vsel %vm1328, %v1318, -inf
        %1348 = vmax.xlane.f32.xlu0 %v1347
        %v1349 = vpop.xlane.xlu0 %1348
        %v1350 = vsel %vm1328, %v1319, -inf
        %1351 = vmax.xlane.f32.xlu0 %v1350
        %v1352 = vpop.xlane.xlu0 %1351
        %v1353 = vsel %vm1328, %v1320, -inf
        %1354 = vmax.xlane.f32.xlu0 %v1353
        %v1355 = vpop.xlane.xlu0 %1354
        %v1356 = vsel %vm1328, %v1321, -inf
        %1357 = vmax.xlane.f32.xlu0 %v1356
        %v1358 = vpop.xlane.xlu0 %1357
        %v1359 = vsel %vm1328, %v1322, -inf
        %1360 = vmax.xlane.f32.xlu0 %v1359
        %v1361 = vpop.xlane.xlu0 %1360
        %v1362 = vsel %vm1328, %v1323, -inf
        %1363 = vmax.xlane.f32.xlu0 %v1362
        %v1364 = vpop.xlane.xlu0 %1363
        %v1365 = vsel %vm1328, %v1324, -inf
        %1366 = vmax.xlane.f32.xlu0 %v1365
        %v1367 = vpop.xlane.xlu0 %1366
        %v1368 = vsel %vm1328, %v1325, -inf
        %1369 = vmax.xlane.f32.xlu0 %v1368
        %v1370 = vpop.xlane.xlu0 %1369
        %v1371 = vsel %vm1328, %v1326, -inf
        %1372 = vmax.xlane.f32.xlu0 %v1371
        %v1373 = vpop.xlane.xlu0 %1372
        %v1374 = vsel %vm1328, %v1327, -inf
        %1375 = vmax.xlane.f32.xlu0 %v1374
        %v1376 = vpop.xlane.xlu0 %1375
        %v1378 = vsel %vm1328, %v563, 0
        %vm1380 = vcmask 1045504
        %v1381 = vsel %vm1380, %v416, 0
        %1383 = vmatpush.msra.mxu0 0.0
        %1384 = vmatpush.msra.mxu0 0.0
        %1385 = vmatpush.msra.mxu0 0.0
        %1386 = vmatpush.msra.mxu0 0.0
        %1387 = vmatpush.msra.mxu0 0.0
        %1388 = vmatpush.msra.mxu0 0.0
        %1389 = vmatpush.msra.mxu0 0.0
        %1390 = vmatpush.msra.mxu0 0.0
        %1391 = vmatpush.msra.mxu0 0.0
        %1392 = vmatpush.msra.mxu0 0.0
        %1393 = vmatpush.msra.mxu0 0.0
        %1394 = vmatpush.msra.mxu0 0.0
        %1395 = vmatpush.msra.mxu0 0.0
        %1396 = vmatpush.msra.mxu0 0.0
        %1397 = vmatpush.msra.mxu0 0.0
        %1398 = vmatpush.msra.mxu0 %v1381
        %1399 = vmatmul.f32.gmra.mxu0 %v1378
        %v1400 = vpop.f32.mrf.mxu0
        %v1401 = vadd.f32 0.0, %v1400
        %1402 = vdwg.mxu0
        %v1404 = vsel %vm1328, %v564, 0
        %v1406 = vsel %vm1380, %v417, 0
        %1408 = vmatpush.msra.mxu0 0.0
        %1409 = vmatpush.msra.mxu0 0.0
        %1410 = vmatpush.msra.mxu0 0.0
        %1411 = vmatpush.msra.mxu0 0.0
        %1412 = vmatpush.msra.mxu0 0.0
        %1413 = vmatpush.msra.mxu0 0.0
        %1414 = vmatpush.msra.mxu0 0.0
        %1415 = vmatpush.msra.mxu0 0.0
        %1416 = vmatpush.msra.mxu0 0.0
        %1417 = vmatpush.msra.mxu0 0.0
        %1418 = vmatpush.msra.mxu0 0.0
        %1419 = vmatpush.msra.mxu0 0.0
        %1420 = vmatpush.msra.mxu0 0.0
        %1421 = vmatpush.msra.mxu0 0.0
        %1422 = vmatpush.msra.mxu0 0.0
        %1423 = vmatpush.msra.mxu0 %v1406
        %1424 = vmatmul.f32.gmra.mxu0 %v1404
        %v1425 = vpop.f32.mrf.mxu0
        %v1426 = vadd.f32 0.0, %v1425
        %1427 = vdwg.mxu0
        %v1428 = vsel %vm1328, %v563, 0.0
        %1429 = vadd.xlane.f32.xlu0 %v1428
        %v1430 = vpop.xlane.xlu0 %1429
        %v1431 = vsel %vm1328, %v564, 0.0
        %1432 = vadd.xlane.f32.xlu0 %v1431
        %v1433 = vpop.xlane.xlu0 %1432
        %v1434 = vadd.f32 %v1430, 1e-06
        %v1435 = vadd.f32 %v1433, 1e-06
        %v1436 = vrcp.pop %v1434
        %v1437 = vmul.f32 %v1434, %v1436
        %v1438 = vsub.f32 1.0, %v1437
        %v1439 = vmul.f32 %v1436, %v1438
        %v1440 = vadd.f32 %v1436, %v1439
        %vm1441 = vweird.f32 %v1434
        %vm1442 = vweird.f32 %v1436
        %vm1443 = vmor %vm1441, %vm1442
        %v1444 = vsel %vm1443, %v1436, %v1440
        %v1445 = vand.u32 2147483647, %v1434
        %vm1446 = vcmp.eq.f32.partialorder %v1445, 8.507059e+37
        %v1447 = vand.u32 %v1434, 2147483648
        %v1448 = vor.u32 1.1754944e-38, %v1447
        %v1449 = vsel %vm1446, %v1448, %v1444
        %v1450 = vmul.f32 1.0, %v1449
        %v1451 = vrcp.pop %v1435
        %v1452 = vmul.f32 %v1435, %v1451
        %v1453 = vsub.f32 1.0, %v1452
        %v1454 = vmul.f32 %v1451, %v1453
        %v1455 = vadd.f32 %v1451, %v1454
        %vm1456 = vweird.f32 %v1435
        %vm1457 = vweird.f32 %v1451
        %vm1458 = vmor %vm1456, %vm1457
        %v1459 = vsel %vm1458, %v1451, %v1455
        %v1460 = vand.u32 2147483647, %v1435
        %vm1461 = vcmp.eq.f32.partialorder %v1460, 8.507059e+37
        %v1462 = vand.u32 %v1435, 2147483648
        %v1463 = vor.u32 1.1754944e-38, %v1462
        %v1464 = vsel %vm1461, %v1463, %v1459
        %v1465 = vmul.f32 1.0, %v1464
        %v1466 = vmul.f32 %v1401, %v1450
        %v1467 = vmul.f32 %v1426, %v1465
        %v1468 = vmul.f32 %v412, %v1466
        %v1469 = vmul.f32 %v413, %v1467
        %v1471 = vsel %vm424, %v1468, 0
        %v1474 = vsel %vm424, %v1469, 0
        %1476 = vmatpush.msra.mxu0 0.0
        %1477 = vmatpush.msra.mxu0 0.0
        %1478 = vmatpush.msra.mxu0 0.0
        %1479 = vmatpush.msra.mxu0 0.0
        %1480 = vmatpush.msra.mxu0 0.0
        %1481 = vmatpush.msra.mxu0 0.0
        %1482 = vmatpush.msra.mxu0 0.0
        %1483 = vmatpush.msra.mxu0 0.0
        %1484 = vmatpush.msra.mxu0 0.0
        %1485 = vmatpush.msra.mxu0 0.0
        %1486 = vmatpush.msra.mxu0 0.0
        %1487 = vmatpush.msra.mxu0 0.0
        %1488 = vmatpush.msra.mxu0 %v399
        %1489 = vmatpush.msra.mxu0 %v398
        %1490 = vmatpush.msra.mxu0 %v397
        %1491 = vmatpush.msra.mxu0 %v396
        %1492 = vmatmul.f32.gmra.mxu0 %v1471
        %v1493 = vpop.f32.mrf.mxu0
        %v1494 = vadd.f32 0.0, %v1493
        %1495 = vmatmul.f32.gmra.mxu0 %v1474
        %v1496 = vpop.f32.mrf.mxu0
        %v1497 = vadd.f32 0.0, %v1496
        %1498 = vdwg.mxu0
        %1499 = vmatpush.msra.mxu0 0.0
        %1500 = vmatpush.msra.mxu0 0.0
        %1501 = vmatpush.msra.mxu0 0.0
        %1502 = vmatpush.msra.mxu0 0.0
        %1503 = vmatpush.msra.mxu0 0.0
        %1504 = vmatpush.msra.mxu0 0.0
        %1505 = vmatpush.msra.mxu0 0.0
        %1506 = vmatpush.msra.mxu0 0.0
        %1507 = vmatpush.msra.mxu0 0.0
        %1508 = vmatpush.msra.mxu0 0.0
        %1509 = vmatpush.msra.mxu0 0.0
        %1510 = vmatpush.msra.mxu0 0.0
        %1511 = vmatpush.msra.mxu0 %v399
        %1512 = vmatpush.msra.mxu0 %v398
        %1513 = vmatpush.msra.mxu0 %v397
        %1514 = vmatpush.msra.mxu0 %v396
        %1515 = vmatmul.f32.gmra.mxu0 %v599
        %v1516 = vpop.f32.mrf.mxu0
        %v1517 = vadd.f32 0.0, %v1516
        %1518 = vmatmul.f32.gmra.mxu0 %v602
        %v1519 = vpop.f32.mrf.mxu0
        %v1520 = vadd.f32 0.0, %v1519
        %1521 = vdwg.mxu0
        %v1522 = vmax.f32 %v1517, 1e-06
        %v1523 = vmax.f32 %v1520, 1e-06
        %v1524 = vrsqrt.pop %v1522
        %v1525 = vmul.f32 %v1524, %v1522
        %v1526 = vmul.f32 %v1525, %v1524
        %v1527 = vmul.f32 0.5, %v1526
        %v1528 = vsub.f32 1.5, %v1527
        %v1529 = vmul.f32 %v1524, %v1528
        %vm1530 = vweird.f32 %v1522
        %vm1531 = vweird.f32 %v1524
        %vm1532 = vmor %vm1530, %vm1531
        %v1533 = vsel %vm1532, %v1524, %v1529
        %v1534 = vrsqrt.pop %v1523
        %v1535 = vmul.f32 %v1534, %v1523
        %v1536 = vmul.f32 %v1535, %v1534
        %v1537 = vmul.f32 0.5, %v1536
        %v1538 = vsub.f32 1.5, %v1537
        %v1539 = vmul.f32 %v1534, %v1538
        %vm1540 = vweird.f32 %v1523
        %vm1541 = vweird.f32 %v1534
        %vm1542 = vmor %vm1540, %vm1541
        %v1543 = vsel %vm1542, %v1534, %v1539
        %v1544 = vmul.f32 %v1494, %v1533
        %v1545 = vmul.f32 %v1497, %v1543
        %v1546 = vmul.f32 %v1466, %v1466
        %v1547 = vmul.f32 %v1467, %v1467
        %v1549 = vsel %vm424, %v1546, 0
        %v1552 = vsel %vm424, %v1547, 0
        %1554 = vmatpush.msra.mxu0 0.0
        %1555 = vmatpush.msra.mxu0 0.0
        %1556 = vmatpush.msra.mxu0 0.0
        %1557 = vmatpush.msra.mxu0 0.0
        %1558 = vmatpush.msra.mxu0 0.0
        %1559 = vmatpush.msra.mxu0 0.0
        %1560 = vmatpush.msra.mxu0 0.0
        %1561 = vmatpush.msra.mxu0 0.0
        %1562 = vmatpush.msra.mxu0 0.0
        %1563 = vmatpush.msra.mxu0 0.0
        %1564 = vmatpush.msra.mxu0 0.0
        %1565 = vmatpush.msra.mxu0 0.0
        %1566 = vmatpush.msra.mxu0 %v399
        %1567 = vmatpush.msra.mxu0 %v398
        %1568 = vmatpush.msra.mxu0 %v397
        %1569 = vmatpush.msra.mxu0 %v396
        %1570 = vmatmul.f32.gmra.mxu0 %v1549
        %v1571 = vpop.f32.mrf.mxu0
        %v1572 = vadd.f32 0.0, %v1571
        %1573 = vmatmul.f32.gmra.mxu0 %v1552
        %v1574 = vpop.f32.mrf.mxu0
        %v1575 = vadd.f32 0.0, %v1574
        %1576 = vdwg.mxu0
        %v1577 = vmax.f32 %v1572, 1e-06
        %v1578 = vmax.f32 %v1575, 1e-06
        %v1579 = vrsqrt.pop %v1577
        %v1580 = vmul.f32 %v1579, %v1577
        %v1581 = vmul.f32 %v1580, %v1579
        %v1582 = vmul.f32 0.5, %v1581
        %v1583 = vsub.f32 1.5, %v1582
        %v1584 = vmul.f32 %v1579, %v1583
        %vm1585 = vweird.f32 %v1577
        %vm1586 = vweird.f32 %v1579
        %vm1587 = vmor %vm1585, %vm1586
        %v1588 = vsel %vm1587, %v1579, %v1584
        %v1589 = vrsqrt.pop %v1578
        %v1590 = vmul.f32 %v1589, %v1578
        %v1591 = vmul.f32 %v1590, %v1589
        %v1592 = vmul.f32 0.5, %v1591
        %v1593 = vsub.f32 1.5, %v1592
        %v1594 = vmul.f32 %v1589, %v1593
        %vm1595 = vweird.f32 %v1578
        %vm1596 = vweird.f32 %v1589
        %vm1597 = vmor %vm1595, %vm1596
        %v1598 = vsel %vm1597, %v1589, %v1594
        %v1599 = vmul.f32 %v1544, %v1588
        %v1600 = vmul.f32 %v1545, %v1598
        %v1601 = vmul.f32 %v414, %v414
        %v1602 = vmul.f32 %v415, %v415
        %v1603 = vmul.f32 %v418, %v418
        %v1604 = vmul.f32 %v419, %v419
        %v1606 = vsel %vm424, %v414, 0
        %v1609 = vsel %vm424, %v418, 0
        %1611 = vmatpush.xpose.msra.mxu0 0.0
        %1612 = vmatpush.xpose.msra.mxu0 0.0
        %1613 = vmatpush.xpose.msra.mxu0 0.0
        %1614 = vmatpush.xpose.msra.mxu0 0.0
        %1615 = vmatpush.xpose.msra.mxu0 0.0
        %1616 = vmatpush.xpose.msra.mxu0 0.0
        %1617 = vmatpush.xpose.msra.mxu0 0.0
        %1618 = vmatpush.xpose.msra.mxu0 0.0
        %1619 = vmatpush.xpose.msra.mxu0 0.0
        %1620 = vmatpush.xpose.msra.mxu0 0.0
        %1621 = vmatpush.xpose.msra.mxu0 0.0
        %1622 = vmatpush.xpose.msra.mxu0 0.0
        %1623 = vmatpush.xpose.msra.mxu0 0.0
        %1624 = vmatpush.xpose.msra.mxu0 0.0
        %1625 = vmatpush.xpose.msra.mxu0 0.0
        %1626 = vmatpush.xpose.msra.mxu0 %v1609
        %1627 = vmatmul.f32.gmra.mxu0 %v1606
        %v1628 = vpop.f32.mrf.mxu0
        %v1629 = vadd.f32 0.0, %v1628
        %1630 = vdwg.mxu0
        %v1632 = vsel %vm424, %v415, 0
        %v1635 = vsel %vm424, %v419, 0
        %1637 = vmatpush.xpose.msra.mxu0 0.0
        %1638 = vmatpush.xpose.msra.mxu0 0.0
        %1639 = vmatpush.xpose.msra.mxu0 0.0
        %1640 = vmatpush.xpose.msra.mxu0 0.0
        %1641 = vmatpush.xpose.msra.mxu0 0.0
        %1642 = vmatpush.xpose.msra.mxu0 0.0
        %1643 = vmatpush.xpose.msra.mxu0 0.0
        %1644 = vmatpush.xpose.msra.mxu0 0.0
        %1645 = vmatpush.xpose.msra.mxu0 0.0
        %1646 = vmatpush.xpose.msra.mxu0 0.0
        %1647 = vmatpush.xpose.msra.mxu0 0.0
        %1648 = vmatpush.xpose.msra.mxu0 0.0
        %1649 = vmatpush.xpose.msra.mxu0 0.0
        %1650 = vmatpush.xpose.msra.mxu0 0.0
        %1651 = vmatpush.xpose.msra.mxu0 0.0
        %1652 = vmatpush.xpose.msra.mxu0 %v1635
        %1653 = vmatmul.f32.gmra.mxu0 %v1632
        %v1654 = vpop.f32.mrf.mxu0
        %v1655 = vadd.f32 0.0, %v1654
        %1656 = vdwg.mxu0
        %v1657 = vsel %vm424, %v1601, 0.0
        %1658 = vadd.xlane.f32.xlu0 %v1657
        %v1659 = vpop.xlane.xlu0 %1658
        %v1660 = vsel %vm424, %v1602, 0.0
        %1661 = vadd.xlane.f32.xlu0 %v1660
        %v1662 = vpop.xlane.xlu0 %1661
        %v1663 = vmax.f32 %v1659, 1e-06
        %v1664 = vmax.f32 %v1662, 1e-06
        %v1665 = vrsqrt.pop %v1663
        %v1666 = vmul.f32 %v1665, %v1663
        %v1667 = vmul.f32 %v1666, %v1665
        %v1668 = vmul.f32 0.5, %v1667
        %v1669 = vsub.f32 1.5, %v1668
        %v1670 = vmul.f32 %v1665, %v1669
        %vm1671 = vweird.f32 %v1663
        %vm1672 = vweird.f32 %v1665
        %vm1673 = vmor %vm1671, %vm1672
        %v1674 = vsel %vm1673, %v1665, %v1670
        %v1675 = vrsqrt.pop %v1664
        %v1676 = vmul.f32 %v1675, %v1664
        %v1677 = vmul.f32 %v1676, %v1675
        %v1678 = vmul.f32 0.5, %v1677
        %v1679 = vsub.f32 1.5, %v1678
        %v1680 = vmul.f32 %v1675, %v1679
        %vm1681 = vweird.f32 %v1664
        %vm1682 = vweird.f32 %v1675
        %vm1683 = vmor %vm1681, %vm1682
        %v1684 = vsel %vm1683, %v1675, %v1680
        %v1685 = vsel %vm505, %v1603, 0.0
        %1686 = vadd.xlane.f32.xlu0 %v1685
        %v1687 = vpop.xlane.xlu0 %1686
        %v1688 = vsel %vm505, %v1604, 0.0
        %1689 = vadd.xlane.f32.xlu0 %v1688
        %v1690 = vpop.xlane.xlu0 %1689
        %v1691 = vmax.f32 %v1687, 1e-06
        %v1692 = vmax.f32 %v1690, 1e-06
        %v1693 = vrsqrt.pop %v1691
        %v1694 = vmul.f32 %v1693, %v1691
        %v1695 = vmul.f32 %v1694, %v1693
        %v1696 = vmul.f32 0.5, %v1695
        %v1697 = vsub.f32 1.5, %v1696
        %v1698 = vmul.f32 %v1693, %v1697
        %vm1699 = vweird.f32 %v1691
        %vm1700 = vweird.f32 %v1693
        %vm1701 = vmor %vm1699, %vm1700
        %v1702 = vsel %vm1701, %v1693, %v1698
        %v1703 = vrsqrt.pop %v1692
        %v1704 = vmul.f32 %v1703, %v1692
        %v1705 = vmul.f32 %v1704, %v1703
        %v1706 = vmul.f32 0.5, %v1705
        %v1707 = vsub.f32 1.5, %v1706
        %v1708 = vmul.f32 %v1703, %v1707
        %vm1709 = vweird.f32 %v1692
        %vm1710 = vweird.f32 %v1703
        %vm1711 = vmor %vm1709, %vm1710
        %v1712 = vsel %vm1711, %v1703, %v1708
        %v1713 = vmul.f32 %v1629, %v1674
        %v1714 = vmul.f32 %v1655, %v1684
        %v1717 = vperm.slane %v1702, %v539
        %v1718 = vperm.slane %v1712, %v539
        %v1719 = vsel %vm543, %v1717, %v1717
        %v1720 = vsel %vm545, %v1717, %v1719
        %v1721 = vsel %vm547, %v1717, %v1720
        %v1722 = vsel %vm549, %v1717, %v1721
        %v1723 = vsel %vm551, %v1717, %v1722
        %v1724 = vsel %vm553, %v1717, %v1723
        %v1725 = vsel %vm543, %v1718, %v1718
        %v1726 = vsel %vm545, %v1718, %v1725
        %v1727 = vsel %vm547, %v1718, %v1726
        %v1728 = vsel %vm549, %v1718, %v1727
        %v1729 = vsel %vm551, %v1718, %v1728
        %v1730 = vsel %vm553, %v1718, %v1729
        %v1733 = vmul.f32 %v1713, %v1724
        %v1734 = vmul.f32 %v1714, %v1730
        %v1735 = vperm.slane %v418, 5
        %v1736 = vperm.slane %v419, 5
        %v1737 = vmul.f32 %v414, %v1735
        %v1738 = vmul.f32 %v415, %v1736
        %v1740 = vsel %vm424, %v1737, 0
        %v1743 = vsel %vm424, %v1738, 0
        %1745 = vmatpush.msra.mxu0 0.0
        %1746 = vmatpush.msra.mxu0 0.0
        %1747 = vmatpush.msra.mxu0 0.0
        %1748 = vmatpush.msra.mxu0 0.0
        %1749 = vmatpush.msra.mxu0 0.0
        %1750 = vmatpush.msra.mxu0 0.0
        %1751 = vmatpush.msra.mxu0 0.0
        %1752 = vmatpush.msra.mxu0 0.0
        %1753 = vmatpush.msra.mxu0 0.0
        %1754 = vmatpush.msra.mxu0 0.0
        %1755 = vmatpush.msra.mxu0 0.0
        %1756 = vmatpush.msra.mxu0 0.0
        %1757 = vmatpush.msra.mxu0 %v387
        %1758 = vmatpush.msra.mxu0 %v386
        %1759 = vmatpush.msra.mxu0 %v385
        %1760 = vmatpush.msra.mxu0 %v384
        %1761 = vmatmul.f32.gmra.mxu0 %v1740
        %v1762 = vpop.f32.mrf.mxu0
        %v1763 = vadd.f32 0.0, %v1762
        %1764 = vmatmul.f32.gmra.mxu0 %v1743
        %v1765 = vpop.f32.mrf.mxu0
        %v1766 = vadd.f32 0.0, %v1765
        %1767 = vdwg.mxu0
        %v1769 = vsel %vm424, %v1601, 0
        %v1772 = vsel %vm424, %v1602, 0
        %1774 = vmatpush.msra.mxu0 0.0
        %1775 = vmatpush.msra.mxu0 0.0
        %1776 = vmatpush.msra.mxu0 0.0
        %1777 = vmatpush.msra.mxu0 0.0
        %1778 = vmatpush.msra.mxu0 0.0
        %1779 = vmatpush.msra.mxu0 0.0
        %1780 = vmatpush.msra.mxu0 0.0
        %1781 = vmatpush.msra.mxu0 0.0
        %1782 = vmatpush.msra.mxu0 0.0
        %1783 = vmatpush.msra.mxu0 0.0
        %1784 = vmatpush.msra.mxu0 0.0
        %1785 = vmatpush.msra.mxu0 0.0
        %1786 = vmatpush.msra.mxu0 %v387
        %1787 = vmatpush.msra.mxu0 %v386
        %1788 = vmatpush.msra.mxu0 %v385
        %1789 = vmatpush.msra.mxu0 %v384
        %1790 = vmatmul.f32.gmra.mxu0 %v1769
        %v1791 = vpop.f32.mrf.mxu0
        %v1792 = vadd.f32 0.0, %v1791
        %1793 = vmatmul.f32.gmra.mxu0 %v1772
        %v1794 = vpop.f32.mrf.mxu0
        %v1795 = vadd.f32 0.0, %v1794
        %1796 = vdwg.mxu0
        %v1797 = vmax.f32 %v1792, 1e-06
        %v1798 = vmax.f32 %v1795, 1e-06
        %v1799 = vrsqrt.pop %v1797
        %v1800 = vmul.f32 %v1799, %v1797
        %v1801 = vmul.f32 %v1800, %v1799
        %v1802 = vmul.f32 0.5, %v1801
        %v1803 = vsub.f32 1.5, %v1802
        %v1804 = vmul.f32 %v1799, %v1803
        %vm1805 = vweird.f32 %v1797
        %vm1806 = vweird.f32 %v1799
        %vm1807 = vmor %vm1805, %vm1806
        %v1808 = vsel %vm1807, %v1799, %v1804
        %v1809 = vrsqrt.pop %v1798
        %v1810 = vmul.f32 %v1809, %v1798
        %v1811 = vmul.f32 %v1810, %v1809
        %v1812 = vmul.f32 0.5, %v1811
        %v1813 = vsub.f32 1.5, %v1812
        %v1814 = vmul.f32 %v1809, %v1813
        %vm1815 = vweird.f32 %v1798
        %vm1816 = vweird.f32 %v1809
        %vm1817 = vmor %vm1815, %vm1816
        %v1818 = vsel %vm1817, %v1809, %v1814
        %v1819 = vmul.f32 %v1763, %v1808
        %v1820 = vmul.f32 %v1766, %v1818
        %v1823 = vrot.slane %v1603, 5
        %v1824 = vrot.slane %v1604, 4
        %v1825 = vsel %vm542, %v1824, %v1823
        %v1826 = vsel %vm424, %v1825, 0
        %1828 = vmatpush.msra.mxu0 0.0
        %1829 = vmatpush.msra.mxu0 0.0
        %1830 = vmatpush.msra.mxu0 0.0
        %1831 = vmatpush.msra.mxu0 0.0
        %1832 = vmatpush.msra.mxu0 0.0
        %1833 = vmatpush.msra.mxu0 0.0
        %1834 = vmatpush.msra.mxu0 0.0
        %1835 = vmatpush.msra.mxu0 0.0
        %1836 = vmatpush.msra.mxu0 0.0
        %1837 = vmatpush.msra.mxu0 0.0
        %1838 = vmatpush.msra.mxu0 0.0
        %1839 = vmatpush.msra.mxu0 0.0
        %1840 = vmatpush.msra.mxu0 %v387
        %1841 = vmatpush.msra.mxu0 %v386
        %1842 = vmatpush.msra.mxu0 %v385
        %1843 = vmatpush.msra.mxu0 %v384
        %1844 = vmatmul.f32.gmra.mxu0 %v1826
        %v1845 = vpop.f32.mrf.mxu0
        %v1846 = vadd.f32 0.0, %v1845
        %1847 = vdwg.mxu0
        %v1849 = vrot.slane %v1846, 1
        %v1851 = vmax.f32 %v1846, 1e-06
        %v1852 = vmax.f32 %v1849, 1e-06
        %v1853 = vrsqrt.pop %v1851
        %v1854 = vmul.f32 %v1853, %v1851
        %v1855 = vmul.f32 %v1854, %v1853
        %v1856 = vmul.f32 0.5, %v1855
        %v1857 = vsub.f32 1.5, %v1856
        %v1858 = vmul.f32 %v1853, %v1857
        %vm1859 = vweird.f32 %v1851
        %vm1860 = vweird.f32 %v1853
        %vm1861 = vmor %vm1859, %vm1860
        %v1862 = vsel %vm1861, %v1853, %v1858
        %v1863 = vrsqrt.pop %v1852
        %v1864 = vmul.f32 %v1863, %v1852
        %v1865 = vmul.f32 %v1864, %v1863
        %v1866 = vmul.f32 0.5, %v1865
        %v1867 = vsub.f32 1.5, %v1866
        %v1868 = vmul.f32 %v1863, %v1867
        %vm1869 = vweird.f32 %v1852
        %vm1870 = vweird.f32 %v1863
        %vm1871 = vmor %vm1869, %vm1870
        %v1872 = vsel %vm1871, %v1863, %v1868
        %v1875 = vperm.slane %v1862, 0
        %v1876 = vperm.slane %v1872, 0
        %v1879 = vmul.f32 %v1819, %v1875
        %v1880 = vmul.f32 %v1820, %v1876
        %1881 = vxpose.xlu0.b32.start [1/16] %v392, 128
        %1882 = vxpose.xlu0.b32.cont [2/16] %v393, 128
        %1883 = vxpose.xlu0.b32.cont [3/16] %v394, 128
        %1884 = vxpose.xlu0.b32.cont [4/16] %v395, 128
        %1885 = vxpose.xlu0.b32.cont [5/16] 0.0, 128
        %1886 = vxpose.xlu0.b32.cont [6/16] 0.0, 128
        %1887 = vxpose.xlu0.b32.cont [7/16] 0.0, 128
        %1888 = vxpose.xlu0.b32.cont [8/16] 0.0, 128
        %1889 = vxpose.xlu0.b32.cont [9/16] 0.0, 128
        %1890 = vxpose.xlu0.b32.cont [10/16] 0.0, 128
        %1891 = vxpose.xlu0.b32.cont [11/16] 0.0, 128
        %1892 = vxpose.xlu0.b32.cont [12/16] 0.0, 128
        %1893 = vxpose.xlu0.b32.cont [13/16] 0.0, 128
        %1894 = vxpose.xlu0.b32.cont [14/16] 0.0, 128
        %1895 = vxpose.xlu0.b32.cont [15/16] 0.0, 128
        %1896 = vxpose.xlu0.b32.end [16/16] 0.0, 128
        %v1897 = vpop.trf.xlu0
        %v1898 = vpop.trf.xlu0
        %v1899 = vpop.trf.xlu0
        %v1900 = vpop.trf.xlu0
        %v1901 = vpop.trf.xlu0
        %v1902 = vpop.trf.xlu0
        %v1903 = vpop.trf.xlu0
        %v1904 = vpop.trf.xlu0
        %v1905 = vpop.trf.xlu0
        %v1906 = vpop.trf.xlu0
        %v1907 = vpop.trf.xlu0
        %v1908 = vpop.trf.xlu0
        %v1909 = vpop.trf.xlu0
        %v1910 = vpop.trf.xlu0
        %v1911 = vpop.trf.xlu0
        %v1912 = vpop.trf.xlu0
        %v1913 = vrot.slane %v414, 1
        %v1914 = vrot.slane %v414, 2
        %v1915 = vrot.slane %v414, 3
        %v1916 = vrot.slane %v414, 4
        %v1917 = vrot.slane %v414, 5
        %v1918 = vrot.slane %v414, 6
        %v1919 = vrot.slane %v414, 7
        %v1920 = vrot.slane %v415, 1
        %v1921 = vrot.slane %v415, 2
        %v1922 = vrot.slane %v415, 3
        %v1923 = vrot.slane %v415, 4
        %v1924 = vrot.slane %v415, 5
        %v1925 = vrot.slane %v415, 6
        %v1926 = vrot.slane %v415, 7
        %v1927 = vperm.slane %v414, 0
        %v1928 = vperm.slane %v1913, 0
        %v1929 = vperm.slane %v1914, 0
        %v1930 = vperm.slane %v1915, 0
        %v1931 = vperm.slane %v1916, 0
        %v1932 = vperm.slane %v1917, 0
        %v1933 = vperm.slane %v1918, 0
        %v1934 = vperm.slane %v1919, 0
        %v1935 = vperm.slane %v415, 0
        %v1936 = vperm.slane %v1920, 0
        %v1937 = vperm.slane %v1921, 0
        %v1938 = vperm.slane %v1922, 0
        %v1939 = vperm.slane %v1923, 0
        %v1940 = vperm.slane %v1924, 0
        %v1941 = vperm.slane %v1925, 0
        %v1942 = vperm.slane %v1926, 0
        %v1959 = vmul.f32 %v1927, %v1897
        %v1960 = vmul.f32 %v1928, %v1897
        %v1961 = vmul.f32 %v1929, %v1897
        %v1962 = vmul.f32 %v1930, %v1897
        %v1963 = vmul.f32 %v1931, %v1897
        %v1964 = vmul.f32 %v1932, %v1897
        %v1965 = vmul.f32 %v1933, %v1897
        %v1966 = vmul.f32 %v1934, %v1897
        %v1967 = vmul.f32 %v1935, %v1897
        %v1968 = vmul.f32 %v1936, %v1897
        %v1969 = vmul.f32 %v1937, %v1897
        %v1970 = vmul.f32 %v1938, %v1897
        %v1971 = vmul.f32 %v1939, %v1897
        %v1972 = vmul.f32 %v1940, %v1897
        %v1973 = vmul.f32 %v1941, %v1897
        %v1974 = vmul.f32 %v1942, %v1897
        %v1976 = vsel %vm424, %v1959, 0
        %v1979 = vsel %vm424, %v1960, 0
        %v1982 = vsel %vm424, %v1961, 0
        %v1985 = vsel %vm424, %v1962, 0
        %v1988 = vsel %vm424, %v1963, 0
        %v1991 = vsel %vm424, %v1964, 0
        %v1994 = vsel %vm424, %v1965, 0
        %v1997 = vsel %vm424, %v1966, 0
        %1999 = vmatpush.xpose.msra.mxu0 0.0
        %2000 = vmatpush.xpose.msra.mxu0 0.0
        %2001 = vmatpush.xpose.msra.mxu0 0.0
        %2002 = vmatpush.xpose.msra.mxu0 0.0
        %2003 = vmatpush.xpose.msra.mxu0 0.0
        %2004 = vmatpush.xpose.msra.mxu0 0.0
        %2005 = vmatpush.xpose.msra.mxu0 0.0
        %2006 = vmatpush.xpose.msra.mxu0 0.0
        %2007 = vmatpush.xpose.msra.mxu0 0.0
        %2008 = vmatpush.xpose.msra.mxu0 0.0
        %2009 = vmatpush.xpose.msra.mxu0 0.0
        %2010 = vmatpush.xpose.msra.mxu0 0.0
        %2011 = vmatpush.xpose.msra.mxu0 0.0
        %2012 = vmatpush.xpose.msra.mxu0 0.0
        %2013 = vmatpush.xpose.msra.mxu0 0.0
        %2014 = vmatpush.xpose.msra.mxu0 %v1609
        %2015 = vmatmul.f32.gmra.mxu0 %v1976
        %v2016 = vpop.f32.mrf.mxu0
        %v2017 = vadd.f32 0.0, %v2016
        %2018 = vmatmul.f32.gmra.mxu0 %v1979
        %v2019 = vpop.f32.mrf.mxu0
        %v2020 = vadd.f32 0.0, %v2019
        %2021 = vmatmul.f32.gmra.mxu0 %v1982
        %v2022 = vpop.f32.mrf.mxu0
        %v2023 = vadd.f32 0.0, %v2022
        %2024 = vmatmul.f32.gmra.mxu0 %v1985
        %v2025 = vpop.f32.mrf.mxu0
        %v2026 = vadd.f32 0.0, %v2025
        %2027 = vmatmul.f32.gmra.mxu0 %v1988
        %v2028 = vpop.f32.mrf.mxu0
        %v2029 = vadd.f32 0.0, %v2028
        %2030 = vmatmul.f32.gmra.mxu0 %v1991
        %v2031 = vpop.f32.mrf.mxu0
        %v2032 = vadd.f32 0.0, %v2031
        %2033 = vmatmul.f32.gmra.mxu0 %v1994
        %v2034 = vpop.f32.mrf.mxu0
        %v2035 = vadd.f32 0.0, %v2034
        %2036 = vmatmul.f32.gmra.mxu0 %v1997
        %v2037 = vpop.f32.mrf.mxu0
        %v2038 = vadd.f32 0.0, %v2037
        %2039 = vdwg.mxu0
        %v2041 = vsel %vm424, %v1967, 0
        %v2044 = vsel %vm424, %v1968, 0
        %v2047 = vsel %vm424, %v1969, 0
        %v2050 = vsel %vm424, %v1970, 0
        %v2053 = vsel %vm424, %v1971, 0
        %v2056 = vsel %vm424, %v1972, 0
        %v2059 = vsel %vm424, %v1973, 0
        %v2062 = vsel %vm424, %v1974, 0
        %2064 = vmatpush.xpose.msra.mxu0 0.0
        %2065 = vmatpush.xpose.msra.mxu0 0.0
        %2066 = vmatpush.xpose.msra.mxu0 0.0
        %2067 = vmatpush.xpose.msra.mxu0 0.0
        %2068 = vmatpush.xpose.msra.mxu0 0.0
        %2069 = vmatpush.xpose.msra.mxu0 0.0
        %2070 = vmatpush.xpose.msra.mxu0 0.0
        %2071 = vmatpush.xpose.msra.mxu0 0.0
        %2072 = vmatpush.xpose.msra.mxu0 0.0
        %2073 = vmatpush.xpose.msra.mxu0 0.0
        %2074 = vmatpush.xpose.msra.mxu0 0.0
        %2075 = vmatpush.xpose.msra.mxu0 0.0
        %2076 = vmatpush.xpose.msra.mxu0 0.0
        %2077 = vmatpush.xpose.msra.mxu0 0.0
        %2078 = vmatpush.xpose.msra.mxu0 0.0
        %2079 = vmatpush.xpose.msra.mxu0 %v1635
        %2080 = vmatmul.f32.gmra.mxu0 %v2041
        %v2081 = vpop.f32.mrf.mxu0
        %v2082 = vadd.f32 0.0, %v2081
        %2083 = vmatmul.f32.gmra.mxu0 %v2044
        %v2084 = vpop.f32.mrf.mxu0
        %v2085 = vadd.f32 0.0, %v2084
        %2086 = vmatmul.f32.gmra.mxu0 %v2047
        %v2087 = vpop.f32.mrf.mxu0
        %v2088 = vadd.f32 0.0, %v2087
        %2089 = vmatmul.f32.gmra.mxu0 %v2050
        %v2090 = vpop.f32.mrf.mxu0
        %v2091 = vadd.f32 0.0, %v2090
        %2092 = vmatmul.f32.gmra.mxu0 %v2053
        %v2093 = vpop.f32.mrf.mxu0
        %v2094 = vadd.f32 0.0, %v2093
        %2095 = vmatmul.f32.gmra.mxu0 %v2056
        %v2096 = vpop.f32.mrf.mxu0
        %v2097 = vadd.f32 0.0, %v2096
        %2098 = vmatmul.f32.gmra.mxu0 %v2059
        %v2099 = vpop.f32.mrf.mxu0
        %v2100 = vadd.f32 0.0, %v2099
        %2101 = vmatmul.f32.gmra.mxu0 %v2062
        %v2102 = vpop.f32.mrf.mxu0
        %v2103 = vadd.f32 0.0, %v2102
        %2104 = vdwg.mxu0
        %2105 = vmatpush.msra.mxu0 0.0
        %2106 = vmatpush.msra.mxu0 0.0
        %2107 = vmatpush.msra.mxu0 0.0
        %2108 = vmatpush.msra.mxu0 0.0
        %2109 = vmatpush.msra.mxu0 0.0
        %2110 = vmatpush.msra.mxu0 0.0
        %2111 = vmatpush.msra.mxu0 0.0
        %2112 = vmatpush.msra.mxu0 0.0
        %2113 = vmatpush.msra.mxu0 0.0
        %2114 = vmatpush.msra.mxu0 0.0
        %2115 = vmatpush.msra.mxu0 0.0
        %2116 = vmatpush.msra.mxu0 0.0
        %2117 = vmatpush.msra.mxu0 %v395
        %2118 = vmatpush.msra.mxu0 %v394
        %2119 = vmatpush.msra.mxu0 %v393
        %2120 = vmatpush.msra.mxu0 %v392
        %2121 = vmatmul.f32.gmra.mxu0 %v1769
        %v2122 = vpop.f32.mrf.mxu0
        %v2123 = vadd.f32 0.0, %v2122
        %2124 = vmatmul.f32.gmra.mxu0 %v1772
        %v2125 = vpop.f32.mrf.mxu0
        %v2126 = vadd.f32 0.0, %v2125
        %2127 = vdwg.mxu0
        %v2128 = vmax.f32 %v2123, 1e-06
        %v2129 = vmax.f32 %v2126, 1e-06
        %v2130 = vrsqrt.pop %v2128
        %v2131 = vmul.f32 %v2130, %v2128
        %v2132 = vmul.f32 %v2131, %v2130
        %v2133 = vmul.f32 0.5, %v2132
        %v2134 = vsub.f32 1.5, %v2133
        %v2135 = vmul.f32 %v2130, %v2134
        %vm2136 = vweird.f32 %v2128
        %vm2137 = vweird.f32 %v2130
        %vm2138 = vmor %vm2136, %vm2137
        %v2139 = vsel %vm2138, %v2130, %v2135
        %v2140 = vrsqrt.pop %v2129
        %v2141 = vmul.f32 %v2140, %v2129
        %v2142 = vmul.f32 %v2141, %v2140
        %v2143 = vmul.f32 0.5, %v2142
        %v2144 = vsub.f32 1.5, %v2143
        %v2145 = vmul.f32 %v2140, %v2144
        %vm2146 = vweird.f32 %v2129
        %vm2147 = vweird.f32 %v2140
        %vm2148 = vmor %vm2146, %vm2147
        %v2149 = vsel %vm2148, %v2140, %v2145
        %v2150 = vrot.slane %v1603, 2
        %v2151 = vrot.slane %v1603, 4
        %v2152 = vrot.slane %v1604, 2
        %2153 = vst [vmem:[#allocation1] ss:$4 sm:$0xff] %v1603
        %s2154 = scalar_lea.vmem [#allocation1], 1
        %2155 = vst [vmem:[%s2154] ss:$4 sm:$0xff] %v2150
        %s2156 = scalar_lea.vmem [#allocation1], 2
        %2157 = vst [vmem:[%s2156] ss:$4 sm:$0xff] %v2151
        %s2158 = scalar_lea.vmem [#allocation1], 3
        %2159 = vst [vmem:[%s2158] ss:$4 sm:$0xff] %v1604
        %s2160 = scalar_lea.vmem [#allocation1], 32
        %2161 = vst [vmem:[%s2160] ss:$4 sm:$0xff] %v2152
        %s2162 = scalar_lea.vmem [#allocation1], 33
        %2163 = vst [vmem:[%s2162] ss:$4 sm:$0xff] %v1824
        %v2164 = vld.sshfl [vmem:[#allocation1] sm:$0xff pattern:$0x73625140]
        %v2165 = vld.sshfl [vmem:[#allocation1 + $0x20] sm:$0xff pattern:$0x73625140]
        %v2166 = vsel %vm424, %v2164, 0
        %v2168 = vsel %vm424, %v2165, 0
        %2170 = vmatpush.msra.mxu0 0.0
        %2171 = vmatpush.msra.mxu0 0.0
        %2172 = vmatpush.msra.mxu0 0.0
        %2173 = vmatpush.msra.mxu0 0.0
        %2174 = vmatpush.msra.mxu0 0.0
        %2175 = vmatpush.msra.mxu0 0.0
        %2176 = vmatpush.msra.mxu0 0.0
        %2177 = vmatpush.msra.mxu0 0.0
        %2178 = vmatpush.msra.mxu0 0.0
        %2179 = vmatpush.msra.mxu0 0.0
        %2180 = vmatpush.msra.mxu0 0.0
        %2181 = vmatpush.msra.mxu0 0.0
        %2182 = vmatpush.msra.mxu0 %v395
        %2183 = vmatpush.msra.mxu0 %v394
        %2184 = vmatpush.msra.mxu0 %v393
        %2185 = vmatpush.msra.mxu0 %v392
        %2186 = vmatmul.f32.gmra.mxu0 %v2166
        %v2187 = vpop.f32.mrf.mxu0
        %v2188 = vadd.f32 0.0, %v2187
        %2189 = vmatmul.f32.gmra.mxu0 %v2168
        %v2190 = vpop.f32.mrf.mxu0
        %v2191 = vadd.f32 0.0, %v2190
        %2192 = vdwg.mxu0
        %v2195 = vrot.slane %v2188, 2
        %v2196 = vrot.slane %v2188, 4
        %v2197 = vrot.slane %v2188, 6
        %v2198 = vrot.slane %v2191, 2
        %v2203 = vmax.f32 %v2188, 1e-06
        %v2204 = vmax.f32 %v2195, 1e-06
        %v2205 = vmax.f32 %v2196, 1e-06
        %v2206 = vmax.f32 %v2197, 1e-06
        %v2207 = vmax.f32 %v2191, 1e-06
        %v2208 = vmax.f32 %v2198, 1e-06
        %v2209 = vrsqrt.pop %v2203
        %v2210 = vmul.f32 %v2209, %v2203
        %v2211 = vmul.f32 %v2210, %v2209
        %v2212 = vmul.f32 0.5, %v2211
        %v2213 = vsub.f32 1.5, %v2212
        %v2214 = vmul.f32 %v2209, %v2213
        %vm2215 = vweird.f32 %v2203
        %vm2216 = vweird.f32 %v2209
        %vm2217 = vmor %vm2215, %vm2216
        %v2218 = vsel %vm2217, %v2209, %v2214
        %v2219 = vrsqrt.pop %v2204
        %v2220 = vmul.f32 %v2219, %v2204
        %v2221 = vmul.f32 %v2220, %v2219
        %v2222 = vmul.f32 0.5, %v2221
        %v2223 = vsub.f32 1.5, %v2222
        %v2224 = vmul.f32 %v2219, %v2223
        %vm2225 = vweird.f32 %v2204
        %vm2226 = vweird.f32 %v2219
        %vm2227 = vmor %vm2225, %vm2226
        %v2228 = vsel %vm2227, %v2219, %v2224
        %v2229 = vrsqrt.pop %v2205
        %v2230 = vmul.f32 %v2229, %v2205
        %v2231 = vmul.f32 %v2230, %v2229
        %v2232 = vmul.f32 0.5, %v2231
        %v2233 = vsub.f32 1.5, %v2232
        %v2234 = vmul.f32 %v2229, %v2233
        %vm2235 = vweird.f32 %v2205
        %vm2236 = vweird.f32 %v2229
        %vm2237 = vmor %vm2235, %vm2236
        %v2238 = vsel %vm2237, %v2229, %v2234
        %v2239 = vrsqrt.pop %v2206
        %v2240 = vmul.f32 %v2239, %v2206
        %v2241 = vmul.f32 %v2240, %v2239
        %v2242 = vmul.f32 0.5, %v2241
        %v2243 = vsub.f32 1.5, %v2242
        %v2244 = vmul.f32 %v2239, %v2243
        %vm2245 = vweird.f32 %v2206
        %vm2246 = vweird.f32 %v2239
        %vm2247 = vmor %vm2245, %vm2246
        %v2248 = vsel %vm2247, %v2239, %v2244
        %v2249 = vrsqrt.pop %v2207
        %v2250 = vmul.f32 %v2249, %v2207
        %v2251 = vmul.f32 %v2250, %v2249
        %v2252 = vmul.f32 0.5, %v2251
        %v2253 = vsub.f32 1.5, %v2252
        %v2254 = vmul.f32 %v2249, %v2253
        %vm2255 = vweird.f32 %v2207
        %vm2256 = vweird.f32 %v2249
        %vm2257 = vmor %vm2255, %vm2256
        %v2258 = vsel %vm2257, %v2249, %v2254
        %v2259 = vrsqrt.pop %v2208
        %v2260 = vmul.f32 %v2259, %v2208
        %v2261 = vmul.f32 %v2260, %v2259
        %v2262 = vmul.f32 0.5, %v2261
        %v2263 = vsub.f32 1.5, %v2262
        %v2264 = vmul.f32 %v2259, %v2263
        %vm2265 = vweird.f32 %v2208
        %vm2266 = vweird.f32 %v2259
        %vm2267 = vmor %vm2265, %vm2266
        %v2268 = vsel %vm2267, %v2259, %v2264
        %v2269 = vperm.slane %v2139, 0
        %v2270 = vlaneseq
        %v2271 = vshrl.u32 %v2270, 7
        %2273 = vset.pattern.permute.xlu0 %v2271
        %2274 = vperm.xlu0 %2273, %v2269
        %v2275 = vpop.permute.xlu0 %2274
        %v2276 = vperm.slane %v2139, 1
        %v2277 = vlaneseq
        %v2278 = vshrl.u32 %v2277, 7
        %2280 = vset.pattern.permute.xlu0 %v2278
        %2281 = vperm.xlu0 %2280, %v2276
        %v2282 = vpop.permute.xlu0 %2281
        %v2283 = vperm.slane %v2139, 2
        %v2284 = vlaneseq
        %v2285 = vshrl.u32 %v2284, 7
        %2287 = vset.pattern.permute.xlu0 %v2285
        %2288 = vperm.xlu0 %2287, %v2283
        %v2289 = vpop.permute.xlu0 %2288
        %v2290 = vperm.slane %v2139, 3
        %v2291 = vlaneseq
        %v2292 = vshrl.u32 %v2291, 7
        %2294 = vset.pattern.permute.xlu0 %v2292
        %2295 = vperm.xlu0 %2294, %v2290
        %v2296 = vpop.permute.xlu0 %2295
        %v2297 = vperm.slane %v2139, 4
        %v2298 = vlaneseq
        %v2299 = vshrl.u32 %v2298, 7
        %2301 = vset.pattern.permute.xlu0 %v2299
        %2302 = vperm.xlu0 %2301, %v2297
        %v2303 = vpop.permute.xlu0 %2302
        %v2304 = vperm.slane %v2139, 5
        %v2305 = vlaneseq
        %v2306 = vshrl.u32 %v2305, 7
        %2308 = vset.pattern.permute.xlu0 %v2306
        %2309 = vperm.xlu0 %2308, %v2304
        %v2310 = vpop.permute.xlu0 %2309
        %v2311 = vperm.slane %v2139, 6
        %v2312 = vlaneseq
        %v2313 = vshrl.u32 %v2312, 7
        %2315 = vset.pattern.permute.xlu0 %v2313
        %2316 = vperm.xlu0 %2315, %v2311
        %v2317 = vpop.permute.xlu0 %2316
        %v2318 = vperm.slane %v2139, 7
        %v2319 = vlaneseq
        %v2320 = vshrl.u32 %v2319, 7
        %2322 = vset.pattern.permute.xlu0 %v2320
        %2323 = vperm.xlu0 %2322, %v2318
        %v2324 = vpop.permute.xlu0 %2323
        %v2325 = vperm.slane %v2149, 0
        %v2326 = vlaneseq
        %v2327 = vshrl.u32 %v2326, 7
        %2329 = vset.pattern.permute.xlu0 %v2327
        %2330 = vperm.xlu0 %2329, %v2325
        %v2331 = vpop.permute.xlu0 %2330
        %v2332 = vperm.slane %v2149, 1
        %v2333 = vlaneseq
        %v2334 = vshrl.u32 %v2333, 7
        %2336 = vset.pattern.permute.xlu0 %v2334
        %2337 = vperm.xlu0 %2336, %v2332
        %v2338 = vpop.permute.xlu0 %2337
        %v2339 = vperm.slane %v2149, 2
        %v2340 = vlaneseq
        %v2341 = vshrl.u32 %v2340, 7
        %2343 = vset.pattern.permute.xlu0 %v2341
        %2344 = vperm.xlu0 %2343, %v2339
        %v2345 = vpop.permute.xlu0 %2344
        %v2346 = vperm.slane %v2149, 3
        %v2347 = vlaneseq
        %v2348 = vshrl.u32 %v2347, 7
        %2350 = vset.pattern.permute.xlu0 %v2348
        %2351 = vperm.xlu0 %2350, %v2346
        %v2352 = vpop.permute.xlu0 %2351
        %v2353 = vperm.slane %v2149, 4
        %v2354 = vlaneseq
        %v2355 = vshrl.u32 %v2354, 7
        %2357 = vset.pattern.permute.xlu0 %v2355
        %2358 = vperm.xlu0 %2357, %v2353
        %v2359 = vpop.permute.xlu0 %2358
        %v2360 = vperm.slane %v2149, 5
        %v2361 = vlaneseq
        %v2362 = vshrl.u32 %v2361, 7
        %2364 = vset.pattern.permute.xlu0 %v2362
        %2365 = vperm.xlu0 %2364, %v2360
        %v2366 = vpop.permute.xlu0 %2365
        %v2367 = vperm.slane %v2149, 6
        %v2368 = vlaneseq
        %v2369 = vshrl.u32 %v2368, 7
        %2371 = vset.pattern.permute.xlu0 %v2369
        %2372 = vperm.xlu0 %2371, %v2367
        %v2373 = vpop.permute.xlu0 %2372
        %v2374 = vperm.slane %v2149, 7
        %v2375 = vlaneseq
        %v2376 = vshrl.u32 %v2375, 7
        %2378 = vset.pattern.permute.xlu0 %v2376
        %2379 = vperm.xlu0 %2378, %v2374
        %v2380 = vpop.permute.xlu0 %2379
        %v2381 = vmul.f32 %v2017, %v2275
        %v2382 = vmul.f32 %v2020, %v2282
        %v2383 = vmul.f32 %v2023, %v2289
        %v2384 = vmul.f32 %v2026, %v2296
        %v2385 = vmul.f32 %v2029, %v2303
        %v2386 = vmul.f32 %v2032, %v2310
        %v2387 = vmul.f32 %v2035, %v2317
        %v2388 = vmul.f32 %v2038, %v2324
        %v2389 = vmul.f32 %v2082, %v2331
        %v2390 = vmul.f32 %v2085, %v2338
        %v2391 = vmul.f32 %v2088, %v2345
        %v2392 = vmul.f32 %v2091, %v2352
        %v2393 = vmul.f32 %v2094, %v2359
        %v2394 = vmul.f32 %v2097, %v2366
        %v2395 = vmul.f32 %v2100, %v2373
        %v2396 = vmul.f32 %v2103, %v2380
        %2403 = vst [vmem:[#allocation1] ss:$4 sm:$0xff] %v2218
        %s2404 = scalar_lea.vmem [#allocation1], 1
        %2405 = vst [vmem:[%s2404] ss:$4 sm:$0xff] %v2228
        %s2406 = scalar_lea.vmem [#allocation1], 2
        %2407 = vst [vmem:[%s2406] ss:$4 sm:$0xff] %v2238
        %v2408 = vld.sshfl [vmem:[#allocation1] sm:$0xff pattern:$0x73625140]
        %s2409 = scalar_lea.vmem [#allocation1], 32
        %2410 = vst [vmem:[%s2409] ss:$4 sm:$0xff] %v2248
        %s2411 = scalar_lea.vmem [#allocation1], 33
        %2412 = vst [vmem:[%s2411] ss:$4 sm:$0xff] %v2258
        %s2413 = scalar_lea.vmem [#allocation1], 34
        %2414 = vst [vmem:[%s2413] ss:$4 sm:$0xff] %v2268
        %v2415 = vld.sshfl [vmem:[#allocation1 + $0x20] sm:$0xff pattern:$0x73625140]
        %2418 = vxpose.xlu0.b32.start [1/16] %v2408, 128
        %2419 = vxpose.xlu0.b32.cont [2/16] 0.0, 128
        %2420 = vxpose.xlu0.b32.cont [3/16] 0.0, 128
        %2421 = vxpose.xlu0.b32.cont [4/16] 0.0, 128
        %2422 = vxpose.xlu0.b32.cont [5/16] 0.0, 128
        %2423 = vxpose.xlu0.b32.cont [6/16] 0.0, 128
        %2424 = vxpose.xlu0.b32.cont [7/16] 0.0, 128
        %2425 = vxpose.xlu0.b32.cont [8/16] 0.0, 128
        %2426 = vxpose.xlu0.b32.cont [9/16] 0.0, 128
        %2427 = vxpose.xlu0.b32.cont [10/16] 0.0, 128
        %2428 = vxpose.xlu0.b32.cont [11/16] 0.0, 128
        %2429 = vxpose.xlu0.b32.cont [12/16] 0.0, 128
        %2430 = vxpose.xlu0.b32.cont [13/16] 0.0, 128
        %2431 = vxpose.xlu0.b32.cont [14/16] 0.0, 128
        %2432 = vxpose.xlu0.b32.cont [15/16] 0.0, 128
        %2433 = vxpose.xlu0.b32.end [16/16] 0.0, 128
        %v2434 = vpop.trf.xlu0
        %v2435 = vpop.trf.xlu0
        %v2436 = vpop.trf.xlu0
        %v2437 = vpop.trf.xlu0
        %v2438 = vpop.trf.xlu0
        %v2439 = vpop.trf.xlu0
        %v2440 = vpop.trf.xlu0
        %v2441 = vpop.trf.xlu0
        %v2442 = vpop.trf.xlu0
        %v2443 = vpop.trf.xlu0
        %v2444 = vpop.trf.xlu0
        %v2445 = vpop.trf.xlu0
        %v2446 = vpop.trf.xlu0
        %v2447 = vpop.trf.xlu0
        %v2448 = vpop.trf.xlu0
        %v2449 = vpop.trf.xlu0
        %2450 = vxpose.xlu0.b32.start [1/16] %v2415, 128
        %2451 = vxpose.xlu0.b32.cont [2/16] 0.0, 128
        %2452 = vxpose.xlu0.b32.cont [3/16] 0.0, 128
        %2453 = vxpose.xlu0.b32.cont [4/16] 0.0, 128
        %2454 = vxpose.xlu0.b32.cont [5/16] 0.0, 128
        %2455 = vxpose.xlu0.b32.cont [6/16] 0.0, 128
        %2456 = vxpose.xlu0.b32.cont [7/16] 0.0, 128
        %2457 = vxpose.xlu0.b32.cont [8/16] 0.0, 128
        %2458 = vxpose.xlu0.b32.cont [9/16] 0.0, 128
        %2459 = vxpose.xlu0.b32.cont [10/16] 0.0, 128
        %2460 = vxpose.xlu0.b32.cont [11/16] 0.0, 128
        %2461 = vxpose.xlu0.b32.cont [12/16] 0.0, 128
        %2462 = vxpose.xlu0.b32.cont [13/16] 0.0, 128
        %2463 = vxpose.xlu0.b32.cont [14/16] 0.0, 128
        %2464 = vxpose.xlu0.b32.cont [15/16] 0.0, 128
        %2465 = vxpose.xlu0.b32.end [16/16] 0.0, 128
        %v2466 = vpop.trf.xlu0
        %v2467 = vpop.trf.xlu0
        %v2468 = vpop.trf.xlu0
        %v2469 = vpop.trf.xlu0
        %v2470 = vpop.trf.xlu0
        %v2471 = vpop.trf.xlu0
        %v2472 = vpop.trf.xlu0
        %v2473 = vpop.trf.xlu0
        %v2474 = vpop.trf.xlu0
        %v2475 = vpop.trf.xlu0
        %v2476 = vpop.trf.xlu0
        %v2477 = vpop.trf.xlu0
        %v2478 = vpop.trf.xlu0
        %v2479 = vpop.trf.xlu0
        %v2480 = vpop.trf.xlu0
        %v2481 = vpop.trf.xlu0
        %v2482 = vmul.f32 %v2381, %v2434
        %v2483 = vmul.f32 %v2382, %v2434
        %v2484 = vmul.f32 %v2383, %v2434
        %v2485 = vmul.f32 %v2384, %v2434
        %v2486 = vmul.f32 %v2385, %v2434
        %v2487 = vmul.f32 %v2386, %v2434
        %v2488 = vmul.f32 %v2387, %v2434
        %v2489 = vmul.f32 %v2388, %v2434
        %v2490 = vmul.f32 %v2389, %v2466
        %v2491 = vmul.f32 %v2390, %v2466
        %v2492 = vmul.f32 %v2391, %v2466
        %v2493 = vmul.f32 %v2392, %v2466
        %v2494 = vmul.f32 %v2393, %v2466
        %v2495 = vmul.f32 %v2394, %v2466
        %v2496 = vmul.f32 %v2395, %v2466
        %v2497 = vmul.f32 %v2396, %v2466
        %v2498 = vsel %vm1328, %v2482, -inf
        %2499 = vmax.xlane.f32.xlu0 %v2498
        %v2500 = vpop.xlane.xlu0 %2499
        %v2501 = vsel %vm1328, %v2483, -inf
        %2502 = vmax.xlane.f32.xlu0 %v2501
        %v2503 = vpop.xlane.xlu0 %2502
        %v2504 = vsel %vm1328, %v2484, -inf
        %2505 = vmax.xlane.f32.xlu0 %v2504
        %v2506 = vpop.xlane.xlu0 %2505
        %v2507 = vsel %vm1328, %v2485, -inf
        %2508 = vmax.xlane.f32.xlu0 %v2507
        %v2509 = vpop.xlane.xlu0 %2508
        %v2510 = vsel %vm1328, %v2486, -inf
        %2511 = vmax.xlane.f32.xlu0 %v2510
        %v2512 = vpop.xlane.xlu0 %2511
        %v2513 = vsel %vm1328, %v2487, -inf
        %2514 = vmax.xlane.f32.xlu0 %v2513
        %v2515 = vpop.xlane.xlu0 %2514
        %v2516 = vsel %vm1328, %v2488, -inf
        %2517 = vmax.xlane.f32.xlu0 %v2516
        %v2518 = vpop.xlane.xlu0 %2517
        %v2519 = vsel %vm1328, %v2489, -inf
        %2520 = vmax.xlane.f32.xlu0 %v2519
        %v2521 = vpop.xlane.xlu0 %2520
        %v2522 = vsel %vm1328, %v2490, -inf
        %2523 = vmax.xlane.f32.xlu0 %v2522
        %v2524 = vpop.xlane.xlu0 %2523
        %v2525 = vsel %vm1328, %v2491, -inf
        %2526 = vmax.xlane.f32.xlu0 %v2525
        %v2527 = vpop.xlane.xlu0 %2526
        %v2528 = vsel %vm1328, %v2492, -inf
        %2529 = vmax.xlane.f32.xlu0 %v2528
        %v2530 = vpop.xlane.xlu0 %2529
        %v2531 = vsel %vm1328, %v2493, -inf
        %2532 = vmax.xlane.f32.xlu0 %v2531
        %v2533 = vpop.xlane.xlu0 %2532
        %v2534 = vsel %vm1328, %v2494, -inf
        %2535 = vmax.xlane.f32.xlu0 %v2534
        %v2536 = vpop.xlane.xlu0 %2535
        %v2537 = vsel %vm1328, %v2495, -inf
        %2538 = vmax.xlane.f32.xlu0 %v2537
        %v2539 = vpop.xlane.xlu0 %2538
        %v2540 = vsel %vm1328, %v2496, -inf
        %2541 = vmax.xlane.f32.xlu0 %v2540
        %v2542 = vpop.xlane.xlu0 %2541
        %v2543 = vsel %vm1328, %v2497, -inf
        %2544 = vmax.xlane.f32.xlu0 %v2543
        %v2545 = vpop.xlane.xlu0 %2544
        %v2547 = vsel %vm1328, %v1733, 0
        %v2549 = vsel %vm1380, %v418, 0
        %2551 = vmatpush.msra.mxu0 0.0
        %2552 = vmatpush.msra.mxu0 0.0
        %2553 = vmatpush.msra.mxu0 0.0
        %2554 = vmatpush.msra.mxu0 0.0
        %2555 = vmatpush.msra.mxu0 0.0
        %2556 = vmatpush.msra.mxu0 0.0
        %2557 = vmatpush.msra.mxu0 0.0
        %2558 = vmatpush.msra.mxu0 0.0
        %2559 = vmatpush.msra.mxu0 0.0
        %2560 = vmatpush.msra.mxu0 0.0
        %2561 = vmatpush.msra.mxu0 0.0
        %2562 = vmatpush.msra.mxu0 0.0
        %2563 = vmatpush.msra.mxu0 0.0
        %2564 = vmatpush.msra.mxu0 0.0
        %2565 = vmatpush.msra.mxu0 0.0
        %2566 = vmatpush.msra.mxu0 %v2549
        %2567 = vmatmul.f32.gmra.mxu0 %v2547
        %v2568 = vpop.f32.mrf.mxu0
        %v2569 = vadd.f32 0.0, %v2568
        %2570 = vdwg.mxu0
        %v2572 = vsel %vm1328, %v1734, 0
        %v2574 = vsel %vm1380, %v419, 0
        %2576 = vmatpush.msra.mxu0 0.0
        %2577 = vmatpush.msra.mxu0 0.0
        %2578 = vmatpush.msra.mxu0 0.0
        %2579 = vmatpush.msra.mxu0 0.0
        %2580 = vmatpush.msra.mxu0 0.0
        %2581 = vmatpush.msra.mxu0 0.0
        %2582 = vmatpush.msra.mxu0 0.0
        %2583 = vmatpush.msra.mxu0 0.0
        %2584 = vmatpush.msra.mxu0 0.0
        %2585 = vmatpush.msra.mxu0 0.0
        %2586 = vmatpush.msra.mxu0 0.0
        %2587 = vmatpush.msra.mxu0 0.0
        %2588 = vmatpush.msra.mxu0 0.0
        %2589 = vmatpush.msra.mxu0 0.0
        %2590 = vmatpush.msra.mxu0 0.0
        %2591 = vmatpush.msra.mxu0 %v2574
        %2592 = vmatmul.f32.gmra.mxu0 %v2572
        %v2593 = vpop.f32.mrf.mxu0
        %v2594 = vadd.f32 0.0, %v2593
        %2595 = vdwg.mxu0
        %v2596 = vsel %vm1328, %v1733, 0.0
        %2597 = vadd.xlane.f32.xlu0 %v2596
        %v2598 = vpop.xlane.xlu0 %2597
        %v2599 = vsel %vm1328, %v1734, 0.0
        %2600 = vadd.xlane.f32.xlu0 %v2599
        %v2601 = vpop.xlane.xlu0 %2600
        %v2602 = vadd.f32 %v2598, 1e-06
        %v2603 = vadd.f32 %v2601, 1e-06
        %v2604 = vrcp.pop %v2602
        %v2605 = vmul.f32 %v2602, %v2604
        %v2606 = vsub.f32 1.0, %v2605
        %v2607 = vmul.f32 %v2604, %v2606
        %v2608 = vadd.f32 %v2604, %v2607
        %vm2609 = vweird.f32 %v2602
        %vm2610 = vweird.f32 %v2604
        %vm2611 = vmor %vm2609, %vm2610
        %v2612 = vsel %vm2611, %v2604, %v2608
        %v2613 = vand.u32 2147483647, %v2602
        %vm2614 = vcmp.eq.f32.partialorder %v2613, 8.507059e+37
        %v2615 = vand.u32 %v2602, 2147483648
        %v2616 = vor.u32 1.1754944e-38, %v2615
        %v2617 = vsel %vm2614, %v2616, %v2612
        %v2618 = vmul.f32 1.0, %v2617
        %v2619 = vrcp.pop %v2603
        %v2620 = vmul.f32 %v2603, %v2619
        %v2621 = vsub.f32 1.0, %v2620
        %v2622 = vmul.f32 %v2619, %v2621
        %v2623 = vadd.f32 %v2619, %v2622
        %vm2624 = vweird.f32 %v2603
        %vm2625 = vweird.f32 %v2619
        %vm2626 = vmor %vm2624, %vm2625
        %v2627 = vsel %vm2626, %v2619, %v2623
        %v2628 = vand.u32 2147483647, %v2603
        %vm2629 = vcmp.eq.f32.partialorder %v2628, 8.507059e+37
        %v2630 = vand.u32 %v2603, 2147483648
        %v2631 = vor.u32 1.1754944e-38, %v2630
        %v2632 = vsel %vm2629, %v2631, %v2627
        %v2633 = vmul.f32 1.0, %v2632
        %v2634 = vmul.f32 %v2569, %v2618
        %v2635 = vmul.f32 %v2594, %v2633
        %v2636 = vmul.f32 %v414, %v2634
        %v2637 = vmul.f32 %v415, %v2635
        %v2639 = vsel %vm424, %v2636, 0
        %v2642 = vsel %vm424, %v2637, 0
        %2644 = vmatpush.msra.mxu0 0.0
        %2645 = vmatpush.msra.mxu0 0.0
        %2646 = vmatpush.msra.mxu0 0.0
        %2647 = vmatpush.msra.mxu0 0.0
        %2648 = vmatpush.msra.mxu0 0.0
        %2649 = vmatpush.msra.mxu0 0.0
        %2650 = vmatpush.msra.mxu0 0.0
        %2651 = vmatpush.msra.mxu0 0.0
        %2652 = vmatpush.msra.mxu0 0.0
        %2653 = vmatpush.msra.mxu0 0.0
        %2654 = vmatpush.msra.mxu0 0.0
        %2655 = vmatpush.msra.mxu0 0.0
        %2656 = vmatpush.msra.mxu0 %v403
        %2657 = vmatpush.msra.mxu0 %v402
        %2658 = vmatpush.msra.mxu0 %v401
        %2659 = vmatpush.msra.mxu0 %v400
        %2660 = vmatmul.f32.gmra.mxu0 %v2639
        %v2661 = vpop.f32.mrf.mxu0
        %v2662 = vadd.f32 0.0, %v2661
        %2663 = vmatmul.f32.gmra.mxu0 %v2642
        %v2664 = vpop.f32.mrf.mxu0
        %v2665 = vadd.f32 0.0, %v2664
        %2666 = vdwg.mxu0
        %2667 = vmatpush.msra.mxu0 0.0
        %2668 = vmatpush.msra.mxu0 0.0
        %2669 = vmatpush.msra.mxu0 0.0
        %2670 = vmatpush.msra.mxu0 0.0
        %2671 = vmatpush.msra.mxu0 0.0
        %2672 = vmatpush.msra.mxu0 0.0
        %2673 = vmatpush.msra.mxu0 0.0
        %2674 = vmatpush.msra.mxu0 0.0
        %2675 = vmatpush.msra.mxu0 0.0
        %2676 = vmatpush.msra.mxu0 0.0
        %2677 = vmatpush.msra.mxu0 0.0
        %2678 = vmatpush.msra.mxu0 0.0
        %2679 = vmatpush.msra.mxu0 %v403
        %2680 = vmatpush.msra.mxu0 %v402
        %2681 = vmatpush.msra.mxu0 %v401
        %2682 = vmatpush.msra.mxu0 %v400
        %2683 = vmatmul.f32.gmra.mxu0 %v1769
        %v2684 = vpop.f32.mrf.mxu0
        %v2685 = vadd.f32 0.0, %v2684
        %2686 = vmatmul.f32.gmra.mxu0 %v1772
        %v2687 = vpop.f32.mrf.mxu0
        %v2688 = vadd.f32 0.0, %v2687
        %2689 = vdwg.mxu0
        %v2690 = vmax.f32 %v2685, 1e-06
        %v2691 = vmax.f32 %v2688, 1e-06
        %v2692 = vrsqrt.pop %v2690
        %v2693 = vmul.f32 %v2692, %v2690
        %v2694 = vmul.f32 %v2693, %v2692
        %v2695 = vmul.f32 0.5, %v2694
        %v2696 = vsub.f32 1.5, %v2695
        %v2697 = vmul.f32 %v2692, %v2696
        %vm2698 = vweird.f32 %v2690
        %vm2699 = vweird.f32 %v2692
        %vm2700 = vmor %vm2698, %vm2699
        %v2701 = vsel %vm2700, %v2692, %v2697
        %v2702 = vrsqrt.pop %v2691
        %v2703 = vmul.f32 %v2702, %v2691
        %v2704 = vmul.f32 %v2703, %v2702
        %v2705 = vmul.f32 0.5, %v2704
        %v2706 = vsub.f32 1.5, %v2705
        %v2707 = vmul.f32 %v2702, %v2706
        %vm2708 = vweird.f32 %v2691
        %vm2709 = vweird.f32 %v2702
        %vm2710 = vmor %vm2708, %vm2709
        %v2711 = vsel %vm2710, %v2702, %v2707
        %v2712 = vmul.f32 %v2662, %v2701
        %v2713 = vmul.f32 %v2665, %v2711
        %v2714 = vmul.f32 %v2634, %v2634
        %v2715 = vmul.f32 %v2635, %v2635
        %v2717 = vsel %vm424, %v2714, 0
        %v2720 = vsel %vm424, %v2715, 0
        %2722 = vmatpush.msra.mxu0 0.0
        %2723 = vmatpush.msra.mxu0 0.0
        %2724 = vmatpush.msra.mxu0 0.0
        %2725 = vmatpush.msra.mxu0 0.0
        %2726 = vmatpush.msra.mxu0 0.0
        %2727 = vmatpush.msra.mxu0 0.0
        %2728 = vmatpush.msra.mxu0 0.0
        %2729 = vmatpush.msra.mxu0 0.0
        %2730 = vmatpush.msra.mxu0 0.0
        %2731 = vmatpush.msra.mxu0 0.0
        %2732 = vmatpush.msra.mxu0 0.0
        %2733 = vmatpush.msra.mxu0 0.0
        %2734 = vmatpush.msra.mxu0 %v403
        %2735 = vmatpush.msra.mxu0 %v402
        %2736 = vmatpush.msra.mxu0 %v401
        %2737 = vmatpush.msra.mxu0 %v400
        %2738 = vmatmul.f32.gmra.mxu0 %v2717
        %v2739 = vpop.f32.mrf.mxu0
        %v2740 = vadd.f32 0.0, %v2739
        %2741 = vmatmul.f32.gmra.mxu0 %v2720
        %v2742 = vpop.f32.mrf.mxu0
        %v2743 = vadd.f32 0.0, %v2742
        %2744 = vdwg.mxu0
        %v2745 = vmax.f32 %v2740, 1e-06
        %v2746 = vmax.f32 %v2743, 1e-06
        %v2747 = vrsqrt.pop %v2745
        %v2748 = vmul.f32 %v2747, %v2745
        %v2749 = vmul.f32 %v2748, %v2747
        %v2750 = vmul.f32 0.5, %v2749
        %v2751 = vsub.f32 1.5, %v2750
        %v2752 = vmul.f32 %v2747, %v2751
        %vm2753 = vweird.f32 %v2745
        %vm2754 = vweird.f32 %v2747
        %vm2755 = vmor %vm2753, %vm2754
        %v2756 = vsel %vm2755, %v2747, %v2752
        %v2757 = vrsqrt.pop %v2746
        %v2758 = vmul.f32 %v2757, %v2746
        %v2759 = vmul.f32 %v2758, %v2757
        %v2760 = vmul.f32 0.5, %v2759
        %v2761 = vsub.f32 1.5, %v2760
        %v2762 = vmul.f32 %v2757, %v2761
        %vm2763 = vweird.f32 %v2746
        %vm2764 = vweird.f32 %v2757
        %vm2765 = vmor %vm2763, %vm2764
        %v2766 = vsel %vm2765, %v2757, %v2762
        %v2767 = vmul.f32 %v2712, %v2756
        %v2768 = vmul.f32 %v2713, %v2766
        %v2769 = vsel %vm1328, %v563, -inf
        %2770 = vmax.xlane.f32.xlu0 %v2769
        %v2771 = vpop.xlane.xlu0 %2770
        %v2772 = vsel %vm1328, %v564, -inf
        %2773 = vmax.xlane.f32.xlu0 %v2772
        %v2774 = vpop.xlane.xlu0 %2773
        %vm2775 = vcmp.ge.f32.partialorder %v563, %v2771
        %vm2776 = vcmp.ge.f32.partialorder %v564, %v2774
        %v2777 = vsel %vm2775, %v539, 6
        %v2778 = vsel %vm2776, %v539, 6
        %v2779 = vsel %vm1328, %v2777, 2147483647
        %v2780 = vand.u32 %v2779, 65535
        %v2781 = vshra.s32 %v2779, 16
        %v2782 = vcvt.s32.f32 %v2780
        %v2783 = vcvt.s32.f32 %v2781
        %2784 = vmin.xlane.f32.xlu0 %v2783
        %v2785 = vpop.xlane.xlu0 %2784
        %vm2786 = vcmp.eq.f32.partialorder %v2783, %v2785
        %v2787 = vsel %vm2786, %v2782, inf
        %2788 = vmin.xlane.f32.xlu0 %v2787
        %v2789 = vpop.xlane.xlu0 %2788
        %v2790 = vcvt.f32.s32 %v2789
        %v2791 = vcvt.f32.s32 %v2785
        %v2792 = vshll.u32 %v2791, 16
        %v2793 = vadd.s32 %v2792, %v2790
        %v2794 = vsel %vm1328, %v2778, 2147483647
        %v2795 = vand.u32 %v2794, 65535
        %v2796 = vshra.s32 %v2794, 16
        %v2797 = vcvt.s32.f32 %v2795
        %v2798 = vcvt.s32.f32 %v2796
        %2799 = vmin.xlane.f32.xlu0 %v2798
        %v2800 = vpop.xlane.xlu0 %2799
        %vm2801 = vcmp.eq.f32.partialorder %v2798, %v2800
        %v2802 = vsel %vm2801, %v2797, inf
        %2803 = vmin.xlane.f32.xlu0 %v2802
        %v2804 = vpop.xlane.xlu0 %2803
        %v2805 = vcvt.f32.s32 %v2804
        %v2806 = vcvt.f32.s32 %v2800
        %v2807 = vshll.u32 %v2806, 16
        %v2808 = vadd.s32 %v2807, %v2805
        %vm2809 = vcmp.eq.s32.totalorder %v539, %v2793
        %vm2810 = vcmp.eq.s32.totalorder %v539, %v2808
        %v2811 = vsel %vm2809, 1, 0
        %v2812 = vsel %vm2810, 1, 0
        %v2813 = vcvt.s32.f32 %v2811
        %v2814 = vcvt.s32.f32 %v2812
        %v2815 = vld [vmem:[%s4] sm:$0x3f]
        %v2817 = vsel %vm1328, %v2813, 0
        %v2820 = vsel %vm1328, %v2814, 0
        %v2823 = vsel %vm1380, %v2815, 0
        %2825 = vmatpush.msra.mxu0 0.0
        %2826 = vmatpush.msra.mxu0 0.0
        %2827 = vmatpush.msra.mxu0 0.0
        %2828 = vmatpush.msra.mxu0 0.0
        %2829 = vmatpush.msra.mxu0 0.0
        %2830 = vmatpush.msra.mxu0 0.0
        %2831 = vmatpush.msra.mxu0 0.0
        %2832 = vmatpush.msra.mxu0 0.0
        %2833 = vmatpush.msra.mxu0 0.0
        %2834 = vmatpush.msra.mxu0 0.0
        %2835 = vmatpush.msra.mxu0 0.0
        %2836 = vmatpush.msra.mxu0 0.0
        %2837 = vmatpush.msra.mxu0 0.0
        %2838 = vmatpush.msra.mxu0 0.0
        %2839 = vmatpush.msra.mxu0 0.0
        %2840 = vmatpush.msra.mxu0 %v2823
        %2841 = vmatmul.f32.gmra.mxu0 %v2817
        %v2842 = vpop.f32.mrf.mxu0
        %v2843 = vadd.f32 0.0, %v2842
        %2844 = vmatmul.f32.gmra.mxu0 %v2820
        %v2845 = vpop.f32.mrf.mxu0
        %v2846 = vadd.f32 0.0, %v2845
        %2847 = vdwg.mxu0
        %v2848 = vmul.f32 %v412, %v2843
        %v2849 = vmul.f32 %v413, %v2846
        %v2851 = vsel %vm424, %v2848, 0
        %v2854 = vsel %vm424, %v2849, 0
        %2856 = vmatpush.msra.mxu0 0.0
        %2857 = vmatpush.msra.mxu0 0.0
        %2858 = vmatpush.msra.mxu0 0.0
        %2859 = vmatpush.msra.mxu0 0.0
        %2860 = vmatpush.msra.mxu0 0.0
        %2861 = vmatpush.msra.mxu0 0.0
        %2862 = vmatpush.msra.mxu0 0.0
        %2863 = vmatpush.msra.mxu0 0.0
        %2864 = vmatpush.msra.mxu0 0.0
        %2865 = vmatpush.msra.mxu0 0.0
        %2866 = vmatpush.msra.mxu0 0.0
        %2867 = vmatpush.msra.mxu0 0.0
        %2868 = vmatpush.msra.mxu0 %v407
        %2869 = vmatpush.msra.mxu0 %v406
        %2870 = vmatpush.msra.mxu0 %v405
        %2871 = vmatpush.msra.mxu0 %v404
        %2872 = vmatmul.f32.gmra.mxu0 %v2851
        %v2873 = vpop.f32.mrf.mxu0
        %v2874 = vadd.f32 0.0, %v2873
        %2875 = vmatmul.f32.gmra.mxu0 %v2854
        %v2876 = vpop.f32.mrf.mxu0
        %v2877 = vadd.f32 0.0, %v2876
        %2878 = vdwg.mxu0
        %2879 = vmatpush.msra.mxu0 0.0
        %2880 = vmatpush.msra.mxu0 0.0
        %2881 = vmatpush.msra.mxu0 0.0
        %2882 = vmatpush.msra.mxu0 0.0
        %2883 = vmatpush.msra.mxu0 0.0
        %2884 = vmatpush.msra.mxu0 0.0
        %2885 = vmatpush.msra.mxu0 0.0
        %2886 = vmatpush.msra.mxu0 0.0
        %2887 = vmatpush.msra.mxu0 0.0
        %2888 = vmatpush.msra.mxu0 0.0
        %2889 = vmatpush.msra.mxu0 0.0
        %2890 = vmatpush.msra.mxu0 0.0
        %2891 = vmatpush.msra.mxu0 %v407
        %2892 = vmatpush.msra.mxu0 %v406
        %2893 = vmatpush.msra.mxu0 %v405
        %2894 = vmatpush.msra.mxu0 %v404
        %2895 = vmatmul.f32.gmra.mxu0 %v599
        %v2896 = vpop.f32.mrf.mxu0
        %v2897 = vadd.f32 0.0, %v2896
        %2898 = vmatmul.f32.gmra.mxu0 %v602
        %v2899 = vpop.f32.mrf.mxu0
        %v2900 = vadd.f32 0.0, %v2899
        %2901 = vdwg.mxu0
        %v2902 = vmax.f32 %v2897, 1e-06
        %v2903 = vmax.f32 %v2900, 1e-06
        %v2904 = vrsqrt.pop %v2902
        %v2905 = vmul.f32 %v2904, %v2902
        %v2906 = vmul.f32 %v2905, %v2904
        %v2907 = vmul.f32 0.5, %v2906
        %v2908 = vsub.f32 1.5, %v2907
        %v2909 = vmul.f32 %v2904, %v2908
        %vm2910 = vweird.f32 %v2902
        %vm2911 = vweird.f32 %v2904
        %vm2912 = vmor %vm2910, %vm2911
        %v2913 = vsel %vm2912, %v2904, %v2909
        %v2914 = vrsqrt.pop %v2903
        %v2915 = vmul.f32 %v2914, %v2903
        %v2916 = vmul.f32 %v2915, %v2914
        %v2917 = vmul.f32 0.5, %v2916
        %v2918 = vsub.f32 1.5, %v2917
        %v2919 = vmul.f32 %v2914, %v2918
        %vm2920 = vweird.f32 %v2903
        %vm2921 = vweird.f32 %v2914
        %vm2922 = vmor %vm2920, %vm2921
        %v2923 = vsel %vm2922, %v2914, %v2919
        %v2924 = vmul.f32 %v2874, %v2913
        %v2925 = vmul.f32 %v2877, %v2923
        %v2926 = vmul.f32 %v2843, %v2843
        %v2927 = vmul.f32 %v2846, %v2846
        %v2929 = vsel %vm424, %v2926, 0
        %v2932 = vsel %vm424, %v2927, 0
        %2934 = vmatpush.msra.mxu0 0.0
        %2935 = vmatpush.msra.mxu0 0.0
        %2936 = vmatpush.msra.mxu0 0.0
        %2937 = vmatpush.msra.mxu0 0.0
        %2938 = vmatpush.msra.mxu0 0.0
        %2939 = vmatpush.msra.mxu0 0.0
        %2940 = vmatpush.msra.mxu0 0.0
        %2941 = vmatpush.msra.mxu0 0.0
        %2942 = vmatpush.msra.mxu0 0.0
        %2943 = vmatpush.msra.mxu0 0.0
        %2944 = vmatpush.msra.mxu0 0.0
        %2945 = vmatpush.msra.mxu0 0.0
        %2946 = vmatpush.msra.mxu0 %v407
        %2947 = vmatpush.msra.mxu0 %v406
        %2948 = vmatpush.msra.mxu0 %v405
        %2949 = vmatpush.msra.mxu0 %v404
        %2950 = vmatmul.f32.gmra.mxu0 %v2929
        %v2951 = vpop.f32.mrf.mxu0
        %v2952 = vadd.f32 0.0, %v2951
        %2953 = vmatmul.f32.gmra.mxu0 %v2932
        %v2954 = vpop.f32.mrf.mxu0
        %v2955 = vadd.f32 0.0, %v2954
        %2956 = vdwg.mxu0
        %v2957 = vmax.f32 %v2952, 1e-06
        %v2958 = vmax.f32 %v2955, 1e-06
        %v2959 = vrsqrt.pop %v2957
        %v2960 = vmul.f32 %v2959, %v2957
        %v2961 = vmul.f32 %v2960, %v2959
        %v2962 = vmul.f32 0.5, %v2961
        %v2963 = vsub.f32 1.5, %v2962
        %v2964 = vmul.f32 %v2959, %v2963
        %vm2965 = vweird.f32 %v2957
        %vm2966 = vweird.f32 %v2959
        %vm2967 = vmor %vm2965, %vm2966
        %v2968 = vsel %vm2967, %v2959, %v2964
        %v2969 = vrsqrt.pop %v2958
        %v2970 = vmul.f32 %v2969, %v2958
        %v2971 = vmul.f32 %v2970, %v2969
        %v2972 = vmul.f32 0.5, %v2971
        %v2973 = vsub.f32 1.5, %v2972
        %v2974 = vmul.f32 %v2969, %v2973
        %vm2975 = vweird.f32 %v2958
        %vm2976 = vweird.f32 %v2969
        %vm2977 = vmor %vm2975, %vm2976
        %v2978 = vsel %vm2977, %v2969, %v2974
        %v2979 = vmul.f32 %v2924, %v2968
        %v2980 = vmul.f32 %v2925, %v2978
        %2981 = vmatpush.msra.mxu0 0.0
        %2982 = vmatpush.msra.mxu0 0.0
        %2983 = vmatpush.msra.mxu0 0.0
        %2984 = vmatpush.msra.mxu0 0.0
        %2985 = vmatpush.msra.mxu0 0.0
        %2986 = vmatpush.msra.mxu0 0.0
        %2987 = vmatpush.msra.mxu0 0.0
        %2988 = vmatpush.msra.mxu0 0.0
        %2989 = vmatpush.msra.mxu0 0.0
        %2990 = vmatpush.msra.mxu0 0.0
        %2991 = vmatpush.msra.mxu0 0.0
        %2992 = vmatpush.msra.mxu0 0.0
        %2993 = vmatpush.msra.mxu0 %v411
        %2994 = vmatpush.msra.mxu0 %v410
        %2995 = vmatpush.msra.mxu0 %v409
        %2996 = vmatpush.msra.mxu0 %v408
        %2997 = vmatmul.f32.gmra.mxu0 %v2639
        %v2998 = vpop.f32.mrf.mxu0
        %v2999 = vadd.f32 0.0, %v2998
        %3000 = vmatmul.f32.gmra.mxu0 %v2642
        %v3001 = vpop.f32.mrf.mxu0
        %v3002 = vadd.f32 0.0, %v3001
        %3003 = vdwg.mxu0
        %3004 = vmatpush.msra.mxu0 0.0
        %3005 = vmatpush.msra.mxu0 0.0
        %3006 = vmatpush.msra.mxu0 0.0
        %3007 = vmatpush.msra.mxu0 0.0
        %3008 = vmatpush.msra.mxu0 0.0
        %3009 = vmatpush.msra.mxu0 0.0
        %3010 = vmatpush.msra.mxu0 0.0
        %3011 = vmatpush.msra.mxu0 0.0
        %3012 = vmatpush.msra.mxu0 0.0
        %3013 = vmatpush.msra.mxu0 0.0
        %3014 = vmatpush.msra.mxu0 0.0
        %3015 = vmatpush.msra.mxu0 0.0
        %3016 = vmatpush.msra.mxu0 %v411
        %3017 = vmatpush.msra.mxu0 %v410
        %3018 = vmatpush.msra.mxu0 %v409
        %3019 = vmatpush.msra.mxu0 %v408
        %3020 = vmatmul.f32.gmra.mxu0 %v1769
        %v3021 = vpop.f32.mrf.mxu0
        %v3022 = vadd.f32 0.0, %v3021
        %3023 = vmatmul.f32.gmra.mxu0 %v1772
        %v3024 = vpop.f32.mrf.mxu0
        %v3025 = vadd.f32 0.0, %v3024
        %3026 = vdwg.mxu0
        %v3027 = vmax.f32 %v3022, 1e-06
        %v3028 = vmax.f32 %v3025, 1e-06
        %v3029 = vrsqrt.pop %v3027
        %v3030 = vmul.f32 %v3029, %v3027
        %v3031 = vmul.f32 %v3030, %v3029
        %v3032 = vmul.f32 0.5, %v3031
        %v3033 = vsub.f32 1.5, %v3032
        %v3034 = vmul.f32 %v3029, %v3033
        %vm3035 = vweird.f32 %v3027
        %vm3036 = vweird.f32 %v3029
        %vm3037 = vmor %vm3035, %vm3036
        %v3038 = vsel %vm3037, %v3029, %v3034
        %v3039 = vrsqrt.pop %v3028
        %v3040 = vmul.f32 %v3039, %v3028
        %v3041 = vmul.f32 %v3040, %v3039
        %v3042 = vmul.f32 0.5, %v3041
        %v3043 = vsub.f32 1.5, %v3042
        %v3044 = vmul.f32 %v3039, %v3043
        %vm3045 = vweird.f32 %v3028
        %vm3046 = vweird.f32 %v3039
        %vm3047 = vmor %vm3045, %vm3046
        %v3048 = vsel %vm3047, %v3039, %v3044
        %v3049 = vmul.f32 %v2999, %v3038
        %v3050 = vmul.f32 %v3002, %v3048
        %3051 = vmatpush.msra.mxu0 0.0
        %3052 = vmatpush.msra.mxu0 0.0
        %3053 = vmatpush.msra.mxu0 0.0
        %3054 = vmatpush.msra.mxu0 0.0
        %3055 = vmatpush.msra.mxu0 0.0
        %3056 = vmatpush.msra.mxu0 0.0
        %3057 = vmatpush.msra.mxu0 0.0
        %3058 = vmatpush.msra.mxu0 0.0
        %3059 = vmatpush.msra.mxu0 0.0
        %3060 = vmatpush.msra.mxu0 0.0
        %3061 = vmatpush.msra.mxu0 0.0
        %3062 = vmatpush.msra.mxu0 0.0
        %3063 = vmatpush.msra.mxu0 %v411
        %3064 = vmatpush.msra.mxu0 %v410
        %3065 = vmatpush.msra.mxu0 %v409
        %3066 = vmatpush.msra.mxu0 %v408
        %3067 = vmatmul.f32.gmra.mxu0 %v2717
        %v3068 = vpop.f32.mrf.mxu0
        %v3069 = vadd.f32 0.0, %v3068
        %3070 = vmatmul.f32.gmra.mxu0 %v2720
        %v3071 = vpop.f32.mrf.mxu0
        %v3072 = vadd.f32 0.0, %v3071
        %3073 = vdwg.mxu0
        %v3074 = vmax.f32 %v3069, 1e-06
        %v3075 = vmax.f32 %v3072, 1e-06
        %v3076 = vrsqrt.pop %v3074
        %v3077 = vmul.f32 %v3076, %v3074
        %v3078 = vmul.f32 %v3077, %v3076
        %v3079 = vmul.f32 0.5, %v3078
        %v3080 = vsub.f32 1.5, %v3079
        %v3081 = vmul.f32 %v3076, %v3080
        %vm3082 = vweird.f32 %v3074
        %vm3083 = vweird.f32 %v3076
        %vm3084 = vmor %vm3082, %vm3083
        %v3085 = vsel %vm3084, %v3076, %v3081
        %v3086 = vrsqrt.pop %v3075
        %v3087 = vmul.f32 %v3086, %v3075
        %v3088 = vmul.f32 %v3087, %v3086
        %v3089 = vmul.f32 0.5, %v3088
        %v3090 = vsub.f32 1.5, %v3089
        %v3091 = vmul.f32 %v3086, %v3090
        %vm3092 = vweird.f32 %v3075
        %vm3093 = vweird.f32 %v3086
        %vm3094 = vmor %vm3092, %vm3093
        %v3095 = vsel %vm3094, %v3086, %v3091
        %v3096 = vmul.f32 %v3049, %v3085
        %v3097 = vmul.f32 %v3050, %v3095
        %3100 = vrot.lane.b32.xlu0 %v1879, 8
        %v3101 = vpop.permute.xlu0 %3100
        %3102 = vrot.lane.b32.xlu0 %v1880, 8
        %v3103 = vpop.permute.xlu0 %3102
        %v3122 = vadd.s32 %v539, 4294967280
        %v3123 = vperm.slane %v1331, %v3122
        %v3124 = vperm.slane %v1334, %v3122
        %v3125 = vperm.slane %v1337, %v3122
        %v3126 = vperm.slane %v1340, %v3122
        %v3127 = vperm.slane %v1343, %v3122
        %v3128 = vperm.slane %v1346, %v3122
        %v3129 = vperm.slane %v1349, %v3122
        %v3130 = vperm.slane %v1352, %v3122
        %v3131 = vperm.slane %v1355, %v3122
        %v3132 = vperm.slane %v1358, %v3122
        %v3133 = vperm.slane %v1361, %v3122
        %v3134 = vperm.slane %v1364, %v3122
        %v3135 = vperm.slane %v1367, %v3122
        %v3136 = vperm.slane %v1370, %v3122
        %v3137 = vperm.slane %v1373, %v3122
        %v3138 = vperm.slane %v1376, %v3122
        %v3139 = vsel %vm542, %v3124, %v3123
        %v3140 = vsel %vm543, %v3125, %v3139
        %v3141 = vsel %vm545, %v3126, %v3140
        %v3142 = vsel %vm547, %v3127, %v3141
        %v3143 = vsel %vm549, %v3128, %v3142
        %v3144 = vsel %vm551, %v3129, %v3143
        %v3145 = vsel %vm553, %v3130, %v3144
        %v3146 = vsel %vm542, %v3132, %v3131
        %v3147 = vsel %vm543, %v3133, %v3146
        %v3148 = vsel %vm545, %v3134, %v3147
        %v3149 = vsel %vm547, %v3135, %v3148
        %v3150 = vsel %vm549, %v3136, %v3149
        %v3151 = vsel %vm551, %v3137, %v3150
        %v3152 = vsel %vm553, %v3138, %v3151
        %v3171 = vadd.s32 %v539, 4294967272
        %v3172 = vperm.slane %v2500, %v3171
        %v3173 = vperm.slane %v2503, %v3171
        %v3174 = vperm.slane %v2506, %v3171
        %v3175 = vperm.slane %v2509, %v3171
        %v3176 = vperm.slane %v2512, %v3171
        %v3177 = vperm.slane %v2515, %v3171
        %v3178 = vperm.slane %v2518, %v3171
        %v3179 = vperm.slane %v2521, %v3171
        %v3180 = vperm.slane %v2524, %v3171
        %v3181 = vperm.slane %v2527, %v3171
        %v3182 = vperm.slane %v2530, %v3171
        %v3183 = vperm.slane %v2533, %v3171
        %v3184 = vperm.slane %v2536, %v3171
        %v3185 = vperm.slane %v2539, %v3171
        %v3186 = vperm.slane %v2542, %v3171
        %v3187 = vperm.slane %v2545, %v3171
        %v3188 = vsel %vm542, %v3173, %v3172
        %v3189 = vsel %vm543, %v3174, %v3188
        %v3190 = vsel %vm545, %v3175, %v3189
        %v3191 = vsel %vm547, %v3176, %v3190
        %v3192 = vsel %vm549, %v3177, %v3191
        %v3193 = vsel %vm551, %v3178, %v3192
        %v3194 = vsel %vm553, %v3179, %v3193
        %v3195 = vsel %vm542, %v3181, %v3180
        %v3196 = vsel %vm543, %v3182, %v3195
        %v3197 = vsel %vm545, %v3183, %v3196
        %v3198 = vsel %vm547, %v3184, %v3197
        %v3199 = vsel %vm549, %v3185, %v3198
        %v3200 = vsel %vm551, %v3186, %v3199
        %v3201 = vsel %vm553, %v3187, %v3200
        %3206 = vrot.lane.b32.xlu0 %v1599, 32
        %v3207 = vpop.permute.xlu0 %3206
        %3208 = vrot.lane.b32.xlu0 %v1600, 32
        %v3209 = vpop.permute.xlu0 %3208
        %3214 = vrot.lane.b32.xlu0 %v2767, 40
        %v3215 = vpop.permute.xlu0 %3214
        %3216 = vrot.lane.b32.xlu0 %v2768, 40
        %v3217 = vpop.permute.xlu0 %3216
        %3222 = vrot.lane.b32.xlu0 %v2979, 48
        %v3223 = vpop.permute.xlu0 %3222
        %3224 = vrot.lane.b32.xlu0 %v2980, 48
        %v3225 = vpop.permute.xlu0 %3224
        %3230 = vrot.lane.b32.xlu0 %v3096, 56
        %v3231 = vpop.permute.xlu0 %3230
        %3232 = vrot.lane.b32.xlu0 %v3097, 56
        %v3233 = vpop.permute.xlu0 %3232
        %vm3236 = vcmask 64512
        %v3237 = vsel %vm3236, %v709, %v3101
        %v3238 = vsel %vm3236, %v710, %v3103
        %vm3239 = vcmask 130048
        %v3240 = vsel %vm3239, %v3237, %v3145
        %v3241 = vsel %vm3239, %v3238, %v3152
        %vm3242 = vcmask 195584
        %v3243 = vsel %vm3242, %v3240, %v3194
        %v3244 = vsel %vm3242, %v3241, %v3201
        %v3245 = vsel %vm424, %v3243, %v3207
        %v3246 = vsel %vm424, %v3244, %v3209
        %vm3247 = vcmask 326656
        %v3248 = vsel %vm3247, %v3245, %v3215
        %v3249 = vsel %vm3247, %v3246, %v3217
        %vm3250 = vcmask 392192
        %v3251 = vsel %vm3250, %v3248, %v3223
        %v3252 = vsel %vm3250, %v3249, %v3225
        %vm3253 = vcmask 457728
        %v3254 = vsel %vm3253, %v3251, %v3231
        %v3255 = vsel %vm3253, %v3252, %v3233
        %3257 = vrot.lane.b32.xlu0 %v3255, 64
        %v3258 = vpop.permute.xlu0 %3257
        %vm3260 = vcmask 523264
        %v3261 = vsel %vm3260, %v3254, %v3258
        %3262 = vst [vmem:[%s347] sm:$0xff] %v3261
        %s3263 = sand.u32 %s164, 1
        %s3264 = scalar_lea.sflag [#allocation5], %s3263
        %s3265 = sand.u32 %s164, 1
        %s3266 = smul.addr %s3265, 8
        %s3267 = scalar_lea.vmem [#allocation4], %s3266
        // Predicated region
        $region121: #{tpu_custom_call.1} parent=111 // pred_check
          %p3268 = pneg %p174
        $region122: #{tpu_custom_call.1} parent=111 // pred_check_branch
          %3270 = sbr.rel (%p3268) target = $region124
        $region123: #{tpu_custom_call.1} parent=111 // pred_region
          %3272 = vsyncadd %s3264, 0
          %s3273 = smul.addr %s20, 8
          %s3274 = scalar_lea.hbm %s6, %s3273
          %s3276 = sshll.u32 %s3267, 4
          %s3277 = int_to_ptr.vmem [resolvable:$true] %s3276
          %s3278 = sshll.u32 %s3274, 4
          %s3279 = int_to_ptr.hbm [resolvable:$true] %s3278
          %3281 = dma.vmem_to_hbm [thread:$0]  %s3277, 128, %s3279, %s3264
        $region124: #{tpu_custom_call.1} parent=111 // pred_fallthru
          _
      $region112: #{tpu_custom_call.1} parent=5 // pred_fallthru
        _
      %p3282 = scmp.le.s32.totalorder 2, %s15
      // Predicated region
      $region125: #{tpu_custom_call.1} parent=5 // pred_check
        %p3283 = pneg %p3282
      $region126: #{tpu_custom_call.1} parent=5 // pred_check_branch
        %3285 = sbr.rel (%p3283) target = $region128
      $region127: #{tpu_custom_call.1} parent=5 // pred_region
        %s3286 = ssub.s32 %s15, 2
        // Predicated region
        $region129: #{tpu_custom_call.1} parent=127 // pred_check
          %p3287 = pneg %p180
        $region130: #{tpu_custom_call.1} parent=127 // pred_check_branch
          %3289 = sbr.rel (%p3287) target = $region132
        $region131: #{tpu_custom_call.1} parent=127 // pred_region
          %s3290 = sand.u32 %s165, 1
          %s3291 = scalar_lea.sflag [#allocation5], %s3290
          %s3292 = sand.u32 %s165, 1
          %s3293 = smul.addr %s3292, 8
          %s3294 = scalar_lea.vmem [#allocation4], %s3293
          %3296 = dma.done %s3291, 128
        $region132: #{tpu_custom_call.1} parent=127 // pred_fallthru
          _
      $region128: #{tpu_custom_call.1} parent=5 // pred_fallthru
        _
    $region6: #{tpu_custom_call.1} parent=1 // loop_footer
      %s19 = sadd.s32 1, %s15
    $region7: #{tpu_custom_call.1} parent=1 // loop_footer_branch
      %14 = sbr.rel target = $region3
    $region8: #{tpu_custom_call.1} parent=1 // loop_exit
      _
    %3297 = vsyncpa [#allocation5], 1
    %s3298 = scalar_lea.sflag [#allocation5], 1
    %3299 = vsyncpa %s3298, 1

</llo_original>
